<compile_context>
chip_gen: v6e
topology: v6e:2x2x1
jax: 0.10.0
libtpu: 0.0.40
codegen_flags: <defaults>
</compile_context>

<pallas_src>
import functools

import jax
import jax.numpy as jnp
from jax.experimental import pallas as pl
from jax.experimental.pallas import tpu as pltpu


# ----------------------------------------------------------------------------
# Pallas kernel: fused 4x4/stride-2 conv (as 4 shifted matmuls) + LeakyReLU
# ----------------------------------------------------------------------------
def _conv4x4s2_lrelu_kernel(x_ref, w_ref, o_ref, *, negative_slope):
    # x_ref: (TB, OH+1, OW+1, 4*Cin)  bf16  (space-to-depth of the padded input)
    # w_ref: (4, 4*Cin, Cout)         bf16  (tap t = (dy2, dx2) in row-major order)
    # o_ref: (TB, OH, OW, Cout)       bf16
    TB, OH, OW, Cout = o_ref.shape
    C4 = x_ref.shape[-1]
    M = TB * OH * OW

    acc = jnp.zeros((M, Cout), jnp.float32)
    for t, (dy, dx) in enumerate(((0, 0), (0, 1), (1, 0), (1, 1))):
        # Shifted window of the space-to-depth input; bf16 matmul, f32 accumulate (MXU).
        xt = x_ref[:, dy:dy + OH, dx:dx + OW, :].reshape(M, C4)
        acc = acc + jnp.dot(xt, w_ref[t], preferred_element_type=jnp.float32)

    if negative_slope is not None:
        acc = jnp.where(acc >= 0, acc, jnp.float32(negative_slope) * acc)
    o_ref[...] = acc.reshape(TB, OH, OW, Cout).astype(o_ref.dtype)


# ----------------------------------------------------------------------------
# Pallas kernel: final 1-channel 4x4 valid conv == per-sample dot product (VPU/XLU)
# ----------------------------------------------------------------------------
def _head_kernel(x_ref, w_ref, o_ref):
    # x_ref: (B, K) bf16, w_ref: (1, K) bf16, o_ref: (B, 1) f32
    x = x_ref[...].astype(jnp.float32)
    w = w_ref[...].astype(jnp.float32)
    o_ref[...] = jnp.sum(x * w, axis=-1, keepdims=True)


# ----------------------------------------------------------------------------
# Plain-JAX glue: padding, space-to-depth, weight re-layout, spectral norm
# ----------------------------------------------------------------------------
def _space_to_depth2(x_pad):
    """(B, Hp, Wp, C) -> (B, Hp//2, Wp//2, 4*C), channel order (dy, dx, c)."""
    B, Hp, Wp, C = x_pad.shape
    assert Hp % 2 == 0 and Wp % 2 == 0
    x = x_pad.reshape(B, Hp // 2, 2, Wp // 2, 2, C)       # (b, r, dy, s, dx, c)
    x = jnp.transpose(x, (0, 1, 3, 2, 4, 5))              # (b, r, s, dy, dx, c)
    return x.reshape(B, Hp // 2, Wp // 2, 4 * C)


def _prep_weight_s2d(w_oihw):
    """(Cout, Cin, 4, 4) -> (4 taps=(dy2,dx2), 4*Cin in (dy,dx,c) order, Cout)."""
    Cout, Cin, KH, KW = w_oihw.shape
    assert KH == 4 and KW == 4
    w = w_oihw.reshape(Cout, Cin, 2, 2, 2, 2)             # (o, c, dy2, dy, dx2, dx)
    w = jnp.transpose(w, (2, 4, 3, 5, 1, 0))              # (dy2, dx2, dy, dx, c, o)
    return w.reshape(4, 4 * Cin, Cout)


def _pick_batch_tile(B, OH, OW, C4, Cout):
    """Largest divisor of B whose block fits comfortably in VMEM; keep >=2 grid steps."""
    per_img = ((OH + 1) * (OW + 1) * C4 * 2        # bf16 s2d input block
               + OH * OW * Cout * 2                # bf16 output block
               + OH * OW * Cout * 4)               # f32 accumulator
    budget = 6 * 1024 * 1024
    tb = 1
    for cand in range(1, B + 1):
        if B % cand != 0:
            continue
        if cand * per_img > budget:
            continue
        if B >= 2 and B // cand < 2:               # keep pipelining / 2-TC sharding
            continue
        tb = cand
        if cand * OH * OW >= 512:                  # enough rows to feed the MXU
            break
    return tb


def spectral_normalize(w_oihw, key, n_iters=10, eps=1e-12):
    """Divide the PyTorch-layout conv weight (Cout, Cin, KH, KW) by its spectral norm."""
    cout = w_oihw.shape[0]
    w_mat = w_oihw.reshape(cout, -1)
    u = jax.random.normal(key, (cout,), dtype=jnp.float32)
    u = u / (jnp.linalg.norm(u) + eps)
    v = jnp.zeros((w_mat.shape[1],), dtype=jnp.float32)
    for _ in range(n_iters):
        v = w_mat.T @ u
        v = v / (jnp.linalg.norm(v) + eps)
        u = w_mat @ v
        u = u / (jnp.linalg.norm(u) + eps)
    sigma = u @ (w_mat @ v)
    return w_oihw / sigma


# ----------------------------------------------------------------------------
# Layer wrappers
# ----------------------------------------------------------------------------
def conv4x4_s2_lrelu(x_nhwc, w_oihw, negative_slope=0.2):
    """Conv2d(Cin, Cout, 4, stride=2, pad=1, bias=False) + LeakyReLU, NHWC, bf16 in/out."""
    B, H, W, C = x_nhwc.shape
    Cout, Cin, KH, KW = w_oihw.shape
    assert Cin == C and KH == 4 and KW == 4 and H % 2 == 0 and W % 2 == 0
    OH, OW = H // 2, W // 2
    C4 = 4 * C

    x_pad = jnp.pad(x_nhwc.astype(jnp.bfloat16), ((0, 0), (1, 1), (1, 1), (0, 0)))
    xs = _space_to_depth2(x_pad)                               # (B, OH+1, OW+1, 4C) bf16
    w2 = _prep_weight_s2d(w_oihw).astype(jnp.bfloat16)          # (4, 4C, Cout) bf16

    TB = _pick_batch_tile(B, OH, OW, C4, Cout)
    grid = (B // TB,)
    Hs, Ws = OH + 1, OW + 1

    flops = int(2 * B * OH * OW * (16 * C) * Cout)
    bytes_accessed = int(xs.size * 2 + w2.size * 2 + B * OH * OW * Cout * 2)

    kernel = functools.partial(_conv4x4s2_lrelu_kernel, negative_slope=negative_slope)
    out = pl.pallas_call(
        kernel,
        out_shape=jax.ShapeDtypeStruct((B, OH, OW, Cout), jnp.bfloat16),
        grid_spec=pltpu.PrefetchScalarGridSpec(
            num_scalar_prefetch=0,
            grid=grid,
            in_specs=[
                pl.BlockSpec((TB, Hs, Ws, C4), lambda b: (b, 0, 0, 0)),
                pl.BlockSpec((4, C4, Cout), lambda b: (0, 0, 0)),
            ],
            out_specs=pl.BlockSpec((TB, OH, OW, Cout), lambda b: (b, 0, 0, 0)),
        ),
        compiler_params=pltpu.CompilerParams(dimension_semantics=("parallel",)),
        cost_estimate=pl.CostEstimate(flops=flops, transcendentals=0,
                                      bytes_accessed=bytes_accessed),
    )(xs, w2)
    return out


def last_adv_head(x_nhwc, w_oihw):
    """Conv2d(Cin, 1, 4, stride=1, pad=0) on a 4x4 feature map == per-sample dot product."""
    B, H, W, C = x_nhwc.shape
    assert H == 4 and W == 4 and w_oihw.shape == (1, C, 4, 4)
    K = H * W * C
    xf = x_nhwc.astype(jnp.bfloat16).reshape(B, K)                     # (kh, kw, c) order
    wf = jnp.transpose(w_oihw[0], (1, 2, 0)).reshape(1, K).astype(jnp.bfloat16)
    out = pl.pallas_call(
        _head_kernel,
        out_shape=jax.ShapeDtypeStruct((B, 1), jnp.float32),
        grid_spec=pltpu.PrefetchScalarGridSpec(
            num_scalar_prefetch=0,
            grid=(1,),
            in_specs=[
                pl.BlockSpec((B, K), lambda i: (0, 0)),
                pl.BlockSpec((1, K), lambda i: (0, 0)),
            ],
            out_specs=pl.BlockSpec((B, 1), lambda i: (0, 0)),
        ),
    )(xf, wf)
    return out                                                          # (B, 1) f32


# ----------------------------------------------------------------------------
# Discriminator
# ----------------------------------------------------------------------------
def init_discriminator_params(key, image_size=64, conv_dim=64, channels=1):
    shapes = []
    curr = conv_dim
    shapes.append((conv_dim, channels, 4, 4))          # l1
    shapes.append((curr * 2, curr, 4, 4)); curr *= 2   # l2
    shapes.append((curr * 2, curr, 4, 4)); curr *= 2   # l3
    shapes.append((curr * 2, curr, 4, 4)); curr *= 2   # l4
    shapes.append((1, curr, 4, 4))                     # last_adv
    params = []
    for i, shp in enumerate(shapes):
        kw, ku = jax.random.split(jax.random.fold_in(key, i))
        w = 0.05 * jax.random.normal(kw, shp, dtype=jnp.float32)
        w_sn = spectral_normalize(w, ku)               # spectral_norm reparametrization
        params.append(w_sn)
    return params


def discriminator_forward(params, x_nchw):
    """x_nchw: (B, channels, H, W) float32. Returns validity.squeeze() like PyTorch."""
    x = jnp.transpose(x_nchw, (0, 2, 3, 1)).astype(jnp.bfloat16)   # NCHW -> NHWC, bf16
    w1, w2, w3, w4, w5 = params
    out = conv4x4_s2_lrelu(x,   w1, negative_slope=0.2)   # l1
    out = conv4x4_s2_lrelu(out, w2, negative_slope=0.2)   # l2
    out = conv4x4_s2_lrelu(out, w3, negative_slope=0.2)   # l3
    out = conv4x4_s2_lrelu(out, w4, negative_slope=0.2)   # l4
    val = last_adv_head(out, w5)                          # (B, 1) f32
    # matches `validity.squeeze()` on the (B,1,1,1) conv output
    return jnp.squeeze(val)


if __name__ == "__main__":
    # image_size=64 is required so the final 4x4 valid conv sees a 4x4 feature map;
    # keep conv_dim / channels / batch small for the smoke test.
    batch, channels, image_size, conv_dim = 2, 1, 64, 8

    key = jax.random.PRNGKey(0)
    kx, kp = jax.random.split(key)
    x = jax.random.normal(kx, (batch, channels, image_size, image_size), dtype=jnp.float32)
    params = init_discriminator_params(kp, image_size=image_size,
                                       conv_dim=conv_dim, channels=channels)

    fwd = jax.jit(discriminator_forward)
    validity = fwd(params, x)
    jax.block_until_ready(validity)
    assert validity.shape == (batch,), validity.shape
    print("KERNEL_OK")
</pallas_src>

<mosaic_0001>
module attributes {stable_mosaic.version = 11 : i64} {
  func.func @_conv4x4s2_lrelu_kernel(%arg0: i32, %arg1: memref<1x33x33x4xbf16, #tpu.memory_space<vmem>>, %arg2: memref<4x4x8xbf16, #tpu.memory_space<vmem>>, %arg3: memref<1x32x32x8xbf16, #tpu.memory_space<vmem>>) attributes {dimension_semantics = [#tpu.dimension_semantics<parallel>], iteration_bounds = array<i64: 2>, scalar_prefetch = 0 : i64, scratch_operands = 0 : i64, tpu.core_type = #tpu.core_type<tc>, window_params = [{transform_indices = @transform_0, window_bounds = array<i64: 1, 33, 33, 4>}, {pipeline_mode = #tpu.pipeline_mode<synchronous>, transform_indices = @transform_1, window_bounds = array<i64: 4, 4, 8>}, {transform_indices = @transform_2, window_bounds = array<i64: 1, 32, 32, 8>}]} {
    %cst = arith.constant 0.000000e+00 : f32
    %0 = vector.broadcast %cst : f32 to vector<1024x8xf32>
    %c0 = arith.constant 0 : index
    %c0_0 = arith.constant 0 : index
    %c0_1 = arith.constant 0 : index
    %c0_2 = arith.constant 0 : index
    %1 = vector.load %arg1[%c0, %c0_0, %c0_1, %c0_2] : memref<1x33x33x4xbf16, #tpu.memory_space<vmem>>, vector<1x32x32x4xbf16>
    %2 = vector.shape_cast %1 : vector<1x32x32x4xbf16> to vector<1024x4xbf16>
    %c0_3 = arith.constant 0 : index
    %c0_4 = arith.constant 0 : index
    %c0_5 = arith.constant 0 : index
    %3 = vector.load %arg2[%c0_3, %c0_4, %c0_5] : memref<4x4x8xbf16, #tpu.memory_space<vmem>>, vector<1x4x8xbf16>
    %4 = vector.shape_cast %3 : vector<1x4x8xbf16> to vector<4x8xbf16>
    %cst_6 = arith.constant dense<0.000000e+00> : vector<1024x8xf32>
    %5 = tpu.matmul %2, %4, %cst_6 {dimension_numbers = #tpu.dot_dimension_numbers<[1], [0], [0], [1], [0, 0, 1, 1], [], []>} : vector<1024x4xbf16>, vector<4x8xbf16>, vector<1024x8xf32> -> vector<1024x8xf32>
    %6 = arith.addf %0, %5 : vector<1024x8xf32>
    %c0_7 = arith.constant 0 : index
    %c0_8 = arith.constant 0 : index
    %c1 = arith.constant 1 : index
    %c0_9 = arith.constant 0 : index
    %7 = vector.load %arg1[%c0_7, %c0_8, %c1, %c0_9] : memref<1x33x33x4xbf16, #tpu.memory_space<vmem>>, vector<1x32x32x4xbf16>
    %8 = vector.shape_cast %7 : vector<1x32x32x4xbf16> to vector<1024x4xbf16>
    %c1_10 = arith.constant 1 : index
    %c0_11 = arith.constant 0 : index
    %c0_12 = arith.constant 0 : index
    %9 = vector.load %arg2[%c1_10, %c0_11, %c0_12] : memref<4x4x8xbf16, #tpu.memory_space<vmem>>, vector<1x4x8xbf16>
    %10 = vector.shape_cast %9 : vector<1x4x8xbf16> to vector<4x8xbf16>
    %cst_13 = arith.constant dense<0.000000e+00> : vector<1024x8xf32>
    %11 = tpu.matmul %8, %10, %cst_13 {dimension_numbers = #tpu.dot_dimension_numbers<[1], [0], [0], [1], [0, 0, 1, 1], [], []>} : vector<1024x4xbf16>, vector<4x8xbf16>, vector<1024x8xf32> -> vector<1024x8xf32>
    %12 = arith.addf %6, %11 : vector<1024x8xf32>
    %c0_14 = arith.constant 0 : index
    %c1_15 = arith.constant 1 : index
    %c0_16 = arith.constant 0 : index
    %c0_17 = arith.constant 0 : index
    %13 = vector.load %arg1[%c0_14, %c1_15, %c0_16, %c0_17] : memref<1x33x33x4xbf16, #tpu.memory_space<vmem>>, vector<1x32x32x4xbf16>
    %14 = vector.shape_cast %13 : vector<1x32x32x4xbf16> to vector<1024x4xbf16>
    %c2 = arith.constant 2 : index
    %c0_18 = arith.constant 0 : index
    %c0_19 = arith.constant 0 : index
    %15 = vector.load %arg2[%c2, %c0_18, %c0_19] : memref<4x4x8xbf16, #tpu.memory_space<vmem>>, vector<1x4x8xbf16>
    %16 = vector.shape_cast %15 : vector<1x4x8xbf16> to vector<4x8xbf16>
    %cst_20 = arith.constant dense<0.000000e+00> : vector<1024x8xf32>
    %17 = tpu.matmul %14, %16, %cst_20 {dimension_numbers = #tpu.dot_dimension_numbers<[1], [0], [0], [1], [0, 0, 1, 1], [], []>} : vector<1024x4xbf16>, vector<4x8xbf16>, vector<1024x8xf32> -> vector<1024x8xf32>
    %18 = arith.addf %12, %17 : vector<1024x8xf32>
    %c0_21 = arith.constant 0 : index
    %c1_22 = arith.constant 1 : index
    %c1_23 = arith.constant 1 : index
    %c0_24 = arith.constant 0 : index
    %19 = vector.load %arg1[%c0_21, %c1_22, %c1_23, %c0_24] : memref<1x33x33x4xbf16, #tpu.memory_space<vmem>>, vector<1x32x32x4xbf16>
    %20 = vector.shape_cast %19 : vector<1x32x32x4xbf16> to vector<1024x4xbf16>
    %c3 = arith.constant 3 : index
    %c0_25 = arith.constant 0 : index
    %c0_26 = arith.constant 0 : index
    %21 = vector.load %arg2[%c3, %c0_25, %c0_26] : memref<4x4x8xbf16, #tpu.memory_space<vmem>>, vector<1x4x8xbf16>
    %22 = vector.shape_cast %21 : vector<1x4x8xbf16> to vector<4x8xbf16>
    %cst_27 = arith.constant dense<0.000000e+00> : vector<1024x8xf32>
    %23 = tpu.matmul %20, %22, %cst_27 {dimension_numbers = #tpu.dot_dimension_numbers<[1], [0], [0], [1], [0, 0, 1, 1], [], []>} : vector<1024x4xbf16>, vector<4x8xbf16>, vector<1024x8xf32> -> vector<1024x8xf32>
    %24 = arith.addf %18, %23 : vector<1024x8xf32>
    %cst_28 = arith.constant 0.000000e+00 : f32
    %25 = vector.broadcast %cst_28 : f32 to vector<1024x8xf32>
    %26 = arith.cmpf oge, %24, %25 : vector<1024x8xf32>
    %cst_29 = arith.constant 2.000000e-01 : f32
    %27 = vector.broadcast %cst_29 : f32 to vector<1024x8xf32>
    %28 = arith.mulf %27, %24 : vector<1024x8xf32>
    %29 = arith.select %26, %24, %28 : vector<1024x8xi1>, vector<1024x8xf32>
    %30 = vector.shape_cast %29 : vector<1024x8xf32> to vector<1x32x32x8xf32>
    %31 = arith.truncf %30 : vector<1x32x32x8xf32> to vector<1x32x32x8xbf16>
    %c0_30 = arith.constant 0 : index
    %c0_31 = arith.constant 0 : index
    %c0_32 = arith.constant 0 : index
    %c0_33 = arith.constant 0 : index
    %32 = vector.load %arg3[%c0_30, %c0_31, %c0_32, %c0_33] : memref<1x32x32x8xbf16, #tpu.memory_space<vmem>>, vector<1x32x32x8xbf16>
    tpu.vector_store %arg3[%c0_30, %c0_31, %c0_32, %c0_33], %31 {strides = array<i32>} : memref<1x32x32x8xbf16, #tpu.memory_space<vmem>>, vector<1x32x32x8xbf16>,
    return
  }
  func.func @transform_0(%arg0: i32) -> (i32, i32, i32, i32) {
    %c0_i32 = arith.constant 0 : i32
    %c0_i32_0 = arith.constant 0 : i32
    %c0_i32_1 = arith.constant 0 : i32
    %c0_i32_2 = arith.constant 0 : i32
    return %arg0, %c0_i32, %c0_i32_0, %c0_i32_1 : i32, i32, i32, i32
  }
  func.func @transform_1(%arg0: i32) -> (i32, i32, i32) {
    %c0_i32 = arith.constant 0 : i32
    %c0_i32_0 = arith.constant 0 : i32
    %c0_i32_1 = arith.constant 0 : i32
    %c0_i32_2 = arith.constant 0 : i32
    return %c0_i32, %c0_i32_0, %c0_i32_1 : i32, i32, i32
  }
  func.func @transform_2(%arg0: i32) -> (i32, i32, i32, i32) {
    %c0_i32 = arith.constant 0 : i32
    %c0_i32_0 = arith.constant 0 : i32
    %c0_i32_1 = arith.constant 0 : i32
    %c0_i32_2 = arith.constant 0 : i32
    return %arg0, %c0_i32, %c0_i32_0, %c0_i32_1 : i32, i32, i32, i32
  }
}

module attributes {stable_mosaic.version = 11 : i64} {
  func.func @_conv4x4s2_lrelu_kernel(%arg0: i32, %arg1: memref<1x17x17x32xbf16, #tpu.memory_space<vmem>>, %arg2: memref<4x32x16xbf16, #tpu.memory_space<vmem>>, %arg3: memref<1x16x16x16xbf16, #tpu.memory_space<vmem>>) attributes {dimension_semantics = [#tpu.dimension_semantics<parallel>], iteration_bounds = array<i64: 2>, scalar_prefetch = 0 : i64, scratch_operands = 0 : i64, tpu.core_type = #tpu.core_type<tc>, window_params = [{transform_indices = @transform_0, window_bounds = array<i64: 1, 17, 17, 32>}, {pipeline_mode = #tpu.pipeline_mode<synchronous>, transform_indices = @transform_1, window_bounds = array<i64: 4, 32, 16>}, {transform_indices = @transform_2, window_bounds = array<i64: 1, 16, 16, 16>}]} {
    %cst = arith.constant 0.000000e+00 : f32
    %0 = vector.broadcast %cst : f32 to vector<256x16xf32>
    %c0 = arith.constant 0 : index
    %c0_0 = arith.constant 0 : index
    %c0_1 = arith.constant 0 : index
    %c0_2 = arith.constant 0 : index
    %1 = vector.load %arg1[%c0, %c0_0, %c0_1, %c0_2] : memref<1x17x17x32xbf16, #tpu.memory_space<vmem>>, vector<1x16x16x32xbf16>
    %2 = vector.shape_cast %1 : vector<1x16x16x32xbf16> to vector<256x32xbf16>
    %c0_3 = arith.constant 0 : index
    %c0_4 = arith.constant 0 : index
    %c0_5 = arith.constant 0 : index
    %3 = vector.load %arg2[%c0_3, %c0_4, %c0_5] : memref<4x32x16xbf16, #tpu.memory_space<vmem>>, vector<1x32x16xbf16>
    %4 = vector.shape_cast %3 : vector<1x32x16xbf16> to vector<32x16xbf16>
    %cst_6 = arith.constant dense<0.000000e+00> : vector<256x16xf32>
    %5 = tpu.matmul %2, %4, %cst_6 {dimension_numbers = #tpu.dot_dimension_numbers<[1], [0], [0], [1], [0, 0, 1, 1], [], []>} : vector<256x32xbf16>, vector<32x16xbf16>, vector<256x16xf32> -> vector<256x16xf32>
    %6 = arith.addf %0, %5 : vector<256x16xf32>
    %c0_7 = arith.constant 0 : index
    %c0_8 = arith.constant 0 : index
    %c1 = arith.constant 1 : index
    %c0_9 = arith.constant 0 : index
    %7 = vector.load %arg1[%c0_7, %c0_8, %c1, %c0_9] : memref<1x17x17x32xbf16, #tpu.memory_space<vmem>>, vector<1x16x16x32xbf16>
    %8 = vector.shape_cast %7 : vector<1x16x16x32xbf16> to vector<256x32xbf16>
    %c1_10 = arith.constant 1 : index
    %c0_11 = arith.constant 0 : index
    %c0_12 = arith.constant 0 : index
    %9 = vector.load %arg2[%c1_10, %c0_11, %c0_12] : memref<4x32x16xbf16, #tpu.memory_space<vmem>>, vector<1x32x16xbf16>
    %10 = vector.shape_cast %9 : vector<1x32x16xbf16> to vector<32x16xbf16>
    %cst_13 = arith.constant dense<0.000000e+00> : vector<256x16xf32>
    %11 = tpu.matmul %8, %10, %cst_13 {dimension_numbers = #tpu.dot_dimension_numbers<[1], [0], [0], [1], [0, 0, 1, 1], [], []>} : vector<256x32xbf16>, vector<32x16xbf16>, vector<256x16xf32> -> vector<256x16xf32>
    %12 = arith.addf %6, %11 : vector<256x16xf32>
    %c0_14 = arith.constant 0 : index
    %c1_15 = arith.constant 1 : index
    %c0_16 = arith.constant 0 : index
    %c0_17 = arith.constant 0 : index
    %13 = vector.load %arg1[%c0_14, %c1_15, %c0_16, %c0_17] : memref<1x17x17x32xbf16, #tpu.memory_space<vmem>>, vector<1x16x16x32xbf16>
    %14 = vector.shape_cast %13 : vector<1x16x16x32xbf16> to vector<256x32xbf16>
    %c2 = arith.constant 2 : index
    %c0_18 = arith.constant 0 : index
    %c0_19 = arith.constant 0 : index
    %15 = vector.load %arg2[%c2, %c0_18, %c0_19] : memref<4x32x16xbf16, #tpu.memory_space<vmem>>, vector<1x32x16xbf16>
    %16 = vector.shape_cast %15 : vector<1x32x16xbf16> to vector<32x16xbf16>
    %cst_20 = arith.constant dense<0.000000e+00> : vector<256x16xf32>
    %17 = tpu.matmul %14, %16, %cst_20 {dimension_numbers = #tpu.dot_dimension_numbers<[1], [0], [0], [1], [0, 0, 1, 1], [], []>} : vector<256x32xbf16>, vector<32x16xbf16>, vector<256x16xf32> -> vector<256x16xf32>
    %18 = arith.addf %12, %17 : vector<256x16xf32>
    %c0_21 = arith.constant 0 : index
    %c1_22 = arith.constant 1 : index
    %c1_23 = arith.constant 1 : index
    %c0_24 = arith.constant 0 : index
    %19 = vector.load %arg1[%c0_21, %c1_22, %c1_23, %c0_24] : memref<1x17x17x32xbf16, #tpu.memory_space<vmem>>, vector<1x16x16x32xbf16>
    %20 = vector.shape_cast %19 : vector<1x16x16x32xbf16> to vector<256x32xbf16>
    %c3 = arith.constant 3 : index
    %c0_25 = arith.constant 0 : index
    %c0_26 = arith.constant 0 : index
    %21 = vector.load %arg2[%c3, %c0_25, %c0_26] : memref<4x32x16xbf16, #tpu.memory_space<vmem>>, vector<1x32x16xbf16>
    %22 = vector.shape_cast %21 : vector<1x32x16xbf16> to vector<32x16xbf16>
    %cst_27 = arith.constant dense<0.000000e+00> : vector<256x16xf32>
    %23 = tpu.matmul %20, %22, %cst_27 {dimension_numbers = #tpu.dot_dimension_numbers<[1], [0], [0], [1], [0, 0, 1, 1], [], []>} : vector<256x32xbf16>, vector<32x16xbf16>, vector<256x16xf32> -> vector<256x16xf32>
    %24 = arith.addf %18, %23 : vector<256x16xf32>
    %cst_28 = arith.constant 0.000000e+00 : f32
    %25 = vector.broadcast %cst_28 : f32 to vector<256x16xf32>
    %26 = arith.cmpf oge, %24, %25 : vector<256x16xf32>
    %cst_29 = arith.constant 2.000000e-01 : f32
    %27 = vector.broadcast %cst_29 : f32 to vector<256x16xf32>
    %28 = arith.mulf %27, %24 : vector<256x16xf32>
    %29 = arith.select %26, %24, %28 : vector<256x16xi1>, vector<256x16xf32>
    %30 = vector.shape_cast %29 : vector<256x16xf32> to vector<1x16x16x16xf32>
    %31 = arith.truncf %30 : vector<1x16x16x16xf32> to vector<1x16x16x16xbf16>
    %c0_30 = arith.constant 0 : index
    %c0_31 = arith.constant 0 : index
    %c0_32 = arith.constant 0 : index
    %c0_33 = arith.constant 0 : index
    %32 = vector.load %arg3[%c0_30, %c0_31, %c0_32, %c0_33] : memref<1x16x16x16xbf16, #tpu.memory_space<vmem>>, vector<1x16x16x16xbf16>
    tpu.vector_store %arg3[%c0_30, %c0_31, %c0_32, %c0_33], %31 {strides = array<i32>} : memref<1x16x16x16xbf16, #tpu.memory_space<vmem>>, vector<1x16x16x16xbf16>,
    return
  }
  func.func @transform_0(%arg0: i32) -> (i32, i32, i32, i32) {
    %c0_i32 = arith.constant 0 : i32
    %c0_i32_0 = arith.constant 0 : i32
    %c0_i32_1 = arith.constant 0 : i32
    %c0_i32_2 = arith.constant 0 : i32
    return %arg0, %c0_i32, %c0_i32_0, %c0_i32_1 : i32, i32, i32, i32
  }
  func.func @transform_1(%arg0: i32) -> (i32, i32, i32) {
    %c0_i32 = arith.constant 0 : i32
    %c0_i32_0 = arith.constant 0 : i32
    %c0_i32_1 = arith.constant 0 : i32
    %c0_i32_2 = arith.constant 0 : i32
    return %c0_i32, %c0_i32_0, %c0_i32_1 : i32, i32, i32
  }
  func.func @transform_2(%arg0: i32) -> (i32, i32, i32, i32) {
    %c0_i32 = arith.constant 0 : i32
    %c0_i32_0 = arith.constant 0 : i32
    %c0_i32_1 = arith.constant 0 : i32
    %c0_i32_2 = arith.constant 0 : i32
    return %arg0, %c0_i32, %c0_i32_0, %c0_i32_1 : i32, i32, i32, i32
  }
}

module attributes {stable_mosaic.version = 11 : i64} {
  func.func @_conv4x4s2_lrelu_kernel(%arg0: i32, %arg1: memref<1x9x9x64xbf16, #tpu.memory_space<vmem>>, %arg2: memref<4x64x32xbf16, #tpu.memory_space<vmem>>, %arg3: memref<1x8x8x32xbf16, #tpu.memory_space<vmem>>) attributes {dimension_semantics = [#tpu.dimension_semantics<parallel>], iteration_bounds = array<i64: 2>, scalar_prefetch = 0 : i64, scratch_operands = 0 : i64, tpu.core_type = #tpu.core_type<tc>, window_params = [{transform_indices = @transform_0, window_bounds = array<i64: 1, 9, 9, 64>}, {pipeline_mode = #tpu.pipeline_mode<synchronous>, transform_indices = @transform_1, window_bounds = array<i64: 4, 64, 32>}, {transform_indices = @transform_2, window_bounds = array<i64: 1, 8, 8, 32>}]} {
    %cst = arith.constant 0.000000e+00 : f32
    %0 = vector.broadcast %cst : f32 to vector<64x32xf32>
    %c0 = arith.constant 0 : index
    %c0_0 = arith.constant 0 : index
    %c0_1 = arith.constant 0 : index
    %c0_2 = arith.constant 0 : index
    %1 = vector.load %arg1[%c0, %c0_0, %c0_1, %c0_2] : memref<1x9x9x64xbf16, #tpu.memory_space<vmem>>, vector<1x8x8x64xbf16>
    %2 = vector.shape_cast %1 : vector<1x8x8x64xbf16> to vector<64x64xbf16>
    %c0_3 = arith.constant 0 : index
    %c0_4 = arith.constant 0 : index
    %c0_5 = arith.constant 0 : index
    %3 = vector.load %arg2[%c0_3, %c0_4, %c0_5] : memref<4x64x32xbf16, #tpu.memory_space<vmem>>, vector<1x64x32xbf16>
    %4 = vector.shape_cast %3 : vector<1x64x32xbf16> to vector<64x32xbf16>
    %cst_6 = arith.constant dense<0.000000e+00> : vector<64x32xf32>
    %5 = tpu.matmul %2, %4, %cst_6 {dimension_numbers = #tpu.dot_dimension_numbers<[1], [0], [0], [1], [0, 0, 1, 1], [], []>} : vector<64x64xbf16>, vector<64x32xbf16>, vector<64x32xf32> -> vector<64x32xf32>
    %6 = arith.addf %0, %5 : vector<64x32xf32>
    %c0_7 = arith.constant 0 : index
    %c0_8 = arith.constant 0 : index
    %c1 = arith.constant 1 : index
    %c0_9 = arith.constant 0 : index
    %7 = vector.load %arg1[%c0_7, %c0_8, %c1, %c0_9] : memref<1x9x9x64xbf16, #tpu.memory_space<vmem>>, vector<1x8x8x64xbf16>
    %8 = vector.shape_cast %7 : vector<1x8x8x64xbf16> to vector<64x64xbf16>
    %c1_10 = arith.constant 1 : index
    %c0_11 = arith.constant 0 : index
    %c0_12 = arith.constant 0 : index
    %9 = vector.load %arg2[%c1_10, %c0_11, %c0_12] : memref<4x64x32xbf16, #tpu.memory_space<vmem>>, vector<1x64x32xbf16>
    %10 = vector.shape_cast %9 : vector<1x64x32xbf16> to vector<64x32xbf16>
    %cst_13 = arith.constant dense<0.000000e+00> : vector<64x32xf32>
    %11 = tpu.matmul %8, %10, %cst_13 {dimension_numbers = #tpu.dot_dimension_numbers<[1], [0], [0], [1], [0, 0, 1, 1], [], []>} : vector<64x64xbf16>, vector<64x32xbf16>, vector<64x32xf32> -> vector<64x32xf32>
    %12 = arith.addf %6, %11 : vector<64x32xf32>
    %c0_14 = arith.constant 0 : index
    %c1_15 = arith.constant 1 : index
    %c0_16 = arith.constant 0 : index
    %c0_17 = arith.constant 0 : index
    %13 = vector.load %arg1[%c0_14, %c1_15, %c0_16, %c0_17] : memref<1x9x9x64xbf16, #tpu.memory_space<vmem>>, vector<1x8x8x64xbf16>
    %14 = vector.shape_cast %13 : vector<1x8x8x64xbf16> to vector<64x64xbf16>
    %c2 = arith.constant 2 : index
    %c0_18 = arith.constant 0 : index
    %c0_19 = arith.constant 0 : index
    %15 = vector.load %arg2[%c2, %c0_18, %c0_19] : memref<4x64x32xbf16, #tpu.memory_space<vmem>>, vector<1x64x32xbf16>
    %16 = vector.shape_cast %15 : vector<1x64x32xbf16> to vector<64x32xbf16>
    %cst_20 = arith.constant dense<0.000000e+00> : vector<64x32xf32>
    %17 = tpu.matmul %14, %16, %cst_20 {dimension_numbers = #tpu.dot_dimension_numbers<[1], [0], [0], [1], [0, 0, 1, 1], [], []>} : vector<64x64xbf16>, vector<64x32xbf16>, vector<64x32xf32> -> vector<64x32xf32>
    %18 = arith.addf %12, %17 : vector<64x32xf32>
    %c0_21 = arith.constant 0 : index
    %c1_22 = arith.constant 1 : index
    %c1_23 = arith.constant 1 : index
    %c0_24 = arith.constant 0 : index
    %19 = vector.load %arg1[%c0_21, %c1_22, %c1_23, %c0_24] : memref<1x9x9x64xbf16, #tpu.memory_space<vmem>>, vector<1x8x8x64xbf16>
    %20 = vector.shape_cast %19 : vector<1x8x8x64xbf16> to vector<64x64xbf16>
    %c3 = arith.constant 3 : index
    %c0_25 = arith.constant 0 : index
    %c0_26 = arith.constant 0 : index
    %21 = vector.load %arg2[%c3, %c0_25, %c0_26] : memref<4x64x32xbf16, #tpu.memory_space<vmem>>, vector<1x64x32xbf16>
    %22 = vector.shape_cast %21 : vector<1x64x32xbf16> to vector<64x32xbf16>
    %cst_27 = arith.constant dense<0.000000e+00> : vector<64x32xf32>
    %23 = tpu.matmul %20, %22, %cst_27 {dimension_numbers = #tpu.dot_dimension_numbers<[1], [0], [0], [1], [0, 0, 1, 1], [], []>} : vector<64x64xbf16>, vector<64x32xbf16>, vector<64x32xf32> -> vector<64x32xf32>
    %24 = arith.addf %18, %23 : vector<64x32xf32>
    %cst_28 = arith.constant 0.000000e+00 : f32
    %25 = vector.broadcast %cst_28 : f32 to vector<64x32xf32>
    %26 = arith.cmpf oge, %24, %25 : vector<64x32xf32>
    %cst_29 = arith.constant 2.000000e-01 : f32
    %27 = vector.broadcast %cst_29 : f32 to vector<64x32xf32>
    %28 = arith.mulf %27, %24 : vector<64x32xf32>
    %29 = arith.select %26, %24, %28 : vector<64x32xi1>, vector<64x32xf32>
    %30 = vector.shape_cast %29 : vector<64x32xf32> to vector<1x8x8x32xf32>
    %31 = arith.truncf %30 : vector<1x8x8x32xf32> to vector<1x8x8x32xbf16>
    %c0_30 = arith.constant 0 : index
    %c0_31 = arith.constant 0 : index
    %c0_32 = arith.constant 0 : index
    %c0_33 = arith.constant 0 : index
    %32 = vector.load %arg3[%c0_30, %c0_31, %c0_32, %c0_33] : memref<1x8x8x32xbf16, #tpu.memory_space<vmem>>, vector<1x8x8x32xbf16>
    tpu.vector_store %arg3[%c0_30, %c0_31, %c0_32, %c0_33], %31 {strides = array<i32>} : memref<1x8x8x32xbf16, #tpu.memory_space<vmem>>, vector<1x8x8x32xbf16>,
    return
  }
  func.func @transform_0(%arg0: i32) -> (i32, i32, i32, i32) {
    %c0_i32 = arith.constant 0 : i32
    %c0_i32_0 = arith.constant 0 : i32
    %c0_i32_1 = arith.constant 0 : i32
    %c0_i32_2 = arith.constant 0 : i32
    return %arg0, %c0_i32, %c0_i32_0, %c0_i32_1 : i32, i32, i32, i32
  }
  func.func @transform_1(%arg0: i32) -> (i32, i32, i32) {
    %c0_i32 = arith.constant 0 : i32
    %c0_i32_0 = arith.constant 0 : i32
    %c0_i32_1 = arith.constant 0 : i32
    %c0_i32_2 = arith.constant 0 : i32
    return %c0_i32, %c0_i32_0, %c0_i32_1 : i32, i32, i32
  }
  func.func @transform_2(%arg0: i32) -> (i32, i32, i32, i32) {
    %c0_i32 = arith.constant 0 : i32
    %c0_i32_0 = arith.constant 0 : i32
    %c0_i32_1 = arith.constant 0 : i32
    %c0_i32_2 = arith.constant 0 : i32
    return %arg0, %c0_i32, %c0_i32_0, %c0_i32_1 : i32, i32, i32, i32
  }
}

module attributes {stable_mosaic.version = 11 : i64} {
  func.func @_conv4x4s2_lrelu_kernel(%arg0: i32, %arg1: memref<1x5x5x128xbf16, #tpu.memory_space<vmem>>, %arg2: memref<4x128x64xbf16, #tpu.memory_space<vmem>>, %arg3: memref<1x4x4x64xbf16, #tpu.memory_space<vmem>>) attributes {dimension_semantics = [#tpu.dimension_semantics<parallel>], iteration_bounds = array<i64: 2>, scalar_prefetch = 0 : i64, scratch_operands = 0 : i64, tpu.core_type = #tpu.core_type<tc>, window_params = [{transform_indices = @transform_0, window_bounds = array<i64: 1, 5, 5, 128>}, {pipeline_mode = #tpu.pipeline_mode<synchronous>, transform_indices = @transform_1, window_bounds = array<i64: 4, 128, 64>}, {transform_indices = @transform_2, window_bounds = array<i64: 1, 4, 4, 64>}]} {
    %cst = arith.constant 0.000000e+00 : f32
    %0 = vector.broadcast %cst : f32 to vector<16x64xf32>
    %c0 = arith.constant 0 : index
    %c0_0 = arith.constant 0 : index
    %c0_1 = arith.constant 0 : index
    %c0_2 = arith.constant 0 : index
    %1 = vector.load %arg1[%c0, %c0_0, %c0_1, %c0_2] : memref<1x5x5x128xbf16, #tpu.memory_space<vmem>>, vector<1x4x4x128xbf16>
    %2 = vector.shape_cast %1 : vector<1x4x4x128xbf16> to vector<16x128xbf16>
    %c0_3 = arith.constant 0 : index
    %c0_4 = arith.constant 0 : index
    %c0_5 = arith.constant 0 : index
    %3 = vector.load %arg2[%c0_3, %c0_4, %c0_5] : memref<4x128x64xbf16, #tpu.memory_space<vmem>>, vector<1x128x64xbf16>
    %4 = vector.shape_cast %3 : vector<1x128x64xbf16> to vector<128x64xbf16>
    %cst_6 = arith.constant dense<0.000000e+00> : vector<16x64xf32>
    %5 = tpu.matmul %2, %4, %cst_6 {dimension_numbers = #tpu.dot_dimension_numbers<[1], [0], [0], [1], [0, 0, 1, 1], [], []>} : vector<16x128xbf16>, vector<128x64xbf16>, vector<16x64xf32> -> vector<16x64xf32>
    %6 = arith.addf %0, %5 : vector<16x64xf32>
    %c0_7 = arith.constant 0 : index
    %c0_8 = arith.constant 0 : index
    %c1 = arith.constant 1 : index
    %c0_9 = arith.constant 0 : index
    %7 = vector.load %arg1[%c0_7, %c0_8, %c1, %c0_9] : memref<1x5x5x128xbf16, #tpu.memory_space<vmem>>, vector<1x4x4x128xbf16>
    %8 = vector.shape_cast %7 : vector<1x4x4x128xbf16> to vector<16x128xbf16>
    %c1_10 = arith.constant 1 : index
    %c0_11 = arith.constant 0 : index
    %c0_12 = arith.constant 0 : index
    %9 = vector.load %arg2[%c1_10, %c0_11, %c0_12] : memref<4x128x64xbf16, #tpu.memory_space<vmem>>, vector<1x128x64xbf16>
    %10 = vector.shape_cast %9 : vector<1x128x64xbf16> to vector<128x64xbf16>
    %cst_13 = arith.constant dense<0.000000e+00> : vector<16x64xf32>
    %11 = tpu.matmul %8, %10, %cst_13 {dimension_numbers = #tpu.dot_dimension_numbers<[1], [0], [0], [1], [0, 0, 1, 1], [], []>} : vector<16x128xbf16>, vector<128x64xbf16>, vector<16x64xf32> -> vector<16x64xf32>
    %12 = arith.addf %6, %11 : vector<16x64xf32>
    %c0_14 = arith.constant 0 : index
    %c1_15 = arith.constant 1 : index
    %c0_16 = arith.constant 0 : index
    %c0_17 = arith.constant 0 : index
    %13 = vector.load %arg1[%c0_14, %c1_15, %c0_16, %c0_17] : memref<1x5x5x128xbf16, #tpu.memory_space<vmem>>, vector<1x4x4x128xbf16>
    %14 = vector.shape_cast %13 : vector<1x4x4x128xbf16> to vector<16x128xbf16>
    %c2 = arith.constant 2 : index
    %c0_18 = arith.constant 0 : index
    %c0_19 = arith.constant 0 : index
    %15 = vector.load %arg2[%c2, %c0_18, %c0_19] : memref<4x128x64xbf16, #tpu.memory_space<vmem>>, vector<1x128x64xbf16>
    %16 = vector.shape_cast %15 : vector<1x128x64xbf16> to vector<128x64xbf16>
    %cst_20 = arith.constant dense<0.000000e+00> : vector<16x64xf32>
    %17 = tpu.matmul %14, %16, %cst_20 {dimension_numbers = #tpu.dot_dimension_numbers<[1], [0], [0], [1], [0, 0, 1, 1], [], []>} : vector<16x128xbf16>, vector<128x64xbf16>, vector<16x64xf32> -> vector<16x64xf32>
    %18 = arith.addf %12, %17 : vector<16x64xf32>
    %c0_21 = arith.constant 0 : index
    %c1_22 = arith.constant 1 : index
    %c1_23 = arith.constant 1 : index
    %c0_24 = arith.constant 0 : index
    %19 = vector.load %arg1[%c0_21, %c1_22, %c1_23, %c0_24] : memref<1x5x5x128xbf16, #tpu.memory_space<vmem>>, vector<1x4x4x128xbf16>
    %20 = vector.shape_cast %19 : vector<1x4x4x128xbf16> to vector<16x128xbf16>
    %c3 = arith.constant 3 : index
    %c0_25 = arith.constant 0 : index
    %c0_26 = arith.constant 0 : index
    %21 = vector.load %arg2[%c3, %c0_25, %c0_26] : memref<4x128x64xbf16, #tpu.memory_space<vmem>>, vector<1x128x64xbf16>
    %22 = vector.shape_cast %21 : vector<1x128x64xbf16> to vector<128x64xbf16>
    %cst_27 = arith.constant dense<0.000000e+00> : vector<16x64xf32>
    %23 = tpu.matmul %20, %22, %cst_27 {dimension_numbers = #tpu.dot_dimension_numbers<[1], [0], [0], [1], [0, 0, 1, 1], [], []>} : vector<16x128xbf16>, vector<128x64xbf16>, vector<16x64xf32> -> vector<16x64xf32>
    %24 = arith.addf %18, %23 : vector<16x64xf32>
    %cst_28 = arith.constant 0.000000e+00 : f32
    %25 = vector.broadcast %cst_28 : f32 to vector<16x64xf32>
    %26 = arith.cmpf oge, %24, %25 : vector<16x64xf32>
    %cst_29 = arith.constant 2.000000e-01 : f32
    %27 = vector.broadcast %cst_29 : f32 to vector<16x64xf32>
    %28 = arith.mulf %27, %24 : vector<16x64xf32>
    %29 = arith.select %26, %24, %28 : vector<16x64xi1>, vector<16x64xf32>
    %30 = vector.shape_cast %29 : vector<16x64xf32> to vector<1x4x4x64xf32>
    %31 = arith.truncf %30 : vector<1x4x4x64xf32> to vector<1x4x4x64xbf16>
    %c0_30 = arith.constant 0 : index
    %c0_31 = arith.constant 0 : index
    %c0_32 = arith.constant 0 : index
    %c0_33 = arith.constant 0 : index
    %32 = vector.load %arg3[%c0_30, %c0_31, %c0_32, %c0_33] : memref<1x4x4x64xbf16, #tpu.memory_space<vmem>>, vector<1x4x4x64xbf16>
    tpu.vector_store %arg3[%c0_30, %c0_31, %c0_32, %c0_33], %31 {strides = array<i32>} : memref<1x4x4x64xbf16, #tpu.memory_space<vmem>>, vector<1x4x4x64xbf16>,
    return
  }
  func.func @transform_0(%arg0: i32) -> (i32, i32, i32, i32) {
    %c0_i32 = arith.constant 0 : i32
    %c0_i32_0 = arith.constant 0 : i32
    %c0_i32_1 = arith.constant 0 : i32
    %c0_i32_2 = arith.constant 0 : i32
    return %arg0, %c0_i32, %c0_i32_0, %c0_i32_1 : i32, i32, i32, i32
  }
  func.func @transform_1(%arg0: i32) -> (i32, i32, i32) {
    %c0_i32 = arith.constant 0 : i32
    %c0_i32_0 = arith.constant 0 : i32
    %c0_i32_1 = arith.constant 0 : i32
    %c0_i32_2 = arith.constant 0 : i32
    return %c0_i32, %c0_i32_0, %c0_i32_1 : i32, i32, i32
  }
  func.func @transform_2(%arg0: i32) -> (i32, i32, i32, i32) {
    %c0_i32 = arith.constant 0 : i32
    %c0_i32_0 = arith.constant 0 : i32
    %c0_i32_1 = arith.constant 0 : i32
    %c0_i32_2 = arith.constant 0 : i32
    return %arg0, %c0_i32, %c0_i32_0, %c0_i32_1 : i32, i32, i32, i32
  }
}

module attributes {stable_mosaic.version = 11 : i64} {
  func.func @_head_kernel(%arg0: i32, %arg1: memref<2x1024xbf16, #tpu.memory_space<vmem>>, %arg2: memref<1x1024xbf16, #tpu.memory_space<vmem>>, %arg3: memref<2x1xf32, #tpu.memory_space<vmem>>) attributes {dimension_semantics = [#tpu.dimension_semantics<arbitrary>], iteration_bounds = array<i64: 1>, scalar_prefetch = 0 : i64, scratch_operands = 0 : i64, tpu.core_type = #tpu.core_type<tc>, window_params = [{pipeline_mode = #tpu.pipeline_mode<synchronous>, transform_indices = @transform_0, window_bounds = array<i64: 2, 1024>}, {pipeline_mode = #tpu.pipeline_mode<synchronous>, transform_indices = @transform_1, window_bounds = array<i64: 1, 1024>}, {pipeline_mode = #tpu.pipeline_mode<synchronous>, transform_indices = @transform_2, window_bounds = array<i64: 2, 1>}]} {
    %c0 = arith.constant 0 : index
    %c0_0 = arith.constant 0 : index
    %0 = vector.load %arg1[%c0, %c0_0] : memref<2x1024xbf16, #tpu.memory_space<vmem>>, vector<2x1024xbf16>
    %1 = arith.extf %0 : vector<2x1024xbf16> to vector<2x1024xf32>
    %c0_1 = arith.constant 0 : index
    %c0_2 = arith.constant 0 : index
    %2 = vector.load %arg2[%c0_1, %c0_2] : memref<1x1024xbf16, #tpu.memory_space<vmem>>, vector<1x1024xbf16>
    %3 = arith.extf %2 : vector<1x1024xbf16> to vector<1x1024xf32>
    %4 = vector.broadcast %3 : vector<1x1024xf32> to vector<2x1024xf32>
    %5 = arith.mulf %1, %4 : vector<2x1024xf32>
    %cst = arith.constant dense<0.000000e+00> : vector<2xf32>
    %6 = vector.multi_reduction <add>, %5, %cst [1] : vector<2x1024xf32> to vector<2xf32>
    %7 = vector.shape_cast %6 : vector<2xf32> to vector<2x1xf32>
    %c0_3 = arith.constant 0 : index
    %c0_4 = arith.constant 0 : index
    %8 = vector.load %arg3[%c0_3, %c0_4] : memref<2x1xf32, #tpu.memory_space<vmem>>, vector<2x1xf32>
    tpu.vector_store %arg3[%c0_3, %c0_4], %7 {strides = array<i32>} : memref<2x1xf32, #tpu.memory_space<vmem>>, vector<2x1xf32>,
    return
  }
  func.func @transform_0(%arg0: i32) -> (i32, i32) {
    %c0_i32 = arith.constant 0 : i32
    %c0_i32_0 = arith.constant 0 : i32
    %c0_i32_1 = arith.constant 0 : i32
    return %c0_i32, %c0_i32_0 : i32, i32
  }
  func.func @transform_1(%arg0: i32) -> (i32, i32) {
    %c0_i32 = arith.constant 0 : i32
    %c0_i32_0 = arith.constant 0 : i32
    %c0_i32_1 = arith.constant 0 : i32
    return %c0_i32, %c0_i32_0 : i32, i32
  }
  func.func @transform_2(%arg0: i32) -> (i32, i32) {
    %c0_i32 = arith.constant 0 : i32
    %c0_i32_0 = arith.constant 0 : i32
    %c0_i32_1 = arith.constant 0 : i32
    return %c0_i32, %c0_i32_0 : i32, i32
  }
}

</mosaic_0001>

<llo_original>
// kernel: discriminator_forward.5
$region0: #{discriminator_forward.5}
  #allocation0 [shape = 'u32[]', space=smem, size = 0x4, offset = 0x4, fixed_abs, tag = 'smem constant byte address 0x4 - core index']
  #allocation1 [shape = 'u32[144,128]{1,0:T(1,128)}', space=vmem, size = 0x12000, scoped, tag = 'internal scratch']
  %s0 = inlined_call_operand.vmem [shape: bf16[2,33,33,4], index: 0, kind: input, shape index: {}]
  %s1 = inlined_call_operand.vmem [shape: bf16[4,4,8], index: 1, kind: input, shape index: {}]
  %s2 = inlined_call_operand.vmem [shape: bf16[2,32,32,8], index: 2, kind: output, shape index: {}]
  %s3 = sld [smem:[#allocation0]]
  $region41: #{discriminator_forward.5} parent=0
    _
  %s5 = ssub.s32 1, %s3
  %s6 = scalar_select 0, %s5, %s3
  loop: start=0, step=1, limit=4
  $region2: #{discriminator_forward.5} parent=0 // loop_pre_header
    _
  $region3: #{discriminator_forward.5} parent=0 // loop_header
    %s8 = sphi 0, %s12
    %p9 = scmp.ge.s32.totalorder %s8, 4
    %s18 = sphi 0, %s20
    %s21 = sphi 0, %s18
    %s22 = sphi 0, %s21
    %s38 = sphi 0, %s22
    %s42 = sphi 0, %s42
    %s44 = sphi 0, %s42
    %s45 = sphi 0, %s44
    %s59 = sphi 0, %s45
    %s65 = sphi 0, %s67
    %s68 = sphi 0, %s65
    %s69 = sphi 0, %s68
    %s85 = sphi 0, %s69
  $region4: #{discriminator_forward.5} parent=0 // loop_header_branch
    %11 = sbr.rel (%p9) target = $region8
  $region5: #{discriminator_forward.5} parent=0 // loop_body
    %s13 = ssub.s32 %s8, 1
    %s14 = ssub.s32 %s8, 2
    %s15 = sadd.s32 %s8, 1
    %s16 = ssub.s32 %s8, %s15
    %p17 = scmp.eq.s32.totalorder %s16, 0
    %s19 = sadd.s32 %s18, 1
    %s20 = scalar_select %p17, %s18, %s19
    %p23 = pneg %p17
    %p24 = scmp.eq.s32.totalorder %s8, 1
    %p25 = por %p23, %p24
    %p26 = scmp.ne.s32.totalorder %s18, %s21
    %p27 = scmp.eq.s32.totalorder %s8, 0
    %p28 = por %p26, %p27
    %p29 = scmp.ne.s32.totalorder %s18, %s21
    %p30 = scmp.eq.s32.totalorder %s13, 1
    %p31 = por %p29, %p30
    %p32 = scmp.ne.s32.totalorder %s21, %s22
    %p33 = scmp.eq.s32.totalorder %s13, 0
    %p34 = por %p32, %p33
    %p35 = scmp.ne.s32.totalorder %s21, %s22
    %p36 = scmp.eq.s32.totalorder %s14, 1
    %p37 = por %p35, %p36
    %p39 = scmp.ne.s32.totalorder %s22, %s38
    %p40 = scmp.eq.s32.totalorder %s14, 0
    %p41 = por %p39, %p40
    %s43 = sadd.s32 %s42, 1
    %p46 = scmp.eq.s32.totalorder %s8, 1
    %p47 = scmp.ne.s32.totalorder %s42, %s44
    %p48 = scmp.eq.s32.totalorder %s8, 0
    %p49 = por %p47, %p48
    %p50 = scmp.ne.s32.totalorder %s42, %s44
    %p51 = scmp.eq.s32.totalorder %s13, 1
    %p52 = por %p50, %p51
    %p53 = scmp.ne.s32.totalorder %s44, %s45
    %p54 = scmp.eq.s32.totalorder %s13, 0
    %p55 = por %p53, %p54
    %p56 = scmp.ne.s32.totalorder %s44, %s45
    %p57 = scmp.eq.s32.totalorder %s14, 1
    %p58 = por %p56, %p57
    %p60 = scmp.ne.s32.totalorder %s45, %s59
    %p61 = scmp.eq.s32.totalorder %s14, 0
    %p62 = por %p60, %p61
    %s63 = ssub.s32 %s8, %s15
    %p64 = scmp.eq.s32.totalorder %s63, 0
    %s66 = sadd.s32 %s65, 1
    %s67 = scalar_select %p64, %s65, %s66
    %p70 = pneg %p64
    %p71 = scmp.eq.s32.totalorder %s8, 1
    %p72 = por %p70, %p71
    %p73 = scmp.ne.s32.totalorder %s65, %s68
    %p74 = scmp.eq.s32.totalorder %s8, 0
    %p75 = por %p73, %p74
    %p76 = scmp.ne.s32.totalorder %s65, %s68
    %p77 = scmp.eq.s32.totalorder %s13, 1
    %p78 = por %p76, %p77
    %p79 = scmp.ne.s32.totalorder %s68, %s69
    %p80 = scmp.eq.s32.totalorder %s13, 0
    %p81 = por %p79, %p80
    %p82 = scmp.ne.s32.totalorder %s68, %s69
    %p83 = scmp.eq.s32.totalorder %s14, 1
    %p84 = por %p82, %p83
    %p86 = scmp.ne.s32.totalorder %s69, %s85
    %p87 = scmp.eq.s32.totalorder %s14, 0
    %p88 = por %p86, %p87
    %p89 = scmp.le.s32.totalorder 1, %s8
    %p90 = scmp.lt.s32.totalorder %s8, 3
    %p91 = pnand %p89, %p90
    %p92 = pneg %p91
    // Predicated region
    $region9: #{discriminator_forward.5} parent=5 // pred_check
      _
    $region10: #{discriminator_forward.5} parent=5 // pred_check_branch
      %94 = sbr.rel (%p91) target = $region12
    $region11: #{discriminator_forward.5} parent=5 // pred_region
      %s95 = ssub.s32 %s8, 1
      // Predicated region
      $region13: #{discriminator_forward.5} parent=11 // pred_check
        %p96 = pneg %p55
      $region14: #{discriminator_forward.5} parent=11 // pred_check_branch
        %98 = sbr.rel (%p96) target = $region16
      $region15: #{discriminator_forward.5} parent=11 // pred_region
        _
      $region16: #{discriminator_forward.5} parent=11 // pred_fallthru
        _
    $region12: #{discriminator_forward.5} parent=5 // pred_fallthru
      _
    %p99 = scmp.lt.s32.totalorder %s8, 2
    // Predicated region
    $region17: #{discriminator_forward.5} parent=5 // pred_check
      %p100 = pneg %p99
    $region18: #{discriminator_forward.5} parent=5 // pred_check_branch
      %102 = sbr.rel (%p100) target = $region20
    $region19: #{discriminator_forward.5} parent=5 // pred_region
      // Predicated region
      $region21: #{discriminator_forward.5} parent=19 // pred_check
        %p103 = pneg %p28
      $region22: #{discriminator_forward.5} parent=19 // pred_check_branch
        %105 = sbr.rel (%p103) target = $region24
      $region23: #{discriminator_forward.5} parent=19 // pred_region
        %p106 = scmp.lt.s32.totalorder %s8, 1
        %s107 = scalar_select %p106, %s8, 1
        %s108 = smul.addr %s107, 165
        %s109 = smul.addr %s108, 4
        %s110 = scalar_lea.vmem %s0, %s109
      $region24: #{discriminator_forward.5} parent=19 // pred_fallthru
        _
    $region20: #{discriminator_forward.5} parent=5 // pred_fallthru
      _
    %p111 = scmp.le.s32.totalorder 1, %s8
    %p112 = scmp.lt.s32.totalorder %s8, 3
    %p113 = pnand %p111, %p112
    %p114 = pneg %p113
    // Predicated region
    $region25: #{discriminator_forward.5} parent=5 // pred_check
      _
    $region26: #{discriminator_forward.5} parent=5 // pred_check_branch
      %116 = sbr.rel (%p113) target = $region28
    $region27: #{discriminator_forward.5} parent=5 // pred_region
      %s117 = ssub.s32 %s8, 1
      %p118 = scmp.lt.s32.totalorder %s13, 1
      %s119 = scalar_select %p118, %s13, 1
      %s120 = smul.addr %s119, 165
      %s121 = smul.addr %s120, 4
      %s122 = scalar_lea.vmem %s0, %s121
      %p123 = pneg %p34
      %p124 = pneg %p31
      %p125 = pneg %p55
      %p126 = pneg %p52
      %p127 = pneg %p81
      %p128 = pneg %p78
      %p129 = scmp.lt.s32.totalorder %s13, 1
      %s130 = scalar_select %p129, %s13, 1
      %s131 = smul.addr %s130, 128
      %s132 = smul.addr %s131, 4
      %s133 = scalar_lea.vmem %s2, %s132
      %p134 = scmp.lt.s32.totalorder %s13, 1
      %s135 = scalar_select %p134, %s13, 1
      %s136 = smul.addr %s135, 165
      %s137 = smul.addr %s136, 4
      %s138 = scalar_lea.vmem %s0, %s137
      %p139 = scmp.lt.s32.totalorder %s13, 1
      %s140 = scalar_select %p139, %s13, 1
      %s141 = smul.addr %s140, 128
      %s142 = smul.addr %s141, 4
      %s143 = scalar_lea.vmem %s2, %s142
      %v145 = vld [vmem:[%s138] sm:$0xf]
      %v146 = vld [vmem:[%s138 + $0x4] sm:$0xf]
      %v147 = vld [vmem:[%s138 + $0x8] sm:$0xf]
      %v148 = vld [vmem:[%s138 + $0xc] sm:$0xf]
      %v149 = vld [vmem:[%s138 + $0x14] sm:$0xf]
      %v150 = vld [vmem:[%s138 + $0x18] sm:$0xf]
      %v151 = vld [vmem:[%s138 + $0x1c] sm:$0xf]
      %v152 = vld [vmem:[%s138 + $0x20] sm:$0xf]
      %v153 = vld [vmem:[%s138 + $0x28] sm:$0xf]
      %v154 = vld [vmem:[%s138 + $0x2c] sm:$0xf]
      %v155 = vld [vmem:[%s138 + $0x30] sm:$0xf]
      %v156 = vld [vmem:[%s138 + $0x34] sm:$0xf]
      %v157 = vld [vmem:[%s138 + $0x3c] sm:$0xf]
      %v158 = vld [vmem:[%s138 + $0x40] sm:$0xf]
      %v159 = vld [vmem:[%s138 + $0x44] sm:$0xf]
      %v160 = vld [vmem:[%s138 + $0x48] sm:$0xf]
      %v161 = vld [vmem:[%s138 + $0x50] sm:$0xf]
      %v162 = vld [vmem:[%s138 + $0x54] sm:$0xf]
      %v163 = vld [vmem:[%s138 + $0x58] sm:$0xf]
      %v164 = vld [vmem:[%s138 + $0x5c] sm:$0xf]
      %v165 = vld [vmem:[%s138 + $0x64] sm:$0xf]
      %v166 = vld [vmem:[%s138 + $0x68] sm:$0xf]
      %v167 = vld [vmem:[%s138 + $0x6c] sm:$0xf]
      %v168 = vld [vmem:[%s138 + $0x70] sm:$0xf]
      %v169 = vld [vmem:[%s138 + $0x78] sm:$0xf]
      %v170 = vld [vmem:[%s138 + $0x7c] sm:$0xf]
      %v171 = vld [vmem:[%s138 + $0x80] sm:$0xf]
      %v172 = vld [vmem:[%s138 + $0x84] sm:$0xf]
      %v173 = vld [vmem:[%s138 + $0x8c] sm:$0xf]
      %v174 = vld [vmem:[%s138 + $0x90] sm:$0xf]
      %v175 = vld [vmem:[%s138 + $0x94] sm:$0xf]
      %v176 = vld [vmem:[%s138 + $0x98] sm:$0xf]
      %v177 = vld [vmem:[%s138 + $0xa0] sm:$0xf]
      %v178 = vld [vmem:[%s138 + $0xa4] sm:$0xf]
      %v179 = vld [vmem:[%s138 + $0xa8] sm:$0xf]
      %v180 = vld [vmem:[%s138 + $0xac] sm:$0xf]
      %v181 = vld [vmem:[%s138 + $0xb4] sm:$0xf]
      %v182 = vld [vmem:[%s138 + $0xb8] sm:$0xf]
      %v183 = vld [vmem:[%s138 + $0xbc] sm:$0xf]
      %v184 = vld [vmem:[%s138 + $0xc0] sm:$0xf]
      %v185 = vld [vmem:[%s138 + $0xc8] sm:$0xf]
      %v186 = vld [vmem:[%s138 + $0xcc] sm:$0xf]
      %v187 = vld [vmem:[%s138 + $0xd0] sm:$0xf]
      %v188 = vld [vmem:[%s138 + $0xd4] sm:$0xf]
      %v189 = vld [vmem:[%s138 + $0xdc] sm:$0xf]
      %v190 = vld [vmem:[%s138 + $0xe0] sm:$0xf]
      %v191 = vld [vmem:[%s138 + $0xe4] sm:$0xf]
      %v192 = vld [vmem:[%s138 + $0xe8] sm:$0xf]
      %v193 = vld [vmem:[%s138 + $0xf0] sm:$0xf]
      %v194 = vld [vmem:[%s138 + $0xf4] sm:$0xf]
      %v195 = vld [vmem:[%s138 + $0xf8] sm:$0xf]
      %v196 = vld [vmem:[%s138 + $0xfc] sm:$0xf]
      %v197 = vld [vmem:[%s138 + $0x104] sm:$0xf]
      %v198 = vld [vmem:[%s138 + $0x108] sm:$0xf]
      %v199 = vld [vmem:[%s138 + $0x10c] sm:$0xf]
      %v200 = vld [vmem:[%s138 + $0x110] sm:$0xf]
      %v201 = vld [vmem:[%s138 + $0x118] sm:$0xf]
      %v202 = vld [vmem:[%s138 + $0x11c] sm:$0xf]
      %v203 = vld [vmem:[%s138 + $0x120] sm:$0xf]
      %v204 = vld [vmem:[%s138 + $0x124] sm:$0xf]
      %v205 = vld [vmem:[%s138 + $0x12c] sm:$0xf]
      %v206 = vld [vmem:[%s138 + $0x130] sm:$0xf]
      %v207 = vld [vmem:[%s138 + $0x134] sm:$0xf]
      %v208 = vld [vmem:[%s138 + $0x138] sm:$0xf]
      %v209 = vld [vmem:[%s138 + $0x140] sm:$0xf]
      %v210 = vld [vmem:[%s138 + $0x144] sm:$0xf]
      %v211 = vld [vmem:[%s138 + $0x148] sm:$0xf]
      %v212 = vld [vmem:[%s138 + $0x14c] sm:$0xf]
      %v213 = vld [vmem:[%s138 + $0x154] sm:$0xf]
      %v214 = vld [vmem:[%s138 + $0x158] sm:$0xf]
      %v215 = vld [vmem:[%s138 + $0x15c] sm:$0xf]
      %v216 = vld [vmem:[%s138 + $0x160] sm:$0xf]
      %v217 = vld [vmem:[%s138 + $0x168] sm:$0xf]
      %v218 = vld [vmem:[%s138 + $0x16c] sm:$0xf]
      %v219 = vld [vmem:[%s138 + $0x170] sm:$0xf]
      %v220 = vld [vmem:[%s138 + $0x174] sm:$0xf]
      %v221 = vld [vmem:[%s138 + $0x17c] sm:$0xf]
      %v222 = vld [vmem:[%s138 + $0x180] sm:$0xf]
      %v223 = vld [vmem:[%s138 + $0x184] sm:$0xf]
      %v224 = vld [vmem:[%s138 + $0x188] sm:$0xf]
      %v225 = vld [vmem:[%s138 + $0x190] sm:$0xf]
      %v226 = vld [vmem:[%s138 + $0x194] sm:$0xf]
      %v227 = vld [vmem:[%s138 + $0x198] sm:$0xf]
      %v228 = vld [vmem:[%s138 + $0x19c] sm:$0xf]
      %v229 = vld [vmem:[%s138 + $0x1a4] sm:$0xf]
      %v230 = vld [vmem:[%s138 + $0x1a8] sm:$0xf]
      %v231 = vld [vmem:[%s138 + $0x1ac] sm:$0xf]
      %v232 = vld [vmem:[%s138 + $0x1b0] sm:$0xf]
      %v233 = vld [vmem:[%s138 + $0x1b8] sm:$0xf]
      %v234 = vld [vmem:[%s138 + $0x1bc] sm:$0xf]
      %v235 = vld [vmem:[%s138 + $0x1c0] sm:$0xf]
      %v236 = vld [vmem:[%s138 + $0x1c4] sm:$0xf]
      %v237 = vld [vmem:[%s138 + $0x1cc] sm:$0xf]
      %v238 = vld [vmem:[%s138 + $0x1d0] sm:$0xf]
      %v239 = vld [vmem:[%s138 + $0x1d4] sm:$0xf]
      %v240 = vld [vmem:[%s138 + $0x1d8] sm:$0xf]
      %v241 = vld [vmem:[%s138 + $0x1e0] sm:$0xf]
      %v242 = vld [vmem:[%s138 + $0x1e4] sm:$0xf]
      %v243 = vld [vmem:[%s138 + $0x1e8] sm:$0xf]
      %v244 = vld [vmem:[%s138 + $0x1ec] sm:$0xf]
      %v245 = vld [vmem:[%s138 + $0x1f4] sm:$0xf]
      %v246 = vld [vmem:[%s138 + $0x1f8] sm:$0xf]
      %v247 = vld [vmem:[%s138 + $0x1fc] sm:$0xf]
      %v248 = vld [vmem:[%s138 + $0x200] sm:$0xf]
      %v249 = vld [vmem:[%s138 + $0x208] sm:$0xf]
      %v250 = vld [vmem:[%s138 + $0x20c] sm:$0xf]
      %v251 = vld [vmem:[%s138 + $0x210] sm:$0xf]
      %v252 = vld [vmem:[%s138 + $0x214] sm:$0xf]
      %v253 = vld [vmem:[%s138 + $0x21c] sm:$0xf]
      %v254 = vld [vmem:[%s138 + $0x220] sm:$0xf]
      %v255 = vld [vmem:[%s138 + $0x224] sm:$0xf]
      %v256 = vld [vmem:[%s138 + $0x228] sm:$0xf]
      %v257 = vld [vmem:[%s138 + $0x230] sm:$0xf]
      %v258 = vld [vmem:[%s138 + $0x234] sm:$0xf]
      %v259 = vld [vmem:[%s138 + $0x238] sm:$0xf]
      %v260 = vld [vmem:[%s138 + $0x23c] sm:$0xf]
      %v261 = vld [vmem:[%s138 + $0x244] sm:$0xf]
      %v262 = vld [vmem:[%s138 + $0x248] sm:$0xf]
      %v263 = vld [vmem:[%s138 + $0x24c] sm:$0xf]
      %v264 = vld [vmem:[%s138 + $0x250] sm:$0xf]
      %v265 = vld [vmem:[%s138 + $0x258] sm:$0xf]
      %v266 = vld [vmem:[%s138 + $0x25c] sm:$0xf]
      %v267 = vld [vmem:[%s138 + $0x260] sm:$0xf]
      %v268 = vld [vmem:[%s138 + $0x264] sm:$0xf]
      %v269 = vld [vmem:[%s138 + $0x26c] sm:$0xf]
      %v270 = vld [vmem:[%s138 + $0x270] sm:$0xf]
      %v271 = vld [vmem:[%s138 + $0x274] sm:$0xf]
      %v272 = vld [vmem:[%s138 + $0x278] sm:$0xf]
      %v273 = vld [vmem:[%s1] sm:$0x3]
      %v274 = vld [vmem:[%s138 + $0x10] sm:$0x1]
      %v275 = vld [vmem:[%s138 + $0x24] sm:$0x1]
      %v276 = vld [vmem:[%s138 + $0x38] sm:$0x1]
      %v277 = vld [vmem:[%s138 + $0x4c] sm:$0x1]
      %v278 = vld [vmem:[%s138 + $0x60] sm:$0x1]
      %v279 = vld [vmem:[%s138 + $0x74] sm:$0x1]
      %v280 = vld [vmem:[%s138 + $0x88] sm:$0x1]
      %v281 = vld [vmem:[%s138 + $0x9c] sm:$0x1]
      %v282 = vld [vmem:[%s138 + $0xb0] sm:$0x1]
      %v283 = vld [vmem:[%s138 + $0xc4] sm:$0x1]
      %v284 = vld [vmem:[%s138 + $0xd8] sm:$0x1]
      %v285 = vld [vmem:[%s138 + $0xec] sm:$0x1]
      %v286 = vld [vmem:[%s138 + $0x100] sm:$0x1]
      %v287 = vld [vmem:[%s138 + $0x114] sm:$0x1]
      %v288 = vld [vmem:[%s138 + $0x128] sm:$0x1]
      %v289 = vld [vmem:[%s138 + $0x13c] sm:$0x1]
      %v290 = vld [vmem:[%s138 + $0x150] sm:$0x1]
      %v291 = vld [vmem:[%s138 + $0x164] sm:$0x1]
      %v292 = vld [vmem:[%s138 + $0x178] sm:$0x1]
      %v293 = vld [vmem:[%s138 + $0x18c] sm:$0x1]
      %v294 = vld [vmem:[%s138 + $0x1a0] sm:$0x1]
      %v295 = vld [vmem:[%s138 + $0x1b4] sm:$0x1]
      %v296 = vld [vmem:[%s138 + $0x1c8] sm:$0x1]
      %v297 = vld [vmem:[%s138 + $0x1dc] sm:$0x1]
      %v298 = vld [vmem:[%s138 + $0x1f0] sm:$0x1]
      %v299 = vld [vmem:[%s138 + $0x204] sm:$0x1]
      %v300 = vld [vmem:[%s138 + $0x218] sm:$0x1]
      %v301 = vld [vmem:[%s138 + $0x22c] sm:$0x1]
      %v302 = vld [vmem:[%s138 + $0x240] sm:$0x1]
      %v303 = vld [vmem:[%s138 + $0x254] sm:$0x1]
      %v304 = vld [vmem:[%s138 + $0x268] sm:$0x1]
      %v305 = vld [vmem:[%s138 + $0x27c] sm:$0x1]
      %vm306 = vsmask.f32 3328
      %vm307 = vsmask.f32 7440
      %vm308 = vmor %vm306, %vm307
      %v310 = vshrl.u32 %v145, 16
      %v312 = vrot.slane %v310, 4
      %v313 = vshll.u32 %v145, 16
      %v315 = vrot.slane %v313, 5
      %v316 = vor.u32 %v312, %v315
      %v317 = vrot.slane %v316, 4
      %v319 = vshll.u32 %v146, 16
      %v321 = vrot.slane %v319, 5
      %v322 = vsel %vm308, %v317, %v321
      %v323 = vshrl.u32 %v146, 16
      %v325 = vrot.slane %v323, 4
      %v326 = vor.u32 %v325, %v321
      %v327 = vrot.slane %v326, 4
      %v329 = vshll.u32 %v147, 16
      %v331 = vrot.slane %v329, 5
      %v332 = vsel %vm308, %v327, %v331
      %v333 = vshrl.u32 %v147, 16
      %v335 = vrot.slane %v333, 4
      %v336 = vor.u32 %v335, %v331
      %v337 = vrot.slane %v336, 4
      %v339 = vshll.u32 %v148, 16
      %v341 = vrot.slane %v339, 5
      %v342 = vsel %vm308, %v337, %v341
      %v343 = vshrl.u32 %v148, 16
      %v345 = vrot.slane %v343, 4
      %v346 = vor.u32 %v345, %v341
      %v347 = vrot.slane %v346, 4
      %v349 = vshll.u32 %v274, 16
      %v351 = vrot.slane %v349, 5
      %v352 = vsel %vm308, %v347, %v351
      %v354 = vshrl.u32 %v149, 16
      %v356 = vrot.slane %v354, 4
      %v357 = vshll.u32 %v149, 16
      %v359 = vrot.slane %v357, 5
      %v360 = vor.u32 %v356, %v359
      %v361 = vrot.slane %v360, 4
      %v363 = vshll.u32 %v150, 16
      %v365 = vrot.slane %v363, 5
      %v366 = vsel %vm308, %v361, %v365
      %v367 = vshrl.u32 %v150, 16
      %v369 = vrot.slane %v367, 4
      %v370 = vor.u32 %v369, %v365
      %v371 = vrot.slane %v370, 4
      %v373 = vshll.u32 %v151, 16
      %v375 = vrot.slane %v373, 5
      %v376 = vsel %vm308, %v371, %v375
      %v377 = vshrl.u32 %v151, 16
      %v379 = vrot.slane %v377, 4
      %v380 = vor.u32 %v379, %v375
      %v381 = vrot.slane %v380, 4
      %v383 = vshll.u32 %v152, 16
      %v385 = vrot.slane %v383, 5
      %v386 = vsel %vm308, %v381, %v385
      %v387 = vshrl.u32 %v152, 16
      %v389 = vrot.slane %v387, 4
      %v390 = vor.u32 %v389, %v385
      %v391 = vrot.slane %v390, 4
      %v393 = vshll.u32 %v275, 16
      %v395 = vrot.slane %v393, 5
      %v396 = vsel %vm308, %v391, %v395
      %v398 = vshrl.u32 %v153, 16
      %v400 = vrot.slane %v398, 4
      %v401 = vshll.u32 %v153, 16
      %v403 = vrot.slane %v401, 5
      %v404 = vor.u32 %v400, %v403
      %v405 = vrot.slane %v404, 4
      %v407 = vshll.u32 %v154, 16
      %v409 = vrot.slane %v407, 5
      %v410 = vsel %vm308, %v405, %v409
      %v411 = vshrl.u32 %v154, 16
      %v413 = vrot.slane %v411, 4
      %v414 = vor.u32 %v413, %v409
      %v415 = vrot.slane %v414, 4
      %v417 = vshll.u32 %v155, 16
      %v419 = vrot.slane %v417, 5
      %v420 = vsel %vm308, %v415, %v419
      %v421 = vshrl.u32 %v155, 16
      %v423 = vrot.slane %v421, 4
      %v424 = vor.u32 %v423, %v419
      %v425 = vrot.slane %v424, 4
      %v427 = vshll.u32 %v156, 16
      %v429 = vrot.slane %v427, 5
      %v430 = vsel %vm308, %v425, %v429
      %v431 = vshrl.u32 %v156, 16
      %v433 = vrot.slane %v431, 4
      %v434 = vor.u32 %v433, %v429
      %v435 = vrot.slane %v434, 4
      %v437 = vshll.u32 %v276, 16
      %v439 = vrot.slane %v437, 5
      %v440 = vsel %vm308, %v435, %v439
      %v442 = vshrl.u32 %v157, 16
      %v444 = vrot.slane %v442, 4
      %v445 = vshll.u32 %v157, 16
      %v447 = vrot.slane %v445, 5
      %v448 = vor.u32 %v444, %v447
      %v449 = vrot.slane %v448, 4
      %v451 = vshll.u32 %v158, 16
      %v453 = vrot.slane %v451, 5
      %v454 = vsel %vm308, %v449, %v453
      %v455 = vshrl.u32 %v158, 16
      %v457 = vrot.slane %v455, 4
      %v458 = vor.u32 %v457, %v453
      %v459 = vrot.slane %v458, 4
      %v461 = vshll.u32 %v159, 16
      %v463 = vrot.slane %v461, 5
      %v464 = vsel %vm308, %v459, %v463
      %v465 = vshrl.u32 %v159, 16
      %v467 = vrot.slane %v465, 4
      %v468 = vor.u32 %v467, %v463
      %v469 = vrot.slane %v468, 4
      %v471 = vshll.u32 %v160, 16
      %v473 = vrot.slane %v471, 5
      %v474 = vsel %vm308, %v469, %v473
      %v475 = vshrl.u32 %v160, 16
      %v477 = vrot.slane %v475, 4
      %v478 = vor.u32 %v477, %v473
      %v479 = vrot.slane %v478, 4
      %v481 = vshll.u32 %v277, 16
      %v483 = vrot.slane %v481, 5
      %v484 = vsel %vm308, %v479, %v483
      %v486 = vshrl.u32 %v161, 16
      %v488 = vrot.slane %v486, 4
      %v489 = vshll.u32 %v161, 16
      %v491 = vrot.slane %v489, 5
      %v492 = vor.u32 %v488, %v491
      %v493 = vrot.slane %v492, 4
      %v495 = vshll.u32 %v162, 16
      %v497 = vrot.slane %v495, 5
      %v498 = vsel %vm308, %v493, %v497
      %v499 = vshrl.u32 %v162, 16
      %v501 = vrot.slane %v499, 4
      %v502 = vor.u32 %v501, %v497
      %v503 = vrot.slane %v502, 4
      %v505 = vshll.u32 %v163, 16
      %v507 = vrot.slane %v505, 5
      %v508 = vsel %vm308, %v503, %v507
      %v509 = vshrl.u32 %v163, 16
      %v511 = vrot.slane %v509, 4
      %v512 = vor.u32 %v511, %v507
      %v513 = vrot.slane %v512, 4
      %v515 = vshll.u32 %v164, 16
      %v517 = vrot.slane %v515, 5
      %v518 = vsel %vm308, %v513, %v517
      %v519 = vshrl.u32 %v164, 16
      %v521 = vrot.slane %v519, 4
      %v522 = vor.u32 %v521, %v517
      %v523 = vrot.slane %v522, 4
      %v525 = vshll.u32 %v278, 16
      %v527 = vrot.slane %v525, 5
      %v528 = vsel %vm308, %v523, %v527
      %v530 = vshrl.u32 %v165, 16
      %v532 = vrot.slane %v530, 4
      %v533 = vshll.u32 %v165, 16
      %v535 = vrot.slane %v533, 5
      %v536 = vor.u32 %v532, %v535
      %v537 = vrot.slane %v536, 4
      %v539 = vshll.u32 %v166, 16
      %v541 = vrot.slane %v539, 5
      %v542 = vsel %vm308, %v537, %v541
      %v543 = vshrl.u32 %v166, 16
      %v545 = vrot.slane %v543, 4
      %v546 = vor.u32 %v545, %v541
      %v547 = vrot.slane %v546, 4
      %v549 = vshll.u32 %v167, 16
      %v551 = vrot.slane %v549, 5
      %v552 = vsel %vm308, %v547, %v551
      %v553 = vshrl.u32 %v167, 16
      %v555 = vrot.slane %v553, 4
      %v556 = vor.u32 %v555, %v551
      %v557 = vrot.slane %v556, 4
      %v559 = vshll.u32 %v168, 16
      %v561 = vrot.slane %v559, 5
      %v562 = vsel %vm308, %v557, %v561
      %v563 = vshrl.u32 %v168, 16
      %v565 = vrot.slane %v563, 4
      %v566 = vor.u32 %v565, %v561
      %v567 = vrot.slane %v566, 4
      %v569 = vshll.u32 %v279, 16
      %v571 = vrot.slane %v569, 5
      %v572 = vsel %vm308, %v567, %v571
      %v574 = vshrl.u32 %v169, 16
      %v576 = vrot.slane %v574, 4
      %v577 = vshll.u32 %v169, 16
      %v579 = vrot.slane %v577, 5
      %v580 = vor.u32 %v576, %v579
      %v581 = vrot.slane %v580, 4
      %v583 = vshll.u32 %v170, 16
      %v585 = vrot.slane %v583, 5
      %v586 = vsel %vm308, %v581, %v585
      %v587 = vshrl.u32 %v170, 16
      %v589 = vrot.slane %v587, 4
      %v590 = vor.u32 %v589, %v585
      %v591 = vrot.slane %v590, 4
      %v593 = vshll.u32 %v171, 16
      %v595 = vrot.slane %v593, 5
      %v596 = vsel %vm308, %v591, %v595
      %v597 = vshrl.u32 %v171, 16
      %v599 = vrot.slane %v597, 4
      %v600 = vor.u32 %v599, %v595
      %v601 = vrot.slane %v600, 4
      %v603 = vshll.u32 %v172, 16
      %v605 = vrot.slane %v603, 5
      %v606 = vsel %vm308, %v601, %v605
      %v607 = vshrl.u32 %v172, 16
      %v609 = vrot.slane %v607, 4
      %v610 = vor.u32 %v609, %v605
      %v611 = vrot.slane %v610, 4
      %v613 = vshll.u32 %v280, 16
      %v615 = vrot.slane %v613, 5
      %v616 = vsel %vm308, %v611, %v615
      %v618 = vshrl.u32 %v173, 16
      %v620 = vrot.slane %v618, 4
      %v621 = vshll.u32 %v173, 16
      %v623 = vrot.slane %v621, 5
      %v624 = vor.u32 %v620, %v623
      %v625 = vrot.slane %v624, 4
      %v627 = vshll.u32 %v174, 16
      %v629 = vrot.slane %v627, 5
      %v630 = vsel %vm308, %v625, %v629
      %v631 = vshrl.u32 %v174, 16
      %v633 = vrot.slane %v631, 4
      %v634 = vor.u32 %v633, %v629
      %v635 = vrot.slane %v634, 4
      %v637 = vshll.u32 %v175, 16
      %v639 = vrot.slane %v637, 5
      %v640 = vsel %vm308, %v635, %v639
      %v641 = vshrl.u32 %v175, 16
      %v643 = vrot.slane %v641, 4
      %v644 = vor.u32 %v643, %v639
      %v645 = vrot.slane %v644, 4
      %v647 = vshll.u32 %v176, 16
      %v649 = vrot.slane %v647, 5
      %v650 = vsel %vm308, %v645, %v649
      %v651 = vshrl.u32 %v176, 16
      %v653 = vrot.slane %v651, 4
      %v654 = vor.u32 %v653, %v649
      %v655 = vrot.slane %v654, 4
      %v657 = vshll.u32 %v281, 16
      %v659 = vrot.slane %v657, 5
      %v660 = vsel %vm308, %v655, %v659
      %v662 = vshrl.u32 %v177, 16
      %v664 = vrot.slane %v662, 4
      %v665 = vshll.u32 %v177, 16
      %v667 = vrot.slane %v665, 5
      %v668 = vor.u32 %v664, %v667
      %v669 = vrot.slane %v668, 4
      %v671 = vshll.u32 %v178, 16
      %v673 = vrot.slane %v671, 5
      %v674 = vsel %vm308, %v669, %v673
      %v675 = vshrl.u32 %v178, 16
      %v677 = vrot.slane %v675, 4
      %v678 = vor.u32 %v677, %v673
      %v679 = vrot.slane %v678, 4
      %v681 = vshll.u32 %v179, 16
      %v683 = vrot.slane %v681, 5
      %v684 = vsel %vm308, %v679, %v683
      %v685 = vshrl.u32 %v179, 16
      %v687 = vrot.slane %v685, 4
      %v688 = vor.u32 %v687, %v683
      %v689 = vrot.slane %v688, 4
      %v691 = vshll.u32 %v180, 16
      %v693 = vrot.slane %v691, 5
      %v694 = vsel %vm308, %v689, %v693
      %v695 = vshrl.u32 %v180, 16
      %v697 = vrot.slane %v695, 4
      %v698 = vor.u32 %v697, %v693
      %v699 = vrot.slane %v698, 4
      %v701 = vshll.u32 %v282, 16
      %v703 = vrot.slane %v701, 5
      %v704 = vsel %vm308, %v699, %v703
      %v706 = vshrl.u32 %v181, 16
      %v708 = vrot.slane %v706, 4
      %v709 = vshll.u32 %v181, 16
      %v711 = vrot.slane %v709, 5
      %v712 = vor.u32 %v708, %v711
      %v713 = vrot.slane %v712, 4
      %v715 = vshll.u32 %v182, 16
      %v717 = vrot.slane %v715, 5
      %v718 = vsel %vm308, %v713, %v717
      %v719 = vshrl.u32 %v182, 16
      %v721 = vrot.slane %v719, 4
      %v722 = vor.u32 %v721, %v717
      %v723 = vrot.slane %v722, 4
      %v725 = vshll.u32 %v183, 16
      %v727 = vrot.slane %v725, 5
      %v728 = vsel %vm308, %v723, %v727
      %v729 = vshrl.u32 %v183, 16
      %v731 = vrot.slane %v729, 4
      %v732 = vor.u32 %v731, %v727
      %v733 = vrot.slane %v732, 4
      %v735 = vshll.u32 %v184, 16
      %v737 = vrot.slane %v735, 5
      %v738 = vsel %vm308, %v733, %v737
      %v739 = vshrl.u32 %v184, 16
      %v741 = vrot.slane %v739, 4
      %v742 = vor.u32 %v741, %v737
      %v743 = vrot.slane %v742, 4
      %v745 = vshll.u32 %v283, 16
      %v747 = vrot.slane %v745, 5
      %v748 = vsel %vm308, %v743, %v747
      %v750 = vshrl.u32 %v185, 16
      %v752 = vrot.slane %v750, 4
      %v753 = vshll.u32 %v185, 16
      %v755 = vrot.slane %v753, 5
      %v756 = vor.u32 %v752, %v755
      %v757 = vrot.slane %v756, 4
      %v759 = vshll.u32 %v186, 16
      %v761 = vrot.slane %v759, 5
      %v762 = vsel %vm308, %v757, %v761
      %v763 = vshrl.u32 %v186, 16
      %v765 = vrot.slane %v763, 4
      %v766 = vor.u32 %v765, %v761
      %v767 = vrot.slane %v766, 4
      %v769 = vshll.u32 %v187, 16
      %v771 = vrot.slane %v769, 5
      %v772 = vsel %vm308, %v767, %v771
      %v773 = vshrl.u32 %v187, 16
      %v775 = vrot.slane %v773, 4
      %v776 = vor.u32 %v775, %v771
      %v777 = vrot.slane %v776, 4
      %v779 = vshll.u32 %v188, 16
      %v781 = vrot.slane %v779, 5
      %v782 = vsel %vm308, %v777, %v781
      %v783 = vshrl.u32 %v188, 16
      %v785 = vrot.slane %v783, 4
      %v786 = vor.u32 %v785, %v781
      %v787 = vrot.slane %v786, 4
      %v789 = vshll.u32 %v284, 16
      %v791 = vrot.slane %v789, 5
      %v792 = vsel %vm308, %v787, %v791
      %v794 = vshrl.u32 %v189, 16
      %v796 = vrot.slane %v794, 4
      %v797 = vshll.u32 %v189, 16
      %v799 = vrot.slane %v797, 5
      %v800 = vor.u32 %v796, %v799
      %v801 = vrot.slane %v800, 4
      %v803 = vshll.u32 %v190, 16
      %v805 = vrot.slane %v803, 5
      %v806 = vsel %vm308, %v801, %v805
      %v807 = vshrl.u32 %v190, 16
      %v809 = vrot.slane %v807, 4
      %v810 = vor.u32 %v809, %v805
      %v811 = vrot.slane %v810, 4
      %v813 = vshll.u32 %v191, 16
      %v815 = vrot.slane %v813, 5
      %v816 = vsel %vm308, %v811, %v815
      %v817 = vshrl.u32 %v191, 16
      %v819 = vrot.slane %v817, 4
      %v820 = vor.u32 %v819, %v815
      %v821 = vrot.slane %v820, 4
      %v823 = vshll.u32 %v192, 16
      %v825 = vrot.slane %v823, 5
      %v826 = vsel %vm308, %v821, %v825
      %v827 = vshrl.u32 %v192, 16
      %v829 = vrot.slane %v827, 4
      %v830 = vor.u32 %v829, %v825
      %v831 = vrot.slane %v830, 4
      %v833 = vshll.u32 %v285, 16
      %v835 = vrot.slane %v833, 5
      %v836 = vsel %vm308, %v831, %v835
      %v838 = vshrl.u32 %v193, 16
      %v840 = vrot.slane %v838, 4
      %v841 = vshll.u32 %v193, 16
      %v843 = vrot.slane %v841, 5
      %v844 = vor.u32 %v840, %v843
      %v845 = vrot.slane %v844, 4
      %v847 = vshll.u32 %v194, 16
      %v849 = vrot.slane %v847, 5
      %v850 = vsel %vm308, %v845, %v849
      %v851 = vshrl.u32 %v194, 16
      %v853 = vrot.slane %v851, 4
      %v854 = vor.u32 %v853, %v849
      %v855 = vrot.slane %v854, 4
      %v857 = vshll.u32 %v195, 16
      %v859 = vrot.slane %v857, 5
      %v860 = vsel %vm308, %v855, %v859
      %v861 = vshrl.u32 %v195, 16
      %v863 = vrot.slane %v861, 4
      %v864 = vor.u32 %v863, %v859
      %v865 = vrot.slane %v864, 4
      %v867 = vshll.u32 %v196, 16
      %v869 = vrot.slane %v867, 5
      %v870 = vsel %vm308, %v865, %v869
      %v871 = vshrl.u32 %v196, 16
      %v873 = vrot.slane %v871, 4
      %v874 = vor.u32 %v873, %v869
      %v875 = vrot.slane %v874, 4
      %v877 = vshll.u32 %v286, 16
      %v879 = vrot.slane %v877, 5
      %v880 = vsel %vm308, %v875, %v879
      %v882 = vshrl.u32 %v197, 16
      %v884 = vrot.slane %v882, 4
      %v885 = vshll.u32 %v197, 16
      %v887 = vrot.slane %v885, 5
      %v888 = vor.u32 %v884, %v887
      %v889 = vrot.slane %v888, 4
      %v891 = vshll.u32 %v198, 16
      %v893 = vrot.slane %v891, 5
      %v894 = vsel %vm308, %v889, %v893
      %v895 = vshrl.u32 %v198, 16
      %v897 = vrot.slane %v895, 4
      %v898 = vor.u32 %v897, %v893
      %v899 = vrot.slane %v898, 4
      %v901 = vshll.u32 %v199, 16
      %v903 = vrot.slane %v901, 5
      %v904 = vsel %vm308, %v899, %v903
      %v905 = vshrl.u32 %v199, 16
      %v907 = vrot.slane %v905, 4
      %v908 = vor.u32 %v907, %v903
      %v909 = vrot.slane %v908, 4
      %v911 = vshll.u32 %v200, 16
      %v913 = vrot.slane %v911, 5
      %v914 = vsel %vm308, %v909, %v913
      %v915 = vshrl.u32 %v200, 16
      %v917 = vrot.slane %v915, 4
      %v918 = vor.u32 %v917, %v913
      %v919 = vrot.slane %v918, 4
      %v921 = vshll.u32 %v287, 16
      %v923 = vrot.slane %v921, 5
      %v924 = vsel %vm308, %v919, %v923
      %v926 = vshrl.u32 %v201, 16
      %v928 = vrot.slane %v926, 4
      %v929 = vshll.u32 %v201, 16
      %v931 = vrot.slane %v929, 5
      %v932 = vor.u32 %v928, %v931
      %v933 = vrot.slane %v932, 4
      %v935 = vshll.u32 %v202, 16
      %v937 = vrot.slane %v935, 5
      %v938 = vsel %vm308, %v933, %v937
      %v939 = vshrl.u32 %v202, 16
      %v941 = vrot.slane %v939, 4
      %v942 = vor.u32 %v941, %v937
      %v943 = vrot.slane %v942, 4
      %v945 = vshll.u32 %v203, 16
      %v947 = vrot.slane %v945, 5
      %v948 = vsel %vm308, %v943, %v947
      %v949 = vshrl.u32 %v203, 16
      %v951 = vrot.slane %v949, 4
      %v952 = vor.u32 %v951, %v947
      %v953 = vrot.slane %v952, 4
      %v955 = vshll.u32 %v204, 16
      %v957 = vrot.slane %v955, 5
      %v958 = vsel %vm308, %v953, %v957
      %v959 = vshrl.u32 %v204, 16
      %v961 = vrot.slane %v959, 4
      %v962 = vor.u32 %v961, %v957
      %v963 = vrot.slane %v962, 4
      %v965 = vshll.u32 %v288, 16
      %v967 = vrot.slane %v965, 5
      %v968 = vsel %vm308, %v963, %v967
      %v970 = vshrl.u32 %v205, 16
      %v972 = vrot.slane %v970, 4
      %v973 = vshll.u32 %v205, 16
      %v975 = vrot.slane %v973, 5
      %v976 = vor.u32 %v972, %v975
      %v977 = vrot.slane %v976, 4
      %v979 = vshll.u32 %v206, 16
      %v981 = vrot.slane %v979, 5
      %v982 = vsel %vm308, %v977, %v981
      %v983 = vshrl.u32 %v206, 16
      %v985 = vrot.slane %v983, 4
      %v986 = vor.u32 %v985, %v981
      %v987 = vrot.slane %v986, 4
      %v989 = vshll.u32 %v207, 16
      %v991 = vrot.slane %v989, 5
      %v992 = vsel %vm308, %v987, %v991
      %v993 = vshrl.u32 %v207, 16
      %v995 = vrot.slane %v993, 4
      %v996 = vor.u32 %v995, %v991
      %v997 = vrot.slane %v996, 4
      %v999 = vshll.u32 %v208, 16
      %v1001 = vrot.slane %v999, 5
      %v1002 = vsel %vm308, %v997, %v1001
      %v1003 = vshrl.u32 %v208, 16
      %v1005 = vrot.slane %v1003, 4
      %v1006 = vor.u32 %v1005, %v1001
      %v1007 = vrot.slane %v1006, 4
      %v1009 = vshll.u32 %v289, 16
      %v1011 = vrot.slane %v1009, 5
      %v1012 = vsel %vm308, %v1007, %v1011
      %v1014 = vshrl.u32 %v209, 16
      %v1016 = vrot.slane %v1014, 4
      %v1017 = vshll.u32 %v209, 16
      %v1019 = vrot.slane %v1017, 5
      %v1020 = vor.u32 %v1016, %v1019
      %v1021 = vrot.slane %v1020, 4
      %v1023 = vshll.u32 %v210, 16
      %v1025 = vrot.slane %v1023, 5
      %v1026 = vsel %vm308, %v1021, %v1025
      %v1027 = vshrl.u32 %v210, 16
      %v1029 = vrot.slane %v1027, 4
      %v1030 = vor.u32 %v1029, %v1025
      %v1031 = vrot.slane %v1030, 4
      %v1033 = vshll.u32 %v211, 16
      %v1035 = vrot.slane %v1033, 5
      %v1036 = vsel %vm308, %v1031, %v1035
      %v1037 = vshrl.u32 %v211, 16
      %v1039 = vrot.slane %v1037, 4
      %v1040 = vor.u32 %v1039, %v1035
      %v1041 = vrot.slane %v1040, 4
      %v1043 = vshll.u32 %v212, 16
      %v1045 = vrot.slane %v1043, 5
      %v1046 = vsel %vm308, %v1041, %v1045
      %v1047 = vshrl.u32 %v212, 16
      %v1049 = vrot.slane %v1047, 4
      %v1050 = vor.u32 %v1049, %v1045
      %v1051 = vrot.slane %v1050, 4
      %v1053 = vshll.u32 %v290, 16
      %v1055 = vrot.slane %v1053, 5
      %v1056 = vsel %vm308, %v1051, %v1055
      %v1058 = vshrl.u32 %v213, 16
      %v1060 = vrot.slane %v1058, 4
      %v1061 = vshll.u32 %v213, 16
      %v1063 = vrot.slane %v1061, 5
      %v1064 = vor.u32 %v1060, %v1063
      %v1065 = vrot.slane %v1064, 4
      %v1067 = vshll.u32 %v214, 16
      %v1069 = vrot.slane %v1067, 5
      %v1070 = vsel %vm308, %v1065, %v1069
      %v1071 = vshrl.u32 %v214, 16
      %v1073 = vrot.slane %v1071, 4
      %v1074 = vor.u32 %v1073, %v1069
      %v1075 = vrot.slane %v1074, 4
      %v1077 = vshll.u32 %v215, 16
      %v1079 = vrot.slane %v1077, 5
      %v1080 = vsel %vm308, %v1075, %v1079
      %v1081 = vshrl.u32 %v215, 16
      %v1083 = vrot.slane %v1081, 4
      %v1084 = vor.u32 %v1083, %v1079
      %v1085 = vrot.slane %v1084, 4
      %v1087 = vshll.u32 %v216, 16
      %v1089 = vrot.slane %v1087, 5
      %v1090 = vsel %vm308, %v1085, %v1089
      %v1091 = vshrl.u32 %v216, 16
      %v1093 = vrot.slane %v1091, 4
      %v1094 = vor.u32 %v1093, %v1089
      %v1095 = vrot.slane %v1094, 4
      %v1097 = vshll.u32 %v291, 16
      %v1099 = vrot.slane %v1097, 5
      %v1100 = vsel %vm308, %v1095, %v1099
      %v1102 = vshrl.u32 %v217, 16
      %v1104 = vrot.slane %v1102, 4
      %v1105 = vshll.u32 %v217, 16
      %v1107 = vrot.slane %v1105, 5
      %v1108 = vor.u32 %v1104, %v1107
      %v1109 = vrot.slane %v1108, 4
      %v1111 = vshll.u32 %v218, 16
      %v1113 = vrot.slane %v1111, 5
      %v1114 = vsel %vm308, %v1109, %v1113
      %v1115 = vshrl.u32 %v218, 16
      %v1117 = vrot.slane %v1115, 4
      %v1118 = vor.u32 %v1117, %v1113
      %v1119 = vrot.slane %v1118, 4
      %v1121 = vshll.u32 %v219, 16
      %v1123 = vrot.slane %v1121, 5
      %v1124 = vsel %vm308, %v1119, %v1123
      %v1125 = vshrl.u32 %v219, 16
      %v1127 = vrot.slane %v1125, 4
      %v1128 = vor.u32 %v1127, %v1123
      %v1129 = vrot.slane %v1128, 4
      %v1131 = vshll.u32 %v220, 16
      %v1133 = vrot.slane %v1131, 5
      %v1134 = vsel %vm308, %v1129, %v1133
      %v1135 = vshrl.u32 %v220, 16
      %v1137 = vrot.slane %v1135, 4
      %v1138 = vor.u32 %v1137, %v1133
      %v1139 = vrot.slane %v1138, 4
      %v1141 = vshll.u32 %v292, 16
      %v1143 = vrot.slane %v1141, 5
      %v1144 = vsel %vm308, %v1139, %v1143
      %v1146 = vshrl.u32 %v221, 16
      %v1148 = vrot.slane %v1146, 4
      %v1149 = vshll.u32 %v221, 16
      %v1151 = vrot.slane %v1149, 5
      %v1152 = vor.u32 %v1148, %v1151
      %v1153 = vrot.slane %v1152, 4
      %v1155 = vshll.u32 %v222, 16
      %v1157 = vrot.slane %v1155, 5
      %v1158 = vsel %vm308, %v1153, %v1157
      %v1159 = vshrl.u32 %v222, 16
      %v1161 = vrot.slane %v1159, 4
      %v1162 = vor.u32 %v1161, %v1157
      %v1163 = vrot.slane %v1162, 4
      %v1165 = vshll.u32 %v223, 16
      %v1167 = vrot.slane %v1165, 5
      %v1168 = vsel %vm308, %v1163, %v1167
      %v1169 = vshrl.u32 %v223, 16
      %v1171 = vrot.slane %v1169, 4
      %v1172 = vor.u32 %v1171, %v1167
      %v1173 = vrot.slane %v1172, 4
      %v1175 = vshll.u32 %v224, 16
      %v1177 = vrot.slane %v1175, 5
      %v1178 = vsel %vm308, %v1173, %v1177
      %v1179 = vshrl.u32 %v224, 16
      %v1181 = vrot.slane %v1179, 4
      %v1182 = vor.u32 %v1181, %v1177
      %v1183 = vrot.slane %v1182, 4
      %v1185 = vshll.u32 %v293, 16
      %v1187 = vrot.slane %v1185, 5
      %v1188 = vsel %vm308, %v1183, %v1187
      %v1190 = vshrl.u32 %v225, 16
      %v1192 = vrot.slane %v1190, 4
      %v1193 = vshll.u32 %v225, 16
      %v1195 = vrot.slane %v1193, 5
      %v1196 = vor.u32 %v1192, %v1195
      %v1197 = vrot.slane %v1196, 4
      %v1199 = vshll.u32 %v226, 16
      %v1201 = vrot.slane %v1199, 5
      %v1202 = vsel %vm308, %v1197, %v1201
      %v1203 = vshrl.u32 %v226, 16
      %v1205 = vrot.slane %v1203, 4
      %v1206 = vor.u32 %v1205, %v1201
      %v1207 = vrot.slane %v1206, 4
      %v1209 = vshll.u32 %v227, 16
      %v1211 = vrot.slane %v1209, 5
      %v1212 = vsel %vm308, %v1207, %v1211
      %v1213 = vshrl.u32 %v227, 16
      %v1215 = vrot.slane %v1213, 4
      %v1216 = vor.u32 %v1215, %v1211
      %v1217 = vrot.slane %v1216, 4
      %v1219 = vshll.u32 %v228, 16
      %v1221 = vrot.slane %v1219, 5
      %v1222 = vsel %vm308, %v1217, %v1221
      %v1223 = vshrl.u32 %v228, 16
      %v1225 = vrot.slane %v1223, 4
      %v1226 = vor.u32 %v1225, %v1221
      %v1227 = vrot.slane %v1226, 4
      %v1229 = vshll.u32 %v294, 16
      %v1231 = vrot.slane %v1229, 5
      %v1232 = vsel %vm308, %v1227, %v1231
      %v1234 = vshrl.u32 %v229, 16
      %v1236 = vrot.slane %v1234, 4
      %v1237 = vshll.u32 %v229, 16
      %v1239 = vrot.slane %v1237, 5
      %v1240 = vor.u32 %v1236, %v1239
      %v1241 = vrot.slane %v1240, 4
      %v1243 = vshll.u32 %v230, 16
      %v1245 = vrot.slane %v1243, 5
      %v1246 = vsel %vm308, %v1241, %v1245
      %v1247 = vshrl.u32 %v230, 16
      %v1249 = vrot.slane %v1247, 4
      %v1250 = vor.u32 %v1249, %v1245
      %v1251 = vrot.slane %v1250, 4
      %v1253 = vshll.u32 %v231, 16
      %v1255 = vrot.slane %v1253, 5
      %v1256 = vsel %vm308, %v1251, %v1255
      %v1257 = vshrl.u32 %v231, 16
      %v1259 = vrot.slane %v1257, 4
      %v1260 = vor.u32 %v1259, %v1255
      %v1261 = vrot.slane %v1260, 4
      %v1263 = vshll.u32 %v232, 16
      %v1265 = vrot.slane %v1263, 5
      %v1266 = vsel %vm308, %v1261, %v1265
      %v1267 = vshrl.u32 %v232, 16
      %v1269 = vrot.slane %v1267, 4
      %v1270 = vor.u32 %v1269, %v1265
      %v1271 = vrot.slane %v1270, 4
      %v1273 = vshll.u32 %v295, 16
      %v1275 = vrot.slane %v1273, 5
      %v1276 = vsel %vm308, %v1271, %v1275
      %v1278 = vshrl.u32 %v233, 16
      %v1280 = vrot.slane %v1278, 4
      %v1281 = vshll.u32 %v233, 16
      %v1283 = vrot.slane %v1281, 5
      %v1284 = vor.u32 %v1280, %v1283
      %v1285 = vrot.slane %v1284, 4
      %v1287 = vshll.u32 %v234, 16
      %v1289 = vrot.slane %v1287, 5
      %v1290 = vsel %vm308, %v1285, %v1289
      %v1291 = vshrl.u32 %v234, 16
      %v1293 = vrot.slane %v1291, 4
      %v1294 = vor.u32 %v1293, %v1289
      %v1295 = vrot.slane %v1294, 4
      %v1297 = vshll.u32 %v235, 16
      %v1299 = vrot.slane %v1297, 5
      %v1300 = vsel %vm308, %v1295, %v1299
      %v1301 = vshrl.u32 %v235, 16
      %v1303 = vrot.slane %v1301, 4
      %v1304 = vor.u32 %v1303, %v1299
      %v1305 = vrot.slane %v1304, 4
      %v1307 = vshll.u32 %v236, 16
      %v1309 = vrot.slane %v1307, 5
      %v1310 = vsel %vm308, %v1305, %v1309
      %v1311 = vshrl.u32 %v236, 16
      %v1313 = vrot.slane %v1311, 4
      %v1314 = vor.u32 %v1313, %v1309
      %v1315 = vrot.slane %v1314, 4
      %v1317 = vshll.u32 %v296, 16
      %v1319 = vrot.slane %v1317, 5
      %v1320 = vsel %vm308, %v1315, %v1319
      %v1322 = vshrl.u32 %v237, 16
      %v1324 = vrot.slane %v1322, 4
      %v1325 = vshll.u32 %v237, 16
      %v1327 = vrot.slane %v1325, 5
      %v1328 = vor.u32 %v1324, %v1327
      %v1329 = vrot.slane %v1328, 4
      %v1331 = vshll.u32 %v238, 16
      %v1333 = vrot.slane %v1331, 5
      %v1334 = vsel %vm308, %v1329, %v1333
      %v1335 = vshrl.u32 %v238, 16
      %v1337 = vrot.slane %v1335, 4
      %v1338 = vor.u32 %v1337, %v1333
      %v1339 = vrot.slane %v1338, 4
      %v1341 = vshll.u32 %v239, 16
      %v1343 = vrot.slane %v1341, 5
      %v1344 = vsel %vm308, %v1339, %v1343
      %v1345 = vshrl.u32 %v239, 16
      %v1347 = vrot.slane %v1345, 4
      %v1348 = vor.u32 %v1347, %v1343
      %v1349 = vrot.slane %v1348, 4
      %v1351 = vshll.u32 %v240, 16
      %v1353 = vrot.slane %v1351, 5
      %v1354 = vsel %vm308, %v1349, %v1353
      %v1355 = vshrl.u32 %v240, 16
      %v1357 = vrot.slane %v1355, 4
      %v1358 = vor.u32 %v1357, %v1353
      %v1359 = vrot.slane %v1358, 4
      %v1361 = vshll.u32 %v297, 16
      %v1363 = vrot.slane %v1361, 5
      %v1364 = vsel %vm308, %v1359, %v1363
      %v1366 = vshrl.u32 %v241, 16
      %v1368 = vrot.slane %v1366, 4
      %v1369 = vshll.u32 %v241, 16
      %v1371 = vrot.slane %v1369, 5
      %v1372 = vor.u32 %v1368, %v1371
      %v1373 = vrot.slane %v1372, 4
      %v1375 = vshll.u32 %v242, 16
      %v1377 = vrot.slane %v1375, 5
      %v1378 = vsel %vm308, %v1373, %v1377
      %v1379 = vshrl.u32 %v242, 16
      %v1381 = vrot.slane %v1379, 4
      %v1382 = vor.u32 %v1381, %v1377
      %v1383 = vrot.slane %v1382, 4
      %v1385 = vshll.u32 %v243, 16
      %v1387 = vrot.slane %v1385, 5
      %v1388 = vsel %vm308, %v1383, %v1387
      %v1389 = vshrl.u32 %v243, 16
      %v1391 = vrot.slane %v1389, 4
      %v1392 = vor.u32 %v1391, %v1387
      %v1393 = vrot.slane %v1392, 4
      %v1395 = vshll.u32 %v244, 16
      %v1397 = vrot.slane %v1395, 5
      %v1398 = vsel %vm308, %v1393, %v1397
      %v1399 = vshrl.u32 %v244, 16
      %v1401 = vrot.slane %v1399, 4
      %v1402 = vor.u32 %v1401, %v1397
      %v1403 = vrot.slane %v1402, 4
      %v1405 = vshll.u32 %v298, 16
      %v1407 = vrot.slane %v1405, 5
      %v1408 = vsel %vm308, %v1403, %v1407
      %v1410 = vshrl.u32 %v245, 16
      %v1412 = vrot.slane %v1410, 4
      %v1413 = vshll.u32 %v245, 16
      %v1415 = vrot.slane %v1413, 5
      %v1416 = vor.u32 %v1412, %v1415
      %v1417 = vrot.slane %v1416, 4
      %v1419 = vshll.u32 %v246, 16
      %v1421 = vrot.slane %v1419, 5
      %v1422 = vsel %vm308, %v1417, %v1421
      %v1423 = vshrl.u32 %v246, 16
      %v1425 = vrot.slane %v1423, 4
      %v1426 = vor.u32 %v1425, %v1421
      %v1427 = vrot.slane %v1426, 4
      %v1429 = vshll.u32 %v247, 16
      %v1431 = vrot.slane %v1429, 5
      %v1432 = vsel %vm308, %v1427, %v1431
      %v1433 = vshrl.u32 %v247, 16
      %v1435 = vrot.slane %v1433, 4
      %v1436 = vor.u32 %v1435, %v1431
      %v1437 = vrot.slane %v1436, 4
      %v1439 = vshll.u32 %v248, 16
      %v1441 = vrot.slane %v1439, 5
      %v1442 = vsel %vm308, %v1437, %v1441
      %v1443 = vshrl.u32 %v248, 16
      %v1445 = vrot.slane %v1443, 4
      %v1446 = vor.u32 %v1445, %v1441
      %v1447 = vrot.slane %v1446, 4
      %v1449 = vshll.u32 %v299, 16
      %v1451 = vrot.slane %v1449, 5
      %v1452 = vsel %vm308, %v1447, %v1451
      %v1454 = vshrl.u32 %v249, 16
      %v1456 = vrot.slane %v1454, 4
      %v1457 = vshll.u32 %v249, 16
      %v1459 = vrot.slane %v1457, 5
      %v1460 = vor.u32 %v1456, %v1459
      %v1461 = vrot.slane %v1460, 4
      %v1463 = vshll.u32 %v250, 16
      %v1465 = vrot.slane %v1463, 5
      %v1466 = vsel %vm308, %v1461, %v1465
      %v1467 = vshrl.u32 %v250, 16
      %v1469 = vrot.slane %v1467, 4
      %v1470 = vor.u32 %v1469, %v1465
      %v1471 = vrot.slane %v1470, 4
      %v1473 = vshll.u32 %v251, 16
      %v1475 = vrot.slane %v1473, 5
      %v1476 = vsel %vm308, %v1471, %v1475
      %v1477 = vshrl.u32 %v251, 16
      %v1479 = vrot.slane %v1477, 4
      %v1480 = vor.u32 %v1479, %v1475
      %v1481 = vrot.slane %v1480, 4
      %v1483 = vshll.u32 %v252, 16
      %v1485 = vrot.slane %v1483, 5
      %v1486 = vsel %vm308, %v1481, %v1485
      %v1487 = vshrl.u32 %v252, 16
      %v1489 = vrot.slane %v1487, 4
      %v1490 = vor.u32 %v1489, %v1485
      %v1491 = vrot.slane %v1490, 4
      %v1493 = vshll.u32 %v300, 16
      %v1495 = vrot.slane %v1493, 5
      %v1496 = vsel %vm308, %v1491, %v1495
      %v1498 = vshrl.u32 %v253, 16
      %v1500 = vrot.slane %v1498, 4
      %v1501 = vshll.u32 %v253, 16
      %v1503 = vrot.slane %v1501, 5
      %v1504 = vor.u32 %v1500, %v1503
      %v1505 = vrot.slane %v1504, 4
      %v1507 = vshll.u32 %v254, 16
      %v1509 = vrot.slane %v1507, 5
      %v1510 = vsel %vm308, %v1505, %v1509
      %v1511 = vshrl.u32 %v254, 16
      %v1513 = vrot.slane %v1511, 4
      %v1514 = vor.u32 %v1513, %v1509
      %v1515 = vrot.slane %v1514, 4
      %v1517 = vshll.u32 %v255, 16
      %v1519 = vrot.slane %v1517, 5
      %v1520 = vsel %vm308, %v1515, %v1519
      %v1521 = vshrl.u32 %v255, 16
      %v1523 = vrot.slane %v1521, 4
      %v1524 = vor.u32 %v1523, %v1519
      %v1525 = vrot.slane %v1524, 4
      %v1527 = vshll.u32 %v256, 16
      %v1529 = vrot.slane %v1527, 5
      %v1530 = vsel %vm308, %v1525, %v1529
      %v1531 = vshrl.u32 %v256, 16
      %v1533 = vrot.slane %v1531, 4
      %v1534 = vor.u32 %v1533, %v1529
      %v1535 = vrot.slane %v1534, 4
      %v1537 = vshll.u32 %v301, 16
      %v1539 = vrot.slane %v1537, 5
      %v1540 = vsel %vm308, %v1535, %v1539
      %v1542 = vshrl.u32 %v257, 16
      %v1544 = vrot.slane %v1542, 4
      %v1545 = vshll.u32 %v257, 16
      %v1547 = vrot.slane %v1545, 5
      %v1548 = vor.u32 %v1544, %v1547
      %v1549 = vrot.slane %v1548, 4
      %v1551 = vshll.u32 %v258, 16
      %v1553 = vrot.slane %v1551, 5
      %v1554 = vsel %vm308, %v1549, %v1553
      %v1555 = vshrl.u32 %v258, 16
      %v1557 = vrot.slane %v1555, 4
      %v1558 = vor.u32 %v1557, %v1553
      %v1559 = vrot.slane %v1558, 4
      %v1561 = vshll.u32 %v259, 16
      %v1563 = vrot.slane %v1561, 5
      %v1564 = vsel %vm308, %v1559, %v1563
      %v1565 = vshrl.u32 %v259, 16
      %v1567 = vrot.slane %v1565, 4
      %v1568 = vor.u32 %v1567, %v1563
      %v1569 = vrot.slane %v1568, 4
      %v1571 = vshll.u32 %v260, 16
      %v1573 = vrot.slane %v1571, 5
      %v1574 = vsel %vm308, %v1569, %v1573
      %v1575 = vshrl.u32 %v260, 16
      %v1577 = vrot.slane %v1575, 4
      %v1578 = vor.u32 %v1577, %v1573
      %v1579 = vrot.slane %v1578, 4
      %v1581 = vshll.u32 %v302, 16
      %v1583 = vrot.slane %v1581, 5
      %v1584 = vsel %vm308, %v1579, %v1583
      %v1586 = vshrl.u32 %v261, 16
      %v1588 = vrot.slane %v1586, 4
      %v1589 = vshll.u32 %v261, 16
      %v1591 = vrot.slane %v1589, 5
      %v1592 = vor.u32 %v1588, %v1591
      %v1593 = vrot.slane %v1592, 4
      %v1595 = vshll.u32 %v262, 16
      %v1597 = vrot.slane %v1595, 5
      %v1598 = vsel %vm308, %v1593, %v1597
      %v1599 = vshrl.u32 %v262, 16
      %v1601 = vrot.slane %v1599, 4
      %v1602 = vor.u32 %v1601, %v1597
      %v1603 = vrot.slane %v1602, 4
      %v1605 = vshll.u32 %v263, 16
      %v1607 = vrot.slane %v1605, 5
      %v1608 = vsel %vm308, %v1603, %v1607
      %v1609 = vshrl.u32 %v263, 16
      %v1611 = vrot.slane %v1609, 4
      %v1612 = vor.u32 %v1611, %v1607
      %v1613 = vrot.slane %v1612, 4
      %v1615 = vshll.u32 %v264, 16
      %v1617 = vrot.slane %v1615, 5
      %v1618 = vsel %vm308, %v1613, %v1617
      %v1619 = vshrl.u32 %v264, 16
      %v1621 = vrot.slane %v1619, 4
      %v1622 = vor.u32 %v1621, %v1617
      %v1623 = vrot.slane %v1622, 4
      %v1625 = vshll.u32 %v303, 16
      %v1627 = vrot.slane %v1625, 5
      %v1628 = vsel %vm308, %v1623, %v1627
      %v1630 = vshrl.u32 %v265, 16
      %v1632 = vrot.slane %v1630, 4
      %v1633 = vshll.u32 %v265, 16
      %v1635 = vrot.slane %v1633, 5
      %v1636 = vor.u32 %v1632, %v1635
      %v1637 = vrot.slane %v1636, 4
      %v1639 = vshll.u32 %v266, 16
      %v1641 = vrot.slane %v1639, 5
      %v1642 = vsel %vm308, %v1637, %v1641
      %v1643 = vshrl.u32 %v266, 16
      %v1645 = vrot.slane %v1643, 4
      %v1646 = vor.u32 %v1645, %v1641
      %v1647 = vrot.slane %v1646, 4
      %v1649 = vshll.u32 %v267, 16
      %v1651 = vrot.slane %v1649, 5
      %v1652 = vsel %vm308, %v1647, %v1651
      %v1653 = vshrl.u32 %v267, 16
      %v1655 = vrot.slane %v1653, 4
      %v1656 = vor.u32 %v1655, %v1651
      %v1657 = vrot.slane %v1656, 4
      %v1659 = vshll.u32 %v268, 16
      %v1661 = vrot.slane %v1659, 5
      %v1662 = vsel %vm308, %v1657, %v1661
      %v1663 = vshrl.u32 %v268, 16
      %v1665 = vrot.slane %v1663, 4
      %v1666 = vor.u32 %v1665, %v1661
      %v1667 = vrot.slane %v1666, 4
      %v1669 = vshll.u32 %v304, 16
      %v1671 = vrot.slane %v1669, 5
      %v1672 = vsel %vm308, %v1667, %v1671
      %v1674 = vshrl.u32 %v269, 16
      %v1676 = vrot.slane %v1674, 4
      %v1677 = vshll.u32 %v269, 16
      %v1679 = vrot.slane %v1677, 5
      %v1680 = vor.u32 %v1676, %v1679
      %v1681 = vrot.slane %v1680, 4
      %v1683 = vshll.u32 %v270, 16
      %v1685 = vrot.slane %v1683, 5
      %v1686 = vsel %vm308, %v1681, %v1685
      %v1687 = vshrl.u32 %v270, 16
      %v1689 = vrot.slane %v1687, 4
      %v1690 = vor.u32 %v1689, %v1685
      %v1691 = vrot.slane %v1690, 4
      %v1693 = vshll.u32 %v271, 16
      %v1695 = vrot.slane %v1693, 5
      %v1696 = vsel %vm308, %v1691, %v1695
      %v1697 = vshrl.u32 %v271, 16
      %v1699 = vrot.slane %v1697, 4
      %v1700 = vor.u32 %v1699, %v1695
      %v1701 = vrot.slane %v1700, 4
      %v1703 = vshll.u32 %v272, 16
      %v1705 = vrot.slane %v1703, 5
      %v1706 = vsel %vm308, %v1701, %v1705
      %v1707 = vshrl.u32 %v272, 16
      %v1709 = vrot.slane %v1707, 4
      %v1710 = vor.u32 %v1709, %v1705
      %v1711 = vrot.slane %v1710, 4
      %v1713 = vshll.u32 %v305, 16
      %v1715 = vrot.slane %v1713, 5
      %v1716 = vsel %vm308, %v1711, %v1715
      %s1717 = scalar_lea.vmem %s1, 2
      %v1718 = vld [vmem:[%s1717] sm:$0x3]
      %v1719 = vunpack.c.l.b16 %v322
      %v1720 = vunpack.c.l.b16 %v332
      %v1721 = vunpack.c.l.b16 %v342
      %v1722 = vunpack.c.l.b16 %v352
      %v1723 = vunpack.c.l.b16 %v366
      %v1724 = vunpack.c.l.b16 %v376
      %v1725 = vunpack.c.l.b16 %v386
      %v1726 = vunpack.c.l.b16 %v396
      %v1727 = vunpack.c.l.b16 %v410
      %v1728 = vunpack.c.l.b16 %v420
      %v1729 = vunpack.c.l.b16 %v430
      %v1730 = vunpack.c.l.b16 %v440
      %v1731 = vunpack.c.l.b16 %v454
      %v1732 = vunpack.c.l.b16 %v464
      %v1733 = vunpack.c.l.b16 %v474
      %v1734 = vunpack.c.l.b16 %v484
      %v1735 = vunpack.c.l.b16 %v498
      %v1736 = vunpack.c.l.b16 %v508
      %v1737 = vunpack.c.l.b16 %v518
      %v1738 = vunpack.c.l.b16 %v528
      %v1739 = vunpack.c.l.b16 %v542
      %v1740 = vunpack.c.l.b16 %v552
      %v1741 = vunpack.c.l.b16 %v562
      %v1742 = vunpack.c.l.b16 %v572
      %v1743 = vunpack.c.l.b16 %v586
      %v1744 = vunpack.c.l.b16 %v596
      %v1745 = vunpack.c.l.b16 %v606
      %v1746 = vunpack.c.l.b16 %v616
      %v1747 = vunpack.c.l.b16 %v630
      %v1748 = vunpack.c.l.b16 %v640
      %v1749 = vunpack.c.l.b16 %v650
      %v1750 = vunpack.c.l.b16 %v660
      %v1751 = vunpack.c.l.b16 %v674
      %v1752 = vunpack.c.l.b16 %v684
      %v1753 = vunpack.c.l.b16 %v694
      %v1754 = vunpack.c.l.b16 %v704
      %v1755 = vunpack.c.l.b16 %v718
      %v1756 = vunpack.c.l.b16 %v728
      %v1757 = vunpack.c.l.b16 %v738
      %v1758 = vunpack.c.l.b16 %v748
      %v1759 = vunpack.c.l.b16 %v762
      %v1760 = vunpack.c.l.b16 %v772
      %v1761 = vunpack.c.l.b16 %v782
      %v1762 = vunpack.c.l.b16 %v792
      %v1763 = vunpack.c.l.b16 %v806
      %v1764 = vunpack.c.l.b16 %v816
      %v1765 = vunpack.c.l.b16 %v826
      %v1766 = vunpack.c.l.b16 %v836
      %v1767 = vunpack.c.l.b16 %v850
      %v1768 = vunpack.c.l.b16 %v860
      %v1769 = vunpack.c.l.b16 %v870
      %v1770 = vunpack.c.l.b16 %v880
      %v1771 = vunpack.c.l.b16 %v894
      %v1772 = vunpack.c.l.b16 %v904
      %v1773 = vunpack.c.l.b16 %v914
      %v1774 = vunpack.c.l.b16 %v924
      %v1775 = vunpack.c.l.b16 %v938
      %v1776 = vunpack.c.l.b16 %v948
      %v1777 = vunpack.c.l.b16 %v958
      %v1778 = vunpack.c.l.b16 %v968
      %v1779 = vunpack.c.l.b16 %v982
      %v1780 = vunpack.c.l.b16 %v992
      %v1781 = vunpack.c.l.b16 %v1002
      %v1782 = vunpack.c.l.b16 %v1012
      %v1783 = vunpack.c.l.b16 %v1026
      %v1784 = vunpack.c.l.b16 %v1036
      %v1785 = vunpack.c.l.b16 %v1046
      %v1786 = vunpack.c.l.b16 %v1056
      %v1787 = vunpack.c.l.b16 %v1070
      %v1788 = vunpack.c.l.b16 %v1080
      %v1789 = vunpack.c.l.b16 %v1090
      %v1790 = vunpack.c.l.b16 %v1100
      %v1791 = vunpack.c.l.b16 %v1114
      %v1792 = vunpack.c.l.b16 %v1124
      %v1793 = vunpack.c.l.b16 %v1134
      %v1794 = vunpack.c.l.b16 %v1144
      %v1795 = vunpack.c.l.b16 %v1158
      %v1796 = vunpack.c.l.b16 %v1168
      %v1797 = vunpack.c.l.b16 %v1178
      %v1798 = vunpack.c.l.b16 %v1188
      %v1799 = vunpack.c.l.b16 %v1202
      %v1800 = vunpack.c.l.b16 %v1212
      %v1801 = vunpack.c.l.b16 %v1222
      %v1802 = vunpack.c.l.b16 %v1232
      %v1803 = vunpack.c.l.b16 %v1246
      %v1804 = vunpack.c.l.b16 %v1256
      %v1805 = vunpack.c.l.b16 %v1266
      %v1806 = vunpack.c.l.b16 %v1276
      %v1807 = vunpack.c.l.b16 %v1290
      %v1808 = vunpack.c.l.b16 %v1300
      %v1809 = vunpack.c.l.b16 %v1310
      %v1810 = vunpack.c.l.b16 %v1320
      %v1811 = vunpack.c.l.b16 %v1334
      %v1812 = vunpack.c.l.b16 %v1344
      %v1813 = vunpack.c.l.b16 %v1354
      %v1814 = vunpack.c.l.b16 %v1364
      %v1815 = vunpack.c.l.b16 %v1378
      %v1816 = vunpack.c.l.b16 %v1388
      %v1817 = vunpack.c.l.b16 %v1398
      %v1818 = vunpack.c.l.b16 %v1408
      %v1819 = vunpack.c.l.b16 %v1422
      %v1820 = vunpack.c.l.b16 %v1432
      %v1821 = vunpack.c.l.b16 %v1442
      %v1822 = vunpack.c.l.b16 %v1452
      %v1823 = vunpack.c.l.b16 %v1466
      %v1824 = vunpack.c.l.b16 %v1476
      %v1825 = vunpack.c.l.b16 %v1486
      %v1826 = vunpack.c.l.b16 %v1496
      %v1827 = vunpack.c.l.b16 %v1510
      %v1828 = vunpack.c.l.b16 %v1520
      %v1829 = vunpack.c.l.b16 %v1530
      %v1830 = vunpack.c.l.b16 %v1540
      %v1831 = vunpack.c.l.b16 %v1554
      %v1832 = vunpack.c.l.b16 %v1564
      %v1833 = vunpack.c.l.b16 %v1574
      %v1834 = vunpack.c.l.b16 %v1584
      %v1835 = vunpack.c.l.b16 %v1598
      %v1836 = vunpack.c.l.b16 %v1608
      %v1837 = vunpack.c.l.b16 %v1618
      %v1838 = vunpack.c.l.b16 %v1628
      %v1839 = vunpack.c.l.b16 %v1642
      %v1840 = vunpack.c.l.b16 %v1652
      %v1841 = vunpack.c.l.b16 %v1662
      %v1842 = vunpack.c.l.b16 %v1672
      %v1843 = vunpack.c.l.b16 %v1686
      %v1844 = vunpack.c.l.b16 %v1696
      %v1845 = vunpack.c.l.b16 %v1706
      %v1846 = vunpack.c.l.b16 %v1716
      %v1847 = vpack.c.b16 %v1720, %v1719
      %v1848 = vpack.c.b16 %v1722, %v1721
      %v1849 = vpack.c.b16 %v1724, %v1723
      %v1850 = vpack.c.b16 %v1726, %v1725
      %v1851 = vpack.c.b16 %v1728, %v1727
      %v1852 = vpack.c.b16 %v1730, %v1729
      %v1853 = vpack.c.b16 %v1732, %v1731
      %v1854 = vpack.c.b16 %v1734, %v1733
      %v1855 = vpack.c.b16 %v1736, %v1735
      %v1856 = vpack.c.b16 %v1738, %v1737
      %v1857 = vpack.c.b16 %v1740, %v1739
      %v1858 = vpack.c.b16 %v1742, %v1741
      %v1859 = vpack.c.b16 %v1744, %v1743
      %v1860 = vpack.c.b16 %v1746, %v1745
      %v1861 = vpack.c.b16 %v1748, %v1747
      %v1862 = vpack.c.b16 %v1750, %v1749
      %v1863 = vpack.c.b16 %v1752, %v1751
      %v1864 = vpack.c.b16 %v1754, %v1753
      %v1865 = vpack.c.b16 %v1756, %v1755
      %v1866 = vpack.c.b16 %v1758, %v1757
      %v1867 = vpack.c.b16 %v1760, %v1759
      %v1868 = vpack.c.b16 %v1762, %v1761
      %v1869 = vpack.c.b16 %v1764, %v1763
      %v1870 = vpack.c.b16 %v1766, %v1765
      %v1871 = vpack.c.b16 %v1768, %v1767
      %v1872 = vpack.c.b16 %v1770, %v1769
      %v1873 = vpack.c.b16 %v1772, %v1771
      %v1874 = vpack.c.b16 %v1774, %v1773
      %v1875 = vpack.c.b16 %v1776, %v1775
      %v1876 = vpack.c.b16 %v1778, %v1777
      %v1877 = vpack.c.b16 %v1780, %v1779
      %v1878 = vpack.c.b16 %v1782, %v1781
      %v1879 = vpack.c.b16 %v1784, %v1783
      %v1880 = vpack.c.b16 %v1786, %v1785
      %v1881 = vpack.c.b16 %v1788, %v1787
      %v1882 = vpack.c.b16 %v1790, %v1789
      %v1883 = vpack.c.b16 %v1792, %v1791
      %v1884 = vpack.c.b16 %v1794, %v1793
      %v1885 = vpack.c.b16 %v1796, %v1795
      %v1886 = vpack.c.b16 %v1798, %v1797
      %v1887 = vpack.c.b16 %v1800, %v1799
      %v1888 = vpack.c.b16 %v1802, %v1801
      %v1889 = vpack.c.b16 %v1804, %v1803
      %v1890 = vpack.c.b16 %v1806, %v1805
      %v1891 = vpack.c.b16 %v1808, %v1807
      %v1892 = vpack.c.b16 %v1810, %v1809
      %v1893 = vpack.c.b16 %v1812, %v1811
      %v1894 = vpack.c.b16 %v1814, %v1813
      %v1895 = vpack.c.b16 %v1816, %v1815
      %v1896 = vpack.c.b16 %v1818, %v1817
      %v1897 = vpack.c.b16 %v1820, %v1819
      %v1898 = vpack.c.b16 %v1822, %v1821
      %v1899 = vpack.c.b16 %v1824, %v1823
      %v1900 = vpack.c.b16 %v1826, %v1825
      %v1901 = vpack.c.b16 %v1828, %v1827
      %v1902 = vpack.c.b16 %v1830, %v1829
      %v1903 = vpack.c.b16 %v1832, %v1831
      %v1904 = vpack.c.b16 %v1834, %v1833
      %v1905 = vpack.c.b16 %v1836, %v1835
      %v1906 = vpack.c.b16 %v1838, %v1837
      %v1907 = vpack.c.b16 %v1840, %v1839
      %v1908 = vpack.c.b16 %v1842, %v1841
      %v1909 = vpack.c.b16 %v1844, %v1843
      %v1910 = vpack.c.b16 %v1846, %v1845
      %vm1911 = vcmask 31744
      %v1913 = vsel %vm1911, %v1847, 0
      %v1916 = vsel %vm1911, %v1848, 0
      %v1919 = vsel %vm1911, %v1849, 0
      %v1922 = vsel %vm1911, %v1850, 0
      %v1925 = vsel %vm1911, %v1851, 0
      %v1928 = vsel %vm1911, %v1852, 0
      %v1931 = vsel %vm1911, %v1853, 0
      %v1934 = vsel %vm1911, %v1854, 0
      %v1937 = vsel %vm1911, %v1855, 0
      %v1940 = vsel %vm1911, %v1856, 0
      %v1943 = vsel %vm1911, %v1857, 0
      %v1946 = vsel %vm1911, %v1858, 0
      %v1949 = vsel %vm1911, %v1859, 0
      %v1952 = vsel %vm1911, %v1860, 0
      %v1955 = vsel %vm1911, %v1861, 0
      %v1958 = vsel %vm1911, %v1862, 0
      %v1961 = vsel %vm1911, %v1863, 0
      %v1964 = vsel %vm1911, %v1864, 0
      %v1967 = vsel %vm1911, %v1865, 0
      %v1970 = vsel %vm1911, %v1866, 0
      %v1973 = vsel %vm1911, %v1867, 0
      %v1976 = vsel %vm1911, %v1868, 0
      %v1979 = vsel %vm1911, %v1869, 0
      %v1982 = vsel %vm1911, %v1870, 0
      %v1985 = vsel %vm1911, %v1871, 0
      %v1988 = vsel %vm1911, %v1872, 0
      %v1991 = vsel %vm1911, %v1873, 0
      %v1994 = vsel %vm1911, %v1874, 0
      %v1997 = vsel %vm1911, %v1875, 0
      %v2000 = vsel %vm1911, %v1876, 0
      %v2003 = vsel %vm1911, %v1877, 0
      %v2006 = vsel %vm1911, %v1878, 0
      %v2009 = vsel %vm1911, %v1879, 0
      %v2012 = vsel %vm1911, %v1880, 0
      %v2015 = vsel %vm1911, %v1881, 0
      %v2018 = vsel %vm1911, %v1882, 0
      %v2021 = vsel %vm1911, %v1883, 0
      %v2024 = vsel %vm1911, %v1884, 0
      %v2027 = vsel %vm1911, %v1885, 0
      %v2030 = vsel %vm1911, %v1886, 0
      %v2033 = vsel %vm1911, %v1887, 0
      %v2036 = vsel %vm1911, %v1888, 0
      %v2039 = vsel %vm1911, %v1889, 0
      %v2042 = vsel %vm1911, %v1890, 0
      %v2045 = vsel %vm1911, %v1891, 0
      %v2048 = vsel %vm1911, %v1892, 0
      %v2051 = vsel %vm1911, %v1893, 0
      %v2054 = vsel %vm1911, %v1894, 0
      %v2057 = vsel %vm1911, %v1895, 0
      %v2060 = vsel %vm1911, %v1896, 0
      %v2063 = vsel %vm1911, %v1897, 0
      %v2066 = vsel %vm1911, %v1898, 0
      %v2069 = vsel %vm1911, %v1899, 0
      %v2072 = vsel %vm1911, %v1900, 0
      %v2075 = vsel %vm1911, %v1901, 0
      %v2078 = vsel %vm1911, %v1902, 0
      %v2081 = vsel %vm1911, %v1903, 0
      %v2084 = vsel %vm1911, %v1904, 0
      %v2087 = vsel %vm1911, %v1905, 0
      %v2090 = vsel %vm1911, %v1906, 0
      %v2093 = vsel %vm1911, %v1907, 0
      %v2096 = vsel %vm1911, %v1908, 0
      %v2099 = vsel %vm1911, %v1909, 0
      %v2102 = vsel %vm1911, %v1910, 0
      %vm2104 = vcmask 1041408
      %v2106 = vsel %vm2104, %v1718, 0
      %2108 = vmatprep.subr.bf16.mxu0 0
      %2109 = vmatpush1.bf16.msra.mxu0 0
      %2110 = vmatprep.subr.bf16.mxu0 0
      %2111 = vmatpush1.bf16.msra.mxu0 0
      %2112 = vmatprep.subr.bf16.mxu0 0
      %2113 = vmatpush1.bf16.msra.mxu0 0
      %2114 = vmatprep.subr.bf16.mxu0 0
      %2115 = vmatpush1.bf16.msra.mxu0 0
      %2116 = vmatprep.subr.bf16.mxu0 0
      %2117 = vmatpush1.bf16.msra.mxu0 0
      %2118 = vmatprep.subr.bf16.mxu0 0
      %2119 = vmatpush1.bf16.msra.mxu0 0
      %2120 = vmatprep.subr.bf16.mxu0 0
      %2121 = vmatpush1.bf16.msra.mxu0 0
      %2122 = vmatprep.subr.bf16.mxu0 0
      %2123 = vmatpush1.bf16.msra.mxu0 %v2106
      %2124 = vmatprep.subr.bf16.mxu0 0
      %2125 = vmatpush2.bf16.msra.mxu0 0
      %2126 = vmatprep.subr.bf16.mxu0 0
      %2127 = vmatpush2.bf16.msra.mxu0 0
      %2128 = vmatprep.subr.bf16.mxu0 0
      %2129 = vmatpush2.bf16.msra.mxu0 0
      %2130 = vmatprep.subr.bf16.mxu0 0
      %2131 = vmatpush2.bf16.msra.mxu0 0
      %2132 = vmatprep.subr.bf16.mxu0 0
      %2133 = vmatpush2.bf16.msra.mxu0 0
      %2134 = vmatprep.subr.bf16.mxu0 0
      %2135 = vmatpush2.bf16.msra.mxu0 0
      %2136 = vmatprep.subr.bf16.mxu0 0
      %2137 = vmatpush2.bf16.msra.mxu0 0
      %2138 = vmatprep.subr.bf16.mxu0 0
      %2139 = vmatpush2.bf16.msra.mxu0 0
      %2140 = vmatprep.mubr.bf16.mxu0 0
      %2141 = vmatmul.mubr.bf16.gmra.mxu0 %v1913
      %v2142 = vpop.f32.mrf.mxu0
      %v2143 = vadd.f32 0.0, %v2142
      %v2144 = vpop.f32.mrf.mxu0
      %v2145 = vpop.f32.mrf.mxu0
      %v2146 = vadd.f32 0.0, %v2145
      %v2147 = vpop.f32.mrf.mxu0
      %2148 = vmatprep.mubr.bf16.mxu0 0
      %2149 = vmatmul.mubr.bf16.gmra.mxu0 %v1916
      %v2150 = vpop.f32.mrf.mxu0
      %v2151 = vadd.f32 0.0, %v2150
      %v2152 = vpop.f32.mrf.mxu0
      %v2153 = vpop.f32.mrf.mxu0
      %v2154 = vadd.f32 0.0, %v2153
      %v2155 = vpop.f32.mrf.mxu0
      %2156 = vmatprep.mubr.bf16.mxu0 0
      %2157 = vmatmul.mubr.bf16.gmra.mxu0 %v1919
      %v2158 = vpop.f32.mrf.mxu0
      %v2159 = vadd.f32 0.0, %v2158
      %v2160 = vpop.f32.mrf.mxu0
      %v2161 = vpop.f32.mrf.mxu0
      %v2162 = vadd.f32 0.0, %v2161
      %v2163 = vpop.f32.mrf.mxu0
      %2164 = vmatprep.mubr.bf16.mxu0 0
      %2165 = vmatmul.mubr.bf16.gmra.mxu0 %v1922
      %v2166 = vpop.f32.mrf.mxu0
      %v2167 = vadd.f32 0.0, %v2166
      %v2168 = vpop.f32.mrf.mxu0
      %v2169 = vpop.f32.mrf.mxu0
      %v2170 = vadd.f32 0.0, %v2169
      %v2171 = vpop.f32.mrf.mxu0
      %2172 = vmatprep.mubr.bf16.mxu0 0
      %2173 = vmatmul.mubr.bf16.gmra.mxu0 %v1925
      %v2174 = vpop.f32.mrf.mxu0
      %v2175 = vadd.f32 0.0, %v2174
      %v2176 = vpop.f32.mrf.mxu0
      %v2177 = vpop.f32.mrf.mxu0
      %v2178 = vadd.f32 0.0, %v2177
      %v2179 = vpop.f32.mrf.mxu0
      %2180 = vmatprep.mubr.bf16.mxu0 0
      %2181 = vmatmul.mubr.bf16.gmra.mxu0 %v1928
      %v2182 = vpop.f32.mrf.mxu0
      %v2183 = vadd.f32 0.0, %v2182
      %v2184 = vpop.f32.mrf.mxu0
      %v2185 = vpop.f32.mrf.mxu0
      %v2186 = vadd.f32 0.0, %v2185
      %v2187 = vpop.f32.mrf.mxu0
      %2188 = vmatprep.mubr.bf16.mxu0 0
      %2189 = vmatmul.mubr.bf16.gmra.mxu0 %v1931
      %v2190 = vpop.f32.mrf.mxu0
      %v2191 = vadd.f32 0.0, %v2190
      %v2192 = vpop.f32.mrf.mxu0
      %v2193 = vpop.f32.mrf.mxu0
      %v2194 = vadd.f32 0.0, %v2193
      %v2195 = vpop.f32.mrf.mxu0
      %2196 = vmatprep.mubr.bf16.mxu0 0
      %2197 = vmatmul.mubr.bf16.gmra.mxu0 %v1934
      %v2198 = vpop.f32.mrf.mxu0
      %v2199 = vadd.f32 0.0, %v2198
      %v2200 = vpop.f32.mrf.mxu0
      %v2201 = vpop.f32.mrf.mxu0
      %v2202 = vadd.f32 0.0, %v2201
      %v2203 = vpop.f32.mrf.mxu0
      %2204 = vmatprep.mubr.bf16.mxu0 0
      %2205 = vmatmul.mubr.bf16.gmra.mxu0 %v1937
      %v2206 = vpop.f32.mrf.mxu0
      %v2207 = vadd.f32 0.0, %v2206
      %v2208 = vpop.f32.mrf.mxu0
      %v2209 = vpop.f32.mrf.mxu0
      %v2210 = vadd.f32 0.0, %v2209
      %v2211 = vpop.f32.mrf.mxu0
      %2212 = vmatprep.mubr.bf16.mxu0 0
      %2213 = vmatmul.mubr.bf16.gmra.mxu0 %v1940
      %v2214 = vpop.f32.mrf.mxu0
      %v2215 = vadd.f32 0.0, %v2214
      %v2216 = vpop.f32.mrf.mxu0
      %v2217 = vpop.f32.mrf.mxu0
      %v2218 = vadd.f32 0.0, %v2217
      %v2219 = vpop.f32.mrf.mxu0
      %2220 = vmatprep.mubr.bf16.mxu0 0
      %2221 = vmatmul.mubr.bf16.gmra.mxu0 %v1943
      %v2222 = vpop.f32.mrf.mxu0
      %v2223 = vadd.f32 0.0, %v2222
      %v2224 = vpop.f32.mrf.mxu0
      %v2225 = vpop.f32.mrf.mxu0
      %v2226 = vadd.f32 0.0, %v2225
      %v2227 = vpop.f32.mrf.mxu0
      %2228 = vmatprep.mubr.bf16.mxu0 0
      %2229 = vmatmul.mubr.bf16.gmra.mxu0 %v1946
      %v2230 = vpop.f32.mrf.mxu0
      %v2231 = vadd.f32 0.0, %v2230
      %v2232 = vpop.f32.mrf.mxu0
      %v2233 = vpop.f32.mrf.mxu0
      %v2234 = vadd.f32 0.0, %v2233
      %v2235 = vpop.f32.mrf.mxu0
      %2236 = vmatprep.mubr.bf16.mxu0 0
      %2237 = vmatmul.mubr.bf16.gmra.mxu0 %v1949
      %v2238 = vpop.f32.mrf.mxu0
      %v2239 = vadd.f32 0.0, %v2238
      %v2240 = vpop.f32.mrf.mxu0
      %v2241 = vpop.f32.mrf.mxu0
      %v2242 = vadd.f32 0.0, %v2241
      %v2243 = vpop.f32.mrf.mxu0
      %2244 = vmatprep.mubr.bf16.mxu0 0
      %2245 = vmatmul.mubr.bf16.gmra.mxu0 %v1952
      %v2246 = vpop.f32.mrf.mxu0
      %v2247 = vadd.f32 0.0, %v2246
      %v2248 = vpop.f32.mrf.mxu0
      %v2249 = vpop.f32.mrf.mxu0
      %v2250 = vadd.f32 0.0, %v2249
      %v2251 = vpop.f32.mrf.mxu0
      %2252 = vmatprep.mubr.bf16.mxu0 0
      %2253 = vmatmul.mubr.bf16.gmra.mxu0 %v1955
      %v2254 = vpop.f32.mrf.mxu0
      %v2255 = vadd.f32 0.0, %v2254
      %v2256 = vpop.f32.mrf.mxu0
      %v2257 = vpop.f32.mrf.mxu0
      %v2258 = vadd.f32 0.0, %v2257
      %v2259 = vpop.f32.mrf.mxu0
      %2260 = vmatprep.mubr.bf16.mxu0 0
      %2261 = vmatmul.mubr.bf16.gmra.mxu0 %v1958
      %v2262 = vpop.f32.mrf.mxu0
      %v2263 = vadd.f32 0.0, %v2262
      %v2264 = vpop.f32.mrf.mxu0
      %v2265 = vpop.f32.mrf.mxu0
      %v2266 = vadd.f32 0.0, %v2265
      %v2267 = vpop.f32.mrf.mxu0
      %2268 = vmatprep.mubr.bf16.mxu0 0
      %2269 = vmatmul.mubr.bf16.gmra.mxu0 %v1961
      %v2270 = vpop.f32.mrf.mxu0
      %v2271 = vadd.f32 0.0, %v2270
      %v2272 = vpop.f32.mrf.mxu0
      %v2273 = vpop.f32.mrf.mxu0
      %v2274 = vadd.f32 0.0, %v2273
      %v2275 = vpop.f32.mrf.mxu0
      %2276 = vmatprep.mubr.bf16.mxu0 0
      %2277 = vmatmul.mubr.bf16.gmra.mxu0 %v1964
      %v2278 = vpop.f32.mrf.mxu0
      %v2279 = vadd.f32 0.0, %v2278
      %v2280 = vpop.f32.mrf.mxu0
      %v2281 = vpop.f32.mrf.mxu0
      %v2282 = vadd.f32 0.0, %v2281
      %v2283 = vpop.f32.mrf.mxu0
      %2284 = vmatprep.mubr.bf16.mxu0 0
      %2285 = vmatmul.mubr.bf16.gmra.mxu0 %v1967
      %v2286 = vpop.f32.mrf.mxu0
      %v2287 = vadd.f32 0.0, %v2286
      %v2288 = vpop.f32.mrf.mxu0
      %v2289 = vpop.f32.mrf.mxu0
      %v2290 = vadd.f32 0.0, %v2289
      %v2291 = vpop.f32.mrf.mxu0
      %2292 = vmatprep.mubr.bf16.mxu0 0
      %2293 = vmatmul.mubr.bf16.gmra.mxu0 %v1970
      %v2294 = vpop.f32.mrf.mxu0
      %v2295 = vadd.f32 0.0, %v2294
      %v2296 = vpop.f32.mrf.mxu0
      %v2297 = vpop.f32.mrf.mxu0
      %v2298 = vadd.f32 0.0, %v2297
      %v2299 = vpop.f32.mrf.mxu0
      %2300 = vmatprep.mubr.bf16.mxu0 0
      %2301 = vmatmul.mubr.bf16.gmra.mxu0 %v1973
      %v2302 = vpop.f32.mrf.mxu0
      %v2303 = vadd.f32 0.0, %v2302
      %v2304 = vpop.f32.mrf.mxu0
      %v2305 = vpop.f32.mrf.mxu0
      %v2306 = vadd.f32 0.0, %v2305
      %v2307 = vpop.f32.mrf.mxu0
      %2308 = vmatprep.mubr.bf16.mxu0 0
      %2309 = vmatmul.mubr.bf16.gmra.mxu0 %v1976
      %v2310 = vpop.f32.mrf.mxu0
      %v2311 = vadd.f32 0.0, %v2310
      %v2312 = vpop.f32.mrf.mxu0
      %v2313 = vpop.f32.mrf.mxu0
      %v2314 = vadd.f32 0.0, %v2313
      %v2315 = vpop.f32.mrf.mxu0
      %2316 = vmatprep.mubr.bf16.mxu0 0
      %2317 = vmatmul.mubr.bf16.gmra.mxu0 %v1979
      %v2318 = vpop.f32.mrf.mxu0
      %v2319 = vadd.f32 0.0, %v2318
      %v2320 = vpop.f32.mrf.mxu0
      %v2321 = vpop.f32.mrf.mxu0
      %v2322 = vadd.f32 0.0, %v2321
      %v2323 = vpop.f32.mrf.mxu0
      %2324 = vmatprep.mubr.bf16.mxu0 0
      %2325 = vmatmul.mubr.bf16.gmra.mxu0 %v1982
      %v2326 = vpop.f32.mrf.mxu0
      %v2327 = vadd.f32 0.0, %v2326
      %v2328 = vpop.f32.mrf.mxu0
      %v2329 = vpop.f32.mrf.mxu0
      %v2330 = vadd.f32 0.0, %v2329
      %v2331 = vpop.f32.mrf.mxu0
      %2332 = vmatprep.mubr.bf16.mxu0 0
      %2333 = vmatmul.mubr.bf16.gmra.mxu0 %v1985
      %v2334 = vpop.f32.mrf.mxu0
      %v2335 = vadd.f32 0.0, %v2334
      %v2336 = vpop.f32.mrf.mxu0
      %v2337 = vpop.f32.mrf.mxu0
      %v2338 = vadd.f32 0.0, %v2337
      %v2339 = vpop.f32.mrf.mxu0
      %2340 = vmatprep.mubr.bf16.mxu0 0
      %2341 = vmatmul.mubr.bf16.gmra.mxu0 %v1988
      %v2342 = vpop.f32.mrf.mxu0
      %v2343 = vadd.f32 0.0, %v2342
      %v2344 = vpop.f32.mrf.mxu0
      %v2345 = vpop.f32.mrf.mxu0
      %v2346 = vadd.f32 0.0, %v2345
      %v2347 = vpop.f32.mrf.mxu0
      %2348 = vmatprep.mubr.bf16.mxu0 0
      %2349 = vmatmul.mubr.bf16.gmra.mxu0 %v1991
      %v2350 = vpop.f32.mrf.mxu0
      %v2351 = vadd.f32 0.0, %v2350
      %v2352 = vpop.f32.mrf.mxu0
      %v2353 = vpop.f32.mrf.mxu0
      %v2354 = vadd.f32 0.0, %v2353
      %v2355 = vpop.f32.mrf.mxu0
      %2356 = vmatprep.mubr.bf16.mxu0 0
      %2357 = vmatmul.mubr.bf16.gmra.mxu0 %v1994
      %v2358 = vpop.f32.mrf.mxu0
      %v2359 = vadd.f32 0.0, %v2358
      %v2360 = vpop.f32.mrf.mxu0
      %v2361 = vpop.f32.mrf.mxu0
      %v2362 = vadd.f32 0.0, %v2361
      %v2363 = vpop.f32.mrf.mxu0
      %2364 = vmatprep.mubr.bf16.mxu0 0
      %2365 = vmatmul.mubr.bf16.gmra.mxu0 %v1997
      %v2366 = vpop.f32.mrf.mxu0
      %v2367 = vadd.f32 0.0, %v2366
      %v2368 = vpop.f32.mrf.mxu0
      %v2369 = vpop.f32.mrf.mxu0
      %v2370 = vadd.f32 0.0, %v2369
      %v2371 = vpop.f32.mrf.mxu0
      %2372 = vmatprep.mubr.bf16.mxu0 0
      %2373 = vmatmul.mubr.bf16.gmra.mxu0 %v2000
      %v2374 = vpop.f32.mrf.mxu0
      %v2375 = vadd.f32 0.0, %v2374
      %v2376 = vpop.f32.mrf.mxu0
      %v2377 = vpop.f32.mrf.mxu0
      %v2378 = vadd.f32 0.0, %v2377
      %v2379 = vpop.f32.mrf.mxu0
      %2380 = vmatprep.mubr.bf16.mxu0 0
      %2381 = vmatmul.mubr.bf16.gmra.mxu0 %v2003
      %v2382 = vpop.f32.mrf.mxu0
      %v2383 = vadd.f32 0.0, %v2382
      %v2384 = vpop.f32.mrf.mxu0
      %v2385 = vpop.f32.mrf.mxu0
      %v2386 = vadd.f32 0.0, %v2385
      %v2387 = vpop.f32.mrf.mxu0
      %2388 = vmatprep.mubr.bf16.mxu0 0
      %2389 = vmatmul.mubr.bf16.gmra.mxu0 %v2006
      %v2390 = vpop.f32.mrf.mxu0
      %v2391 = vadd.f32 0.0, %v2390
      %v2392 = vpop.f32.mrf.mxu0
      %v2393 = vpop.f32.mrf.mxu0
      %v2394 = vadd.f32 0.0, %v2393
      %v2395 = vpop.f32.mrf.mxu0
      %2396 = vmatprep.mubr.bf16.mxu0 0
      %2397 = vmatmul.mubr.bf16.gmra.mxu0 %v2009
      %v2398 = vpop.f32.mrf.mxu0
      %v2399 = vadd.f32 0.0, %v2398
      %v2400 = vpop.f32.mrf.mxu0
      %v2401 = vpop.f32.mrf.mxu0
      %v2402 = vadd.f32 0.0, %v2401
      %v2403 = vpop.f32.mrf.mxu0
      %2404 = vmatprep.mubr.bf16.mxu0 0
      %2405 = vmatmul.mubr.bf16.gmra.mxu0 %v2012
      %v2406 = vpop.f32.mrf.mxu0
      %v2407 = vadd.f32 0.0, %v2406
      %v2408 = vpop.f32.mrf.mxu0
      %v2409 = vpop.f32.mrf.mxu0
      %v2410 = vadd.f32 0.0, %v2409
      %v2411 = vpop.f32.mrf.mxu0
      %2412 = vmatprep.mubr.bf16.mxu0 0
      %2413 = vmatmul.mubr.bf16.gmra.mxu0 %v2015
      %v2414 = vpop.f32.mrf.mxu0
      %v2415 = vadd.f32 0.0, %v2414
      %v2416 = vpop.f32.mrf.mxu0
      %v2417 = vpop.f32.mrf.mxu0
      %v2418 = vadd.f32 0.0, %v2417
      %v2419 = vpop.f32.mrf.mxu0
      %2420 = vmatprep.mubr.bf16.mxu0 0
      %2421 = vmatmul.mubr.bf16.gmra.mxu0 %v2018
      %v2422 = vpop.f32.mrf.mxu0
      %v2423 = vadd.f32 0.0, %v2422
      %v2424 = vpop.f32.mrf.mxu0
      %v2425 = vpop.f32.mrf.mxu0
      %v2426 = vadd.f32 0.0, %v2425
      %v2427 = vpop.f32.mrf.mxu0
      %2428 = vmatprep.mubr.bf16.mxu0 0
      %2429 = vmatmul.mubr.bf16.gmra.mxu0 %v2021
      %v2430 = vpop.f32.mrf.mxu0
      %v2431 = vadd.f32 0.0, %v2430
      %v2432 = vpop.f32.mrf.mxu0
      %v2433 = vpop.f32.mrf.mxu0
      %v2434 = vadd.f32 0.0, %v2433
      %v2435 = vpop.f32.mrf.mxu0
      %2436 = vmatprep.mubr.bf16.mxu0 0
      %2437 = vmatmul.mubr.bf16.gmra.mxu0 %v2024
      %v2438 = vpop.f32.mrf.mxu0
      %v2439 = vadd.f32 0.0, %v2438
      %v2440 = vpop.f32.mrf.mxu0
      %v2441 = vpop.f32.mrf.mxu0
      %v2442 = vadd.f32 0.0, %v2441
      %v2443 = vpop.f32.mrf.mxu0
      %2444 = vmatprep.mubr.bf16.mxu0 0
      %2445 = vmatmul.mubr.bf16.gmra.mxu0 %v2027
      %v2446 = vpop.f32.mrf.mxu0
      %v2447 = vadd.f32 0.0, %v2446
      %v2448 = vpop.f32.mrf.mxu0
      %v2449 = vpop.f32.mrf.mxu0
      %v2450 = vadd.f32 0.0, %v2449
      %v2451 = vpop.f32.mrf.mxu0
      %2452 = vmatprep.mubr.bf16.mxu0 0
      %2453 = vmatmul.mubr.bf16.gmra.mxu0 %v2030
      %v2454 = vpop.f32.mrf.mxu0
      %v2455 = vadd.f32 0.0, %v2454
      %v2456 = vpop.f32.mrf.mxu0
      %v2457 = vpop.f32.mrf.mxu0
      %v2458 = vadd.f32 0.0, %v2457
      %v2459 = vpop.f32.mrf.mxu0
      %2460 = vmatprep.mubr.bf16.mxu0 0
      %2461 = vmatmul.mubr.bf16.gmra.mxu0 %v2033
      %v2462 = vpop.f32.mrf.mxu0
      %v2463 = vadd.f32 0.0, %v2462
      %v2464 = vpop.f32.mrf.mxu0
      %v2465 = vpop.f32.mrf.mxu0
      %v2466 = vadd.f32 0.0, %v2465
      %v2467 = vpop.f32.mrf.mxu0
      %2468 = vmatprep.mubr.bf16.mxu0 0
      %2469 = vmatmul.mubr.bf16.gmra.mxu0 %v2036
      %v2470 = vpop.f32.mrf.mxu0
      %v2471 = vadd.f32 0.0, %v2470
      %v2472 = vpop.f32.mrf.mxu0
      %v2473 = vpop.f32.mrf.mxu0
      %v2474 = vadd.f32 0.0, %v2473
      %v2475 = vpop.f32.mrf.mxu0
      %2476 = vmatprep.mubr.bf16.mxu0 0
      %2477 = vmatmul.mubr.bf16.gmra.mxu0 %v2039
      %v2478 = vpop.f32.mrf.mxu0
      %v2479 = vadd.f32 0.0, %v2478
      %v2480 = vpop.f32.mrf.mxu0
      %v2481 = vpop.f32.mrf.mxu0
      %v2482 = vadd.f32 0.0, %v2481
      %v2483 = vpop.f32.mrf.mxu0
      %2484 = vmatprep.mubr.bf16.mxu0 0
      %2485 = vmatmul.mubr.bf16.gmra.mxu0 %v2042
      %v2486 = vpop.f32.mrf.mxu0
      %v2487 = vadd.f32 0.0, %v2486
      %v2488 = vpop.f32.mrf.mxu0
      %v2489 = vpop.f32.mrf.mxu0
      %v2490 = vadd.f32 0.0, %v2489
      %v2491 = vpop.f32.mrf.mxu0
      %2492 = vmatprep.mubr.bf16.mxu0 0
      %2493 = vmatmul.mubr.bf16.gmra.mxu0 %v2045
      %v2494 = vpop.f32.mrf.mxu0
      %v2495 = vadd.f32 0.0, %v2494
      %v2496 = vpop.f32.mrf.mxu0
      %v2497 = vpop.f32.mrf.mxu0
      %v2498 = vadd.f32 0.0, %v2497
      %v2499 = vpop.f32.mrf.mxu0
      %2500 = vmatprep.mubr.bf16.mxu0 0
      %2501 = vmatmul.mubr.bf16.gmra.mxu0 %v2048
      %v2502 = vpop.f32.mrf.mxu0
      %v2503 = vadd.f32 0.0, %v2502
      %v2504 = vpop.f32.mrf.mxu0
      %v2505 = vpop.f32.mrf.mxu0
      %v2506 = vadd.f32 0.0, %v2505
      %v2507 = vpop.f32.mrf.mxu0
      %2508 = vmatprep.mubr.bf16.mxu0 0
      %2509 = vmatmul.mubr.bf16.gmra.mxu0 %v2051
      %v2510 = vpop.f32.mrf.mxu0
      %v2511 = vadd.f32 0.0, %v2510
      %v2512 = vpop.f32.mrf.mxu0
      %v2513 = vpop.f32.mrf.mxu0
      %v2514 = vadd.f32 0.0, %v2513
      %v2515 = vpop.f32.mrf.mxu0
      %2516 = vmatprep.mubr.bf16.mxu0 0
      %2517 = vmatmul.mubr.bf16.gmra.mxu0 %v2054
      %v2518 = vpop.f32.mrf.mxu0
      %v2519 = vadd.f32 0.0, %v2518
      %v2520 = vpop.f32.mrf.mxu0
      %v2521 = vpop.f32.mrf.mxu0
      %v2522 = vadd.f32 0.0, %v2521
      %v2523 = vpop.f32.mrf.mxu0
      %2524 = vmatprep.mubr.bf16.mxu0 0
      %2525 = vmatmul.mubr.bf16.gmra.mxu0 %v2057
      %v2526 = vpop.f32.mrf.mxu0
      %v2527 = vadd.f32 0.0, %v2526
      %v2528 = vpop.f32.mrf.mxu0
      %v2529 = vpop.f32.mrf.mxu0
      %v2530 = vadd.f32 0.0, %v2529
      %v2531 = vpop.f32.mrf.mxu0
      %2532 = vmatprep.mubr.bf16.mxu0 0
      %2533 = vmatmul.mubr.bf16.gmra.mxu0 %v2060
      %v2534 = vpop.f32.mrf.mxu0
      %v2535 = vadd.f32 0.0, %v2534
      %v2536 = vpop.f32.mrf.mxu0
      %v2537 = vpop.f32.mrf.mxu0
      %v2538 = vadd.f32 0.0, %v2537
      %v2539 = vpop.f32.mrf.mxu0
      %2540 = vmatprep.mubr.bf16.mxu0 0
      %2541 = vmatmul.mubr.bf16.gmra.mxu0 %v2063
      %v2542 = vpop.f32.mrf.mxu0
      %v2543 = vadd.f32 0.0, %v2542
      %v2544 = vpop.f32.mrf.mxu0
      %v2545 = vpop.f32.mrf.mxu0
      %v2546 = vadd.f32 0.0, %v2545
      %v2547 = vpop.f32.mrf.mxu0
      %2548 = vmatprep.mubr.bf16.mxu0 0
      %2549 = vmatmul.mubr.bf16.gmra.mxu0 %v2066
      %v2550 = vpop.f32.mrf.mxu0
      %v2551 = vadd.f32 0.0, %v2550
      %v2552 = vpop.f32.mrf.mxu0
      %v2553 = vpop.f32.mrf.mxu0
      %v2554 = vadd.f32 0.0, %v2553
      %v2555 = vpop.f32.mrf.mxu0
      %2556 = vmatprep.mubr.bf16.mxu0 0
      %2557 = vmatmul.mubr.bf16.gmra.mxu0 %v2069
      %v2558 = vpop.f32.mrf.mxu0
      %v2559 = vadd.f32 0.0, %v2558
      %v2560 = vpop.f32.mrf.mxu0
      %v2561 = vpop.f32.mrf.mxu0
      %v2562 = vadd.f32 0.0, %v2561
      %v2563 = vpop.f32.mrf.mxu0
      %2564 = vmatprep.mubr.bf16.mxu0 0
      %2565 = vmatmul.mubr.bf16.gmra.mxu0 %v2072
      %v2566 = vpop.f32.mrf.mxu0
      %v2567 = vadd.f32 0.0, %v2566
      %v2568 = vpop.f32.mrf.mxu0
      %v2569 = vpop.f32.mrf.mxu0
      %v2570 = vadd.f32 0.0, %v2569
      %v2571 = vpop.f32.mrf.mxu0
      %2572 = vmatprep.mubr.bf16.mxu0 0
      %2573 = vmatmul.mubr.bf16.gmra.mxu0 %v2075
      %v2574 = vpop.f32.mrf.mxu0
      %v2575 = vadd.f32 0.0, %v2574
      %v2576 = vpop.f32.mrf.mxu0
      %v2577 = vpop.f32.mrf.mxu0
      %v2578 = vadd.f32 0.0, %v2577
      %v2579 = vpop.f32.mrf.mxu0
      %2580 = vmatprep.mubr.bf16.mxu0 0
      %2581 = vmatmul.mubr.bf16.gmra.mxu0 %v2078
      %v2582 = vpop.f32.mrf.mxu0
      %v2583 = vadd.f32 0.0, %v2582
      %v2584 = vpop.f32.mrf.mxu0
      %v2585 = vpop.f32.mrf.mxu0
      %v2586 = vadd.f32 0.0, %v2585
      %v2587 = vpop.f32.mrf.mxu0
      %2588 = vmatprep.mubr.bf16.mxu0 0
      %2589 = vmatmul.mubr.bf16.gmra.mxu0 %v2081
      %v2590 = vpop.f32.mrf.mxu0
      %v2591 = vadd.f32 0.0, %v2590
      %v2592 = vpop.f32.mrf.mxu0
      %v2593 = vpop.f32.mrf.mxu0
      %v2594 = vadd.f32 0.0, %v2593
      %v2595 = vpop.f32.mrf.mxu0
      %2596 = vmatprep.mubr.bf16.mxu0 0
      %2597 = vmatmul.mubr.bf16.gmra.mxu0 %v2084
      %v2598 = vpop.f32.mrf.mxu0
      %v2599 = vadd.f32 0.0, %v2598
      %v2600 = vpop.f32.mrf.mxu0
      %v2601 = vpop.f32.mrf.mxu0
      %v2602 = vadd.f32 0.0, %v2601
      %v2603 = vpop.f32.mrf.mxu0
      %2604 = vmatprep.mubr.bf16.mxu0 0
      %2605 = vmatmul.mubr.bf16.gmra.mxu0 %v2087
      %v2606 = vpop.f32.mrf.mxu0
      %v2607 = vadd.f32 0.0, %v2606
      %v2608 = vpop.f32.mrf.mxu0
      %v2609 = vpop.f32.mrf.mxu0
      %v2610 = vadd.f32 0.0, %v2609
      %v2611 = vpop.f32.mrf.mxu0
      %2612 = vmatprep.mubr.bf16.mxu0 0
      %2613 = vmatmul.mubr.bf16.gmra.mxu0 %v2090
      %v2614 = vpop.f32.mrf.mxu0
      %v2615 = vadd.f32 0.0, %v2614
      %v2616 = vpop.f32.mrf.mxu0
      %v2617 = vpop.f32.mrf.mxu0
      %v2618 = vadd.f32 0.0, %v2617
      %v2619 = vpop.f32.mrf.mxu0
      %2620 = vmatprep.mubr.bf16.mxu0 0
      %2621 = vmatmul.mubr.bf16.gmra.mxu0 %v2093
      %v2622 = vpop.f32.mrf.mxu0
      %v2623 = vadd.f32 0.0, %v2622
      %v2624 = vpop.f32.mrf.mxu0
      %v2625 = vpop.f32.mrf.mxu0
      %v2626 = vadd.f32 0.0, %v2625
      %v2627 = vpop.f32.mrf.mxu0
      %2628 = vmatprep.mubr.bf16.mxu0 0
      %2629 = vmatmul.mubr.bf16.gmra.mxu0 %v2096
      %v2630 = vpop.f32.mrf.mxu0
      %v2631 = vadd.f32 0.0, %v2630
      %v2632 = vpop.f32.mrf.mxu0
      %v2633 = vpop.f32.mrf.mxu0
      %v2634 = vadd.f32 0.0, %v2633
      %v2635 = vpop.f32.mrf.mxu0
      %2636 = vmatprep.mubr.bf16.mxu0 0
      %2637 = vmatmul.mubr.bf16.gmra.mxu0 %v2099
      %v2638 = vpop.f32.mrf.mxu0
      %v2639 = vadd.f32 0.0, %v2638
      %v2640 = vpop.f32.mrf.mxu0
      %v2641 = vpop.f32.mrf.mxu0
      %v2642 = vadd.f32 0.0, %v2641
      %v2643 = vpop.f32.mrf.mxu0
      %2644 = vmatprep.mubr.bf16.mxu0 0
      %2645 = vmatmul.mubr.bf16.gmra.mxu0 %v2102
      %v2646 = vpop.f32.mrf.mxu0
      %v2647 = vadd.f32 0.0, %v2646
      %v2648 = vpop.f32.mrf.mxu0
      %v2649 = vpop.f32.mrf.mxu0
      %v2650 = vadd.f32 0.0, %v2649
      %v2651 = vpop.f32.mrf.mxu0
      %2652 = vdwg.mxu0
      %v2781 = vunpack.c.l.b16 %v145
      %v2782 = vunpack.c.l.b16 %v146
      %v2783 = vunpack.c.l.b16 %v147
      %v2784 = vunpack.c.l.b16 %v148
      %v2785 = vunpack.c.l.b16 %v149
      %v2786 = vunpack.c.l.b16 %v150
      %v2787 = vunpack.c.l.b16 %v151
      %v2788 = vunpack.c.l.b16 %v152
      %v2789 = vunpack.c.l.b16 %v153
      %v2790 = vunpack.c.l.b16 %v154
      %v2791 = vunpack.c.l.b16 %v155
      %v2792 = vunpack.c.l.b16 %v156
      %v2793 = vunpack.c.l.b16 %v157
      %v2794 = vunpack.c.l.b16 %v158
      %v2795 = vunpack.c.l.b16 %v159
      %v2796 = vunpack.c.l.b16 %v160
      %v2797 = vunpack.c.l.b16 %v161
      %v2798 = vunpack.c.l.b16 %v162
      %v2799 = vunpack.c.l.b16 %v163
      %v2800 = vunpack.c.l.b16 %v164
      %v2801 = vunpack.c.l.b16 %v165
      %v2802 = vunpack.c.l.b16 %v166
      %v2803 = vunpack.c.l.b16 %v167
      %v2804 = vunpack.c.l.b16 %v168
      %v2805 = vunpack.c.l.b16 %v169
      %v2806 = vunpack.c.l.b16 %v170
      %v2807 = vunpack.c.l.b16 %v171
      %v2808 = vunpack.c.l.b16 %v172
      %v2809 = vunpack.c.l.b16 %v173
      %v2810 = vunpack.c.l.b16 %v174
      %v2811 = vunpack.c.l.b16 %v175
      %v2812 = vunpack.c.l.b16 %v176
      %v2813 = vunpack.c.l.b16 %v177
      %v2814 = vunpack.c.l.b16 %v178
      %v2815 = vunpack.c.l.b16 %v179
      %v2816 = vunpack.c.l.b16 %v180
      %v2817 = vunpack.c.l.b16 %v181
      %v2818 = vunpack.c.l.b16 %v182
      %v2819 = vunpack.c.l.b16 %v183
      %v2820 = vunpack.c.l.b16 %v184
      %v2821 = vunpack.c.l.b16 %v185
      %v2822 = vunpack.c.l.b16 %v186
      %v2823 = vunpack.c.l.b16 %v187
      %v2824 = vunpack.c.l.b16 %v188
      %v2825 = vunpack.c.l.b16 %v189
      %v2826 = vunpack.c.l.b16 %v190
      %v2827 = vunpack.c.l.b16 %v191
      %v2828 = vunpack.c.l.b16 %v192
      %v2829 = vunpack.c.l.b16 %v193
      %v2830 = vunpack.c.l.b16 %v194
      %v2831 = vunpack.c.l.b16 %v195
      %v2832 = vunpack.c.l.b16 %v196
      %v2833 = vunpack.c.l.b16 %v197
      %v2834 = vunpack.c.l.b16 %v198
      %v2835 = vunpack.c.l.b16 %v199
      %v2836 = vunpack.c.l.b16 %v200
      %v2837 = vunpack.c.l.b16 %v201
      %v2838 = vunpack.c.l.b16 %v202
      %v2839 = vunpack.c.l.b16 %v203
      %v2840 = vunpack.c.l.b16 %v204
      %v2841 = vunpack.c.l.b16 %v205
      %v2842 = vunpack.c.l.b16 %v206
      %v2843 = vunpack.c.l.b16 %v207
      %v2844 = vunpack.c.l.b16 %v208
      %v2845 = vunpack.c.l.b16 %v209
      %v2846 = vunpack.c.l.b16 %v210
      %v2847 = vunpack.c.l.b16 %v211
      %v2848 = vunpack.c.l.b16 %v212
      %v2849 = vunpack.c.l.b16 %v213
      %v2850 = vunpack.c.l.b16 %v214
      %v2851 = vunpack.c.l.b16 %v215
      %v2852 = vunpack.c.l.b16 %v216
      %v2853 = vunpack.c.l.b16 %v217
      %v2854 = vunpack.c.l.b16 %v218
      %v2855 = vunpack.c.l.b16 %v219
      %v2856 = vunpack.c.l.b16 %v220
      %v2857 = vunpack.c.l.b16 %v221
      %v2858 = vunpack.c.l.b16 %v222
      %v2859 = vunpack.c.l.b16 %v223
      %v2860 = vunpack.c.l.b16 %v224
      %v2861 = vunpack.c.l.b16 %v225
      %v2862 = vunpack.c.l.b16 %v226
      %v2863 = vunpack.c.l.b16 %v227
      %v2864 = vunpack.c.l.b16 %v228
      %v2865 = vunpack.c.l.b16 %v229
      %v2866 = vunpack.c.l.b16 %v230
      %v2867 = vunpack.c.l.b16 %v231
      %v2868 = vunpack.c.l.b16 %v232
      %v2869 = vunpack.c.l.b16 %v233
      %v2870 = vunpack.c.l.b16 %v234
      %v2871 = vunpack.c.l.b16 %v235
      %v2872 = vunpack.c.l.b16 %v236
      %v2873 = vunpack.c.l.b16 %v237
      %v2874 = vunpack.c.l.b16 %v238
      %v2875 = vunpack.c.l.b16 %v239
      %v2876 = vunpack.c.l.b16 %v240
      %v2877 = vunpack.c.l.b16 %v241
      %v2878 = vunpack.c.l.b16 %v242
      %v2879 = vunpack.c.l.b16 %v243
      %v2880 = vunpack.c.l.b16 %v244
      %v2881 = vunpack.c.l.b16 %v245
      %v2882 = vunpack.c.l.b16 %v246
      %v2883 = vunpack.c.l.b16 %v247
      %v2884 = vunpack.c.l.b16 %v248
      %v2885 = vunpack.c.l.b16 %v249
      %v2886 = vunpack.c.l.b16 %v250
      %v2887 = vunpack.c.l.b16 %v251
      %v2888 = vunpack.c.l.b16 %v252
      %v2889 = vunpack.c.l.b16 %v253
      %v2890 = vunpack.c.l.b16 %v254
      %v2891 = vunpack.c.l.b16 %v255
      %v2892 = vunpack.c.l.b16 %v256
      %v2893 = vunpack.c.l.b16 %v257
      %v2894 = vunpack.c.l.b16 %v258
      %v2895 = vunpack.c.l.b16 %v259
      %v2896 = vunpack.c.l.b16 %v260
      %v2897 = vunpack.c.l.b16 %v261
      %v2898 = vunpack.c.l.b16 %v262
      %v2899 = vunpack.c.l.b16 %v263
      %v2900 = vunpack.c.l.b16 %v264
      %v2901 = vunpack.c.l.b16 %v265
      %v2902 = vunpack.c.l.b16 %v266
      %v2903 = vunpack.c.l.b16 %v267
      %v2904 = vunpack.c.l.b16 %v268
      %v2905 = vunpack.c.l.b16 %v269
      %v2906 = vunpack.c.l.b16 %v270
      %v2907 = vunpack.c.l.b16 %v271
      %v2908 = vunpack.c.l.b16 %v272
      %v2909 = vpack.c.b16 %v2782, %v2781
      %v2910 = vpack.c.b16 %v2784, %v2783
      %v2911 = vpack.c.b16 %v2786, %v2785
      %v2912 = vpack.c.b16 %v2788, %v2787
      %v2913 = vpack.c.b16 %v2790, %v2789
      %v2914 = vpack.c.b16 %v2792, %v2791
      %v2915 = vpack.c.b16 %v2794, %v2793
      %v2916 = vpack.c.b16 %v2796, %v2795
      %v2917 = vpack.c.b16 %v2798, %v2797
      %v2918 = vpack.c.b16 %v2800, %v2799
      %v2919 = vpack.c.b16 %v2802, %v2801
      %v2920 = vpack.c.b16 %v2804, %v2803
      %v2921 = vpack.c.b16 %v2806, %v2805
      %v2922 = vpack.c.b16 %v2808, %v2807
      %v2923 = vpack.c.b16 %v2810, %v2809
      %v2924 = vpack.c.b16 %v2812, %v2811
      %v2925 = vpack.c.b16 %v2814, %v2813
      %v2926 = vpack.c.b16 %v2816, %v2815
      %v2927 = vpack.c.b16 %v2818, %v2817
      %v2928 = vpack.c.b16 %v2820, %v2819
      %v2929 = vpack.c.b16 %v2822, %v2821
      %v2930 = vpack.c.b16 %v2824, %v2823
      %v2931 = vpack.c.b16 %v2826, %v2825
      %v2932 = vpack.c.b16 %v2828, %v2827
      %v2933 = vpack.c.b16 %v2830, %v2829
      %v2934 = vpack.c.b16 %v2832, %v2831
      %v2935 = vpack.c.b16 %v2834, %v2833
      %v2936 = vpack.c.b16 %v2836, %v2835
      %v2937 = vpack.c.b16 %v2838, %v2837
      %v2938 = vpack.c.b16 %v2840, %v2839
      %v2939 = vpack.c.b16 %v2842, %v2841
      %v2940 = vpack.c.b16 %v2844, %v2843
      %v2941 = vpack.c.b16 %v2846, %v2845
      %v2942 = vpack.c.b16 %v2848, %v2847
      %v2943 = vpack.c.b16 %v2850, %v2849
      %v2944 = vpack.c.b16 %v2852, %v2851
      %v2945 = vpack.c.b16 %v2854, %v2853
      %v2946 = vpack.c.b16 %v2856, %v2855
      %v2947 = vpack.c.b16 %v2858, %v2857
      %v2948 = vpack.c.b16 %v2860, %v2859
      %v2949 = vpack.c.b16 %v2862, %v2861
      %v2950 = vpack.c.b16 %v2864, %v2863
      %v2951 = vpack.c.b16 %v2866, %v2865
      %v2952 = vpack.c.b16 %v2868, %v2867
      %v2953 = vpack.c.b16 %v2870, %v2869
      %v2954 = vpack.c.b16 %v2872, %v2871
      %v2955 = vpack.c.b16 %v2874, %v2873
      %v2956 = vpack.c.b16 %v2876, %v2875
      %v2957 = vpack.c.b16 %v2878, %v2877
      %v2958 = vpack.c.b16 %v2880, %v2879
      %v2959 = vpack.c.b16 %v2882, %v2881
      %v2960 = vpack.c.b16 %v2884, %v2883
      %v2961 = vpack.c.b16 %v2886, %v2885
      %v2962 = vpack.c.b16 %v2888, %v2887
      %v2963 = vpack.c.b16 %v2890, %v2889
      %v2964 = vpack.c.b16 %v2892, %v2891
      %v2965 = vpack.c.b16 %v2894, %v2893
      %v2966 = vpack.c.b16 %v2896, %v2895
      %v2967 = vpack.c.b16 %v2898, %v2897
      %v2968 = vpack.c.b16 %v2900, %v2899
      %v2969 = vpack.c.b16 %v2902, %v2901
      %v2970 = vpack.c.b16 %v2904, %v2903
      %v2971 = vpack.c.b16 %v2906, %v2905
      %v2972 = vpack.c.b16 %v2908, %v2907
      %v2974 = vsel %vm1911, %v2909, 0
      %v2977 = vsel %vm1911, %v2910, 0
      %v2980 = vsel %vm1911, %v2911, 0
      %v2983 = vsel %vm1911, %v2912, 0
      %v2986 = vsel %vm1911, %v2913, 0
      %v2989 = vsel %vm1911, %v2914, 0
      %v2992 = vsel %vm1911, %v2915, 0
      %v2995 = vsel %vm1911, %v2916, 0
      %v2998 = vsel %vm1911, %v2917, 0
      %v3001 = vsel %vm1911, %v2918, 0
      %v3004 = vsel %vm1911, %v2919, 0
      %v3007 = vsel %vm1911, %v2920, 0
      %v3010 = vsel %vm1911, %v2921, 0
      %v3013 = vsel %vm1911, %v2922, 0
      %v3016 = vsel %vm1911, %v2923, 0
      %v3019 = vsel %vm1911, %v2924, 0
      %v3022 = vsel %vm1911, %v2925, 0
      %v3025 = vsel %vm1911, %v2926, 0
      %v3028 = vsel %vm1911, %v2927, 0
      %v3031 = vsel %vm1911, %v2928, 0
      %v3034 = vsel %vm1911, %v2929, 0
      %v3037 = vsel %vm1911, %v2930, 0
      %v3040 = vsel %vm1911, %v2931, 0
      %v3043 = vsel %vm1911, %v2932, 0
      %v3046 = vsel %vm1911, %v2933, 0
      %v3049 = vsel %vm1911, %v2934, 0
      %v3052 = vsel %vm1911, %v2935, 0
      %v3055 = vsel %vm1911, %v2936, 0
      %v3058 = vsel %vm1911, %v2937, 0
      %v3061 = vsel %vm1911, %v2938, 0
      %v3064 = vsel %vm1911, %v2939, 0
      %v3067 = vsel %vm1911, %v2940, 0
      %v3070 = vsel %vm1911, %v2941, 0
      %v3073 = vsel %vm1911, %v2942, 0
      %v3076 = vsel %vm1911, %v2943, 0
      %v3079 = vsel %vm1911, %v2944, 0
      %v3082 = vsel %vm1911, %v2945, 0
      %v3085 = vsel %vm1911, %v2946, 0
      %v3088 = vsel %vm1911, %v2947, 0
      %v3091 = vsel %vm1911, %v2948, 0
      %v3094 = vsel %vm1911, %v2949, 0
      %v3097 = vsel %vm1911, %v2950, 0
      %v3100 = vsel %vm1911, %v2951, 0
      %v3103 = vsel %vm1911, %v2952, 0
      %v3106 = vsel %vm1911, %v2953, 0
      %v3109 = vsel %vm1911, %v2954, 0
      %v3112 = vsel %vm1911, %v2955, 0
      %v3115 = vsel %vm1911, %v2956, 0
      %v3118 = vsel %vm1911, %v2957, 0
      %v3121 = vsel %vm1911, %v2958, 0
      %v3124 = vsel %vm1911, %v2959, 0
      %v3127 = vsel %vm1911, %v2960, 0
      %v3130 = vsel %vm1911, %v2961, 0
      %v3133 = vsel %vm1911, %v2962, 0
      %v3136 = vsel %vm1911, %v2963, 0
      %v3139 = vsel %vm1911, %v2964, 0
      %v3142 = vsel %vm1911, %v2965, 0
      %v3145 = vsel %vm1911, %v2966, 0
      %v3148 = vsel %vm1911, %v2967, 0
      %v3151 = vsel %vm1911, %v2968, 0
      %v3154 = vsel %vm1911, %v2969, 0
      %v3157 = vsel %vm1911, %v2970, 0
      %v3160 = vsel %vm1911, %v2971, 0
      %v3163 = vsel %vm1911, %v2972, 0
      %v3166 = vsel %vm2104, %v273, 0
      %3168 = vmatprep.subr.bf16.mxu0 0
      %3169 = vmatpush1.bf16.msra.mxu0 0
      %3170 = vmatprep.subr.bf16.mxu0 0
      %3171 = vmatpush1.bf16.msra.mxu0 0
      %3172 = vmatprep.subr.bf16.mxu0 0
      %3173 = vmatpush1.bf16.msra.mxu0 0
      %3174 = vmatprep.subr.bf16.mxu0 0
      %3175 = vmatpush1.bf16.msra.mxu0 0
      %3176 = vmatprep.subr.bf16.mxu0 0
      %3177 = vmatpush1.bf16.msra.mxu0 0
      %3178 = vmatprep.subr.bf16.mxu0 0
      %3179 = vmatpush1.bf16.msra.mxu0 0
      %3180 = vmatprep.subr.bf16.mxu0 0
      %3181 = vmatpush1.bf16.msra.mxu0 0
      %3182 = vmatprep.subr.bf16.mxu0 0
      %3183 = vmatpush1.bf16.msra.mxu0 %v3166
      %3184 = vmatprep.subr.bf16.mxu0 0
      %3185 = vmatpush2.bf16.msra.mxu0 0
      %3186 = vmatprep.subr.bf16.mxu0 0
      %3187 = vmatpush2.bf16.msra.mxu0 0
      %3188 = vmatprep.subr.bf16.mxu0 0
      %3189 = vmatpush2.bf16.msra.mxu0 0
      %3190 = vmatprep.subr.bf16.mxu0 0
      %3191 = vmatpush2.bf16.msra.mxu0 0
      %3192 = vmatprep.subr.bf16.mxu0 0
      %3193 = vmatpush2.bf16.msra.mxu0 0
      %3194 = vmatprep.subr.bf16.mxu0 0
      %3195 = vmatpush2.bf16.msra.mxu0 0
      %3196 = vmatprep.subr.bf16.mxu0 0
      %3197 = vmatpush2.bf16.msra.mxu0 0
      %3198 = vmatprep.subr.bf16.mxu0 0
      %3199 = vmatpush2.bf16.msra.mxu0 0
      %3200 = vmatprep.mubr.bf16.mxu0 0
      %3201 = vmatmul.mubr.bf16.gmra.mxu0 %v2974
      %v3202 = vpop.f32.mrf.mxu0
      %v3203 = vadd.f32 %v2143, %v3202
      %v3204 = vpop.f32.mrf.mxu0
      %v3205 = vpop.f32.mrf.mxu0
      %v3206 = vadd.f32 %v2146, %v3205
      %v3207 = vpop.f32.mrf.mxu0
      %3208 = vmatprep.mubr.bf16.mxu0 0
      %3209 = vmatmul.mubr.bf16.gmra.mxu0 %v2977
      %v3210 = vpop.f32.mrf.mxu0
      %v3211 = vadd.f32 %v2151, %v3210
      %v3212 = vpop.f32.mrf.mxu0
      %v3213 = vpop.f32.mrf.mxu0
      %v3214 = vadd.f32 %v2154, %v3213
      %v3215 = vpop.f32.mrf.mxu0
      %3216 = vmatprep.mubr.bf16.mxu0 0
      %3217 = vmatmul.mubr.bf16.gmra.mxu0 %v2980
      %v3218 = vpop.f32.mrf.mxu0
      %v3219 = vadd.f32 %v2159, %v3218
      %v3220 = vpop.f32.mrf.mxu0
      %v3221 = vpop.f32.mrf.mxu0
      %v3222 = vadd.f32 %v2162, %v3221
      %v3223 = vpop.f32.mrf.mxu0
      %3224 = vmatprep.mubr.bf16.mxu0 0
      %3225 = vmatmul.mubr.bf16.gmra.mxu0 %v2983
      %v3226 = vpop.f32.mrf.mxu0
      %v3227 = vadd.f32 %v2167, %v3226
      %v3228 = vpop.f32.mrf.mxu0
      %v3229 = vpop.f32.mrf.mxu0
      %v3230 = vadd.f32 %v2170, %v3229
      %v3231 = vpop.f32.mrf.mxu0
      %3232 = vmatprep.mubr.bf16.mxu0 0
      %3233 = vmatmul.mubr.bf16.gmra.mxu0 %v2986
      %v3234 = vpop.f32.mrf.mxu0
      %v3235 = vadd.f32 %v2175, %v3234
      %v3236 = vpop.f32.mrf.mxu0
      %v3237 = vpop.f32.mrf.mxu0
      %v3238 = vadd.f32 %v2178, %v3237
      %v3239 = vpop.f32.mrf.mxu0
      %3240 = vmatprep.mubr.bf16.mxu0 0
      %3241 = vmatmul.mubr.bf16.gmra.mxu0 %v2989
      %v3242 = vpop.f32.mrf.mxu0
      %v3243 = vadd.f32 %v2183, %v3242
      %v3244 = vpop.f32.mrf.mxu0
      %v3245 = vpop.f32.mrf.mxu0
      %v3246 = vadd.f32 %v2186, %v3245
      %v3247 = vpop.f32.mrf.mxu0
      %3248 = vmatprep.mubr.bf16.mxu0 0
      %3249 = vmatmul.mubr.bf16.gmra.mxu0 %v2992
      %v3250 = vpop.f32.mrf.mxu0
      %v3251 = vadd.f32 %v2191, %v3250
      %v3252 = vpop.f32.mrf.mxu0
      %v3253 = vpop.f32.mrf.mxu0
      %v3254 = vadd.f32 %v2194, %v3253
      %v3255 = vpop.f32.mrf.mxu0
      %3256 = vmatprep.mubr.bf16.mxu0 0
      %3257 = vmatmul.mubr.bf16.gmra.mxu0 %v2995
      %v3258 = vpop.f32.mrf.mxu0
      %v3259 = vadd.f32 %v2199, %v3258
      %v3260 = vpop.f32.mrf.mxu0
      %v3261 = vpop.f32.mrf.mxu0
      %v3262 = vadd.f32 %v2202, %v3261
      %v3263 = vpop.f32.mrf.mxu0
      %3264 = vmatprep.mubr.bf16.mxu0 0
      %3265 = vmatmul.mubr.bf16.gmra.mxu0 %v2998
      %v3266 = vpop.f32.mrf.mxu0
      %v3267 = vadd.f32 %v2207, %v3266
      %v3268 = vpop.f32.mrf.mxu0
      %v3269 = vpop.f32.mrf.mxu0
      %v3270 = vadd.f32 %v2210, %v3269
      %v3271 = vpop.f32.mrf.mxu0
      %3272 = vmatprep.mubr.bf16.mxu0 0
      %3273 = vmatmul.mubr.bf16.gmra.mxu0 %v3001
      %v3274 = vpop.f32.mrf.mxu0
      %v3275 = vadd.f32 %v2215, %v3274
      %v3276 = vpop.f32.mrf.mxu0
      %v3277 = vpop.f32.mrf.mxu0
      %v3278 = vadd.f32 %v2218, %v3277
      %v3279 = vpop.f32.mrf.mxu0
      %3280 = vmatprep.mubr.bf16.mxu0 0
      %3281 = vmatmul.mubr.bf16.gmra.mxu0 %v3004
      %v3282 = vpop.f32.mrf.mxu0
      %v3283 = vadd.f32 %v2223, %v3282
      %v3284 = vpop.f32.mrf.mxu0
      %v3285 = vpop.f32.mrf.mxu0
      %v3286 = vadd.f32 %v2226, %v3285
      %v3287 = vpop.f32.mrf.mxu0
      %3288 = vmatprep.mubr.bf16.mxu0 0
      %3289 = vmatmul.mubr.bf16.gmra.mxu0 %v3007
      %v3290 = vpop.f32.mrf.mxu0
      %v3291 = vadd.f32 %v2231, %v3290
      %v3292 = vpop.f32.mrf.mxu0
      %v3293 = vpop.f32.mrf.mxu0
      %v3294 = vadd.f32 %v2234, %v3293
      %v3295 = vpop.f32.mrf.mxu0
      %3296 = vmatprep.mubr.bf16.mxu0 0
      %3297 = vmatmul.mubr.bf16.gmra.mxu0 %v3010
      %v3298 = vpop.f32.mrf.mxu0
      %v3299 = vadd.f32 %v2239, %v3298
      %v3300 = vpop.f32.mrf.mxu0
      %v3301 = vpop.f32.mrf.mxu0
      %v3302 = vadd.f32 %v2242, %v3301
      %v3303 = vpop.f32.mrf.mxu0
      %3304 = vmatprep.mubr.bf16.mxu0 0
      %3305 = vmatmul.mubr.bf16.gmra.mxu0 %v3013
      %v3306 = vpop.f32.mrf.mxu0
      %v3307 = vadd.f32 %v2247, %v3306
      %v3308 = vpop.f32.mrf.mxu0
      %v3309 = vpop.f32.mrf.mxu0
      %v3310 = vadd.f32 %v2250, %v3309
      %v3311 = vpop.f32.mrf.mxu0
      %3312 = vmatprep.mubr.bf16.mxu0 0
      %3313 = vmatmul.mubr.bf16.gmra.mxu0 %v3016
      %v3314 = vpop.f32.mrf.mxu0
      %v3315 = vadd.f32 %v2255, %v3314
      %v3316 = vpop.f32.mrf.mxu0
      %v3317 = vpop.f32.mrf.mxu0
      %v3318 = vadd.f32 %v2258, %v3317
      %v3319 = vpop.f32.mrf.mxu0
      %3320 = vmatprep.mubr.bf16.mxu0 0
      %3321 = vmatmul.mubr.bf16.gmra.mxu0 %v3019
      %v3322 = vpop.f32.mrf.mxu0
      %v3323 = vadd.f32 %v2263, %v3322
      %v3324 = vpop.f32.mrf.mxu0
      %v3325 = vpop.f32.mrf.mxu0
      %v3326 = vadd.f32 %v2266, %v3325
      %v3327 = vpop.f32.mrf.mxu0
      %3328 = vmatprep.mubr.bf16.mxu0 0
      %3329 = vmatmul.mubr.bf16.gmra.mxu0 %v3022
      %v3330 = vpop.f32.mrf.mxu0
      %v3331 = vadd.f32 %v2271, %v3330
      %v3332 = vpop.f32.mrf.mxu0
      %v3333 = vpop.f32.mrf.mxu0
      %v3334 = vadd.f32 %v2274, %v3333
      %v3335 = vpop.f32.mrf.mxu0
      %3336 = vmatprep.mubr.bf16.mxu0 0
      %3337 = vmatmul.mubr.bf16.gmra.mxu0 %v3025
      %v3338 = vpop.f32.mrf.mxu0
      %v3339 = vadd.f32 %v2279, %v3338
      %v3340 = vpop.f32.mrf.mxu0
      %v3341 = vpop.f32.mrf.mxu0
      %v3342 = vadd.f32 %v2282, %v3341
      %v3343 = vpop.f32.mrf.mxu0
      %3344 = vmatprep.mubr.bf16.mxu0 0
      %3345 = vmatmul.mubr.bf16.gmra.mxu0 %v3028
      %v3346 = vpop.f32.mrf.mxu0
      %v3347 = vadd.f32 %v2287, %v3346
      %v3348 = vpop.f32.mrf.mxu0
      %v3349 = vpop.f32.mrf.mxu0
      %v3350 = vadd.f32 %v2290, %v3349
      %v3351 = vpop.f32.mrf.mxu0
      %3352 = vmatprep.mubr.bf16.mxu0 0
      %3353 = vmatmul.mubr.bf16.gmra.mxu0 %v3031
      %v3354 = vpop.f32.mrf.mxu0
      %v3355 = vadd.f32 %v2295, %v3354
      %v3356 = vpop.f32.mrf.mxu0
      %v3357 = vpop.f32.mrf.mxu0
      %v3358 = vadd.f32 %v2298, %v3357
      %v3359 = vpop.f32.mrf.mxu0
      %3360 = vmatprep.mubr.bf16.mxu0 0
      %3361 = vmatmul.mubr.bf16.gmra.mxu0 %v3034
      %v3362 = vpop.f32.mrf.mxu0
      %v3363 = vadd.f32 %v2303, %v3362
      %v3364 = vpop.f32.mrf.mxu0
      %v3365 = vpop.f32.mrf.mxu0
      %v3366 = vadd.f32 %v2306, %v3365
      %v3367 = vpop.f32.mrf.mxu0
      %3368 = vmatprep.mubr.bf16.mxu0 0
      %3369 = vmatmul.mubr.bf16.gmra.mxu0 %v3037
      %v3370 = vpop.f32.mrf.mxu0
      %v3371 = vadd.f32 %v2311, %v3370
      %v3372 = vpop.f32.mrf.mxu0
      %v3373 = vpop.f32.mrf.mxu0
      %v3374 = vadd.f32 %v2314, %v3373
      %v3375 = vpop.f32.mrf.mxu0
      %3376 = vmatprep.mubr.bf16.mxu0 0
      %3377 = vmatmul.mubr.bf16.gmra.mxu0 %v3040
      %v3378 = vpop.f32.mrf.mxu0
      %v3379 = vadd.f32 %v2319, %v3378
      %v3380 = vpop.f32.mrf.mxu0
      %v3381 = vpop.f32.mrf.mxu0
      %v3382 = vadd.f32 %v2322, %v3381
      %v3383 = vpop.f32.mrf.mxu0
      %3384 = vmatprep.mubr.bf16.mxu0 0
      %3385 = vmatmul.mubr.bf16.gmra.mxu0 %v3043
      %v3386 = vpop.f32.mrf.mxu0
      %v3387 = vadd.f32 %v2327, %v3386
      %v3388 = vpop.f32.mrf.mxu0
      %v3389 = vpop.f32.mrf.mxu0
      %v3390 = vadd.f32 %v2330, %v3389
      %v3391 = vpop.f32.mrf.mxu0
      %3392 = vmatprep.mubr.bf16.mxu0 0
      %3393 = vmatmul.mubr.bf16.gmra.mxu0 %v3046
      %v3394 = vpop.f32.mrf.mxu0
      %v3395 = vadd.f32 %v2335, %v3394
      %v3396 = vpop.f32.mrf.mxu0
      %v3397 = vpop.f32.mrf.mxu0
      %v3398 = vadd.f32 %v2338, %v3397
      %v3399 = vpop.f32.mrf.mxu0
      %3400 = vmatprep.mubr.bf16.mxu0 0
      %3401 = vmatmul.mubr.bf16.gmra.mxu0 %v3049
      %v3402 = vpop.f32.mrf.mxu0
      %v3403 = vadd.f32 %v2343, %v3402
      %v3404 = vpop.f32.mrf.mxu0
      %v3405 = vpop.f32.mrf.mxu0
      %v3406 = vadd.f32 %v2346, %v3405
      %v3407 = vpop.f32.mrf.mxu0
      %3408 = vmatprep.mubr.bf16.mxu0 0
      %3409 = vmatmul.mubr.bf16.gmra.mxu0 %v3052
      %v3410 = vpop.f32.mrf.mxu0
      %v3411 = vadd.f32 %v2351, %v3410
      %v3412 = vpop.f32.mrf.mxu0
      %v3413 = vpop.f32.mrf.mxu0
      %v3414 = vadd.f32 %v2354, %v3413
      %v3415 = vpop.f32.mrf.mxu0
      %3416 = vmatprep.mubr.bf16.mxu0 0
      %3417 = vmatmul.mubr.bf16.gmra.mxu0 %v3055
      %v3418 = vpop.f32.mrf.mxu0
      %v3419 = vadd.f32 %v2359, %v3418
      %v3420 = vpop.f32.mrf.mxu0
      %v3421 = vpop.f32.mrf.mxu0
      %v3422 = vadd.f32 %v2362, %v3421
      %v3423 = vpop.f32.mrf.mxu0
      %3424 = vmatprep.mubr.bf16.mxu0 0
      %3425 = vmatmul.mubr.bf16.gmra.mxu0 %v3058
      %v3426 = vpop.f32.mrf.mxu0
      %v3427 = vadd.f32 %v2367, %v3426
      %v3428 = vpop.f32.mrf.mxu0
      %v3429 = vpop.f32.mrf.mxu0
      %v3430 = vadd.f32 %v2370, %v3429
      %v3431 = vpop.f32.mrf.mxu0
      %3432 = vmatprep.mubr.bf16.mxu0 0
      %3433 = vmatmul.mubr.bf16.gmra.mxu0 %v3061
      %v3434 = vpop.f32.mrf.mxu0
      %v3435 = vadd.f32 %v2375, %v3434
      %v3436 = vpop.f32.mrf.mxu0
      %v3437 = vpop.f32.mrf.mxu0
      %v3438 = vadd.f32 %v2378, %v3437
      %v3439 = vpop.f32.mrf.mxu0
      %3440 = vmatprep.mubr.bf16.mxu0 0
      %3441 = vmatmul.mubr.bf16.gmra.mxu0 %v3064
      %v3442 = vpop.f32.mrf.mxu0
      %v3443 = vadd.f32 %v2383, %v3442
      %v3444 = vpop.f32.mrf.mxu0
      %v3445 = vpop.f32.mrf.mxu0
      %v3446 = vadd.f32 %v2386, %v3445
      %v3447 = vpop.f32.mrf.mxu0
      %3448 = vmatprep.mubr.bf16.mxu0 0
      %3449 = vmatmul.mubr.bf16.gmra.mxu0 %v3067
      %v3450 = vpop.f32.mrf.mxu0
      %v3451 = vadd.f32 %v2391, %v3450
      %v3452 = vpop.f32.mrf.mxu0
      %v3453 = vpop.f32.mrf.mxu0
      %v3454 = vadd.f32 %v2394, %v3453
      %v3455 = vpop.f32.mrf.mxu0
      %3456 = vmatprep.mubr.bf16.mxu0 0
      %3457 = vmatmul.mubr.bf16.gmra.mxu0 %v3070
      %v3458 = vpop.f32.mrf.mxu0
      %v3459 = vadd.f32 %v2399, %v3458
      %v3460 = vpop.f32.mrf.mxu0
      %v3461 = vpop.f32.mrf.mxu0
      %v3462 = vadd.f32 %v2402, %v3461
      %v3463 = vpop.f32.mrf.mxu0
      %3464 = vmatprep.mubr.bf16.mxu0 0
      %3465 = vmatmul.mubr.bf16.gmra.mxu0 %v3073
      %v3466 = vpop.f32.mrf.mxu0
      %v3467 = vadd.f32 %v2407, %v3466
      %v3468 = vpop.f32.mrf.mxu0
      %v3469 = vpop.f32.mrf.mxu0
      %v3470 = vadd.f32 %v2410, %v3469
      %v3471 = vpop.f32.mrf.mxu0
      %3472 = vmatprep.mubr.bf16.mxu0 0
      %3473 = vmatmul.mubr.bf16.gmra.mxu0 %v3076
      %v3474 = vpop.f32.mrf.mxu0
      %v3475 = vadd.f32 %v2415, %v3474
      %v3476 = vpop.f32.mrf.mxu0
      %v3477 = vpop.f32.mrf.mxu0
      %v3478 = vadd.f32 %v2418, %v3477
      %v3479 = vpop.f32.mrf.mxu0
      %3480 = vmatprep.mubr.bf16.mxu0 0
      %3481 = vmatmul.mubr.bf16.gmra.mxu0 %v3079
      %v3482 = vpop.f32.mrf.mxu0
      %v3483 = vadd.f32 %v2423, %v3482
      %v3484 = vpop.f32.mrf.mxu0
      %v3485 = vpop.f32.mrf.mxu0
      %v3486 = vadd.f32 %v2426, %v3485
      %v3487 = vpop.f32.mrf.mxu0
      %3488 = vmatprep.mubr.bf16.mxu0 0
      %3489 = vmatmul.mubr.bf16.gmra.mxu0 %v3082
      %v3490 = vpop.f32.mrf.mxu0
      %v3491 = vadd.f32 %v2431, %v3490
      %v3492 = vpop.f32.mrf.mxu0
      %v3493 = vpop.f32.mrf.mxu0
      %v3494 = vadd.f32 %v2434, %v3493
      %v3495 = vpop.f32.mrf.mxu0
      %3496 = vmatprep.mubr.bf16.mxu0 0
      %3497 = vmatmul.mubr.bf16.gmra.mxu0 %v3085
      %v3498 = vpop.f32.mrf.mxu0
      %v3499 = vadd.f32 %v2439, %v3498
      %v3500 = vpop.f32.mrf.mxu0
      %v3501 = vpop.f32.mrf.mxu0
      %v3502 = vadd.f32 %v2442, %v3501
      %v3503 = vpop.f32.mrf.mxu0
      %3504 = vmatprep.mubr.bf16.mxu0 0
      %3505 = vmatmul.mubr.bf16.gmra.mxu0 %v3088
      %v3506 = vpop.f32.mrf.mxu0
      %v3507 = vadd.f32 %v2447, %v3506
      %v3508 = vpop.f32.mrf.mxu0
      %v3509 = vpop.f32.mrf.mxu0
      %v3510 = vadd.f32 %v2450, %v3509
      %v3511 = vpop.f32.mrf.mxu0
      %3512 = vmatprep.mubr.bf16.mxu0 0
      %3513 = vmatmul.mubr.bf16.gmra.mxu0 %v3091
      %v3514 = vpop.f32.mrf.mxu0
      %v3515 = vadd.f32 %v2455, %v3514
      %v3516 = vpop.f32.mrf.mxu0
      %v3517 = vpop.f32.mrf.mxu0
      %v3518 = vadd.f32 %v2458, %v3517
      %v3519 = vpop.f32.mrf.mxu0
      %3520 = vmatprep.mubr.bf16.mxu0 0
      %3521 = vmatmul.mubr.bf16.gmra.mxu0 %v3094
      %v3522 = vpop.f32.mrf.mxu0
      %v3523 = vadd.f32 %v2463, %v3522
      %v3524 = vpop.f32.mrf.mxu0
      %v3525 = vpop.f32.mrf.mxu0
      %v3526 = vadd.f32 %v2466, %v3525
      %v3527 = vpop.f32.mrf.mxu0
      %3528 = vmatprep.mubr.bf16.mxu0 0
      %3529 = vmatmul.mubr.bf16.gmra.mxu0 %v3097
      %v3530 = vpop.f32.mrf.mxu0
      %v3531 = vadd.f32 %v2471, %v3530
      %v3532 = vpop.f32.mrf.mxu0
      %v3533 = vpop.f32.mrf.mxu0
      %v3534 = vadd.f32 %v2474, %v3533
      %v3535 = vpop.f32.mrf.mxu0
      %3536 = vmatprep.mubr.bf16.mxu0 0
      %3537 = vmatmul.mubr.bf16.gmra.mxu0 %v3100
      %v3538 = vpop.f32.mrf.mxu0
      %v3539 = vadd.f32 %v2479, %v3538
      %v3540 = vpop.f32.mrf.mxu0
      %v3541 = vpop.f32.mrf.mxu0
      %v3542 = vadd.f32 %v2482, %v3541
      %v3543 = vpop.f32.mrf.mxu0
      %3544 = vmatprep.mubr.bf16.mxu0 0
      %3545 = vmatmul.mubr.bf16.gmra.mxu0 %v3103
      %v3546 = vpop.f32.mrf.mxu0
      %v3547 = vadd.f32 %v2487, %v3546
      %v3548 = vpop.f32.mrf.mxu0
      %v3549 = vpop.f32.mrf.mxu0
      %v3550 = vadd.f32 %v2490, %v3549
      %v3551 = vpop.f32.mrf.mxu0
      %3552 = vmatprep.mubr.bf16.mxu0 0
      %3553 = vmatmul.mubr.bf16.gmra.mxu0 %v3106
      %v3554 = vpop.f32.mrf.mxu0
      %v3555 = vadd.f32 %v2495, %v3554
      %v3556 = vpop.f32.mrf.mxu0
      %v3557 = vpop.f32.mrf.mxu0
      %v3558 = vadd.f32 %v2498, %v3557
      %v3559 = vpop.f32.mrf.mxu0
      %3560 = vmatprep.mubr.bf16.mxu0 0
      %3561 = vmatmul.mubr.bf16.gmra.mxu0 %v3109
      %v3562 = vpop.f32.mrf.mxu0
      %v3563 = vadd.f32 %v2503, %v3562
      %v3564 = vpop.f32.mrf.mxu0
      %v3565 = vpop.f32.mrf.mxu0
      %v3566 = vadd.f32 %v2506, %v3565
      %v3567 = vpop.f32.mrf.mxu0
      %3568 = vmatprep.mubr.bf16.mxu0 0
      %3569 = vmatmul.mubr.bf16.gmra.mxu0 %v3112
      %v3570 = vpop.f32.mrf.mxu0
      %v3571 = vadd.f32 %v2511, %v3570
      %v3572 = vpop.f32.mrf.mxu0
      %v3573 = vpop.f32.mrf.mxu0
      %v3574 = vadd.f32 %v2514, %v3573
      %v3575 = vpop.f32.mrf.mxu0
      %3576 = vmatprep.mubr.bf16.mxu0 0
      %3577 = vmatmul.mubr.bf16.gmra.mxu0 %v3115
      %v3578 = vpop.f32.mrf.mxu0
      %v3579 = vadd.f32 %v2519, %v3578
      %v3580 = vpop.f32.mrf.mxu0
      %v3581 = vpop.f32.mrf.mxu0
      %v3582 = vadd.f32 %v2522, %v3581
      %v3583 = vpop.f32.mrf.mxu0
      %3584 = vmatprep.mubr.bf16.mxu0 0
      %3585 = vmatmul.mubr.bf16.gmra.mxu0 %v3118
      %v3586 = vpop.f32.mrf.mxu0
      %v3587 = vadd.f32 %v2527, %v3586
      %v3588 = vpop.f32.mrf.mxu0
      %v3589 = vpop.f32.mrf.mxu0
      %v3590 = vadd.f32 %v2530, %v3589
      %v3591 = vpop.f32.mrf.mxu0
      %3592 = vmatprep.mubr.bf16.mxu0 0
      %3593 = vmatmul.mubr.bf16.gmra.mxu0 %v3121
      %v3594 = vpop.f32.mrf.mxu0
      %v3595 = vadd.f32 %v2535, %v3594
      %v3596 = vpop.f32.mrf.mxu0
      %v3597 = vpop.f32.mrf.mxu0
      %v3598 = vadd.f32 %v2538, %v3597
      %v3599 = vpop.f32.mrf.mxu0
      %3600 = vmatprep.mubr.bf16.mxu0 0
      %3601 = vmatmul.mubr.bf16.gmra.mxu0 %v3124
      %v3602 = vpop.f32.mrf.mxu0
      %v3603 = vadd.f32 %v2543, %v3602
      %v3604 = vpop.f32.mrf.mxu0
      %v3605 = vpop.f32.mrf.mxu0
      %v3606 = vadd.f32 %v2546, %v3605
      %v3607 = vpop.f32.mrf.mxu0
      %3608 = vmatprep.mubr.bf16.mxu0 0
      %3609 = vmatmul.mubr.bf16.gmra.mxu0 %v3127
      %v3610 = vpop.f32.mrf.mxu0
      %v3611 = vadd.f32 %v2551, %v3610
      %v3612 = vpop.f32.mrf.mxu0
      %v3613 = vpop.f32.mrf.mxu0
      %v3614 = vadd.f32 %v2554, %v3613
      %v3615 = vpop.f32.mrf.mxu0
      %3616 = vmatprep.mubr.bf16.mxu0 0
      %3617 = vmatmul.mubr.bf16.gmra.mxu0 %v3130
      %v3618 = vpop.f32.mrf.mxu0
      %v3619 = vadd.f32 %v2559, %v3618
      %v3620 = vpop.f32.mrf.mxu0
      %v3621 = vpop.f32.mrf.mxu0
      %v3622 = vadd.f32 %v2562, %v3621
      %v3623 = vpop.f32.mrf.mxu0
      %3624 = vmatprep.mubr.bf16.mxu0 0
      %3625 = vmatmul.mubr.bf16.gmra.mxu0 %v3133
      %v3626 = vpop.f32.mrf.mxu0
      %v3627 = vadd.f32 %v2567, %v3626
      %v3628 = vpop.f32.mrf.mxu0
      %v3629 = vpop.f32.mrf.mxu0
      %v3630 = vadd.f32 %v2570, %v3629
      %v3631 = vpop.f32.mrf.mxu0
      %3632 = vmatprep.mubr.bf16.mxu0 0
      %3633 = vmatmul.mubr.bf16.gmra.mxu0 %v3136
      %v3634 = vpop.f32.mrf.mxu0
      %v3635 = vadd.f32 %v2575, %v3634
      %v3636 = vpop.f32.mrf.mxu0
      %v3637 = vpop.f32.mrf.mxu0
      %v3638 = vadd.f32 %v2578, %v3637
      %v3639 = vpop.f32.mrf.mxu0
      %3640 = vmatprep.mubr.bf16.mxu0 0
      %3641 = vmatmul.mubr.bf16.gmra.mxu0 %v3139
      %v3642 = vpop.f32.mrf.mxu0
      %v3643 = vadd.f32 %v2583, %v3642
      %v3644 = vpop.f32.mrf.mxu0
      %v3645 = vpop.f32.mrf.mxu0
      %v3646 = vadd.f32 %v2586, %v3645
      %v3647 = vpop.f32.mrf.mxu0
      %3648 = vmatprep.mubr.bf16.mxu0 0
      %3649 = vmatmul.mubr.bf16.gmra.mxu0 %v3142
      %v3650 = vpop.f32.mrf.mxu0
      %v3651 = vadd.f32 %v2591, %v3650
      %v3652 = vpop.f32.mrf.mxu0
      %v3653 = vpop.f32.mrf.mxu0
      %v3654 = vadd.f32 %v2594, %v3653
      %v3655 = vpop.f32.mrf.mxu0
      %3656 = vmatprep.mubr.bf16.mxu0 0
      %3657 = vmatmul.mubr.bf16.gmra.mxu0 %v3145
      %v3658 = vpop.f32.mrf.mxu0
      %v3659 = vadd.f32 %v2599, %v3658
      %v3660 = vpop.f32.mrf.mxu0
      %v3661 = vpop.f32.mrf.mxu0
      %v3662 = vadd.f32 %v2602, %v3661
      %v3663 = vpop.f32.mrf.mxu0
      %3664 = vmatprep.mubr.bf16.mxu0 0
      %3665 = vmatmul.mubr.bf16.gmra.mxu0 %v3148
      %v3666 = vpop.f32.mrf.mxu0
      %v3667 = vadd.f32 %v2607, %v3666
      %v3668 = vpop.f32.mrf.mxu0
      %v3669 = vpop.f32.mrf.mxu0
      %v3670 = vadd.f32 %v2610, %v3669
      %v3671 = vpop.f32.mrf.mxu0
      %3672 = vmatprep.mubr.bf16.mxu0 0
      %3673 = vmatmul.mubr.bf16.gmra.mxu0 %v3151
      %v3674 = vpop.f32.mrf.mxu0
      %v3675 = vadd.f32 %v2615, %v3674
      %v3676 = vpop.f32.mrf.mxu0
      %v3677 = vpop.f32.mrf.mxu0
      %v3678 = vadd.f32 %v2618, %v3677
      %v3679 = vpop.f32.mrf.mxu0
      %3680 = vmatprep.mubr.bf16.mxu0 0
      %3681 = vmatmul.mubr.bf16.gmra.mxu0 %v3154
      %v3682 = vpop.f32.mrf.mxu0
      %v3683 = vadd.f32 %v2623, %v3682
      %v3684 = vpop.f32.mrf.mxu0
      %v3685 = vpop.f32.mrf.mxu0
      %v3686 = vadd.f32 %v2626, %v3685
      %v3687 = vpop.f32.mrf.mxu0
      %3688 = vmatprep.mubr.bf16.mxu0 0
      %3689 = vmatmul.mubr.bf16.gmra.mxu0 %v3157
      %v3690 = vpop.f32.mrf.mxu0
      %v3691 = vadd.f32 %v2631, %v3690
      %v3692 = vpop.f32.mrf.mxu0
      %v3693 = vpop.f32.mrf.mxu0
      %v3694 = vadd.f32 %v2634, %v3693
      %v3695 = vpop.f32.mrf.mxu0
      %3696 = vmatprep.mubr.bf16.mxu0 0
      %3697 = vmatmul.mubr.bf16.gmra.mxu0 %v3160
      %v3698 = vpop.f32.mrf.mxu0
      %v3699 = vadd.f32 %v2639, %v3698
      %v3700 = vpop.f32.mrf.mxu0
      %v3701 = vpop.f32.mrf.mxu0
      %v3702 = vadd.f32 %v2642, %v3701
      %v3703 = vpop.f32.mrf.mxu0
      %3704 = vmatprep.mubr.bf16.mxu0 0
      %3705 = vmatmul.mubr.bf16.gmra.mxu0 %v3163
      %v3706 = vpop.f32.mrf.mxu0
      %v3707 = vadd.f32 %v2647, %v3706
      %v3708 = vpop.f32.mrf.mxu0
      %v3709 = vpop.f32.mrf.mxu0
      %v3710 = vadd.f32 %v2650, %v3709
      %v3711 = vpop.f32.mrf.mxu0
      %3712 = vdwg.mxu0
      %s3713 = scalar_lea.vmem %s138, 20
      %v3714 = vld [vmem:[%s3713] sm:$0xf]
      %v3715 = vld [vmem:[%s3713 + $0x4] sm:$0xf]
      %v3716 = vld [vmem:[%s3713 + $0x8] sm:$0xf]
      %v3717 = vld [vmem:[%s3713 + $0xc] sm:$0xf]
      %v3718 = vld [vmem:[%s3713 + $0x14] sm:$0xf]
      %v3719 = vld [vmem:[%s3713 + $0x18] sm:$0xf]
      %v3720 = vld [vmem:[%s3713 + $0x1c] sm:$0xf]
      %v3721 = vld [vmem:[%s3713 + $0x20] sm:$0xf]
      %v3722 = vld [vmem:[%s3713 + $0x28] sm:$0xf]
      %v3723 = vld [vmem:[%s3713 + $0x2c] sm:$0xf]
      %v3724 = vld [vmem:[%s3713 + $0x30] sm:$0xf]
      %v3725 = vld [vmem:[%s3713 + $0x34] sm:$0xf]
      %v3726 = vld [vmem:[%s3713 + $0x3c] sm:$0xf]
      %v3727 = vld [vmem:[%s3713 + $0x40] sm:$0xf]
      %v3728 = vld [vmem:[%s3713 + $0x44] sm:$0xf]
      %v3729 = vld [vmem:[%s3713 + $0x48] sm:$0xf]
      %v3730 = vld [vmem:[%s3713 + $0x50] sm:$0xf]
      %v3731 = vld [vmem:[%s3713 + $0x54] sm:$0xf]
      %v3732 = vld [vmem:[%s3713 + $0x58] sm:$0xf]
      %v3733 = vld [vmem:[%s3713 + $0x5c] sm:$0xf]
      %v3734 = vld [vmem:[%s3713 + $0x64] sm:$0xf]
      %v3735 = vld [vmem:[%s3713 + $0x68] sm:$0xf]
      %v3736 = vld [vmem:[%s3713 + $0x6c] sm:$0xf]
      %v3737 = vld [vmem:[%s3713 + $0x70] sm:$0xf]
      %v3738 = vld [vmem:[%s3713 + $0x78] sm:$0xf]
      %v3739 = vld [vmem:[%s3713 + $0x7c] sm:$0xf]
      %v3740 = vld [vmem:[%s3713 + $0x80] sm:$0xf]
      %v3741 = vld [vmem:[%s3713 + $0x84] sm:$0xf]
      %v3742 = vld [vmem:[%s3713 + $0x8c] sm:$0xf]
      %v3743 = vld [vmem:[%s3713 + $0x90] sm:$0xf]
      %v3744 = vld [vmem:[%s3713 + $0x94] sm:$0xf]
      %v3745 = vld [vmem:[%s3713 + $0x98] sm:$0xf]
      %v3746 = vld [vmem:[%s3713 + $0xa0] sm:$0xf]
      %v3747 = vld [vmem:[%s3713 + $0xa4] sm:$0xf]
      %v3748 = vld [vmem:[%s3713 + $0xa8] sm:$0xf]
      %v3749 = vld [vmem:[%s3713 + $0xac] sm:$0xf]
      %v3750 = vld [vmem:[%s3713 + $0xb4] sm:$0xf]
      %v3751 = vld [vmem:[%s3713 + $0xb8] sm:$0xf]
      %v3752 = vld [vmem:[%s3713 + $0xbc] sm:$0xf]
      %v3753 = vld [vmem:[%s3713 + $0xc0] sm:$0xf]
      %v3754 = vld [vmem:[%s3713 + $0xc8] sm:$0xf]
      %v3755 = vld [vmem:[%s3713 + $0xcc] sm:$0xf]
      %v3756 = vld [vmem:[%s3713 + $0xd0] sm:$0xf]
      %v3757 = vld [vmem:[%s3713 + $0xd4] sm:$0xf]
      %v3758 = vld [vmem:[%s3713 + $0xdc] sm:$0xf]
      %v3759 = vld [vmem:[%s3713 + $0xe0] sm:$0xf]
      %v3760 = vld [vmem:[%s3713 + $0xe4] sm:$0xf]
      %v3761 = vld [vmem:[%s3713 + $0xe8] sm:$0xf]
      %v3762 = vld [vmem:[%s3713 + $0xf0] sm:$0xf]
      %v3763 = vld [vmem:[%s3713 + $0xf4] sm:$0xf]
      %v3764 = vld [vmem:[%s3713 + $0xf8] sm:$0xf]
      %v3765 = vld [vmem:[%s3713 + $0xfc] sm:$0xf]
      %v3766 = vld [vmem:[%s3713 + $0x104] sm:$0xf]
      %v3767 = vld [vmem:[%s3713 + $0x108] sm:$0xf]
      %v3768 = vld [vmem:[%s3713 + $0x10c] sm:$0xf]
      %v3769 = vld [vmem:[%s3713 + $0x110] sm:$0xf]
      %v3770 = vld [vmem:[%s3713 + $0x118] sm:$0xf]
      %v3771 = vld [vmem:[%s3713 + $0x11c] sm:$0xf]
      %v3772 = vld [vmem:[%s3713 + $0x120] sm:$0xf]
      %v3773 = vld [vmem:[%s3713 + $0x124] sm:$0xf]
      %v3774 = vld [vmem:[%s3713 + $0x12c] sm:$0xf]
      %v3775 = vld [vmem:[%s3713 + $0x130] sm:$0xf]
      %v3776 = vld [vmem:[%s3713 + $0x134] sm:$0xf]
      %v3777 = vld [vmem:[%s3713 + $0x138] sm:$0xf]
      %v3778 = vld [vmem:[%s3713 + $0x140] sm:$0xf]
      %v3779 = vld [vmem:[%s3713 + $0x144] sm:$0xf]
      %v3780 = vld [vmem:[%s3713 + $0x148] sm:$0xf]
      %v3781 = vld [vmem:[%s3713 + $0x14c] sm:$0xf]
      %v3782 = vld [vmem:[%s3713 + $0x154] sm:$0xf]
      %v3783 = vld [vmem:[%s3713 + $0x158] sm:$0xf]
      %v3784 = vld [vmem:[%s3713 + $0x15c] sm:$0xf]
      %v3785 = vld [vmem:[%s3713 + $0x160] sm:$0xf]
      %v3786 = vld [vmem:[%s3713 + $0x168] sm:$0xf]
      %v3787 = vld [vmem:[%s3713 + $0x16c] sm:$0xf]
      %v3788 = vld [vmem:[%s3713 + $0x170] sm:$0xf]
      %v3789 = vld [vmem:[%s3713 + $0x174] sm:$0xf]
      %v3790 = vld [vmem:[%s3713 + $0x17c] sm:$0xf]
      %v3791 = vld [vmem:[%s3713 + $0x180] sm:$0xf]
      %v3792 = vld [vmem:[%s3713 + $0x184] sm:$0xf]
      %v3793 = vld [vmem:[%s3713 + $0x188] sm:$0xf]
      %v3794 = vld [vmem:[%s3713 + $0x190] sm:$0xf]
      %v3795 = vld [vmem:[%s3713 + $0x194] sm:$0xf]
      %v3796 = vld [vmem:[%s3713 + $0x198] sm:$0xf]
      %v3797 = vld [vmem:[%s3713 + $0x19c] sm:$0xf]
      %v3798 = vld [vmem:[%s3713 + $0x1a4] sm:$0xf]
      %v3799 = vld [vmem:[%s3713 + $0x1a8] sm:$0xf]
      %v3800 = vld [vmem:[%s3713 + $0x1ac] sm:$0xf]
      %v3801 = vld [vmem:[%s3713 + $0x1b0] sm:$0xf]
      %v3802 = vld [vmem:[%s3713 + $0x1b8] sm:$0xf]
      %v3803 = vld [vmem:[%s3713 + $0x1bc] sm:$0xf]
      %v3804 = vld [vmem:[%s3713 + $0x1c0] sm:$0xf]
      %v3805 = vld [vmem:[%s3713 + $0x1c4] sm:$0xf]
      %v3806 = vld [vmem:[%s3713 + $0x1cc] sm:$0xf]
      %v3807 = vld [vmem:[%s3713 + $0x1d0] sm:$0xf]
      %v3808 = vld [vmem:[%s3713 + $0x1d4] sm:$0xf]
      %v3809 = vld [vmem:[%s3713 + $0x1d8] sm:$0xf]
      %v3810 = vld [vmem:[%s3713 + $0x1e0] sm:$0xf]
      %v3811 = vld [vmem:[%s3713 + $0x1e4] sm:$0xf]
      %v3812 = vld [vmem:[%s3713 + $0x1e8] sm:$0xf]
      %v3813 = vld [vmem:[%s3713 + $0x1ec] sm:$0xf]
      %v3814 = vld [vmem:[%s3713 + $0x1f4] sm:$0xf]
      %v3815 = vld [vmem:[%s3713 + $0x1f8] sm:$0xf]
      %v3816 = vld [vmem:[%s3713 + $0x1fc] sm:$0xf]
      %v3817 = vld [vmem:[%s3713 + $0x200] sm:$0xf]
      %v3818 = vld [vmem:[%s3713 + $0x208] sm:$0xf]
      %v3819 = vld [vmem:[%s3713 + $0x20c] sm:$0xf]
      %v3820 = vld [vmem:[%s3713 + $0x210] sm:$0xf]
      %v3821 = vld [vmem:[%s3713 + $0x214] sm:$0xf]
      %v3822 = vld [vmem:[%s3713 + $0x21c] sm:$0xf]
      %v3823 = vld [vmem:[%s3713 + $0x220] sm:$0xf]
      %v3824 = vld [vmem:[%s3713 + $0x224] sm:$0xf]
      %v3825 = vld [vmem:[%s3713 + $0x228] sm:$0xf]
      %v3826 = vld [vmem:[%s3713 + $0x230] sm:$0xf]
      %v3827 = vld [vmem:[%s3713 + $0x234] sm:$0xf]
      %v3828 = vld [vmem:[%s3713 + $0x238] sm:$0xf]
      %v3829 = vld [vmem:[%s3713 + $0x23c] sm:$0xf]
      %v3830 = vld [vmem:[%s3713 + $0x244] sm:$0xf]
      %v3831 = vld [vmem:[%s3713 + $0x248] sm:$0xf]
      %v3832 = vld [vmem:[%s3713 + $0x24c] sm:$0xf]
      %v3833 = vld [vmem:[%s3713 + $0x250] sm:$0xf]
      %v3834 = vld [vmem:[%s3713 + $0x258] sm:$0xf]
      %v3835 = vld [vmem:[%s3713 + $0x25c] sm:$0xf]
      %v3836 = vld [vmem:[%s3713 + $0x260] sm:$0xf]
      %v3837 = vld [vmem:[%s3713 + $0x264] sm:$0xf]
      %v3838 = vld [vmem:[%s3713 + $0x26c] sm:$0xf]
      %v3839 = vld [vmem:[%s3713 + $0x270] sm:$0xf]
      %v3840 = vld [vmem:[%s3713 + $0x274] sm:$0xf]
      %v3841 = vld [vmem:[%s3713 + $0x278] sm:$0xf]
      %s3842 = scalar_lea.vmem %s1, 4
      %v3843 = vld [vmem:[%s3842] sm:$0x3]
      %v3972 = vunpack.c.l.b16 %v3714
      %v3973 = vunpack.c.l.b16 %v3715
      %v3974 = vunpack.c.l.b16 %v3716
      %v3975 = vunpack.c.l.b16 %v3717
      %v3976 = vunpack.c.l.b16 %v3718
      %v3977 = vunpack.c.l.b16 %v3719
      %v3978 = vunpack.c.l.b16 %v3720
      %v3979 = vunpack.c.l.b16 %v3721
      %v3980 = vunpack.c.l.b16 %v3722
      %v3981 = vunpack.c.l.b16 %v3723
      %v3982 = vunpack.c.l.b16 %v3724
      %v3983 = vunpack.c.l.b16 %v3725
      %v3984 = vunpack.c.l.b16 %v3726
      %v3985 = vunpack.c.l.b16 %v3727
      %v3986 = vunpack.c.l.b16 %v3728
      %v3987 = vunpack.c.l.b16 %v3729
      %v3988 = vunpack.c.l.b16 %v3730
      %v3989 = vunpack.c.l.b16 %v3731
      %v3990 = vunpack.c.l.b16 %v3732
      %v3991 = vunpack.c.l.b16 %v3733
      %v3992 = vunpack.c.l.b16 %v3734
      %v3993 = vunpack.c.l.b16 %v3735
      %v3994 = vunpack.c.l.b16 %v3736
      %v3995 = vunpack.c.l.b16 %v3737
      %v3996 = vunpack.c.l.b16 %v3738
      %v3997 = vunpack.c.l.b16 %v3739
      %v3998 = vunpack.c.l.b16 %v3740
      %v3999 = vunpack.c.l.b16 %v3741
      %v4000 = vunpack.c.l.b16 %v3742
      %v4001 = vunpack.c.l.b16 %v3743
      %v4002 = vunpack.c.l.b16 %v3744
      %v4003 = vunpack.c.l.b16 %v3745
      %v4004 = vunpack.c.l.b16 %v3746
      %v4005 = vunpack.c.l.b16 %v3747
      %v4006 = vunpack.c.l.b16 %v3748
      %v4007 = vunpack.c.l.b16 %v3749
      %v4008 = vunpack.c.l.b16 %v3750
      %v4009 = vunpack.c.l.b16 %v3751
      %v4010 = vunpack.c.l.b16 %v3752
      %v4011 = vunpack.c.l.b16 %v3753
      %v4012 = vunpack.c.l.b16 %v3754
      %v4013 = vunpack.c.l.b16 %v3755
      %v4014 = vunpack.c.l.b16 %v3756
      %v4015 = vunpack.c.l.b16 %v3757
      %v4016 = vunpack.c.l.b16 %v3758
      %v4017 = vunpack.c.l.b16 %v3759
      %v4018 = vunpack.c.l.b16 %v3760
      %v4019 = vunpack.c.l.b16 %v3761
      %v4020 = vunpack.c.l.b16 %v3762
      %v4021 = vunpack.c.l.b16 %v3763
      %v4022 = vunpack.c.l.b16 %v3764
      %v4023 = vunpack.c.l.b16 %v3765
      %v4024 = vunpack.c.l.b16 %v3766
      %v4025 = vunpack.c.l.b16 %v3767
      %v4026 = vunpack.c.l.b16 %v3768
      %v4027 = vunpack.c.l.b16 %v3769
      %v4028 = vunpack.c.l.b16 %v3770
      %v4029 = vunpack.c.l.b16 %v3771
      %v4030 = vunpack.c.l.b16 %v3772
      %v4031 = vunpack.c.l.b16 %v3773
      %v4032 = vunpack.c.l.b16 %v3774
      %v4033 = vunpack.c.l.b16 %v3775
      %v4034 = vunpack.c.l.b16 %v3776
      %v4035 = vunpack.c.l.b16 %v3777
      %v4036 = vunpack.c.l.b16 %v3778
      %v4037 = vunpack.c.l.b16 %v3779
      %v4038 = vunpack.c.l.b16 %v3780
      %v4039 = vunpack.c.l.b16 %v3781
      %v4040 = vunpack.c.l.b16 %v3782
      %v4041 = vunpack.c.l.b16 %v3783
      %v4042 = vunpack.c.l.b16 %v3784
      %v4043 = vunpack.c.l.b16 %v3785
      %v4044 = vunpack.c.l.b16 %v3786
      %v4045 = vunpack.c.l.b16 %v3787
      %v4046 = vunpack.c.l.b16 %v3788
      %v4047 = vunpack.c.l.b16 %v3789
      %v4048 = vunpack.c.l.b16 %v3790
      %v4049 = vunpack.c.l.b16 %v3791
      %v4050 = vunpack.c.l.b16 %v3792
      %v4051 = vunpack.c.l.b16 %v3793
      %v4052 = vunpack.c.l.b16 %v3794
      %v4053 = vunpack.c.l.b16 %v3795
      %v4054 = vunpack.c.l.b16 %v3796
      %v4055 = vunpack.c.l.b16 %v3797
      %v4056 = vunpack.c.l.b16 %v3798
      %v4057 = vunpack.c.l.b16 %v3799
      %v4058 = vunpack.c.l.b16 %v3800
      %v4059 = vunpack.c.l.b16 %v3801
      %v4060 = vunpack.c.l.b16 %v3802
      %v4061 = vunpack.c.l.b16 %v3803
      %v4062 = vunpack.c.l.b16 %v3804
      %v4063 = vunpack.c.l.b16 %v3805
      %v4064 = vunpack.c.l.b16 %v3806
      %v4065 = vunpack.c.l.b16 %v3807
      %v4066 = vunpack.c.l.b16 %v3808
      %v4067 = vunpack.c.l.b16 %v3809
      %v4068 = vunpack.c.l.b16 %v3810
      %v4069 = vunpack.c.l.b16 %v3811
      %v4070 = vunpack.c.l.b16 %v3812
      %v4071 = vunpack.c.l.b16 %v3813
      %v4072 = vunpack.c.l.b16 %v3814
      %v4073 = vunpack.c.l.b16 %v3815
      %v4074 = vunpack.c.l.b16 %v3816
      %v4075 = vunpack.c.l.b16 %v3817
      %v4076 = vunpack.c.l.b16 %v3818
      %v4077 = vunpack.c.l.b16 %v3819
      %v4078 = vunpack.c.l.b16 %v3820
      %v4079 = vunpack.c.l.b16 %v3821
      %v4080 = vunpack.c.l.b16 %v3822
      %v4081 = vunpack.c.l.b16 %v3823
      %v4082 = vunpack.c.l.b16 %v3824
      %v4083 = vunpack.c.l.b16 %v3825
      %v4084 = vunpack.c.l.b16 %v3826
      %v4085 = vunpack.c.l.b16 %v3827
      %v4086 = vunpack.c.l.b16 %v3828
      %v4087 = vunpack.c.l.b16 %v3829
      %v4088 = vunpack.c.l.b16 %v3830
      %v4089 = vunpack.c.l.b16 %v3831
      %v4090 = vunpack.c.l.b16 %v3832
      %v4091 = vunpack.c.l.b16 %v3833
      %v4092 = vunpack.c.l.b16 %v3834
      %v4093 = vunpack.c.l.b16 %v3835
      %v4094 = vunpack.c.l.b16 %v3836
      %v4095 = vunpack.c.l.b16 %v3837
      %v4096 = vunpack.c.l.b16 %v3838
      %v4097 = vunpack.c.l.b16 %v3839
      %v4098 = vunpack.c.l.b16 %v3840
      %v4099 = vunpack.c.l.b16 %v3841
      %v4100 = vpack.c.b16 %v3973, %v3972
      %v4101 = vpack.c.b16 %v3975, %v3974
      %v4102 = vpack.c.b16 %v3977, %v3976
      %v4103 = vpack.c.b16 %v3979, %v3978
      %v4104 = vpack.c.b16 %v3981, %v3980
      %v4105 = vpack.c.b16 %v3983, %v3982
      %v4106 = vpack.c.b16 %v3985, %v3984
      %v4107 = vpack.c.b16 %v3987, %v3986
      %v4108 = vpack.c.b16 %v3989, %v3988
      %v4109 = vpack.c.b16 %v3991, %v3990
      %v4110 = vpack.c.b16 %v3993, %v3992
      %v4111 = vpack.c.b16 %v3995, %v3994
      %v4112 = vpack.c.b16 %v3997, %v3996
      %v4113 = vpack.c.b16 %v3999, %v3998
      %v4114 = vpack.c.b16 %v4001, %v4000
      %v4115 = vpack.c.b16 %v4003, %v4002
      %v4116 = vpack.c.b16 %v4005, %v4004
      %v4117 = vpack.c.b16 %v4007, %v4006
      %v4118 = vpack.c.b16 %v4009, %v4008
      %v4119 = vpack.c.b16 %v4011, %v4010
      %v4120 = vpack.c.b16 %v4013, %v4012
      %v4121 = vpack.c.b16 %v4015, %v4014
      %v4122 = vpack.c.b16 %v4017, %v4016
      %v4123 = vpack.c.b16 %v4019, %v4018
      %v4124 = vpack.c.b16 %v4021, %v4020
      %v4125 = vpack.c.b16 %v4023, %v4022
      %v4126 = vpack.c.b16 %v4025, %v4024
      %v4127 = vpack.c.b16 %v4027, %v4026
      %v4128 = vpack.c.b16 %v4029, %v4028
      %v4129 = vpack.c.b16 %v4031, %v4030
      %v4130 = vpack.c.b16 %v4033, %v4032
      %v4131 = vpack.c.b16 %v4035, %v4034
      %v4132 = vpack.c.b16 %v4037, %v4036
      %v4133 = vpack.c.b16 %v4039, %v4038
      %v4134 = vpack.c.b16 %v4041, %v4040
      %v4135 = vpack.c.b16 %v4043, %v4042
      %v4136 = vpack.c.b16 %v4045, %v4044
      %v4137 = vpack.c.b16 %v4047, %v4046
      %v4138 = vpack.c.b16 %v4049, %v4048
      %v4139 = vpack.c.b16 %v4051, %v4050
      %v4140 = vpack.c.b16 %v4053, %v4052
      %v4141 = vpack.c.b16 %v4055, %v4054
      %v4142 = vpack.c.b16 %v4057, %v4056
      %v4143 = vpack.c.b16 %v4059, %v4058
      %v4144 = vpack.c.b16 %v4061, %v4060
      %v4145 = vpack.c.b16 %v4063, %v4062
      %v4146 = vpack.c.b16 %v4065, %v4064
      %v4147 = vpack.c.b16 %v4067, %v4066
      %v4148 = vpack.c.b16 %v4069, %v4068
      %v4149 = vpack.c.b16 %v4071, %v4070
      %v4150 = vpack.c.b16 %v4073, %v4072
      %v4151 = vpack.c.b16 %v4075, %v4074
      %v4152 = vpack.c.b16 %v4077, %v4076
      %v4153 = vpack.c.b16 %v4079, %v4078
      %v4154 = vpack.c.b16 %v4081, %v4080
      %v4155 = vpack.c.b16 %v4083, %v4082
      %v4156 = vpack.c.b16 %v4085, %v4084
      %v4157 = vpack.c.b16 %v4087, %v4086
      %v4158 = vpack.c.b16 %v4089, %v4088
      %v4159 = vpack.c.b16 %v4091, %v4090
      %v4160 = vpack.c.b16 %v4093, %v4092
      %v4161 = vpack.c.b16 %v4095, %v4094
      %v4162 = vpack.c.b16 %v4097, %v4096
      %v4163 = vpack.c.b16 %v4099, %v4098
      %v4165 = vsel %vm1911, %v4100, 0
      %v4168 = vsel %vm1911, %v4101, 0
      %v4171 = vsel %vm1911, %v4102, 0
      %v4174 = vsel %vm1911, %v4103, 0
      %v4177 = vsel %vm1911, %v4104, 0
      %v4180 = vsel %vm1911, %v4105, 0
      %v4183 = vsel %vm1911, %v4106, 0
      %v4186 = vsel %vm1911, %v4107, 0
      %v4189 = vsel %vm1911, %v4108, 0
      %v4192 = vsel %vm1911, %v4109, 0
      %v4195 = vsel %vm1911, %v4110, 0
      %v4198 = vsel %vm1911, %v4111, 0
      %v4201 = vsel %vm1911, %v4112, 0
      %v4204 = vsel %vm1911, %v4113, 0
      %v4207 = vsel %vm1911, %v4114, 0
      %v4210 = vsel %vm1911, %v4115, 0
      %v4213 = vsel %vm1911, %v4116, 0
      %v4216 = vsel %vm1911, %v4117, 0
      %v4219 = vsel %vm1911, %v4118, 0
      %v4222 = vsel %vm1911, %v4119, 0
      %v4225 = vsel %vm1911, %v4120, 0
      %v4228 = vsel %vm1911, %v4121, 0
      %v4231 = vsel %vm1911, %v4122, 0
      %v4234 = vsel %vm1911, %v4123, 0
      %v4237 = vsel %vm1911, %v4124, 0
      %v4240 = vsel %vm1911, %v4125, 0
      %v4243 = vsel %vm1911, %v4126, 0
      %v4246 = vsel %vm1911, %v4127, 0
      %v4249 = vsel %vm1911, %v4128, 0
      %v4252 = vsel %vm1911, %v4129, 0
      %v4255 = vsel %vm1911, %v4130, 0
      %v4258 = vsel %vm1911, %v4131, 0
      %v4261 = vsel %vm1911, %v4132, 0
      %v4264 = vsel %vm1911, %v4133, 0
      %v4267 = vsel %vm1911, %v4134, 0
      %v4270 = vsel %vm1911, %v4135, 0
      %v4273 = vsel %vm1911, %v4136, 0
      %v4276 = vsel %vm1911, %v4137, 0
      %v4279 = vsel %vm1911, %v4138, 0
      %v4282 = vsel %vm1911, %v4139, 0
      %v4285 = vsel %vm1911, %v4140, 0
      %v4288 = vsel %vm1911, %v4141, 0
      %v4291 = vsel %vm1911, %v4142, 0
      %v4294 = vsel %vm1911, %v4143, 0
      %v4297 = vsel %vm1911, %v4144, 0
      %v4300 = vsel %vm1911, %v4145, 0
      %v4303 = vsel %vm1911, %v4146, 0
      %v4306 = vsel %vm1911, %v4147, 0
      %v4309 = vsel %vm1911, %v4148, 0
      %v4312 = vsel %vm1911, %v4149, 0
      %v4315 = vsel %vm1911, %v4150, 0
      %v4318 = vsel %vm1911, %v4151, 0
      %v4321 = vsel %vm1911, %v4152, 0
      %v4324 = vsel %vm1911, %v4153, 0
      %v4327 = vsel %vm1911, %v4154, 0
      %v4330 = vsel %vm1911, %v4155, 0
      %v4333 = vsel %vm1911, %v4156, 0
      %v4336 = vsel %vm1911, %v4157, 0
      %v4339 = vsel %vm1911, %v4158, 0
      %v4342 = vsel %vm1911, %v4159, 0
      %v4345 = vsel %vm1911, %v4160, 0
      %v4348 = vsel %vm1911, %v4161, 0
      %v4351 = vsel %vm1911, %v4162, 0
      %v4354 = vsel %vm1911, %v4163, 0
      %v4357 = vsel %vm2104, %v3843, 0
      %4359 = vmatprep.subr.bf16.mxu0 0
      %4360 = vmatpush1.bf16.msra.mxu0 0
      %4361 = vmatprep.subr.bf16.mxu0 0
      %4362 = vmatpush1.bf16.msra.mxu0 0
      %4363 = vmatprep.subr.bf16.mxu0 0
      %4364 = vmatpush1.bf16.msra.mxu0 0
      %4365 = vmatprep.subr.bf16.mxu0 0
      %4366 = vmatpush1.bf16.msra.mxu0 0
      %4367 = vmatprep.subr.bf16.mxu0 0
      %4368 = vmatpush1.bf16.msra.mxu0 0
      %4369 = vmatprep.subr.bf16.mxu0 0
      %4370 = vmatpush1.bf16.msra.mxu0 0
      %4371 = vmatprep.subr.bf16.mxu0 0
      %4372 = vmatpush1.bf16.msra.mxu0 0
      %4373 = vmatprep.subr.bf16.mxu0 0
      %4374 = vmatpush1.bf16.msra.mxu0 %v4357
      %4375 = vmatprep.subr.bf16.mxu0 0
      %4376 = vmatpush2.bf16.msra.mxu0 0
      %4377 = vmatprep.subr.bf16.mxu0 0
      %4378 = vmatpush2.bf16.msra.mxu0 0
      %4379 = vmatprep.subr.bf16.mxu0 0
      %4380 = vmatpush2.bf16.msra.mxu0 0
      %4381 = vmatprep.subr.bf16.mxu0 0
      %4382 = vmatpush2.bf16.msra.mxu0 0
      %4383 = vmatprep.subr.bf16.mxu0 0
      %4384 = vmatpush2.bf16.msra.mxu0 0
      %4385 = vmatprep.subr.bf16.mxu0 0
      %4386 = vmatpush2.bf16.msra.mxu0 0
      %4387 = vmatprep.subr.bf16.mxu0 0
      %4388 = vmatpush2.bf16.msra.mxu0 0
      %4389 = vmatprep.subr.bf16.mxu0 0
      %4390 = vmatpush2.bf16.msra.mxu0 0
      %4391 = vmatprep.mubr.bf16.mxu0 0
      %4392 = vmatmul.mubr.bf16.gmra.mxu0 %v4165
      %v4393 = vpop.f32.mrf.mxu0
      %v4394 = vadd.f32 0.0, %v4393
      %v4395 = vpop.f32.mrf.mxu0
      %v4396 = vpop.f32.mrf.mxu0
      %v4397 = vadd.f32 0.0, %v4396
      %v4398 = vpop.f32.mrf.mxu0
      %4399 = vmatprep.mubr.bf16.mxu0 0
      %4400 = vmatmul.mubr.bf16.gmra.mxu0 %v4168
      %v4401 = vpop.f32.mrf.mxu0
      %v4402 = vadd.f32 0.0, %v4401
      %v4403 = vpop.f32.mrf.mxu0
      %v4404 = vpop.f32.mrf.mxu0
      %v4405 = vadd.f32 0.0, %v4404
      %v4406 = vpop.f32.mrf.mxu0
      %4407 = vmatprep.mubr.bf16.mxu0 0
      %4408 = vmatmul.mubr.bf16.gmra.mxu0 %v4171
      %v4409 = vpop.f32.mrf.mxu0
      %v4410 = vadd.f32 0.0, %v4409
      %v4411 = vpop.f32.mrf.mxu0
      %v4412 = vpop.f32.mrf.mxu0
      %v4413 = vadd.f32 0.0, %v4412
      %v4414 = vpop.f32.mrf.mxu0
      %4415 = vmatprep.mubr.bf16.mxu0 0
      %4416 = vmatmul.mubr.bf16.gmra.mxu0 %v4174
      %v4417 = vpop.f32.mrf.mxu0
      %v4418 = vadd.f32 0.0, %v4417
      %v4419 = vpop.f32.mrf.mxu0
      %v4420 = vpop.f32.mrf.mxu0
      %v4421 = vadd.f32 0.0, %v4420
      %v4422 = vpop.f32.mrf.mxu0
      %4423 = vmatprep.mubr.bf16.mxu0 0
      %4424 = vmatmul.mubr.bf16.gmra.mxu0 %v4177
      %v4425 = vpop.f32.mrf.mxu0
      %v4426 = vadd.f32 0.0, %v4425
      %v4427 = vpop.f32.mrf.mxu0
      %v4428 = vpop.f32.mrf.mxu0
      %v4429 = vadd.f32 0.0, %v4428
      %v4430 = vpop.f32.mrf.mxu0
      %4431 = vmatprep.mubr.bf16.mxu0 0
      %4432 = vmatmul.mubr.bf16.gmra.mxu0 %v4180
      %v4433 = vpop.f32.mrf.mxu0
      %v4434 = vadd.f32 0.0, %v4433
      %v4435 = vpop.f32.mrf.mxu0
      %v4436 = vpop.f32.mrf.mxu0
      %v4437 = vadd.f32 0.0, %v4436
      %v4438 = vpop.f32.mrf.mxu0
      %4439 = vmatprep.mubr.bf16.mxu0 0
      %4440 = vmatmul.mubr.bf16.gmra.mxu0 %v4183
      %v4441 = vpop.f32.mrf.mxu0
      %v4442 = vadd.f32 0.0, %v4441
      %v4443 = vpop.f32.mrf.mxu0
      %v4444 = vpop.f32.mrf.mxu0
      %v4445 = vadd.f32 0.0, %v4444
      %v4446 = vpop.f32.mrf.mxu0
      %4447 = vmatprep.mubr.bf16.mxu0 0
      %4448 = vmatmul.mubr.bf16.gmra.mxu0 %v4186
      %v4449 = vpop.f32.mrf.mxu0
      %v4450 = vadd.f32 0.0, %v4449
      %v4451 = vpop.f32.mrf.mxu0
      %v4452 = vpop.f32.mrf.mxu0
      %v4453 = vadd.f32 0.0, %v4452
      %v4454 = vpop.f32.mrf.mxu0
      %4455 = vmatprep.mubr.bf16.mxu0 0
      %4456 = vmatmul.mubr.bf16.gmra.mxu0 %v4189
      %v4457 = vpop.f32.mrf.mxu0
      %v4458 = vadd.f32 0.0, %v4457
      %v4459 = vpop.f32.mrf.mxu0
      %v4460 = vpop.f32.mrf.mxu0
      %v4461 = vadd.f32 0.0, %v4460
      %v4462 = vpop.f32.mrf.mxu0
      %4463 = vmatprep.mubr.bf16.mxu0 0
      %4464 = vmatmul.mubr.bf16.gmra.mxu0 %v4192
      %v4465 = vpop.f32.mrf.mxu0
      %v4466 = vadd.f32 0.0, %v4465
      %v4467 = vpop.f32.mrf.mxu0
      %v4468 = vpop.f32.mrf.mxu0
      %v4469 = vadd.f32 0.0, %v4468
      %v4470 = vpop.f32.mrf.mxu0
      %4471 = vmatprep.mubr.bf16.mxu0 0
      %4472 = vmatmul.mubr.bf16.gmra.mxu0 %v4195
      %v4473 = vpop.f32.mrf.mxu0
      %v4474 = vadd.f32 0.0, %v4473
      %v4475 = vpop.f32.mrf.mxu0
      %v4476 = vpop.f32.mrf.mxu0
      %v4477 = vadd.f32 0.0, %v4476
      %v4478 = vpop.f32.mrf.mxu0
      %4479 = vmatprep.mubr.bf16.mxu0 0
      %4480 = vmatmul.mubr.bf16.gmra.mxu0 %v4198
      %v4481 = vpop.f32.mrf.mxu0
      %v4482 = vadd.f32 0.0, %v4481
      %v4483 = vpop.f32.mrf.mxu0
      %v4484 = vpop.f32.mrf.mxu0
      %v4485 = vadd.f32 0.0, %v4484
      %v4486 = vpop.f32.mrf.mxu0
      %4487 = vmatprep.mubr.bf16.mxu0 0
      %4488 = vmatmul.mubr.bf16.gmra.mxu0 %v4201
      %v4489 = vpop.f32.mrf.mxu0
      %v4490 = vadd.f32 0.0, %v4489
      %v4491 = vpop.f32.mrf.mxu0
      %v4492 = vpop.f32.mrf.mxu0
      %v4493 = vadd.f32 0.0, %v4492
      %v4494 = vpop.f32.mrf.mxu0
      %4495 = vmatprep.mubr.bf16.mxu0 0
      %4496 = vmatmul.mubr.bf16.gmra.mxu0 %v4204
      %v4497 = vpop.f32.mrf.mxu0
      %v4498 = vadd.f32 0.0, %v4497
      %v4499 = vpop.f32.mrf.mxu0
      %v4500 = vpop.f32.mrf.mxu0
      %v4501 = vadd.f32 0.0, %v4500
      %v4502 = vpop.f32.mrf.mxu0
      %4503 = vmatprep.mubr.bf16.mxu0 0
      %4504 = vmatmul.mubr.bf16.gmra.mxu0 %v4207
      %v4505 = vpop.f32.mrf.mxu0
      %v4506 = vadd.f32 0.0, %v4505
      %v4507 = vpop.f32.mrf.mxu0
      %v4508 = vpop.f32.mrf.mxu0
      %v4509 = vadd.f32 0.0, %v4508
      %v4510 = vpop.f32.mrf.mxu0
      %4511 = vmatprep.mubr.bf16.mxu0 0
      %4512 = vmatmul.mubr.bf16.gmra.mxu0 %v4210
      %v4513 = vpop.f32.mrf.mxu0
      %v4514 = vadd.f32 0.0, %v4513
      %v4515 = vpop.f32.mrf.mxu0
      %v4516 = vpop.f32.mrf.mxu0
      %v4517 = vadd.f32 0.0, %v4516
      %v4518 = vpop.f32.mrf.mxu0
      %4519 = vmatprep.mubr.bf16.mxu0 0
      %4520 = vmatmul.mubr.bf16.gmra.mxu0 %v4213
      %v4521 = vpop.f32.mrf.mxu0
      %v4522 = vadd.f32 0.0, %v4521
      %v4523 = vpop.f32.mrf.mxu0
      %v4524 = vpop.f32.mrf.mxu0
      %v4525 = vadd.f32 0.0, %v4524
      %v4526 = vpop.f32.mrf.mxu0
      %4527 = vmatprep.mubr.bf16.mxu0 0
      %4528 = vmatmul.mubr.bf16.gmra.mxu0 %v4216
      %v4529 = vpop.f32.mrf.mxu0
      %v4530 = vadd.f32 0.0, %v4529
      %v4531 = vpop.f32.mrf.mxu0
      %v4532 = vpop.f32.mrf.mxu0
      %v4533 = vadd.f32 0.0, %v4532
      %v4534 = vpop.f32.mrf.mxu0
      %4535 = vmatprep.mubr.bf16.mxu0 0
      %4536 = vmatmul.mubr.bf16.gmra.mxu0 %v4219
      %v4537 = vpop.f32.mrf.mxu0
      %v4538 = vadd.f32 0.0, %v4537
      %v4539 = vpop.f32.mrf.mxu0
      %v4540 = vpop.f32.mrf.mxu0
      %v4541 = vadd.f32 0.0, %v4540
      %v4542 = vpop.f32.mrf.mxu0
      %4543 = vmatprep.mubr.bf16.mxu0 0
      %4544 = vmatmul.mubr.bf16.gmra.mxu0 %v4222
      %v4545 = vpop.f32.mrf.mxu0
      %v4546 = vadd.f32 0.0, %v4545
      %v4547 = vpop.f32.mrf.mxu0
      %v4548 = vpop.f32.mrf.mxu0
      %v4549 = vadd.f32 0.0, %v4548
      %v4550 = vpop.f32.mrf.mxu0
      %4551 = vmatprep.mubr.bf16.mxu0 0
      %4552 = vmatmul.mubr.bf16.gmra.mxu0 %v4225
      %v4553 = vpop.f32.mrf.mxu0
      %v4554 = vadd.f32 0.0, %v4553
      %v4555 = vpop.f32.mrf.mxu0
      %v4556 = vpop.f32.mrf.mxu0
      %v4557 = vadd.f32 0.0, %v4556
      %v4558 = vpop.f32.mrf.mxu0
      %4559 = vmatprep.mubr.bf16.mxu0 0
      %4560 = vmatmul.mubr.bf16.gmra.mxu0 %v4228
      %v4561 = vpop.f32.mrf.mxu0
      %v4562 = vadd.f32 0.0, %v4561
      %v4563 = vpop.f32.mrf.mxu0
      %v4564 = vpop.f32.mrf.mxu0
      %v4565 = vadd.f32 0.0, %v4564
      %v4566 = vpop.f32.mrf.mxu0
      %4567 = vmatprep.mubr.bf16.mxu0 0
      %4568 = vmatmul.mubr.bf16.gmra.mxu0 %v4231
      %v4569 = vpop.f32.mrf.mxu0
      %v4570 = vadd.f32 0.0, %v4569
      %v4571 = vpop.f32.mrf.mxu0
      %v4572 = vpop.f32.mrf.mxu0
      %v4573 = vadd.f32 0.0, %v4572
      %v4574 = vpop.f32.mrf.mxu0
      %4575 = vmatprep.mubr.bf16.mxu0 0
      %4576 = vmatmul.mubr.bf16.gmra.mxu0 %v4234
      %v4577 = vpop.f32.mrf.mxu0
      %v4578 = vadd.f32 0.0, %v4577
      %v4579 = vpop.f32.mrf.mxu0
      %v4580 = vpop.f32.mrf.mxu0
      %v4581 = vadd.f32 0.0, %v4580
      %v4582 = vpop.f32.mrf.mxu0
      %4583 = vmatprep.mubr.bf16.mxu0 0
      %4584 = vmatmul.mubr.bf16.gmra.mxu0 %v4237
      %v4585 = vpop.f32.mrf.mxu0
      %v4586 = vadd.f32 0.0, %v4585
      %v4587 = vpop.f32.mrf.mxu0
      %v4588 = vpop.f32.mrf.mxu0
      %v4589 = vadd.f32 0.0, %v4588
      %v4590 = vpop.f32.mrf.mxu0
      %4591 = vmatprep.mubr.bf16.mxu0 0
      %4592 = vmatmul.mubr.bf16.gmra.mxu0 %v4240
      %v4593 = vpop.f32.mrf.mxu0
      %v4594 = vadd.f32 0.0, %v4593
      %v4595 = vpop.f32.mrf.mxu0
      %v4596 = vpop.f32.mrf.mxu0
      %v4597 = vadd.f32 0.0, %v4596
      %v4598 = vpop.f32.mrf.mxu0
      %4599 = vmatprep.mubr.bf16.mxu0 0
      %4600 = vmatmul.mubr.bf16.gmra.mxu0 %v4243
      %v4601 = vpop.f32.mrf.mxu0
      %v4602 = vadd.f32 0.0, %v4601
      %v4603 = vpop.f32.mrf.mxu0
      %v4604 = vpop.f32.mrf.mxu0
      %v4605 = vadd.f32 0.0, %v4604
      %v4606 = vpop.f32.mrf.mxu0
      %4607 = vmatprep.mubr.bf16.mxu0 0
      %4608 = vmatmul.mubr.bf16.gmra.mxu0 %v4246
      %v4609 = vpop.f32.mrf.mxu0
      %v4610 = vadd.f32 0.0, %v4609
      %v4611 = vpop.f32.mrf.mxu0
      %v4612 = vpop.f32.mrf.mxu0
      %v4613 = vadd.f32 0.0, %v4612
      %v4614 = vpop.f32.mrf.mxu0
      %4615 = vmatprep.mubr.bf16.mxu0 0
      %4616 = vmatmul.mubr.bf16.gmra.mxu0 %v4249
      %v4617 = vpop.f32.mrf.mxu0
      %v4618 = vadd.f32 0.0, %v4617
      %v4619 = vpop.f32.mrf.mxu0
      %v4620 = vpop.f32.mrf.mxu0
      %v4621 = vadd.f32 0.0, %v4620
      %v4622 = vpop.f32.mrf.mxu0
      %4623 = vmatprep.mubr.bf16.mxu0 0
      %4624 = vmatmul.mubr.bf16.gmra.mxu0 %v4252
      %v4625 = vpop.f32.mrf.mxu0
      %v4626 = vadd.f32 0.0, %v4625
      %v4627 = vpop.f32.mrf.mxu0
      %v4628 = vpop.f32.mrf.mxu0
      %v4629 = vadd.f32 0.0, %v4628
      %v4630 = vpop.f32.mrf.mxu0
      %4631 = vmatprep.mubr.bf16.mxu0 0
      %4632 = vmatmul.mubr.bf16.gmra.mxu0 %v4255
      %v4633 = vpop.f32.mrf.mxu0
      %v4634 = vadd.f32 0.0, %v4633
      %v4635 = vpop.f32.mrf.mxu0
      %v4636 = vpop.f32.mrf.mxu0
      %v4637 = vadd.f32 0.0, %v4636
      %v4638 = vpop.f32.mrf.mxu0
      %4639 = vmatprep.mubr.bf16.mxu0 0
      %4640 = vmatmul.mubr.bf16.gmra.mxu0 %v4258
      %v4641 = vpop.f32.mrf.mxu0
      %v4642 = vadd.f32 0.0, %v4641
      %v4643 = vpop.f32.mrf.mxu0
      %v4644 = vpop.f32.mrf.mxu0
      %v4645 = vadd.f32 0.0, %v4644
      %v4646 = vpop.f32.mrf.mxu0
      %4647 = vmatprep.mubr.bf16.mxu0 0
      %4648 = vmatmul.mubr.bf16.gmra.mxu0 %v4261
      %v4649 = vpop.f32.mrf.mxu0
      %v4650 = vadd.f32 0.0, %v4649
      %v4651 = vpop.f32.mrf.mxu0
      %v4652 = vpop.f32.mrf.mxu0
      %v4653 = vadd.f32 0.0, %v4652
      %v4654 = vpop.f32.mrf.mxu0
      %4655 = vmatprep.mubr.bf16.mxu0 0
      %4656 = vmatmul.mubr.bf16.gmra.mxu0 %v4264
      %v4657 = vpop.f32.mrf.mxu0
      %v4658 = vadd.f32 0.0, %v4657
      %v4659 = vpop.f32.mrf.mxu0
      %v4660 = vpop.f32.mrf.mxu0
      %v4661 = vadd.f32 0.0, %v4660
      %v4662 = vpop.f32.mrf.mxu0
      %4663 = vmatprep.mubr.bf16.mxu0 0
      %4664 = vmatmul.mubr.bf16.gmra.mxu0 %v4267
      %v4665 = vpop.f32.mrf.mxu0
      %v4666 = vadd.f32 0.0, %v4665
      %v4667 = vpop.f32.mrf.mxu0
      %v4668 = vpop.f32.mrf.mxu0
      %v4669 = vadd.f32 0.0, %v4668
      %v4670 = vpop.f32.mrf.mxu0
      %4671 = vmatprep.mubr.bf16.mxu0 0
      %4672 = vmatmul.mubr.bf16.gmra.mxu0 %v4270
      %v4673 = vpop.f32.mrf.mxu0
      %v4674 = vadd.f32 0.0, %v4673
      %v4675 = vpop.f32.mrf.mxu0
      %v4676 = vpop.f32.mrf.mxu0
      %v4677 = vadd.f32 0.0, %v4676
      %v4678 = vpop.f32.mrf.mxu0
      %4679 = vmatprep.mubr.bf16.mxu0 0
      %4680 = vmatmul.mubr.bf16.gmra.mxu0 %v4273
      %v4681 = vpop.f32.mrf.mxu0
      %v4682 = vadd.f32 0.0, %v4681
      %v4683 = vpop.f32.mrf.mxu0
      %v4684 = vpop.f32.mrf.mxu0
      %v4685 = vadd.f32 0.0, %v4684
      %v4686 = vpop.f32.mrf.mxu0
      %4687 = vmatprep.mubr.bf16.mxu0 0
      %4688 = vmatmul.mubr.bf16.gmra.mxu0 %v4276
      %v4689 = vpop.f32.mrf.mxu0
      %v4690 = vadd.f32 0.0, %v4689
      %v4691 = vpop.f32.mrf.mxu0
      %v4692 = vpop.f32.mrf.mxu0
      %v4693 = vadd.f32 0.0, %v4692
      %v4694 = vpop.f32.mrf.mxu0
      %4695 = vmatprep.mubr.bf16.mxu0 0
      %4696 = vmatmul.mubr.bf16.gmra.mxu0 %v4279
      %v4697 = vpop.f32.mrf.mxu0
      %v4698 = vadd.f32 0.0, %v4697
      %v4699 = vpop.f32.mrf.mxu0
      %v4700 = vpop.f32.mrf.mxu0
      %v4701 = vadd.f32 0.0, %v4700
      %v4702 = vpop.f32.mrf.mxu0
      %4703 = vmatprep.mubr.bf16.mxu0 0
      %4704 = vmatmul.mubr.bf16.gmra.mxu0 %v4282
      %v4705 = vpop.f32.mrf.mxu0
      %v4706 = vadd.f32 0.0, %v4705
      %v4707 = vpop.f32.mrf.mxu0
      %v4708 = vpop.f32.mrf.mxu0
      %v4709 = vadd.f32 0.0, %v4708
      %v4710 = vpop.f32.mrf.mxu0
      %4711 = vmatprep.mubr.bf16.mxu0 0
      %4712 = vmatmul.mubr.bf16.gmra.mxu0 %v4285
      %v4713 = vpop.f32.mrf.mxu0
      %v4714 = vadd.f32 0.0, %v4713
      %v4715 = vpop.f32.mrf.mxu0
      %v4716 = vpop.f32.mrf.mxu0
      %v4717 = vadd.f32 0.0, %v4716
      %v4718 = vpop.f32.mrf.mxu0
      %4719 = vmatprep.mubr.bf16.mxu0 0
      %4720 = vmatmul.mubr.bf16.gmra.mxu0 %v4288
      %v4721 = vpop.f32.mrf.mxu0
      %v4722 = vadd.f32 0.0, %v4721
      %v4723 = vpop.f32.mrf.mxu0
      %v4724 = vpop.f32.mrf.mxu0
      %v4725 = vadd.f32 0.0, %v4724
      %v4726 = vpop.f32.mrf.mxu0
      %4727 = vmatprep.mubr.bf16.mxu0 0
      %4728 = vmatmul.mubr.bf16.gmra.mxu0 %v4291
      %v4729 = vpop.f32.mrf.mxu0
      %v4730 = vadd.f32 0.0, %v4729
      %v4731 = vpop.f32.mrf.mxu0
      %v4732 = vpop.f32.mrf.mxu0
      %v4733 = vadd.f32 0.0, %v4732
      %v4734 = vpop.f32.mrf.mxu0
      %4735 = vmatprep.mubr.bf16.mxu0 0
      %4736 = vmatmul.mubr.bf16.gmra.mxu0 %v4294
      %v4737 = vpop.f32.mrf.mxu0
      %v4738 = vadd.f32 0.0, %v4737
      %v4739 = vpop.f32.mrf.mxu0
      %v4740 = vpop.f32.mrf.mxu0
      %v4741 = vadd.f32 0.0, %v4740
      %v4742 = vpop.f32.mrf.mxu0
      %4743 = vmatprep.mubr.bf16.mxu0 0
      %4744 = vmatmul.mubr.bf16.gmra.mxu0 %v4297
      %v4745 = vpop.f32.mrf.mxu0
      %v4746 = vadd.f32 0.0, %v4745
      %v4747 = vpop.f32.mrf.mxu0
      %v4748 = vpop.f32.mrf.mxu0
      %v4749 = vadd.f32 0.0, %v4748
      %v4750 = vpop.f32.mrf.mxu0
      %4751 = vmatprep.mubr.bf16.mxu0 0
      %4752 = vmatmul.mubr.bf16.gmra.mxu0 %v4300
      %v4753 = vpop.f32.mrf.mxu0
      %v4754 = vadd.f32 0.0, %v4753
      %v4755 = vpop.f32.mrf.mxu0
      %v4756 = vpop.f32.mrf.mxu0
      %v4757 = vadd.f32 0.0, %v4756
      %v4758 = vpop.f32.mrf.mxu0
      %4759 = vmatprep.mubr.bf16.mxu0 0
      %4760 = vmatmul.mubr.bf16.gmra.mxu0 %v4303
      %v4761 = vpop.f32.mrf.mxu0
      %v4762 = vadd.f32 0.0, %v4761
      %v4763 = vpop.f32.mrf.mxu0
      %v4764 = vpop.f32.mrf.mxu0
      %v4765 = vadd.f32 0.0, %v4764
      %v4766 = vpop.f32.mrf.mxu0
      %4767 = vmatprep.mubr.bf16.mxu0 0
      %4768 = vmatmul.mubr.bf16.gmra.mxu0 %v4306
      %v4769 = vpop.f32.mrf.mxu0
      %v4770 = vadd.f32 0.0, %v4769
      %v4771 = vpop.f32.mrf.mxu0
      %v4772 = vpop.f32.mrf.mxu0
      %v4773 = vadd.f32 0.0, %v4772
      %v4774 = vpop.f32.mrf.mxu0
      %4775 = vmatprep.mubr.bf16.mxu0 0
      %4776 = vmatmul.mubr.bf16.gmra.mxu0 %v4309
      %v4777 = vpop.f32.mrf.mxu0
      %v4778 = vadd.f32 0.0, %v4777
      %v4779 = vpop.f32.mrf.mxu0
      %v4780 = vpop.f32.mrf.mxu0
      %v4781 = vadd.f32 0.0, %v4780
      %v4782 = vpop.f32.mrf.mxu0
      %4783 = vmatprep.mubr.bf16.mxu0 0
      %4784 = vmatmul.mubr.bf16.gmra.mxu0 %v4312
      %v4785 = vpop.f32.mrf.mxu0
      %v4786 = vadd.f32 0.0, %v4785
      %v4787 = vpop.f32.mrf.mxu0
      %v4788 = vpop.f32.mrf.mxu0
      %v4789 = vadd.f32 0.0, %v4788
      %v4790 = vpop.f32.mrf.mxu0
      %4791 = vmatprep.mubr.bf16.mxu0 0
      %4792 = vmatmul.mubr.bf16.gmra.mxu0 %v4315
      %v4793 = vpop.f32.mrf.mxu0
      %v4794 = vadd.f32 0.0, %v4793
      %v4795 = vpop.f32.mrf.mxu0
      %v4796 = vpop.f32.mrf.mxu0
      %v4797 = vadd.f32 0.0, %v4796
      %v4798 = vpop.f32.mrf.mxu0
      %4799 = vmatprep.mubr.bf16.mxu0 0
      %4800 = vmatmul.mubr.bf16.gmra.mxu0 %v4318
      %v4801 = vpop.f32.mrf.mxu0
      %v4802 = vadd.f32 0.0, %v4801
      %v4803 = vpop.f32.mrf.mxu0
      %v4804 = vpop.f32.mrf.mxu0
      %v4805 = vadd.f32 0.0, %v4804
      %v4806 = vpop.f32.mrf.mxu0
      %4807 = vmatprep.mubr.bf16.mxu0 0
      %4808 = vmatmul.mubr.bf16.gmra.mxu0 %v4321
      %v4809 = vpop.f32.mrf.mxu0
      %v4810 = vadd.f32 0.0, %v4809
      %v4811 = vpop.f32.mrf.mxu0
      %v4812 = vpop.f32.mrf.mxu0
      %v4813 = vadd.f32 0.0, %v4812
      %v4814 = vpop.f32.mrf.mxu0
      %4815 = vmatprep.mubr.bf16.mxu0 0
      %4816 = vmatmul.mubr.bf16.gmra.mxu0 %v4324
      %v4817 = vpop.f32.mrf.mxu0
      %v4818 = vadd.f32 0.0, %v4817
      %v4819 = vpop.f32.mrf.mxu0
      %v4820 = vpop.f32.mrf.mxu0
      %v4821 = vadd.f32 0.0, %v4820
      %v4822 = vpop.f32.mrf.mxu0
      %4823 = vmatprep.mubr.bf16.mxu0 0
      %4824 = vmatmul.mubr.bf16.gmra.mxu0 %v4327
      %v4825 = vpop.f32.mrf.mxu0
      %v4826 = vadd.f32 0.0, %v4825
      %v4827 = vpop.f32.mrf.mxu0
      %v4828 = vpop.f32.mrf.mxu0
      %v4829 = vadd.f32 0.0, %v4828
      %v4830 = vpop.f32.mrf.mxu0
      %4831 = vmatprep.mubr.bf16.mxu0 0
      %4832 = vmatmul.mubr.bf16.gmra.mxu0 %v4330
      %v4833 = vpop.f32.mrf.mxu0
      %v4834 = vadd.f32 0.0, %v4833
      %v4835 = vpop.f32.mrf.mxu0
      %v4836 = vpop.f32.mrf.mxu0
      %v4837 = vadd.f32 0.0, %v4836
      %v4838 = vpop.f32.mrf.mxu0
      %4839 = vmatprep.mubr.bf16.mxu0 0
      %4840 = vmatmul.mubr.bf16.gmra.mxu0 %v4333
      %v4841 = vpop.f32.mrf.mxu0
      %v4842 = vadd.f32 0.0, %v4841
      %v4843 = vpop.f32.mrf.mxu0
      %v4844 = vpop.f32.mrf.mxu0
      %v4845 = vadd.f32 0.0, %v4844
      %v4846 = vpop.f32.mrf.mxu0
      %4847 = vmatprep.mubr.bf16.mxu0 0
      %4848 = vmatmul.mubr.bf16.gmra.mxu0 %v4336
      %v4849 = vpop.f32.mrf.mxu0
      %v4850 = vadd.f32 0.0, %v4849
      %v4851 = vpop.f32.mrf.mxu0
      %v4852 = vpop.f32.mrf.mxu0
      %v4853 = vadd.f32 0.0, %v4852
      %v4854 = vpop.f32.mrf.mxu0
      %4855 = vmatprep.mubr.bf16.mxu0 0
      %4856 = vmatmul.mubr.bf16.gmra.mxu0 %v4339
      %v4857 = vpop.f32.mrf.mxu0
      %v4858 = vadd.f32 0.0, %v4857
      %v4859 = vpop.f32.mrf.mxu0
      %v4860 = vpop.f32.mrf.mxu0
      %v4861 = vadd.f32 0.0, %v4860
      %v4862 = vpop.f32.mrf.mxu0
      %4863 = vmatprep.mubr.bf16.mxu0 0
      %4864 = vmatmul.mubr.bf16.gmra.mxu0 %v4342
      %v4865 = vpop.f32.mrf.mxu0
      %v4866 = vadd.f32 0.0, %v4865
      %v4867 = vpop.f32.mrf.mxu0
      %v4868 = vpop.f32.mrf.mxu0
      %v4869 = vadd.f32 0.0, %v4868
      %v4870 = vpop.f32.mrf.mxu0
      %4871 = vmatprep.mubr.bf16.mxu0 0
      %4872 = vmatmul.mubr.bf16.gmra.mxu0 %v4345
      %v4873 = vpop.f32.mrf.mxu0
      %v4874 = vadd.f32 0.0, %v4873
      %v4875 = vpop.f32.mrf.mxu0
      %v4876 = vpop.f32.mrf.mxu0
      %v4877 = vadd.f32 0.0, %v4876
      %v4878 = vpop.f32.mrf.mxu0
      %4879 = vmatprep.mubr.bf16.mxu0 0
      %4880 = vmatmul.mubr.bf16.gmra.mxu0 %v4348
      %v4881 = vpop.f32.mrf.mxu0
      %v4882 = vadd.f32 0.0, %v4881
      %v4883 = vpop.f32.mrf.mxu0
      %v4884 = vpop.f32.mrf.mxu0
      %v4885 = vadd.f32 0.0, %v4884
      %v4886 = vpop.f32.mrf.mxu0
      %4887 = vmatprep.mubr.bf16.mxu0 0
      %4888 = vmatmul.mubr.bf16.gmra.mxu0 %v4351
      %v4889 = vpop.f32.mrf.mxu0
      %v4890 = vadd.f32 0.0, %v4889
      %v4891 = vpop.f32.mrf.mxu0
      %v4892 = vpop.f32.mrf.mxu0
      %v4893 = vadd.f32 0.0, %v4892
      %v4894 = vpop.f32.mrf.mxu0
      %4895 = vmatprep.mubr.bf16.mxu0 0
      %4896 = vmatmul.mubr.bf16.gmra.mxu0 %v4354
      %v4897 = vpop.f32.mrf.mxu0
      %v4898 = vadd.f32 0.0, %v4897
      %v4899 = vpop.f32.mrf.mxu0
      %v4900 = vpop.f32.mrf.mxu0
      %v4901 = vadd.f32 0.0, %v4900
      %v4902 = vpop.f32.mrf.mxu0
      %4903 = vdwg.mxu0
      %v4904 = vadd.f32 %v3203, %v4394
      %v4905 = vadd.f32 %v3206, %v4397
      %v4906 = vadd.f32 %v3211, %v4402
      %v4907 = vadd.f32 %v3214, %v4405
      %v4908 = vadd.f32 %v3219, %v4410
      %v4909 = vadd.f32 %v3222, %v4413
      %v4910 = vadd.f32 %v3227, %v4418
      %v4911 = vadd.f32 %v3230, %v4421
      %v4912 = vadd.f32 %v3235, %v4426
      %v4913 = vadd.f32 %v3238, %v4429
      %v4914 = vadd.f32 %v3243, %v4434
      %v4915 = vadd.f32 %v3246, %v4437
      %v4916 = vadd.f32 %v3251, %v4442
      %v4917 = vadd.f32 %v3254, %v4445
      %v4918 = vadd.f32 %v3259, %v4450
      %v4919 = vadd.f32 %v3262, %v4453
      %v4920 = vadd.f32 %v3267, %v4458
      %v4921 = vadd.f32 %v3270, %v4461
      %v4922 = vadd.f32 %v3275, %v4466
      %v4923 = vadd.f32 %v3278, %v4469
      %v4924 = vadd.f32 %v3283, %v4474
      %v4925 = vadd.f32 %v3286, %v4477
      %v4926 = vadd.f32 %v3291, %v4482
      %v4927 = vadd.f32 %v3294, %v4485
      %v4928 = vadd.f32 %v3299, %v4490
      %v4929 = vadd.f32 %v3302, %v4493
      %v4930 = vadd.f32 %v3307, %v4498
      %v4931 = vadd.f32 %v3310, %v4501
      %v4932 = vadd.f32 %v3315, %v4506
      %v4933 = vadd.f32 %v3318, %v4509
      %v4934 = vadd.f32 %v3323, %v4514
      %v4935 = vadd.f32 %v3326, %v4517
      %v4936 = vadd.f32 %v3331, %v4522
      %v4937 = vadd.f32 %v3334, %v4525
      %v4938 = vadd.f32 %v3339, %v4530
      %v4939 = vadd.f32 %v3342, %v4533
      %v4940 = vadd.f32 %v3347, %v4538
      %v4941 = vadd.f32 %v3350, %v4541
      %v4942 = vadd.f32 %v3355, %v4546
      %v4943 = vadd.f32 %v3358, %v4549
      %v4944 = vadd.f32 %v3363, %v4554
      %v4945 = vadd.f32 %v3366, %v4557
      %v4946 = vadd.f32 %v3371, %v4562
      %v4947 = vadd.f32 %v3374, %v4565
      %v4948 = vadd.f32 %v3379, %v4570
      %v4949 = vadd.f32 %v3382, %v4573
      %v4950 = vadd.f32 %v3387, %v4578
      %v4951 = vadd.f32 %v3390, %v4581
      %v4952 = vadd.f32 %v3395, %v4586
      %v4953 = vadd.f32 %v3398, %v4589
      %v4954 = vadd.f32 %v3403, %v4594
      %v4955 = vadd.f32 %v3406, %v4597
      %v4956 = vadd.f32 %v3411, %v4602
      %v4957 = vadd.f32 %v3414, %v4605
      %v4958 = vadd.f32 %v3419, %v4610
      %v4959 = vadd.f32 %v3422, %v4613
      %v4960 = vadd.f32 %v3427, %v4618
      %v4961 = vadd.f32 %v3430, %v4621
      %v4962 = vadd.f32 %v3435, %v4626
      %v4963 = vadd.f32 %v3438, %v4629
      %v4964 = vadd.f32 %v3443, %v4634
      %v4965 = vadd.f32 %v3446, %v4637
      %v4966 = vadd.f32 %v3451, %v4642
      %v4967 = vadd.f32 %v3454, %v4645
      %v4968 = vadd.f32 %v3459, %v4650
      %v4969 = vadd.f32 %v3462, %v4653
      %v4970 = vadd.f32 %v3467, %v4658
      %v4971 = vadd.f32 %v3470, %v4661
      %v4972 = vadd.f32 %v3475, %v4666
      %v4973 = vadd.f32 %v3478, %v4669
      %v4974 = vadd.f32 %v3483, %v4674
      %v4975 = vadd.f32 %v3486, %v4677
      %v4976 = vadd.f32 %v3491, %v4682
      %v4977 = vadd.f32 %v3494, %v4685
      %v4978 = vadd.f32 %v3499, %v4690
      %v4979 = vadd.f32 %v3502, %v4693
      %v4980 = vadd.f32 %v3507, %v4698
      %v4981 = vadd.f32 %v3510, %v4701
      %v4982 = vadd.f32 %v3515, %v4706
      %v4983 = vadd.f32 %v3518, %v4709
      %v4984 = vadd.f32 %v3523, %v4714
      %v4985 = vadd.f32 %v3526, %v4717
      %v4986 = vadd.f32 %v3531, %v4722
      %v4987 = vadd.f32 %v3534, %v4725
      %v4988 = vadd.f32 %v3539, %v4730
      %v4989 = vadd.f32 %v3542, %v4733
      %v4990 = vadd.f32 %v3547, %v4738
      %v4991 = vadd.f32 %v3550, %v4741
      %v4992 = vadd.f32 %v3555, %v4746
      %v4993 = vadd.f32 %v3558, %v4749
      %v4994 = vadd.f32 %v3563, %v4754
      %v4995 = vadd.f32 %v3566, %v4757
      %v4996 = vadd.f32 %v3571, %v4762
      %v4997 = vadd.f32 %v3574, %v4765
      %v4998 = vadd.f32 %v3579, %v4770
      %v4999 = vadd.f32 %v3582, %v4773
      %v5000 = vadd.f32 %v3587, %v4778
      %v5001 = vadd.f32 %v3590, %v4781
      %v5002 = vadd.f32 %v3595, %v4786
      %v5003 = vadd.f32 %v3598, %v4789
      %v5004 = vadd.f32 %v3603, %v4794
      %v5005 = vadd.f32 %v3606, %v4797
      %v5006 = vadd.f32 %v3611, %v4802
      %v5007 = vadd.f32 %v3614, %v4805
      %v5008 = vadd.f32 %v3619, %v4810
      %v5009 = vadd.f32 %v3622, %v4813
      %v5010 = vadd.f32 %v3627, %v4818
      %v5011 = vadd.f32 %v3630, %v4821
      %v5012 = vadd.f32 %v3635, %v4826
      %v5013 = vadd.f32 %v3638, %v4829
      %v5014 = vadd.f32 %v3643, %v4834
      %v5015 = vadd.f32 %v3646, %v4837
      %v5016 = vadd.f32 %v3651, %v4842
      %v5017 = vadd.f32 %v3654, %v4845
      %v5018 = vadd.f32 %v3659, %v4850
      %v5019 = vadd.f32 %v3662, %v4853
      %v5020 = vadd.f32 %v3667, %v4858
      %v5021 = vadd.f32 %v3670, %v4861
      %v5022 = vadd.f32 %v3675, %v4866
      %v5023 = vadd.f32 %v3678, %v4869
      %v5024 = vadd.f32 %v3683, %v4874
      %v5025 = vadd.f32 %v3686, %v4877
      %v5026 = vadd.f32 %v3691, %v4882
      %v5027 = vadd.f32 %v3694, %v4885
      %v5028 = vadd.f32 %v3699, %v4890
      %v5029 = vadd.f32 %v3702, %v4893
      %v5030 = vadd.f32 %v3707, %v4898
      %v5031 = vadd.f32 %v3710, %v4901
      %v5032 = vld [vmem:[%s3713] sm:$0xf]
      %v5033 = vld [vmem:[%s3713 + $0x4] sm:$0xf]
      %v5034 = vld [vmem:[%s3713 + $0x8] sm:$0xf]
      %v5035 = vld [vmem:[%s3713 + $0xc] sm:$0xf]
      %v5036 = vld [vmem:[%s3713 + $0x10] sm:$0x1]
      %v5037 = vld [vmem:[%s3713 + $0x14] sm:$0xf]
      %v5038 = vld [vmem:[%s3713 + $0x18] sm:$0xf]
      %v5039 = vld [vmem:[%s3713 + $0x1c] sm:$0xf]
      %v5040 = vld [vmem:[%s3713 + $0x20] sm:$0xf]
      %v5041 = vld [vmem:[%s3713 + $0x24] sm:$0x1]
      %v5042 = vld [vmem:[%s3713 + $0x28] sm:$0xf]
      %v5043 = vld [vmem:[%s3713 + $0x2c] sm:$0xf]
      %v5044 = vld [vmem:[%s3713 + $0x30] sm:$0xf]
      %v5045 = vld [vmem:[%s3713 + $0x34] sm:$0xf]
      %v5046 = vld [vmem:[%s3713 + $0x38] sm:$0x1]
      %v5047 = vld [vmem:[%s3713 + $0x3c] sm:$0xf]
      %v5048 = vld [vmem:[%s3713 + $0x40] sm:$0xf]
      %v5049 = vld [vmem:[%s3713 + $0x44] sm:$0xf]
      %v5050 = vld [vmem:[%s3713 + $0x48] sm:$0xf]
      %v5051 = vld [vmem:[%s3713 + $0x4c] sm:$0x1]
      %v5052 = vld [vmem:[%s3713 + $0x50] sm:$0xf]
      %v5053 = vld [vmem:[%s3713 + $0x54] sm:$0xf]
      %v5054 = vld [vmem:[%s3713 + $0x58] sm:$0xf]
      %v5055 = vld [vmem:[%s3713 + $0x5c] sm:$0xf]
      %v5056 = vld [vmem:[%s3713 + $0x60] sm:$0x1]
      %v5057 = vld [vmem:[%s3713 + $0x64] sm:$0xf]
      %v5058 = vld [vmem:[%s3713 + $0x68] sm:$0xf]
      %v5059 = vld [vmem:[%s3713 + $0x6c] sm:$0xf]
      %v5060 = vld [vmem:[%s3713 + $0x70] sm:$0xf]
      %v5061 = vld [vmem:[%s3713 + $0x74] sm:$0x1]
      %v5062 = vld [vmem:[%s3713 + $0x78] sm:$0xf]
      %v5063 = vld [vmem:[%s3713 + $0x7c] sm:$0xf]
      %v5064 = vld [vmem:[%s3713 + $0x80] sm:$0xf]
      %v5065 = vld [vmem:[%s3713 + $0x84] sm:$0xf]
      %v5066 = vld [vmem:[%s3713 + $0x88] sm:$0x1]
      %v5067 = vld [vmem:[%s3713 + $0x8c] sm:$0xf]
      %v5068 = vld [vmem:[%s3713 + $0x90] sm:$0xf]
      %v5069 = vld [vmem:[%s3713 + $0x94] sm:$0xf]
      %v5070 = vld [vmem:[%s3713 + $0x98] sm:$0xf]
      %v5071 = vld [vmem:[%s3713 + $0x9c] sm:$0x1]
      %v5072 = vld [vmem:[%s3713 + $0xa0] sm:$0xf]
      %v5073 = vld [vmem:[%s3713 + $0xa4] sm:$0xf]
      %v5074 = vld [vmem:[%s3713 + $0xa8] sm:$0xf]
      %v5075 = vld [vmem:[%s3713 + $0xac] sm:$0xf]
      %v5076 = vld [vmem:[%s3713 + $0xb0] sm:$0x1]
      %v5077 = vld [vmem:[%s3713 + $0xb4] sm:$0xf]
      %v5078 = vld [vmem:[%s3713 + $0xb8] sm:$0xf]
      %v5079 = vld [vmem:[%s3713 + $0xbc] sm:$0xf]
      %v5080 = vld [vmem:[%s3713 + $0xc0] sm:$0xf]
      %v5081 = vld [vmem:[%s3713 + $0xc4] sm:$0x1]
      %v5082 = vld [vmem:[%s3713 + $0xc8] sm:$0xf]
      %v5083 = vld [vmem:[%s3713 + $0xcc] sm:$0xf]
      %v5084 = vld [vmem:[%s3713 + $0xd0] sm:$0xf]
      %v5085 = vld [vmem:[%s3713 + $0xd4] sm:$0xf]
      %v5086 = vld [vmem:[%s3713 + $0xd8] sm:$0x1]
      %v5087 = vld [vmem:[%s3713 + $0xdc] sm:$0xf]
      %v5088 = vld [vmem:[%s3713 + $0xe0] sm:$0xf]
      %v5089 = vld [vmem:[%s3713 + $0xe4] sm:$0xf]
      %v5090 = vld [vmem:[%s3713 + $0xe8] sm:$0xf]
      %v5091 = vld [vmem:[%s3713 + $0xec] sm:$0x1]
      %v5092 = vld [vmem:[%s3713 + $0xf0] sm:$0xf]
      %v5093 = vld [vmem:[%s3713 + $0xf4] sm:$0xf]
      %v5094 = vld [vmem:[%s3713 + $0xf8] sm:$0xf]
      %v5095 = vld [vmem:[%s3713 + $0xfc] sm:$0xf]
      %v5096 = vld [vmem:[%s3713 + $0x100] sm:$0x1]
      %v5097 = vld [vmem:[%s3713 + $0x104] sm:$0xf]
      %v5098 = vld [vmem:[%s3713 + $0x108] sm:$0xf]
      %v5099 = vld [vmem:[%s3713 + $0x10c] sm:$0xf]
      %v5100 = vld [vmem:[%s3713 + $0x110] sm:$0xf]
      %v5101 = vld [vmem:[%s3713 + $0x114] sm:$0x1]
      %v5102 = vld [vmem:[%s3713 + $0x118] sm:$0xf]
      %v5103 = vld [vmem:[%s3713 + $0x11c] sm:$0xf]
      %v5104 = vld [vmem:[%s3713 + $0x120] sm:$0xf]
      %v5105 = vld [vmem:[%s3713 + $0x124] sm:$0xf]
      %v5106 = vld [vmem:[%s3713 + $0x128] sm:$0x1]
      %v5107 = vld [vmem:[%s3713 + $0x12c] sm:$0xf]
      %v5108 = vld [vmem:[%s3713 + $0x130] sm:$0xf]
      %v5109 = vld [vmem:[%s3713 + $0x134] sm:$0xf]
      %v5110 = vld [vmem:[%s3713 + $0x138] sm:$0xf]
      %v5111 = vld [vmem:[%s3713 + $0x13c] sm:$0x1]
      %v5112 = vld [vmem:[%s3713 + $0x140] sm:$0xf]
      %v5113 = vld [vmem:[%s3713 + $0x144] sm:$0xf]
      %v5114 = vld [vmem:[%s3713 + $0x148] sm:$0xf]
      %v5115 = vld [vmem:[%s3713 + $0x14c] sm:$0xf]
      %v5116 = vld [vmem:[%s3713 + $0x150] sm:$0x1]
      %v5117 = vld [vmem:[%s3713 + $0x154] sm:$0xf]
      %v5118 = vld [vmem:[%s3713 + $0x158] sm:$0xf]
      %v5119 = vld [vmem:[%s3713 + $0x15c] sm:$0xf]
      %v5120 = vld [vmem:[%s3713 + $0x160] sm:$0xf]
      %v5121 = vld [vmem:[%s3713 + $0x164] sm:$0x1]
      %v5122 = vld [vmem:[%s3713 + $0x168] sm:$0xf]
      %v5123 = vld [vmem:[%s3713 + $0x16c] sm:$0xf]
      %v5124 = vld [vmem:[%s3713 + $0x170] sm:$0xf]
      %v5125 = vld [vmem:[%s3713 + $0x174] sm:$0xf]
      %v5126 = vld [vmem:[%s3713 + $0x178] sm:$0x1]
      %v5127 = vld [vmem:[%s3713 + $0x17c] sm:$0xf]
      %v5128 = vld [vmem:[%s3713 + $0x180] sm:$0xf]
      %v5129 = vld [vmem:[%s3713 + $0x184] sm:$0xf]
      %v5130 = vld [vmem:[%s3713 + $0x188] sm:$0xf]
      %v5131 = vld [vmem:[%s3713 + $0x18c] sm:$0x1]
      %v5132 = vld [vmem:[%s3713 + $0x190] sm:$0xf]
      %v5133 = vld [vmem:[%s3713 + $0x194] sm:$0xf]
      %v5134 = vld [vmem:[%s3713 + $0x198] sm:$0xf]
      %v5135 = vld [vmem:[%s3713 + $0x19c] sm:$0xf]
      %v5136 = vld [vmem:[%s3713 + $0x1a0] sm:$0x1]
      %v5137 = vld [vmem:[%s3713 + $0x1a4] sm:$0xf]
      %v5138 = vld [vmem:[%s3713 + $0x1a8] sm:$0xf]
      %v5139 = vld [vmem:[%s3713 + $0x1ac] sm:$0xf]
      %v5140 = vld [vmem:[%s3713 + $0x1b0] sm:$0xf]
      %v5141 = vld [vmem:[%s3713 + $0x1b4] sm:$0x1]
      %v5142 = vld [vmem:[%s3713 + $0x1b8] sm:$0xf]
      %v5143 = vld [vmem:[%s3713 + $0x1bc] sm:$0xf]
      %v5144 = vld [vmem:[%s3713 + $0x1c0] sm:$0xf]
      %v5145 = vld [vmem:[%s3713 + $0x1c4] sm:$0xf]
      %v5146 = vld [vmem:[%s3713 + $0x1c8] sm:$0x1]
      %v5147 = vld [vmem:[%s3713 + $0x1cc] sm:$0xf]
      %v5148 = vld [vmem:[%s3713 + $0x1d0] sm:$0xf]
      %v5149 = vld [vmem:[%s3713 + $0x1d4] sm:$0xf]
      %v5150 = vld [vmem:[%s3713 + $0x1d8] sm:$0xf]
      %v5151 = vld [vmem:[%s3713 + $0x1dc] sm:$0x1]
      %v5152 = vld [vmem:[%s3713 + $0x1e0] sm:$0xf]
      %v5153 = vld [vmem:[%s3713 + $0x1e4] sm:$0xf]
      %v5154 = vld [vmem:[%s3713 + $0x1e8] sm:$0xf]
      %v5155 = vld [vmem:[%s3713 + $0x1ec] sm:$0xf]
      %v5156 = vld [vmem:[%s3713 + $0x1f0] sm:$0x1]
      %v5157 = vld [vmem:[%s3713 + $0x1f4] sm:$0xf]
      %v5158 = vld [vmem:[%s3713 + $0x1f8] sm:$0xf]
      %v5159 = vld [vmem:[%s3713 + $0x1fc] sm:$0xf]
      %v5160 = vld [vmem:[%s3713 + $0x200] sm:$0xf]
      %v5161 = vld [vmem:[%s3713 + $0x204] sm:$0x1]
      %v5162 = vld [vmem:[%s3713 + $0x208] sm:$0xf]
      %v5163 = vld [vmem:[%s3713 + $0x20c] sm:$0xf]
      %v5164 = vld [vmem:[%s3713 + $0x210] sm:$0xf]
      %v5165 = vld [vmem:[%s3713 + $0x214] sm:$0xf]
      %v5166 = vld [vmem:[%s3713 + $0x218] sm:$0x1]
      %v5167 = vld [vmem:[%s3713 + $0x21c] sm:$0xf]
      %v5168 = vld [vmem:[%s3713 + $0x220] sm:$0xf]
      %v5169 = vld [vmem:[%s3713 + $0x224] sm:$0xf]
      %v5170 = vld [vmem:[%s3713 + $0x228] sm:$0xf]
      %v5171 = vld [vmem:[%s3713 + $0x22c] sm:$0x1]
      %v5172 = vld [vmem:[%s3713 + $0x230] sm:$0xf]
      %v5173 = vld [vmem:[%s3713 + $0x234] sm:$0xf]
      %v5174 = vld [vmem:[%s3713 + $0x238] sm:$0xf]
      %v5175 = vld [vmem:[%s3713 + $0x23c] sm:$0xf]
      %v5176 = vld [vmem:[%s3713 + $0x240] sm:$0x1]
      %v5177 = vld [vmem:[%s3713 + $0x244] sm:$0xf]
      %v5178 = vld [vmem:[%s3713 + $0x248] sm:$0xf]
      %v5179 = vld [vmem:[%s3713 + $0x24c] sm:$0xf]
      %v5180 = vld [vmem:[%s3713 + $0x250] sm:$0xf]
      %v5181 = vld [vmem:[%s3713 + $0x254] sm:$0x1]
      %v5182 = vld [vmem:[%s3713 + $0x258] sm:$0xf]
      %v5183 = vld [vmem:[%s3713 + $0x25c] sm:$0xf]
      %v5184 = vld [vmem:[%s3713 + $0x260] sm:$0xf]
      %v5185 = vld [vmem:[%s3713 + $0x264] sm:$0xf]
      %v5186 = vld [vmem:[%s3713 + $0x268] sm:$0x1]
      %v5187 = vld [vmem:[%s3713 + $0x26c] sm:$0xf]
      %v5188 = vld [vmem:[%s3713 + $0x270] sm:$0xf]
      %v5189 = vld [vmem:[%s3713 + $0x274] sm:$0xf]
      %v5190 = vld [vmem:[%s3713 + $0x278] sm:$0xf]
      %v5191 = vld [vmem:[%s3713 + $0x27c] sm:$0x1]
      %v5193 = vshrl.u32 %v5032, 16
      %v5195 = vrot.slane %v5193, 4
      %v5196 = vshll.u32 %v5032, 16
      %v5198 = vrot.slane %v5196, 5
      %v5199 = vor.u32 %v5195, %v5198
      %v5200 = vrot.slane %v5199, 4
      %v5202 = vshll.u32 %v5033, 16
      %v5204 = vrot.slane %v5202, 5
      %v5205 = vsel %vm308, %v5200, %v5204
      %v5206 = vshrl.u32 %v5033, 16
      %v5208 = vrot.slane %v5206, 4
      %v5209 = vor.u32 %v5208, %v5204
      %v5210 = vrot.slane %v5209, 4
      %v5212 = vshll.u32 %v5034, 16
      %v5214 = vrot.slane %v5212, 5
      %v5215 = vsel %vm308, %v5210, %v5214
      %v5216 = vshrl.u32 %v5034, 16
      %v5218 = vrot.slane %v5216, 4
      %v5219 = vor.u32 %v5218, %v5214
      %v5220 = vrot.slane %v5219, 4
      %v5222 = vshll.u32 %v5035, 16
      %v5224 = vrot.slane %v5222, 5
      %v5225 = vsel %vm308, %v5220, %v5224
      %v5226 = vshrl.u32 %v5035, 16
      %v5228 = vrot.slane %v5226, 4
      %v5229 = vor.u32 %v5228, %v5224
      %v5230 = vrot.slane %v5229, 4
      %v5232 = vshll.u32 %v5036, 16
      %v5234 = vrot.slane %v5232, 5
      %v5235 = vsel %vm308, %v5230, %v5234
      %v5237 = vshrl.u32 %v5037, 16
      %v5239 = vrot.slane %v5237, 4
      %v5240 = vshll.u32 %v5037, 16
      %v5242 = vrot.slane %v5240, 5
      %v5243 = vor.u32 %v5239, %v5242
      %v5244 = vrot.slane %v5243, 4
      %v5246 = vshll.u32 %v5038, 16
      %v5248 = vrot.slane %v5246, 5
      %v5249 = vsel %vm308, %v5244, %v5248
      %v5250 = vshrl.u32 %v5038, 16
      %v5252 = vrot.slane %v5250, 4
      %v5253 = vor.u32 %v5252, %v5248
      %v5254 = vrot.slane %v5253, 4
      %v5256 = vshll.u32 %v5039, 16
      %v5258 = vrot.slane %v5256, 5
      %v5259 = vsel %vm308, %v5254, %v5258
      %v5260 = vshrl.u32 %v5039, 16
      %v5262 = vrot.slane %v5260, 4
      %v5263 = vor.u32 %v5262, %v5258
      %v5264 = vrot.slane %v5263, 4
      %v5266 = vshll.u32 %v5040, 16
      %v5268 = vrot.slane %v5266, 5
      %v5269 = vsel %vm308, %v5264, %v5268
      %v5270 = vshrl.u32 %v5040, 16
      %v5272 = vrot.slane %v5270, 4
      %v5273 = vor.u32 %v5272, %v5268
      %v5274 = vrot.slane %v5273, 4
      %v5276 = vshll.u32 %v5041, 16
      %v5278 = vrot.slane %v5276, 5
      %v5279 = vsel %vm308, %v5274, %v5278
      %v5281 = vshrl.u32 %v5042, 16
      %v5283 = vrot.slane %v5281, 4
      %v5284 = vshll.u32 %v5042, 16
      %v5286 = vrot.slane %v5284, 5
      %v5287 = vor.u32 %v5283, %v5286
      %v5288 = vrot.slane %v5287, 4
      %v5290 = vshll.u32 %v5043, 16
      %v5292 = vrot.slane %v5290, 5
      %v5293 = vsel %vm308, %v5288, %v5292
      %v5294 = vshrl.u32 %v5043, 16
      %v5296 = vrot.slane %v5294, 4
      %v5297 = vor.u32 %v5296, %v5292
      %v5298 = vrot.slane %v5297, 4
      %v5300 = vshll.u32 %v5044, 16
      %v5302 = vrot.slane %v5300, 5
      %v5303 = vsel %vm308, %v5298, %v5302
      %v5304 = vshrl.u32 %v5044, 16
      %v5306 = vrot.slane %v5304, 4
      %v5307 = vor.u32 %v5306, %v5302
      %v5308 = vrot.slane %v5307, 4
      %v5310 = vshll.u32 %v5045, 16
      %v5312 = vrot.slane %v5310, 5
      %v5313 = vsel %vm308, %v5308, %v5312
      %v5314 = vshrl.u32 %v5045, 16
      %v5316 = vrot.slane %v5314, 4
      %v5317 = vor.u32 %v5316, %v5312
      %v5318 = vrot.slane %v5317, 4
      %v5320 = vshll.u32 %v5046, 16
      %v5322 = vrot.slane %v5320, 5
      %v5323 = vsel %vm308, %v5318, %v5322
      %v5325 = vshrl.u32 %v5047, 16
      %v5327 = vrot.slane %v5325, 4
      %v5328 = vshll.u32 %v5047, 16
      %v5330 = vrot.slane %v5328, 5
      %v5331 = vor.u32 %v5327, %v5330
      %v5332 = vrot.slane %v5331, 4
      %v5334 = vshll.u32 %v5048, 16
      %v5336 = vrot.slane %v5334, 5
      %v5337 = vsel %vm308, %v5332, %v5336
      %v5338 = vshrl.u32 %v5048, 16
      %v5340 = vrot.slane %v5338, 4
      %v5341 = vor.u32 %v5340, %v5336
      %v5342 = vrot.slane %v5341, 4
      %v5344 = vshll.u32 %v5049, 16
      %v5346 = vrot.slane %v5344, 5
      %v5347 = vsel %vm308, %v5342, %v5346
      %v5348 = vshrl.u32 %v5049, 16
      %v5350 = vrot.slane %v5348, 4
      %v5351 = vor.u32 %v5350, %v5346
      %v5352 = vrot.slane %v5351, 4
      %v5354 = vshll.u32 %v5050, 16
      %v5356 = vrot.slane %v5354, 5
      %v5357 = vsel %vm308, %v5352, %v5356
      %v5358 = vshrl.u32 %v5050, 16
      %v5360 = vrot.slane %v5358, 4
      %v5361 = vor.u32 %v5360, %v5356
      %v5362 = vrot.slane %v5361, 4
      %v5364 = vshll.u32 %v5051, 16
      %v5366 = vrot.slane %v5364, 5
      %v5367 = vsel %vm308, %v5362, %v5366
      %v5369 = vshrl.u32 %v5052, 16
      %v5371 = vrot.slane %v5369, 4
      %v5372 = vshll.u32 %v5052, 16
      %v5374 = vrot.slane %v5372, 5
      %v5375 = vor.u32 %v5371, %v5374
      %v5376 = vrot.slane %v5375, 4
      %v5378 = vshll.u32 %v5053, 16
      %v5380 = vrot.slane %v5378, 5
      %v5381 = vsel %vm308, %v5376, %v5380
      %v5382 = vshrl.u32 %v5053, 16
      %v5384 = vrot.slane %v5382, 4
      %v5385 = vor.u32 %v5384, %v5380
      %v5386 = vrot.slane %v5385, 4
      %v5388 = vshll.u32 %v5054, 16
      %v5390 = vrot.slane %v5388, 5
      %v5391 = vsel %vm308, %v5386, %v5390
      %v5392 = vshrl.u32 %v5054, 16
      %v5394 = vrot.slane %v5392, 4
      %v5395 = vor.u32 %v5394, %v5390
      %v5396 = vrot.slane %v5395, 4
      %v5398 = vshll.u32 %v5055, 16
      %v5400 = vrot.slane %v5398, 5
      %v5401 = vsel %vm308, %v5396, %v5400
      %v5402 = vshrl.u32 %v5055, 16
      %v5404 = vrot.slane %v5402, 4
      %v5405 = vor.u32 %v5404, %v5400
      %v5406 = vrot.slane %v5405, 4
      %v5408 = vshll.u32 %v5056, 16
      %v5410 = vrot.slane %v5408, 5
      %v5411 = vsel %vm308, %v5406, %v5410
      %v5413 = vshrl.u32 %v5057, 16
      %v5415 = vrot.slane %v5413, 4
      %v5416 = vshll.u32 %v5057, 16
      %v5418 = vrot.slane %v5416, 5
      %v5419 = vor.u32 %v5415, %v5418
      %v5420 = vrot.slane %v5419, 4
      %v5422 = vshll.u32 %v5058, 16
      %v5424 = vrot.slane %v5422, 5
      %v5425 = vsel %vm308, %v5420, %v5424
      %v5426 = vshrl.u32 %v5058, 16
      %v5428 = vrot.slane %v5426, 4
      %v5429 = vor.u32 %v5428, %v5424
      %v5430 = vrot.slane %v5429, 4
      %v5432 = vshll.u32 %v5059, 16
      %v5434 = vrot.slane %v5432, 5
      %v5435 = vsel %vm308, %v5430, %v5434
      %v5436 = vshrl.u32 %v5059, 16
      %v5438 = vrot.slane %v5436, 4
      %v5439 = vor.u32 %v5438, %v5434
      %v5440 = vrot.slane %v5439, 4
      %v5442 = vshll.u32 %v5060, 16
      %v5444 = vrot.slane %v5442, 5
      %v5445 = vsel %vm308, %v5440, %v5444
      %v5446 = vshrl.u32 %v5060, 16
      %v5448 = vrot.slane %v5446, 4
      %v5449 = vor.u32 %v5448, %v5444
      %v5450 = vrot.slane %v5449, 4
      %v5452 = vshll.u32 %v5061, 16
      %v5454 = vrot.slane %v5452, 5
      %v5455 = vsel %vm308, %v5450, %v5454
      %v5457 = vshrl.u32 %v5062, 16
      %v5459 = vrot.slane %v5457, 4
      %v5460 = vshll.u32 %v5062, 16
      %v5462 = vrot.slane %v5460, 5
      %v5463 = vor.u32 %v5459, %v5462
      %v5464 = vrot.slane %v5463, 4
      %v5466 = vshll.u32 %v5063, 16
      %v5468 = vrot.slane %v5466, 5
      %v5469 = vsel %vm308, %v5464, %v5468
      %v5470 = vshrl.u32 %v5063, 16
      %v5472 = vrot.slane %v5470, 4
      %v5473 = vor.u32 %v5472, %v5468
      %v5474 = vrot.slane %v5473, 4
      %v5476 = vshll.u32 %v5064, 16
      %v5478 = vrot.slane %v5476, 5
      %v5479 = vsel %vm308, %v5474, %v5478
      %v5480 = vshrl.u32 %v5064, 16
      %v5482 = vrot.slane %v5480, 4
      %v5483 = vor.u32 %v5482, %v5478
      %v5484 = vrot.slane %v5483, 4
      %v5486 = vshll.u32 %v5065, 16
      %v5488 = vrot.slane %v5486, 5
      %v5489 = vsel %vm308, %v5484, %v5488
      %v5490 = vshrl.u32 %v5065, 16
      %v5492 = vrot.slane %v5490, 4
      %v5493 = vor.u32 %v5492, %v5488
      %v5494 = vrot.slane %v5493, 4
      %v5496 = vshll.u32 %v5066, 16
      %v5498 = vrot.slane %v5496, 5
      %v5499 = vsel %vm308, %v5494, %v5498
      %v5501 = vshrl.u32 %v5067, 16
      %v5503 = vrot.slane %v5501, 4
      %v5504 = vshll.u32 %v5067, 16
      %v5506 = vrot.slane %v5504, 5
      %v5507 = vor.u32 %v5503, %v5506
      %v5508 = vrot.slane %v5507, 4
      %v5510 = vshll.u32 %v5068, 16
      %v5512 = vrot.slane %v5510, 5
      %v5513 = vsel %vm308, %v5508, %v5512
      %v5514 = vshrl.u32 %v5068, 16
      %v5516 = vrot.slane %v5514, 4
      %v5517 = vor.u32 %v5516, %v5512
      %v5518 = vrot.slane %v5517, 4
      %v5520 = vshll.u32 %v5069, 16
      %v5522 = vrot.slane %v5520, 5
      %v5523 = vsel %vm308, %v5518, %v5522
      %v5524 = vshrl.u32 %v5069, 16
      %v5526 = vrot.slane %v5524, 4
      %v5527 = vor.u32 %v5526, %v5522
      %v5528 = vrot.slane %v5527, 4
      %v5530 = vshll.u32 %v5070, 16
      %v5532 = vrot.slane %v5530, 5
      %v5533 = vsel %vm308, %v5528, %v5532
      %v5534 = vshrl.u32 %v5070, 16
      %v5536 = vrot.slane %v5534, 4
      %v5537 = vor.u32 %v5536, %v5532
      %v5538 = vrot.slane %v5537, 4
      %v5540 = vshll.u32 %v5071, 16
      %v5542 = vrot.slane %v5540, 5
      %v5543 = vsel %vm308, %v5538, %v5542
      %v5545 = vshrl.u32 %v5072, 16
      %v5547 = vrot.slane %v5545, 4
      %v5548 = vshll.u32 %v5072, 16
      %v5550 = vrot.slane %v5548, 5
      %v5551 = vor.u32 %v5547, %v5550
      %v5552 = vrot.slane %v5551, 4
      %v5554 = vshll.u32 %v5073, 16
      %v5556 = vrot.slane %v5554, 5
      %v5557 = vsel %vm308, %v5552, %v5556
      %v5558 = vshrl.u32 %v5073, 16
      %v5560 = vrot.slane %v5558, 4
      %v5561 = vor.u32 %v5560, %v5556
      %v5562 = vrot.slane %v5561, 4
      %v5564 = vshll.u32 %v5074, 16
      %v5566 = vrot.slane %v5564, 5
      %v5567 = vsel %vm308, %v5562, %v5566
      %v5568 = vshrl.u32 %v5074, 16
      %v5570 = vrot.slane %v5568, 4
      %v5571 = vor.u32 %v5570, %v5566
      %v5572 = vrot.slane %v5571, 4
      %v5574 = vshll.u32 %v5075, 16
      %v5576 = vrot.slane %v5574, 5
      %v5577 = vsel %vm308, %v5572, %v5576
      %v5578 = vshrl.u32 %v5075, 16
      %v5580 = vrot.slane %v5578, 4
      %v5581 = vor.u32 %v5580, %v5576
      %v5582 = vrot.slane %v5581, 4
      %v5584 = vshll.u32 %v5076, 16
      %v5586 = vrot.slane %v5584, 5
      %v5587 = vsel %vm308, %v5582, %v5586
      %v5589 = vshrl.u32 %v5077, 16
      %v5591 = vrot.slane %v5589, 4
      %v5592 = vshll.u32 %v5077, 16
      %v5594 = vrot.slane %v5592, 5
      %v5595 = vor.u32 %v5591, %v5594
      %v5596 = vrot.slane %v5595, 4
      %v5598 = vshll.u32 %v5078, 16
      %v5600 = vrot.slane %v5598, 5
      %v5601 = vsel %vm308, %v5596, %v5600
      %v5602 = vshrl.u32 %v5078, 16
      %v5604 = vrot.slane %v5602, 4
      %v5605 = vor.u32 %v5604, %v5600
      %v5606 = vrot.slane %v5605, 4
      %v5608 = vshll.u32 %v5079, 16
      %v5610 = vrot.slane %v5608, 5
      %v5611 = vsel %vm308, %v5606, %v5610
      %v5612 = vshrl.u32 %v5079, 16
      %v5614 = vrot.slane %v5612, 4
      %v5615 = vor.u32 %v5614, %v5610
      %v5616 = vrot.slane %v5615, 4
      %v5618 = vshll.u32 %v5080, 16
      %v5620 = vrot.slane %v5618, 5
      %v5621 = vsel %vm308, %v5616, %v5620
      %v5622 = vshrl.u32 %v5080, 16
      %v5624 = vrot.slane %v5622, 4
      %v5625 = vor.u32 %v5624, %v5620
      %v5626 = vrot.slane %v5625, 4
      %v5628 = vshll.u32 %v5081, 16
      %v5630 = vrot.slane %v5628, 5
      %v5631 = vsel %vm308, %v5626, %v5630
      %v5633 = vshrl.u32 %v5082, 16
      %v5635 = vrot.slane %v5633, 4
      %v5636 = vshll.u32 %v5082, 16
      %v5638 = vrot.slane %v5636, 5
      %v5639 = vor.u32 %v5635, %v5638
      %v5640 = vrot.slane %v5639, 4
      %v5642 = vshll.u32 %v5083, 16
      %v5644 = vrot.slane %v5642, 5
      %v5645 = vsel %vm308, %v5640, %v5644
      %v5646 = vshrl.u32 %v5083, 16
      %v5648 = vrot.slane %v5646, 4
      %v5649 = vor.u32 %v5648, %v5644
      %v5650 = vrot.slane %v5649, 4
      %v5652 = vshll.u32 %v5084, 16
      %v5654 = vrot.slane %v5652, 5
      %v5655 = vsel %vm308, %v5650, %v5654
      %v5656 = vshrl.u32 %v5084, 16
      %v5658 = vrot.slane %v5656, 4
      %v5659 = vor.u32 %v5658, %v5654
      %v5660 = vrot.slane %v5659, 4
      %v5662 = vshll.u32 %v5085, 16
      %v5664 = vrot.slane %v5662, 5
      %v5665 = vsel %vm308, %v5660, %v5664
      %v5666 = vshrl.u32 %v5085, 16
      %v5668 = vrot.slane %v5666, 4
      %v5669 = vor.u32 %v5668, %v5664
      %v5670 = vrot.slane %v5669, 4
      %v5672 = vshll.u32 %v5086, 16
      %v5674 = vrot.slane %v5672, 5
      %v5675 = vsel %vm308, %v5670, %v5674
      %v5677 = vshrl.u32 %v5087, 16
      %v5679 = vrot.slane %v5677, 4
      %v5680 = vshll.u32 %v5087, 16
      %v5682 = vrot.slane %v5680, 5
      %v5683 = vor.u32 %v5679, %v5682
      %v5684 = vrot.slane %v5683, 4
      %v5686 = vshll.u32 %v5088, 16
      %v5688 = vrot.slane %v5686, 5
      %v5689 = vsel %vm308, %v5684, %v5688
      %v5690 = vshrl.u32 %v5088, 16
      %v5692 = vrot.slane %v5690, 4
      %v5693 = vor.u32 %v5692, %v5688
      %v5694 = vrot.slane %v5693, 4
      %v5696 = vshll.u32 %v5089, 16
      %v5698 = vrot.slane %v5696, 5
      %v5699 = vsel %vm308, %v5694, %v5698
      %v5700 = vshrl.u32 %v5089, 16
      %v5702 = vrot.slane %v5700, 4
      %v5703 = vor.u32 %v5702, %v5698
      %v5704 = vrot.slane %v5703, 4
      %v5706 = vshll.u32 %v5090, 16
      %v5708 = vrot.slane %v5706, 5
      %v5709 = vsel %vm308, %v5704, %v5708
      %v5710 = vshrl.u32 %v5090, 16
      %v5712 = vrot.slane %v5710, 4
      %v5713 = vor.u32 %v5712, %v5708
      %v5714 = vrot.slane %v5713, 4
      %v5716 = vshll.u32 %v5091, 16
      %v5718 = vrot.slane %v5716, 5
      %v5719 = vsel %vm308, %v5714, %v5718
      %v5721 = vshrl.u32 %v5092, 16
      %v5723 = vrot.slane %v5721, 4
      %v5724 = vshll.u32 %v5092, 16
      %v5726 = vrot.slane %v5724, 5
      %v5727 = vor.u32 %v5723, %v5726
      %v5728 = vrot.slane %v5727, 4
      %v5730 = vshll.u32 %v5093, 16
      %v5732 = vrot.slane %v5730, 5
      %v5733 = vsel %vm308, %v5728, %v5732
      %v5734 = vshrl.u32 %v5093, 16
      %v5736 = vrot.slane %v5734, 4
      %v5737 = vor.u32 %v5736, %v5732
      %v5738 = vrot.slane %v5737, 4
      %v5740 = vshll.u32 %v5094, 16
      %v5742 = vrot.slane %v5740, 5
      %v5743 = vsel %vm308, %v5738, %v5742
      %v5744 = vshrl.u32 %v5094, 16
      %v5746 = vrot.slane %v5744, 4
      %v5747 = vor.u32 %v5746, %v5742
      %v5748 = vrot.slane %v5747, 4
      %v5750 = vshll.u32 %v5095, 16
      %v5752 = vrot.slane %v5750, 5
      %v5753 = vsel %vm308, %v5748, %v5752
      %v5754 = vshrl.u32 %v5095, 16
      %v5756 = vrot.slane %v5754, 4
      %v5757 = vor.u32 %v5756, %v5752
      %v5758 = vrot.slane %v5757, 4
      %v5760 = vshll.u32 %v5096, 16
      %v5762 = vrot.slane %v5760, 5
      %v5763 = vsel %vm308, %v5758, %v5762
      %v5765 = vshrl.u32 %v5097, 16
      %v5767 = vrot.slane %v5765, 4
      %v5768 = vshll.u32 %v5097, 16
      %v5770 = vrot.slane %v5768, 5
      %v5771 = vor.u32 %v5767, %v5770
      %v5772 = vrot.slane %v5771, 4
      %v5774 = vshll.u32 %v5098, 16
      %v5776 = vrot.slane %v5774, 5
      %v5777 = vsel %vm308, %v5772, %v5776
      %v5778 = vshrl.u32 %v5098, 16
      %v5780 = vrot.slane %v5778, 4
      %v5781 = vor.u32 %v5780, %v5776
      %v5782 = vrot.slane %v5781, 4
      %v5784 = vshll.u32 %v5099, 16
      %v5786 = vrot.slane %v5784, 5
      %v5787 = vsel %vm308, %v5782, %v5786
      %v5788 = vshrl.u32 %v5099, 16
      %v5790 = vrot.slane %v5788, 4
      %v5791 = vor.u32 %v5790, %v5786
      %v5792 = vrot.slane %v5791, 4
      %v5794 = vshll.u32 %v5100, 16
      %v5796 = vrot.slane %v5794, 5
      %v5797 = vsel %vm308, %v5792, %v5796
      %v5798 = vshrl.u32 %v5100, 16
      %v5800 = vrot.slane %v5798, 4
      %v5801 = vor.u32 %v5800, %v5796
      %v5802 = vrot.slane %v5801, 4
      %v5804 = vshll.u32 %v5101, 16
      %v5806 = vrot.slane %v5804, 5
      %v5807 = vsel %vm308, %v5802, %v5806
      %v5809 = vshrl.u32 %v5102, 16
      %v5811 = vrot.slane %v5809, 4
      %v5812 = vshll.u32 %v5102, 16
      %v5814 = vrot.slane %v5812, 5
      %v5815 = vor.u32 %v5811, %v5814
      %v5816 = vrot.slane %v5815, 4
      %v5818 = vshll.u32 %v5103, 16
      %v5820 = vrot.slane %v5818, 5
      %v5821 = vsel %vm308, %v5816, %v5820
      %v5822 = vshrl.u32 %v5103, 16
      %v5824 = vrot.slane %v5822, 4
      %v5825 = vor.u32 %v5824, %v5820
      %v5826 = vrot.slane %v5825, 4
      %v5828 = vshll.u32 %v5104, 16
      %v5830 = vrot.slane %v5828, 5
      %v5831 = vsel %vm308, %v5826, %v5830
      %v5832 = vshrl.u32 %v5104, 16
      %v5834 = vrot.slane %v5832, 4
      %v5835 = vor.u32 %v5834, %v5830
      %v5836 = vrot.slane %v5835, 4
      %v5838 = vshll.u32 %v5105, 16
      %v5840 = vrot.slane %v5838, 5
      %v5841 = vsel %vm308, %v5836, %v5840
      %v5842 = vshrl.u32 %v5105, 16
      %v5844 = vrot.slane %v5842, 4
      %v5845 = vor.u32 %v5844, %v5840
      %v5846 = vrot.slane %v5845, 4
      %v5848 = vshll.u32 %v5106, 16
      %v5850 = vrot.slane %v5848, 5
      %v5851 = vsel %vm308, %v5846, %v5850
      %v5853 = vshrl.u32 %v5107, 16
      %v5855 = vrot.slane %v5853, 4
      %v5856 = vshll.u32 %v5107, 16
      %v5858 = vrot.slane %v5856, 5
      %v5859 = vor.u32 %v5855, %v5858
      %v5860 = vrot.slane %v5859, 4
      %v5862 = vshll.u32 %v5108, 16
      %v5864 = vrot.slane %v5862, 5
      %v5865 = vsel %vm308, %v5860, %v5864
      %v5866 = vshrl.u32 %v5108, 16
      %v5868 = vrot.slane %v5866, 4
      %v5869 = vor.u32 %v5868, %v5864
      %v5870 = vrot.slane %v5869, 4
      %v5872 = vshll.u32 %v5109, 16
      %v5874 = vrot.slane %v5872, 5
      %v5875 = vsel %vm308, %v5870, %v5874
      %v5876 = vshrl.u32 %v5109, 16
      %v5878 = vrot.slane %v5876, 4
      %v5879 = vor.u32 %v5878, %v5874
      %v5880 = vrot.slane %v5879, 4
      %v5882 = vshll.u32 %v5110, 16
      %v5884 = vrot.slane %v5882, 5
      %v5885 = vsel %vm308, %v5880, %v5884
      %v5886 = vshrl.u32 %v5110, 16
      %v5888 = vrot.slane %v5886, 4
      %v5889 = vor.u32 %v5888, %v5884
      %v5890 = vrot.slane %v5889, 4
      %v5892 = vshll.u32 %v5111, 16
      %v5894 = vrot.slane %v5892, 5
      %v5895 = vsel %vm308, %v5890, %v5894
      %v5897 = vshrl.u32 %v5112, 16
      %v5899 = vrot.slane %v5897, 4
      %v5900 = vshll.u32 %v5112, 16
      %v5902 = vrot.slane %v5900, 5
      %v5903 = vor.u32 %v5899, %v5902
      %v5904 = vrot.slane %v5903, 4
      %v5906 = vshll.u32 %v5113, 16
      %v5908 = vrot.slane %v5906, 5
      %v5909 = vsel %vm308, %v5904, %v5908
      %v5910 = vshrl.u32 %v5113, 16
      %v5912 = vrot.slane %v5910, 4
      %v5913 = vor.u32 %v5912, %v5908
      %v5914 = vrot.slane %v5913, 4
      %v5916 = vshll.u32 %v5114, 16
      %v5918 = vrot.slane %v5916, 5
      %v5919 = vsel %vm308, %v5914, %v5918
      %v5920 = vshrl.u32 %v5114, 16
      %v5922 = vrot.slane %v5920, 4
      %v5923 = vor.u32 %v5922, %v5918
      %v5924 = vrot.slane %v5923, 4
      %v5926 = vshll.u32 %v5115, 16
      %v5928 = vrot.slane %v5926, 5
      %v5929 = vsel %vm308, %v5924, %v5928
      %v5930 = vshrl.u32 %v5115, 16
      %v5932 = vrot.slane %v5930, 4
      %v5933 = vor.u32 %v5932, %v5928
      %v5934 = vrot.slane %v5933, 4
      %v5936 = vshll.u32 %v5116, 16
      %v5938 = vrot.slane %v5936, 5
      %v5939 = vsel %vm308, %v5934, %v5938
      %v5941 = vshrl.u32 %v5117, 16
      %v5943 = vrot.slane %v5941, 4
      %v5944 = vshll.u32 %v5117, 16
      %v5946 = vrot.slane %v5944, 5
      %v5947 = vor.u32 %v5943, %v5946
      %v5948 = vrot.slane %v5947, 4
      %v5950 = vshll.u32 %v5118, 16
      %v5952 = vrot.slane %v5950, 5
      %v5953 = vsel %vm308, %v5948, %v5952
      %v5954 = vshrl.u32 %v5118, 16
      %v5956 = vrot.slane %v5954, 4
      %v5957 = vor.u32 %v5956, %v5952
      %v5958 = vrot.slane %v5957, 4
      %v5960 = vshll.u32 %v5119, 16
      %v5962 = vrot.slane %v5960, 5
      %v5963 = vsel %vm308, %v5958, %v5962
      %v5964 = vshrl.u32 %v5119, 16
      %v5966 = vrot.slane %v5964, 4
      %v5967 = vor.u32 %v5966, %v5962
      %v5968 = vrot.slane %v5967, 4
      %v5970 = vshll.u32 %v5120, 16
      %v5972 = vrot.slane %v5970, 5
      %v5973 = vsel %vm308, %v5968, %v5972
      %v5974 = vshrl.u32 %v5120, 16
      %v5976 = vrot.slane %v5974, 4
      %v5977 = vor.u32 %v5976, %v5972
      %v5978 = vrot.slane %v5977, 4
      %v5980 = vshll.u32 %v5121, 16
      %v5982 = vrot.slane %v5980, 5
      %v5983 = vsel %vm308, %v5978, %v5982
      %v5985 = vshrl.u32 %v5122, 16
      %v5987 = vrot.slane %v5985, 4
      %v5988 = vshll.u32 %v5122, 16
      %v5990 = vrot.slane %v5988, 5
      %v5991 = vor.u32 %v5987, %v5990
      %v5992 = vrot.slane %v5991, 4
      %v5994 = vshll.u32 %v5123, 16
      %v5996 = vrot.slane %v5994, 5
      %v5997 = vsel %vm308, %v5992, %v5996
      %v5998 = vshrl.u32 %v5123, 16
      %v6000 = vrot.slane %v5998, 4
      %v6001 = vor.u32 %v6000, %v5996
      %v6002 = vrot.slane %v6001, 4
      %v6004 = vshll.u32 %v5124, 16
      %v6006 = vrot.slane %v6004, 5
      %v6007 = vsel %vm308, %v6002, %v6006
      %v6008 = vshrl.u32 %v5124, 16
      %v6010 = vrot.slane %v6008, 4
      %v6011 = vor.u32 %v6010, %v6006
      %v6012 = vrot.slane %v6011, 4
      %v6014 = vshll.u32 %v5125, 16
      %v6016 = vrot.slane %v6014, 5
      %v6017 = vsel %vm308, %v6012, %v6016
      %v6018 = vshrl.u32 %v5125, 16
      %v6020 = vrot.slane %v6018, 4
      %v6021 = vor.u32 %v6020, %v6016
      %v6022 = vrot.slane %v6021, 4
      %v6024 = vshll.u32 %v5126, 16
      %v6026 = vrot.slane %v6024, 5
      %v6027 = vsel %vm308, %v6022, %v6026
      %v6029 = vshrl.u32 %v5127, 16
      %v6031 = vrot.slane %v6029, 4
      %v6032 = vshll.u32 %v5127, 16
      %v6034 = vrot.slane %v6032, 5
      %v6035 = vor.u32 %v6031, %v6034
      %v6036 = vrot.slane %v6035, 4
      %v6038 = vshll.u32 %v5128, 16
      %v6040 = vrot.slane %v6038, 5
      %v6041 = vsel %vm308, %v6036, %v6040
      %v6042 = vshrl.u32 %v5128, 16
      %v6044 = vrot.slane %v6042, 4
      %v6045 = vor.u32 %v6044, %v6040
      %v6046 = vrot.slane %v6045, 4
      %v6048 = vshll.u32 %v5129, 16
      %v6050 = vrot.slane %v6048, 5
      %v6051 = vsel %vm308, %v6046, %v6050
      %v6052 = vshrl.u32 %v5129, 16
      %v6054 = vrot.slane %v6052, 4
      %v6055 = vor.u32 %v6054, %v6050
      %v6056 = vrot.slane %v6055, 4
      %v6058 = vshll.u32 %v5130, 16
      %v6060 = vrot.slane %v6058, 5
      %v6061 = vsel %vm308, %v6056, %v6060
      %v6062 = vshrl.u32 %v5130, 16
      %v6064 = vrot.slane %v6062, 4
      %v6065 = vor.u32 %v6064, %v6060
      %v6066 = vrot.slane %v6065, 4
      %v6068 = vshll.u32 %v5131, 16
      %v6070 = vrot.slane %v6068, 5
      %v6071 = vsel %vm308, %v6066, %v6070
      %v6073 = vshrl.u32 %v5132, 16
      %v6075 = vrot.slane %v6073, 4
      %v6076 = vshll.u32 %v5132, 16
      %v6078 = vrot.slane %v6076, 5
      %v6079 = vor.u32 %v6075, %v6078
      %v6080 = vrot.slane %v6079, 4
      %v6082 = vshll.u32 %v5133, 16
      %v6084 = vrot.slane %v6082, 5
      %v6085 = vsel %vm308, %v6080, %v6084
      %v6086 = vshrl.u32 %v5133, 16
      %v6088 = vrot.slane %v6086, 4
      %v6089 = vor.u32 %v6088, %v6084
      %v6090 = vrot.slane %v6089, 4
      %v6092 = vshll.u32 %v5134, 16
      %v6094 = vrot.slane %v6092, 5
      %v6095 = vsel %vm308, %v6090, %v6094
      %v6096 = vshrl.u32 %v5134, 16
      %v6098 = vrot.slane %v6096, 4
      %v6099 = vor.u32 %v6098, %v6094
      %v6100 = vrot.slane %v6099, 4
      %v6102 = vshll.u32 %v5135, 16
      %v6104 = vrot.slane %v6102, 5
      %v6105 = vsel %vm308, %v6100, %v6104
      %v6106 = vshrl.u32 %v5135, 16
      %v6108 = vrot.slane %v6106, 4
      %v6109 = vor.u32 %v6108, %v6104
      %v6110 = vrot.slane %v6109, 4
      %v6112 = vshll.u32 %v5136, 16
      %v6114 = vrot.slane %v6112, 5
      %v6115 = vsel %vm308, %v6110, %v6114
      %v6117 = vshrl.u32 %v5137, 16
      %v6119 = vrot.slane %v6117, 4
      %v6120 = vshll.u32 %v5137, 16
      %v6122 = vrot.slane %v6120, 5
      %v6123 = vor.u32 %v6119, %v6122
      %v6124 = vrot.slane %v6123, 4
      %v6126 = vshll.u32 %v5138, 16
      %v6128 = vrot.slane %v6126, 5
      %v6129 = vsel %vm308, %v6124, %v6128
      %v6130 = vshrl.u32 %v5138, 16
      %v6132 = vrot.slane %v6130, 4
      %v6133 = vor.u32 %v6132, %v6128
      %v6134 = vrot.slane %v6133, 4
      %v6136 = vshll.u32 %v5139, 16
      %v6138 = vrot.slane %v6136, 5
      %v6139 = vsel %vm308, %v6134, %v6138
      %v6140 = vshrl.u32 %v5139, 16
      %v6142 = vrot.slane %v6140, 4
      %v6143 = vor.u32 %v6142, %v6138
      %v6144 = vrot.slane %v6143, 4
      %v6146 = vshll.u32 %v5140, 16
      %v6148 = vrot.slane %v6146, 5
      %v6149 = vsel %vm308, %v6144, %v6148
      %v6150 = vshrl.u32 %v5140, 16
      %v6152 = vrot.slane %v6150, 4
      %v6153 = vor.u32 %v6152, %v6148
      %v6154 = vrot.slane %v6153, 4
      %v6156 = vshll.u32 %v5141, 16
      %v6158 = vrot.slane %v6156, 5
      %v6159 = vsel %vm308, %v6154, %v6158
      %v6161 = vshrl.u32 %v5142, 16
      %v6163 = vrot.slane %v6161, 4
      %v6164 = vshll.u32 %v5142, 16
      %v6166 = vrot.slane %v6164, 5
      %v6167 = vor.u32 %v6163, %v6166
      %v6168 = vrot.slane %v6167, 4
      %v6170 = vshll.u32 %v5143, 16
      %v6172 = vrot.slane %v6170, 5
      %v6173 = vsel %vm308, %v6168, %v6172
      %v6174 = vshrl.u32 %v5143, 16
      %v6176 = vrot.slane %v6174, 4
      %v6177 = vor.u32 %v6176, %v6172
      %v6178 = vrot.slane %v6177, 4
      %v6180 = vshll.u32 %v5144, 16
      %v6182 = vrot.slane %v6180, 5
      %v6183 = vsel %vm308, %v6178, %v6182
      %v6184 = vshrl.u32 %v5144, 16
      %v6186 = vrot.slane %v6184, 4
      %v6187 = vor.u32 %v6186, %v6182
      %v6188 = vrot.slane %v6187, 4
      %v6190 = vshll.u32 %v5145, 16
      %v6192 = vrot.slane %v6190, 5
      %v6193 = vsel %vm308, %v6188, %v6192
      %v6194 = vshrl.u32 %v5145, 16
      %v6196 = vrot.slane %v6194, 4
      %v6197 = vor.u32 %v6196, %v6192
      %v6198 = vrot.slane %v6197, 4
      %v6200 = vshll.u32 %v5146, 16
      %v6202 = vrot.slane %v6200, 5
      %v6203 = vsel %vm308, %v6198, %v6202
      %v6205 = vshrl.u32 %v5147, 16
      %v6207 = vrot.slane %v6205, 4
      %v6208 = vshll.u32 %v5147, 16
      %v6210 = vrot.slane %v6208, 5
      %v6211 = vor.u32 %v6207, %v6210
      %v6212 = vrot.slane %v6211, 4
      %v6214 = vshll.u32 %v5148, 16
      %v6216 = vrot.slane %v6214, 5
      %v6217 = vsel %vm308, %v6212, %v6216
      %v6218 = vshrl.u32 %v5148, 16
      %v6220 = vrot.slane %v6218, 4
      %v6221 = vor.u32 %v6220, %v6216
      %v6222 = vrot.slane %v6221, 4
      %v6224 = vshll.u32 %v5149, 16
      %v6226 = vrot.slane %v6224, 5
      %v6227 = vsel %vm308, %v6222, %v6226
      %v6228 = vshrl.u32 %v5149, 16
      %v6230 = vrot.slane %v6228, 4
      %v6231 = vor.u32 %v6230, %v6226
      %v6232 = vrot.slane %v6231, 4
      %v6234 = vshll.u32 %v5150, 16
      %v6236 = vrot.slane %v6234, 5
      %v6237 = vsel %vm308, %v6232, %v6236
      %v6238 = vshrl.u32 %v5150, 16
      %v6240 = vrot.slane %v6238, 4
      %v6241 = vor.u32 %v6240, %v6236
      %v6242 = vrot.slane %v6241, 4
      %v6244 = vshll.u32 %v5151, 16
      %v6246 = vrot.slane %v6244, 5
      %v6247 = vsel %vm308, %v6242, %v6246
      %v6249 = vshrl.u32 %v5152, 16
      %v6251 = vrot.slane %v6249, 4
      %v6252 = vshll.u32 %v5152, 16
      %v6254 = vrot.slane %v6252, 5
      %v6255 = vor.u32 %v6251, %v6254
      %v6256 = vrot.slane %v6255, 4
      %v6258 = vshll.u32 %v5153, 16
      %v6260 = vrot.slane %v6258, 5
      %v6261 = vsel %vm308, %v6256, %v6260
      %v6262 = vshrl.u32 %v5153, 16
      %v6264 = vrot.slane %v6262, 4
      %v6265 = vor.u32 %v6264, %v6260
      %v6266 = vrot.slane %v6265, 4
      %v6268 = vshll.u32 %v5154, 16
      %v6270 = vrot.slane %v6268, 5
      %v6271 = vsel %vm308, %v6266, %v6270
      %v6272 = vshrl.u32 %v5154, 16
      %v6274 = vrot.slane %v6272, 4
      %v6275 = vor.u32 %v6274, %v6270
      %v6276 = vrot.slane %v6275, 4
      %v6278 = vshll.u32 %v5155, 16
      %v6280 = vrot.slane %v6278, 5
      %v6281 = vsel %vm308, %v6276, %v6280
      %v6282 = vshrl.u32 %v5155, 16
      %v6284 = vrot.slane %v6282, 4
      %v6285 = vor.u32 %v6284, %v6280
      %v6286 = vrot.slane %v6285, 4
      %v6288 = vshll.u32 %v5156, 16
      %v6290 = vrot.slane %v6288, 5
      %v6291 = vsel %vm308, %v6286, %v6290
      %v6293 = vshrl.u32 %v5157, 16
      %v6295 = vrot.slane %v6293, 4
      %v6296 = vshll.u32 %v5157, 16
      %v6298 = vrot.slane %v6296, 5
      %v6299 = vor.u32 %v6295, %v6298
      %v6300 = vrot.slane %v6299, 4
      %v6302 = vshll.u32 %v5158, 16
      %v6304 = vrot.slane %v6302, 5
      %v6305 = vsel %vm308, %v6300, %v6304
      %v6306 = vshrl.u32 %v5158, 16
      %v6308 = vrot.slane %v6306, 4
      %v6309 = vor.u32 %v6308, %v6304
      %v6310 = vrot.slane %v6309, 4
      %v6312 = vshll.u32 %v5159, 16
      %v6314 = vrot.slane %v6312, 5
      %v6315 = vsel %vm308, %v6310, %v6314
      %v6316 = vshrl.u32 %v5159, 16
      %v6318 = vrot.slane %v6316, 4
      %v6319 = vor.u32 %v6318, %v6314
      %v6320 = vrot.slane %v6319, 4
      %v6322 = vshll.u32 %v5160, 16
      %v6324 = vrot.slane %v6322, 5
      %v6325 = vsel %vm308, %v6320, %v6324
      %v6326 = vshrl.u32 %v5160, 16
      %v6328 = vrot.slane %v6326, 4
      %v6329 = vor.u32 %v6328, %v6324
      %v6330 = vrot.slane %v6329, 4
      %v6332 = vshll.u32 %v5161, 16
      %v6334 = vrot.slane %v6332, 5
      %v6335 = vsel %vm308, %v6330, %v6334
      %v6337 = vshrl.u32 %v5162, 16
      %v6339 = vrot.slane %v6337, 4
      %v6340 = vshll.u32 %v5162, 16
      %v6342 = vrot.slane %v6340, 5
      %v6343 = vor.u32 %v6339, %v6342
      %v6344 = vrot.slane %v6343, 4
      %v6346 = vshll.u32 %v5163, 16
      %v6348 = vrot.slane %v6346, 5
      %v6349 = vsel %vm308, %v6344, %v6348
      %v6350 = vshrl.u32 %v5163, 16
      %v6352 = vrot.slane %v6350, 4
      %v6353 = vor.u32 %v6352, %v6348
      %v6354 = vrot.slane %v6353, 4
      %v6356 = vshll.u32 %v5164, 16
      %v6358 = vrot.slane %v6356, 5
      %v6359 = vsel %vm308, %v6354, %v6358
      %v6360 = vshrl.u32 %v5164, 16
      %v6362 = vrot.slane %v6360, 4
      %v6363 = vor.u32 %v6362, %v6358
      %v6364 = vrot.slane %v6363, 4
      %v6366 = vshll.u32 %v5165, 16
      %v6368 = vrot.slane %v6366, 5
      %v6369 = vsel %vm308, %v6364, %v6368
      %v6370 = vshrl.u32 %v5165, 16
      %v6372 = vrot.slane %v6370, 4
      %v6373 = vor.u32 %v6372, %v6368
      %v6374 = vrot.slane %v6373, 4
      %v6376 = vshll.u32 %v5166, 16
      %v6378 = vrot.slane %v6376, 5
      %v6379 = vsel %vm308, %v6374, %v6378
      %v6381 = vshrl.u32 %v5167, 16
      %v6383 = vrot.slane %v6381, 4
      %v6384 = vshll.u32 %v5167, 16
      %v6386 = vrot.slane %v6384, 5
      %v6387 = vor.u32 %v6383, %v6386
      %v6388 = vrot.slane %v6387, 4
      %v6390 = vshll.u32 %v5168, 16
      %v6392 = vrot.slane %v6390, 5
      %v6393 = vsel %vm308, %v6388, %v6392
      %v6394 = vshrl.u32 %v5168, 16
      %v6396 = vrot.slane %v6394, 4
      %v6397 = vor.u32 %v6396, %v6392
      %v6398 = vrot.slane %v6397, 4
      %v6400 = vshll.u32 %v5169, 16
      %v6402 = vrot.slane %v6400, 5
      %v6403 = vsel %vm308, %v6398, %v6402
      %v6404 = vshrl.u32 %v5169, 16
      %v6406 = vrot.slane %v6404, 4
      %v6407 = vor.u32 %v6406, %v6402
      %v6408 = vrot.slane %v6407, 4
      %v6410 = vshll.u32 %v5170, 16
      %v6412 = vrot.slane %v6410, 5
      %v6413 = vsel %vm308, %v6408, %v6412
      %v6414 = vshrl.u32 %v5170, 16
      %v6416 = vrot.slane %v6414, 4
      %v6417 = vor.u32 %v6416, %v6412
      %v6418 = vrot.slane %v6417, 4
      %v6420 = vshll.u32 %v5171, 16
      %v6422 = vrot.slane %v6420, 5
      %v6423 = vsel %vm308, %v6418, %v6422
      %v6425 = vshrl.u32 %v5172, 16
      %v6427 = vrot.slane %v6425, 4
      %v6428 = vshll.u32 %v5172, 16
      %v6430 = vrot.slane %v6428, 5
      %v6431 = vor.u32 %v6427, %v6430
      %v6432 = vrot.slane %v6431, 4
      %v6434 = vshll.u32 %v5173, 16
      %v6436 = vrot.slane %v6434, 5
      %v6437 = vsel %vm308, %v6432, %v6436
      %v6438 = vshrl.u32 %v5173, 16
      %v6440 = vrot.slane %v6438, 4
      %v6441 = vor.u32 %v6440, %v6436
      %v6442 = vrot.slane %v6441, 4
      %v6444 = vshll.u32 %v5174, 16
      %v6446 = vrot.slane %v6444, 5
      %v6447 = vsel %vm308, %v6442, %v6446
      %v6448 = vshrl.u32 %v5174, 16
      %v6450 = vrot.slane %v6448, 4
      %v6451 = vor.u32 %v6450, %v6446
      %v6452 = vrot.slane %v6451, 4
      %v6454 = vshll.u32 %v5175, 16
      %v6456 = vrot.slane %v6454, 5
      %v6457 = vsel %vm308, %v6452, %v6456
      %v6458 = vshrl.u32 %v5175, 16
      %v6460 = vrot.slane %v6458, 4
      %v6461 = vor.u32 %v6460, %v6456
      %v6462 = vrot.slane %v6461, 4
      %v6464 = vshll.u32 %v5176, 16
      %v6466 = vrot.slane %v6464, 5
      %v6467 = vsel %vm308, %v6462, %v6466
      %v6469 = vshrl.u32 %v5177, 16
      %v6471 = vrot.slane %v6469, 4
      %v6472 = vshll.u32 %v5177, 16
      %v6474 = vrot.slane %v6472, 5
      %v6475 = vor.u32 %v6471, %v6474
      %v6476 = vrot.slane %v6475, 4
      %v6478 = vshll.u32 %v5178, 16
      %v6480 = vrot.slane %v6478, 5
      %v6481 = vsel %vm308, %v6476, %v6480
      %v6482 = vshrl.u32 %v5178, 16
      %v6484 = vrot.slane %v6482, 4
      %v6485 = vor.u32 %v6484, %v6480
      %v6486 = vrot.slane %v6485, 4
      %v6488 = vshll.u32 %v5179, 16
      %v6490 = vrot.slane %v6488, 5
      %v6491 = vsel %vm308, %v6486, %v6490
      %v6492 = vshrl.u32 %v5179, 16
      %v6494 = vrot.slane %v6492, 4
      %v6495 = vor.u32 %v6494, %v6490
      %v6496 = vrot.slane %v6495, 4
      %v6498 = vshll.u32 %v5180, 16
      %v6500 = vrot.slane %v6498, 5
      %v6501 = vsel %vm308, %v6496, %v6500
      %v6502 = vshrl.u32 %v5180, 16
      %v6504 = vrot.slane %v6502, 4
      %v6505 = vor.u32 %v6504, %v6500
      %v6506 = vrot.slane %v6505, 4
      %v6508 = vshll.u32 %v5181, 16
      %v6510 = vrot.slane %v6508, 5
      %v6511 = vsel %vm308, %v6506, %v6510
      %v6513 = vshrl.u32 %v5182, 16
      %v6515 = vrot.slane %v6513, 4
      %v6516 = vshll.u32 %v5182, 16
      %v6518 = vrot.slane %v6516, 5
      %v6519 = vor.u32 %v6515, %v6518
      %v6520 = vrot.slane %v6519, 4
      %v6522 = vshll.u32 %v5183, 16
      %v6524 = vrot.slane %v6522, 5
      %v6525 = vsel %vm308, %v6520, %v6524
      %v6526 = vshrl.u32 %v5183, 16
      %v6528 = vrot.slane %v6526, 4
      %v6529 = vor.u32 %v6528, %v6524
      %v6530 = vrot.slane %v6529, 4
      %v6532 = vshll.u32 %v5184, 16
      %v6534 = vrot.slane %v6532, 5
      %v6535 = vsel %vm308, %v6530, %v6534
      %v6536 = vshrl.u32 %v5184, 16
      %v6538 = vrot.slane %v6536, 4
      %v6539 = vor.u32 %v6538, %v6534
      %v6540 = vrot.slane %v6539, 4
      %v6542 = vshll.u32 %v5185, 16
      %v6544 = vrot.slane %v6542, 5
      %v6545 = vsel %vm308, %v6540, %v6544
      %v6546 = vshrl.u32 %v5185, 16
      %v6548 = vrot.slane %v6546, 4
      %v6549 = vor.u32 %v6548, %v6544
      %v6550 = vrot.slane %v6549, 4
      %v6552 = vshll.u32 %v5186, 16
      %v6554 = vrot.slane %v6552, 5
      %v6555 = vsel %vm308, %v6550, %v6554
      %v6557 = vshrl.u32 %v5187, 16
      %v6559 = vrot.slane %v6557, 4
      %v6560 = vshll.u32 %v5187, 16
      %v6562 = vrot.slane %v6560, 5
      %v6563 = vor.u32 %v6559, %v6562
      %v6564 = vrot.slane %v6563, 4
      %v6566 = vshll.u32 %v5188, 16
      %v6568 = vrot.slane %v6566, 5
      %v6569 = vsel %vm308, %v6564, %v6568
      %v6570 = vshrl.u32 %v5188, 16
      %v6572 = vrot.slane %v6570, 4
      %v6573 = vor.u32 %v6572, %v6568
      %v6574 = vrot.slane %v6573, 4
      %v6576 = vshll.u32 %v5189, 16
      %v6578 = vrot.slane %v6576, 5
      %v6579 = vsel %vm308, %v6574, %v6578
      %v6580 = vshrl.u32 %v5189, 16
      %v6582 = vrot.slane %v6580, 4
      %v6583 = vor.u32 %v6582, %v6578
      %v6584 = vrot.slane %v6583, 4
      %v6586 = vshll.u32 %v5190, 16
      %v6588 = vrot.slane %v6586, 5
      %v6589 = vsel %vm308, %v6584, %v6588
      %v6590 = vshrl.u32 %v5190, 16
      %v6592 = vrot.slane %v6590, 4
      %v6593 = vor.u32 %v6592, %v6588
      %v6594 = vrot.slane %v6593, 4
      %v6596 = vshll.u32 %v5191, 16
      %v6598 = vrot.slane %v6596, 5
      %v6599 = vsel %vm308, %v6594, %v6598
      %s6600 = scalar_lea.vmem %s1, 6
      %v6601 = vld [vmem:[%s6600] sm:$0x3]
      %v6602 = vunpack.c.l.b16 %v5205
      %v6603 = vunpack.c.l.b16 %v5215
      %v6604 = vunpack.c.l.b16 %v5225
      %v6605 = vunpack.c.l.b16 %v5235
      %v6606 = vunpack.c.l.b16 %v5249
      %v6607 = vunpack.c.l.b16 %v5259
      %v6608 = vunpack.c.l.b16 %v5269
      %v6609 = vunpack.c.l.b16 %v5279
      %v6610 = vunpack.c.l.b16 %v5293
      %v6611 = vunpack.c.l.b16 %v5303
      %v6612 = vunpack.c.l.b16 %v5313
      %v6613 = vunpack.c.l.b16 %v5323
      %v6614 = vunpack.c.l.b16 %v5337
      %v6615 = vunpack.c.l.b16 %v5347
      %v6616 = vunpack.c.l.b16 %v5357
      %v6617 = vunpack.c.l.b16 %v5367
      %v6618 = vunpack.c.l.b16 %v5381
      %v6619 = vunpack.c.l.b16 %v5391
      %v6620 = vunpack.c.l.b16 %v5401
      %v6621 = vunpack.c.l.b16 %v5411
      %v6622 = vunpack.c.l.b16 %v5425
      %v6623 = vunpack.c.l.b16 %v5435
      %v6624 = vunpack.c.l.b16 %v5445
      %v6625 = vunpack.c.l.b16 %v5455
      %v6626 = vunpack.c.l.b16 %v5469
      %v6627 = vunpack.c.l.b16 %v5479
      %v6628 = vunpack.c.l.b16 %v5489
      %v6629 = vunpack.c.l.b16 %v5499
      %v6630 = vunpack.c.l.b16 %v5513
      %v6631 = vunpack.c.l.b16 %v5523
      %v6632 = vunpack.c.l.b16 %v5533
      %v6633 = vunpack.c.l.b16 %v5543
      %v6634 = vunpack.c.l.b16 %v5557
      %v6635 = vunpack.c.l.b16 %v5567
      %v6636 = vunpack.c.l.b16 %v5577
      %v6637 = vunpack.c.l.b16 %v5587
      %v6638 = vunpack.c.l.b16 %v5601
      %v6639 = vunpack.c.l.b16 %v5611
      %v6640 = vunpack.c.l.b16 %v5621
      %v6641 = vunpack.c.l.b16 %v5631
      %v6642 = vunpack.c.l.b16 %v5645
      %v6643 = vunpack.c.l.b16 %v5655
      %v6644 = vunpack.c.l.b16 %v5665
      %v6645 = vunpack.c.l.b16 %v5675
      %v6646 = vunpack.c.l.b16 %v5689
      %v6647 = vunpack.c.l.b16 %v5699
      %v6648 = vunpack.c.l.b16 %v5709
      %v6649 = vunpack.c.l.b16 %v5719
      %v6650 = vunpack.c.l.b16 %v5733
      %v6651 = vunpack.c.l.b16 %v5743
      %v6652 = vunpack.c.l.b16 %v5753
      %v6653 = vunpack.c.l.b16 %v5763
      %v6654 = vunpack.c.l.b16 %v5777
      %v6655 = vunpack.c.l.b16 %v5787
      %v6656 = vunpack.c.l.b16 %v5797
      %v6657 = vunpack.c.l.b16 %v5807
      %v6658 = vunpack.c.l.b16 %v5821
      %v6659 = vunpack.c.l.b16 %v5831
      %v6660 = vunpack.c.l.b16 %v5841
      %v6661 = vunpack.c.l.b16 %v5851
      %v6662 = vunpack.c.l.b16 %v5865
      %v6663 = vunpack.c.l.b16 %v5875
      %v6664 = vunpack.c.l.b16 %v5885
      %v6665 = vunpack.c.l.b16 %v5895
      %v6666 = vunpack.c.l.b16 %v5909
      %v6667 = vunpack.c.l.b16 %v5919
      %v6668 = vunpack.c.l.b16 %v5929
      %v6669 = vunpack.c.l.b16 %v5939
      %v6670 = vunpack.c.l.b16 %v5953
      %v6671 = vunpack.c.l.b16 %v5963
      %v6672 = vunpack.c.l.b16 %v5973
      %v6673 = vunpack.c.l.b16 %v5983
      %v6674 = vunpack.c.l.b16 %v5997
      %v6675 = vunpack.c.l.b16 %v6007
      %v6676 = vunpack.c.l.b16 %v6017
      %v6677 = vunpack.c.l.b16 %v6027
      %v6678 = vunpack.c.l.b16 %v6041
      %v6679 = vunpack.c.l.b16 %v6051
      %v6680 = vunpack.c.l.b16 %v6061
      %v6681 = vunpack.c.l.b16 %v6071
      %v6682 = vunpack.c.l.b16 %v6085
      %v6683 = vunpack.c.l.b16 %v6095
      %v6684 = vunpack.c.l.b16 %v6105
      %v6685 = vunpack.c.l.b16 %v6115
      %v6686 = vunpack.c.l.b16 %v6129
      %v6687 = vunpack.c.l.b16 %v6139
      %v6688 = vunpack.c.l.b16 %v6149
      %v6689 = vunpack.c.l.b16 %v6159
      %v6690 = vunpack.c.l.b16 %v6173
      %v6691 = vunpack.c.l.b16 %v6183
      %v6692 = vunpack.c.l.b16 %v6193
      %v6693 = vunpack.c.l.b16 %v6203
      %v6694 = vunpack.c.l.b16 %v6217
      %v6695 = vunpack.c.l.b16 %v6227
      %v6696 = vunpack.c.l.b16 %v6237
      %v6697 = vunpack.c.l.b16 %v6247
      %v6698 = vunpack.c.l.b16 %v6261
      %v6699 = vunpack.c.l.b16 %v6271
      %v6700 = vunpack.c.l.b16 %v6281
      %v6701 = vunpack.c.l.b16 %v6291
      %v6702 = vunpack.c.l.b16 %v6305
      %v6703 = vunpack.c.l.b16 %v6315
      %v6704 = vunpack.c.l.b16 %v6325
      %v6705 = vunpack.c.l.b16 %v6335
      %v6706 = vunpack.c.l.b16 %v6349
      %v6707 = vunpack.c.l.b16 %v6359
      %v6708 = vunpack.c.l.b16 %v6369
      %v6709 = vunpack.c.l.b16 %v6379
      %v6710 = vunpack.c.l.b16 %v6393
      %v6711 = vunpack.c.l.b16 %v6403
      %v6712 = vunpack.c.l.b16 %v6413
      %v6713 = vunpack.c.l.b16 %v6423
      %v6714 = vunpack.c.l.b16 %v6437
      %v6715 = vunpack.c.l.b16 %v6447
      %v6716 = vunpack.c.l.b16 %v6457
      %v6717 = vunpack.c.l.b16 %v6467
      %v6718 = vunpack.c.l.b16 %v6481
      %v6719 = vunpack.c.l.b16 %v6491
      %v6720 = vunpack.c.l.b16 %v6501
      %v6721 = vunpack.c.l.b16 %v6511
      %v6722 = vunpack.c.l.b16 %v6525
      %v6723 = vunpack.c.l.b16 %v6535
      %v6724 = vunpack.c.l.b16 %v6545
      %v6725 = vunpack.c.l.b16 %v6555
      %v6726 = vunpack.c.l.b16 %v6569
      %v6727 = vunpack.c.l.b16 %v6579
      %v6728 = vunpack.c.l.b16 %v6589
      %v6729 = vunpack.c.l.b16 %v6599
      %v6730 = vpack.c.b16 %v6603, %v6602
      %v6731 = vpack.c.b16 %v6605, %v6604
      %v6732 = vpack.c.b16 %v6607, %v6606
      %v6733 = vpack.c.b16 %v6609, %v6608
      %v6734 = vpack.c.b16 %v6611, %v6610
      %v6735 = vpack.c.b16 %v6613, %v6612
      %v6736 = vpack.c.b16 %v6615, %v6614
      %v6737 = vpack.c.b16 %v6617, %v6616
      %v6738 = vpack.c.b16 %v6619, %v6618
      %v6739 = vpack.c.b16 %v6621, %v6620
      %v6740 = vpack.c.b16 %v6623, %v6622
      %v6741 = vpack.c.b16 %v6625, %v6624
      %v6742 = vpack.c.b16 %v6627, %v6626
      %v6743 = vpack.c.b16 %v6629, %v6628
      %v6744 = vpack.c.b16 %v6631, %v6630
      %v6745 = vpack.c.b16 %v6633, %v6632
      %v6746 = vpack.c.b16 %v6635, %v6634
      %v6747 = vpack.c.b16 %v6637, %v6636
      %v6748 = vpack.c.b16 %v6639, %v6638
      %v6749 = vpack.c.b16 %v6641, %v6640
      %v6750 = vpack.c.b16 %v6643, %v6642
      %v6751 = vpack.c.b16 %v6645, %v6644
      %v6752 = vpack.c.b16 %v6647, %v6646
      %v6753 = vpack.c.b16 %v6649, %v6648
      %v6754 = vpack.c.b16 %v6651, %v6650
      %v6755 = vpack.c.b16 %v6653, %v6652
      %v6756 = vpack.c.b16 %v6655, %v6654
      %v6757 = vpack.c.b16 %v6657, %v6656
      %v6758 = vpack.c.b16 %v6659, %v6658
      %v6759 = vpack.c.b16 %v6661, %v6660
      %v6760 = vpack.c.b16 %v6663, %v6662
      %v6761 = vpack.c.b16 %v6665, %v6664
      %v6762 = vpack.c.b16 %v6667, %v6666
      %v6763 = vpack.c.b16 %v6669, %v6668
      %v6764 = vpack.c.b16 %v6671, %v6670
      %v6765 = vpack.c.b16 %v6673, %v6672
      %v6766 = vpack.c.b16 %v6675, %v6674
      %v6767 = vpack.c.b16 %v6677, %v6676
      %v6768 = vpack.c.b16 %v6679, %v6678
      %v6769 = vpack.c.b16 %v6681, %v6680
      %v6770 = vpack.c.b16 %v6683, %v6682
      %v6771 = vpack.c.b16 %v6685, %v6684
      %v6772 = vpack.c.b16 %v6687, %v6686
      %v6773 = vpack.c.b16 %v6689, %v6688
      %v6774 = vpack.c.b16 %v6691, %v6690
      %v6775 = vpack.c.b16 %v6693, %v6692
      %v6776 = vpack.c.b16 %v6695, %v6694
      %v6777 = vpack.c.b16 %v6697, %v6696
      %v6778 = vpack.c.b16 %v6699, %v6698
      %v6779 = vpack.c.b16 %v6701, %v6700
      %v6780 = vpack.c.b16 %v6703, %v6702
      %v6781 = vpack.c.b16 %v6705, %v6704
      %v6782 = vpack.c.b16 %v6707, %v6706
      %v6783 = vpack.c.b16 %v6709, %v6708
      %v6784 = vpack.c.b16 %v6711, %v6710
      %v6785 = vpack.c.b16 %v6713, %v6712
      %v6786 = vpack.c.b16 %v6715, %v6714
      %v6787 = vpack.c.b16 %v6717, %v6716
      %v6788 = vpack.c.b16 %v6719, %v6718
      %v6789 = vpack.c.b16 %v6721, %v6720
      %v6790 = vpack.c.b16 %v6723, %v6722
      %v6791 = vpack.c.b16 %v6725, %v6724
      %v6792 = vpack.c.b16 %v6727, %v6726
      %v6793 = vpack.c.b16 %v6729, %v6728
      %v6795 = vsel %vm1911, %v6730, 0
      %v6798 = vsel %vm1911, %v6731, 0
      %v6801 = vsel %vm1911, %v6732, 0
      %v6804 = vsel %vm1911, %v6733, 0
      %v6807 = vsel %vm1911, %v6734, 0
      %v6810 = vsel %vm1911, %v6735, 0
      %v6813 = vsel %vm1911, %v6736, 0
      %v6816 = vsel %vm1911, %v6737, 0
      %v6819 = vsel %vm1911, %v6738, 0
      %v6822 = vsel %vm1911, %v6739, 0
      %v6825 = vsel %vm1911, %v6740, 0
      %v6828 = vsel %vm1911, %v6741, 0
      %v6831 = vsel %vm1911, %v6742, 0
      %v6834 = vsel %vm1911, %v6743, 0
      %v6837 = vsel %vm1911, %v6744, 0
      %v6840 = vsel %vm1911, %v6745, 0
      %v6843 = vsel %vm1911, %v6746, 0
      %v6846 = vsel %vm1911, %v6747, 0
      %v6849 = vsel %vm1911, %v6748, 0
      %v6852 = vsel %vm1911, %v6749, 0
      %v6855 = vsel %vm1911, %v6750, 0
      %v6858 = vsel %vm1911, %v6751, 0
      %v6861 = vsel %vm1911, %v6752, 0
      %v6864 = vsel %vm1911, %v6753, 0
      %v6867 = vsel %vm1911, %v6754, 0
      %v6870 = vsel %vm1911, %v6755, 0
      %v6873 = vsel %vm1911, %v6756, 0
      %v6876 = vsel %vm1911, %v6757, 0
      %v6879 = vsel %vm1911, %v6758, 0
      %v6882 = vsel %vm1911, %v6759, 0
      %v6885 = vsel %vm1911, %v6760, 0
      %v6888 = vsel %vm1911, %v6761, 0
      %v6891 = vsel %vm1911, %v6762, 0
      %v6894 = vsel %vm1911, %v6763, 0
      %v6897 = vsel %vm1911, %v6764, 0
      %v6900 = vsel %vm1911, %v6765, 0
      %v6903 = vsel %vm1911, %v6766, 0
      %v6906 = vsel %vm1911, %v6767, 0
      %v6909 = vsel %vm1911, %v6768, 0
      %v6912 = vsel %vm1911, %v6769, 0
      %v6915 = vsel %vm1911, %v6770, 0
      %v6918 = vsel %vm1911, %v6771, 0
      %v6921 = vsel %vm1911, %v6772, 0
      %v6924 = vsel %vm1911, %v6773, 0
      %v6927 = vsel %vm1911, %v6774, 0
      %v6930 = vsel %vm1911, %v6775, 0
      %v6933 = vsel %vm1911, %v6776, 0
      %v6936 = vsel %vm1911, %v6777, 0
      %v6939 = vsel %vm1911, %v6778, 0
      %v6942 = vsel %vm1911, %v6779, 0
      %v6945 = vsel %vm1911, %v6780, 0
      %v6948 = vsel %vm1911, %v6781, 0
      %v6951 = vsel %vm1911, %v6782, 0
      %v6954 = vsel %vm1911, %v6783, 0
      %v6957 = vsel %vm1911, %v6784, 0
      %v6960 = vsel %vm1911, %v6785, 0
      %v6963 = vsel %vm1911, %v6786, 0
      %v6966 = vsel %vm1911, %v6787, 0
      %v6969 = vsel %vm1911, %v6788, 0
      %v6972 = vsel %vm1911, %v6789, 0
      %v6975 = vsel %vm1911, %v6790, 0
      %v6978 = vsel %vm1911, %v6791, 0
      %v6981 = vsel %vm1911, %v6792, 0
      %v6984 = vsel %vm1911, %v6793, 0
      %v6987 = vsel %vm2104, %v6601, 0
      %6989 = vmatprep.subr.bf16.mxu0 0
      %6990 = vmatpush1.bf16.msra.mxu0 0
      %6991 = vmatprep.subr.bf16.mxu0 0
      %6992 = vmatpush1.bf16.msra.mxu0 0
      %6993 = vmatprep.subr.bf16.mxu0 0
      %6994 = vmatpush1.bf16.msra.mxu0 0
      %6995 = vmatprep.subr.bf16.mxu0 0
      %6996 = vmatpush1.bf16.msra.mxu0 0
      %6997 = vmatprep.subr.bf16.mxu0 0
      %6998 = vmatpush1.bf16.msra.mxu0 0
      %6999 = vmatprep.subr.bf16.mxu0 0
      %7000 = vmatpush1.bf16.msra.mxu0 0
      %7001 = vmatprep.subr.bf16.mxu0 0
      %7002 = vmatpush1.bf16.msra.mxu0 0
      %7003 = vmatprep.subr.bf16.mxu0 0
      %7004 = vmatpush1.bf16.msra.mxu0 %v6987
      %7005 = vmatprep.subr.bf16.mxu0 0
      %7006 = vmatpush2.bf16.msra.mxu0 0
      %7007 = vmatprep.subr.bf16.mxu0 0
      %7008 = vmatpush2.bf16.msra.mxu0 0
      %7009 = vmatprep.subr.bf16.mxu0 0
      %7010 = vmatpush2.bf16.msra.mxu0 0
      %7011 = vmatprep.subr.bf16.mxu0 0
      %7012 = vmatpush2.bf16.msra.mxu0 0
      %7013 = vmatprep.subr.bf16.mxu0 0
      %7014 = vmatpush2.bf16.msra.mxu0 0
      %7015 = vmatprep.subr.bf16.mxu0 0
      %7016 = vmatpush2.bf16.msra.mxu0 0
      %7017 = vmatprep.subr.bf16.mxu0 0
      %7018 = vmatpush2.bf16.msra.mxu0 0
      %7019 = vmatprep.subr.bf16.mxu0 0
      %7020 = vmatpush2.bf16.msra.mxu0 0
      %7021 = vmatprep.mubr.bf16.mxu0 0
      %7022 = vmatmul.mubr.bf16.gmra.mxu0 %v6795
      %v7023 = vpop.f32.mrf.mxu0
      %v7024 = vadd.f32 0.0, %v7023
      %v7025 = vpop.f32.mrf.mxu0
      %v7026 = vpop.f32.mrf.mxu0
      %v7027 = vadd.f32 0.0, %v7026
      %v7028 = vpop.f32.mrf.mxu0
      %7029 = vmatprep.mubr.bf16.mxu0 0
      %7030 = vmatmul.mubr.bf16.gmra.mxu0 %v6798
      %v7031 = vpop.f32.mrf.mxu0
      %v7032 = vadd.f32 0.0, %v7031
      %v7033 = vpop.f32.mrf.mxu0
      %v7034 = vpop.f32.mrf.mxu0
      %v7035 = vadd.f32 0.0, %v7034
      %v7036 = vpop.f32.mrf.mxu0
      %7037 = vmatprep.mubr.bf16.mxu0 0
      %7038 = vmatmul.mubr.bf16.gmra.mxu0 %v6801
      %v7039 = vpop.f32.mrf.mxu0
      %v7040 = vadd.f32 0.0, %v7039
      %v7041 = vpop.f32.mrf.mxu0
      %v7042 = vpop.f32.mrf.mxu0
      %v7043 = vadd.f32 0.0, %v7042
      %v7044 = vpop.f32.mrf.mxu0
      %7045 = vmatprep.mubr.bf16.mxu0 0
      %7046 = vmatmul.mubr.bf16.gmra.mxu0 %v6804
      %v7047 = vpop.f32.mrf.mxu0
      %v7048 = vadd.f32 0.0, %v7047
      %v7049 = vpop.f32.mrf.mxu0
      %v7050 = vpop.f32.mrf.mxu0
      %v7051 = vadd.f32 0.0, %v7050
      %v7052 = vpop.f32.mrf.mxu0
      %7053 = vmatprep.mubr.bf16.mxu0 0
      %7054 = vmatmul.mubr.bf16.gmra.mxu0 %v6807
      %v7055 = vpop.f32.mrf.mxu0
      %v7056 = vadd.f32 0.0, %v7055
      %v7057 = vpop.f32.mrf.mxu0
      %v7058 = vpop.f32.mrf.mxu0
      %v7059 = vadd.f32 0.0, %v7058
      %v7060 = vpop.f32.mrf.mxu0
      %7061 = vmatprep.mubr.bf16.mxu0 0
      %7062 = vmatmul.mubr.bf16.gmra.mxu0 %v6810
      %v7063 = vpop.f32.mrf.mxu0
      %v7064 = vadd.f32 0.0, %v7063
      %v7065 = vpop.f32.mrf.mxu0
      %v7066 = vpop.f32.mrf.mxu0
      %v7067 = vadd.f32 0.0, %v7066
      %v7068 = vpop.f32.mrf.mxu0
      %7069 = vmatprep.mubr.bf16.mxu0 0
      %7070 = vmatmul.mubr.bf16.gmra.mxu0 %v6813
      %v7071 = vpop.f32.mrf.mxu0
      %v7072 = vadd.f32 0.0, %v7071
      %v7073 = vpop.f32.mrf.mxu0
      %v7074 = vpop.f32.mrf.mxu0
      %v7075 = vadd.f32 0.0, %v7074
      %v7076 = vpop.f32.mrf.mxu0
      %7077 = vmatprep.mubr.bf16.mxu0 0
      %7078 = vmatmul.mubr.bf16.gmra.mxu0 %v6816
      %v7079 = vpop.f32.mrf.mxu0
      %v7080 = vadd.f32 0.0, %v7079
      %v7081 = vpop.f32.mrf.mxu0
      %v7082 = vpop.f32.mrf.mxu0
      %v7083 = vadd.f32 0.0, %v7082
      %v7084 = vpop.f32.mrf.mxu0
      %7085 = vmatprep.mubr.bf16.mxu0 0
      %7086 = vmatmul.mubr.bf16.gmra.mxu0 %v6819
      %v7087 = vpop.f32.mrf.mxu0
      %v7088 = vadd.f32 0.0, %v7087
      %v7089 = vpop.f32.mrf.mxu0
      %v7090 = vpop.f32.mrf.mxu0
      %v7091 = vadd.f32 0.0, %v7090
      %v7092 = vpop.f32.mrf.mxu0
      %7093 = vmatprep.mubr.bf16.mxu0 0
      %7094 = vmatmul.mubr.bf16.gmra.mxu0 %v6822
      %v7095 = vpop.f32.mrf.mxu0
      %v7096 = vadd.f32 0.0, %v7095
      %v7097 = vpop.f32.mrf.mxu0
      %v7098 = vpop.f32.mrf.mxu0
      %v7099 = vadd.f32 0.0, %v7098
      %v7100 = vpop.f32.mrf.mxu0
      %7101 = vmatprep.mubr.bf16.mxu0 0
      %7102 = vmatmul.mubr.bf16.gmra.mxu0 %v6825
      %v7103 = vpop.f32.mrf.mxu0
      %v7104 = vadd.f32 0.0, %v7103
      %v7105 = vpop.f32.mrf.mxu0
      %v7106 = vpop.f32.mrf.mxu0
      %v7107 = vadd.f32 0.0, %v7106
      %v7108 = vpop.f32.mrf.mxu0
      %7109 = vmatprep.mubr.bf16.mxu0 0
      %7110 = vmatmul.mubr.bf16.gmra.mxu0 %v6828
      %v7111 = vpop.f32.mrf.mxu0
      %v7112 = vadd.f32 0.0, %v7111
      %v7113 = vpop.f32.mrf.mxu0
      %v7114 = vpop.f32.mrf.mxu0
      %v7115 = vadd.f32 0.0, %v7114
      %v7116 = vpop.f32.mrf.mxu0
      %7117 = vmatprep.mubr.bf16.mxu0 0
      %7118 = vmatmul.mubr.bf16.gmra.mxu0 %v6831
      %v7119 = vpop.f32.mrf.mxu0
      %v7120 = vadd.f32 0.0, %v7119
      %v7121 = vpop.f32.mrf.mxu0
      %v7122 = vpop.f32.mrf.mxu0
      %v7123 = vadd.f32 0.0, %v7122
      %v7124 = vpop.f32.mrf.mxu0
      %7125 = vmatprep.mubr.bf16.mxu0 0
      %7126 = vmatmul.mubr.bf16.gmra.mxu0 %v6834
      %v7127 = vpop.f32.mrf.mxu0
      %v7128 = vadd.f32 0.0, %v7127
      %v7129 = vpop.f32.mrf.mxu0
      %v7130 = vpop.f32.mrf.mxu0
      %v7131 = vadd.f32 0.0, %v7130
      %v7132 = vpop.f32.mrf.mxu0
      %7133 = vmatprep.mubr.bf16.mxu0 0
      %7134 = vmatmul.mubr.bf16.gmra.mxu0 %v6837
      %v7135 = vpop.f32.mrf.mxu0
      %v7136 = vadd.f32 0.0, %v7135
      %v7137 = vpop.f32.mrf.mxu0
      %v7138 = vpop.f32.mrf.mxu0
      %v7139 = vadd.f32 0.0, %v7138
      %v7140 = vpop.f32.mrf.mxu0
      %7141 = vmatprep.mubr.bf16.mxu0 0
      %7142 = vmatmul.mubr.bf16.gmra.mxu0 %v6840
      %v7143 = vpop.f32.mrf.mxu0
      %v7144 = vadd.f32 0.0, %v7143
      %v7145 = vpop.f32.mrf.mxu0
      %v7146 = vpop.f32.mrf.mxu0
      %v7147 = vadd.f32 0.0, %v7146
      %v7148 = vpop.f32.mrf.mxu0
      %7149 = vmatprep.mubr.bf16.mxu0 0
      %7150 = vmatmul.mubr.bf16.gmra.mxu0 %v6843
      %v7151 = vpop.f32.mrf.mxu0
      %v7152 = vadd.f32 0.0, %v7151
      %v7153 = vpop.f32.mrf.mxu0
      %v7154 = vpop.f32.mrf.mxu0
      %v7155 = vadd.f32 0.0, %v7154
      %v7156 = vpop.f32.mrf.mxu0
      %7157 = vmatprep.mubr.bf16.mxu0 0
      %7158 = vmatmul.mubr.bf16.gmra.mxu0 %v6846
      %v7159 = vpop.f32.mrf.mxu0
      %v7160 = vadd.f32 0.0, %v7159
      %v7161 = vpop.f32.mrf.mxu0
      %v7162 = vpop.f32.mrf.mxu0
      %v7163 = vadd.f32 0.0, %v7162
      %v7164 = vpop.f32.mrf.mxu0
      %7165 = vmatprep.mubr.bf16.mxu0 0
      %7166 = vmatmul.mubr.bf16.gmra.mxu0 %v6849
      %v7167 = vpop.f32.mrf.mxu0
      %v7168 = vadd.f32 0.0, %v7167
      %v7169 = vpop.f32.mrf.mxu0
      %v7170 = vpop.f32.mrf.mxu0
      %v7171 = vadd.f32 0.0, %v7170
      %v7172 = vpop.f32.mrf.mxu0
      %7173 = vmatprep.mubr.bf16.mxu0 0
      %7174 = vmatmul.mubr.bf16.gmra.mxu0 %v6852
      %v7175 = vpop.f32.mrf.mxu0
      %v7176 = vadd.f32 0.0, %v7175
      %v7177 = vpop.f32.mrf.mxu0
      %v7178 = vpop.f32.mrf.mxu0
      %v7179 = vadd.f32 0.0, %v7178
      %v7180 = vpop.f32.mrf.mxu0
      %7181 = vmatprep.mubr.bf16.mxu0 0
      %7182 = vmatmul.mubr.bf16.gmra.mxu0 %v6855
      %v7183 = vpop.f32.mrf.mxu0
      %v7184 = vadd.f32 0.0, %v7183
      %v7185 = vpop.f32.mrf.mxu0
      %v7186 = vpop.f32.mrf.mxu0
      %v7187 = vadd.f32 0.0, %v7186
      %v7188 = vpop.f32.mrf.mxu0
      %7189 = vmatprep.mubr.bf16.mxu0 0
      %7190 = vmatmul.mubr.bf16.gmra.mxu0 %v6858
      %v7191 = vpop.f32.mrf.mxu0
      %v7192 = vadd.f32 0.0, %v7191
      %v7193 = vpop.f32.mrf.mxu0
      %v7194 = vpop.f32.mrf.mxu0
      %v7195 = vadd.f32 0.0, %v7194
      %v7196 = vpop.f32.mrf.mxu0
      %7197 = vmatprep.mubr.bf16.mxu0 0
      %7198 = vmatmul.mubr.bf16.gmra.mxu0 %v6861
      %v7199 = vpop.f32.mrf.mxu0
      %v7200 = vadd.f32 0.0, %v7199
      %v7201 = vpop.f32.mrf.mxu0
      %v7202 = vpop.f32.mrf.mxu0
      %v7203 = vadd.f32 0.0, %v7202
      %v7204 = vpop.f32.mrf.mxu0
      %7205 = vmatprep.mubr.bf16.mxu0 0
      %7206 = vmatmul.mubr.bf16.gmra.mxu0 %v6864
      %v7207 = vpop.f32.mrf.mxu0
      %v7208 = vadd.f32 0.0, %v7207
      %v7209 = vpop.f32.mrf.mxu0
      %v7210 = vpop.f32.mrf.mxu0
      %v7211 = vadd.f32 0.0, %v7210
      %v7212 = vpop.f32.mrf.mxu0
      %7213 = vmatprep.mubr.bf16.mxu0 0
      %7214 = vmatmul.mubr.bf16.gmra.mxu0 %v6867
      %v7215 = vpop.f32.mrf.mxu0
      %v7216 = vadd.f32 0.0, %v7215
      %v7217 = vpop.f32.mrf.mxu0
      %v7218 = vpop.f32.mrf.mxu0
      %v7219 = vadd.f32 0.0, %v7218
      %v7220 = vpop.f32.mrf.mxu0
      %7221 = vmatprep.mubr.bf16.mxu0 0
      %7222 = vmatmul.mubr.bf16.gmra.mxu0 %v6870
      %v7223 = vpop.f32.mrf.mxu0
      %v7224 = vadd.f32 0.0, %v7223
      %v7225 = vpop.f32.mrf.mxu0
      %v7226 = vpop.f32.mrf.mxu0
      %v7227 = vadd.f32 0.0, %v7226
      %v7228 = vpop.f32.mrf.mxu0
      %7229 = vmatprep.mubr.bf16.mxu0 0
      %7230 = vmatmul.mubr.bf16.gmra.mxu0 %v6873
      %v7231 = vpop.f32.mrf.mxu0
      %v7232 = vadd.f32 0.0, %v7231
      %v7233 = vpop.f32.mrf.mxu0
      %v7234 = vpop.f32.mrf.mxu0
      %v7235 = vadd.f32 0.0, %v7234
      %v7236 = vpop.f32.mrf.mxu0
      %7237 = vmatprep.mubr.bf16.mxu0 0
      %7238 = vmatmul.mubr.bf16.gmra.mxu0 %v6876
      %v7239 = vpop.f32.mrf.mxu0
      %v7240 = vadd.f32 0.0, %v7239
      %v7241 = vpop.f32.mrf.mxu0
      %v7242 = vpop.f32.mrf.mxu0
      %v7243 = vadd.f32 0.0, %v7242
      %v7244 = vpop.f32.mrf.mxu0
      %7245 = vmatprep.mubr.bf16.mxu0 0
      %7246 = vmatmul.mubr.bf16.gmra.mxu0 %v6879
      %v7247 = vpop.f32.mrf.mxu0
      %v7248 = vadd.f32 0.0, %v7247
      %v7249 = vpop.f32.mrf.mxu0
      %v7250 = vpop.f32.mrf.mxu0
      %v7251 = vadd.f32 0.0, %v7250
      %v7252 = vpop.f32.mrf.mxu0
      %7253 = vmatprep.mubr.bf16.mxu0 0
      %7254 = vmatmul.mubr.bf16.gmra.mxu0 %v6882
      %v7255 = vpop.f32.mrf.mxu0
      %v7256 = vadd.f32 0.0, %v7255
      %v7257 = vpop.f32.mrf.mxu0
      %v7258 = vpop.f32.mrf.mxu0
      %v7259 = vadd.f32 0.0, %v7258
      %v7260 = vpop.f32.mrf.mxu0
      %7261 = vmatprep.mubr.bf16.mxu0 0
      %7262 = vmatmul.mubr.bf16.gmra.mxu0 %v6885
      %v7263 = vpop.f32.mrf.mxu0
      %v7264 = vadd.f32 0.0, %v7263
      %v7265 = vpop.f32.mrf.mxu0
      %v7266 = vpop.f32.mrf.mxu0
      %v7267 = vadd.f32 0.0, %v7266
      %v7268 = vpop.f32.mrf.mxu0
      %7269 = vmatprep.mubr.bf16.mxu0 0
      %7270 = vmatmul.mubr.bf16.gmra.mxu0 %v6888
      %v7271 = vpop.f32.mrf.mxu0
      %v7272 = vadd.f32 0.0, %v7271
      %v7273 = vpop.f32.mrf.mxu0
      %v7274 = vpop.f32.mrf.mxu0
      %v7275 = vadd.f32 0.0, %v7274
      %v7276 = vpop.f32.mrf.mxu0
      %7277 = vmatprep.mubr.bf16.mxu0 0
      %7278 = vmatmul.mubr.bf16.gmra.mxu0 %v6891
      %v7279 = vpop.f32.mrf.mxu0
      %v7280 = vadd.f32 0.0, %v7279
      %v7281 = vpop.f32.mrf.mxu0
      %v7282 = vpop.f32.mrf.mxu0
      %v7283 = vadd.f32 0.0, %v7282
      %v7284 = vpop.f32.mrf.mxu0
      %7285 = vmatprep.mubr.bf16.mxu0 0
      %7286 = vmatmul.mubr.bf16.gmra.mxu0 %v6894
      %v7287 = vpop.f32.mrf.mxu0
      %v7288 = vadd.f32 0.0, %v7287
      %v7289 = vpop.f32.mrf.mxu0
      %v7290 = vpop.f32.mrf.mxu0
      %v7291 = vadd.f32 0.0, %v7290
      %v7292 = vpop.f32.mrf.mxu0
      %7293 = vmatprep.mubr.bf16.mxu0 0
      %7294 = vmatmul.mubr.bf16.gmra.mxu0 %v6897
      %v7295 = vpop.f32.mrf.mxu0
      %v7296 = vadd.f32 0.0, %v7295
      %v7297 = vpop.f32.mrf.mxu0
      %v7298 = vpop.f32.mrf.mxu0
      %v7299 = vadd.f32 0.0, %v7298
      %v7300 = vpop.f32.mrf.mxu0
      %7301 = vmatprep.mubr.bf16.mxu0 0
      %7302 = vmatmul.mubr.bf16.gmra.mxu0 %v6900
      %v7303 = vpop.f32.mrf.mxu0
      %v7304 = vadd.f32 0.0, %v7303
      %v7305 = vpop.f32.mrf.mxu0
      %v7306 = vpop.f32.mrf.mxu0
      %v7307 = vadd.f32 0.0, %v7306
      %v7308 = vpop.f32.mrf.mxu0
      %7309 = vmatprep.mubr.bf16.mxu0 0
      %7310 = vmatmul.mubr.bf16.gmra.mxu0 %v6903
      %v7311 = vpop.f32.mrf.mxu0
      %v7312 = vadd.f32 0.0, %v7311
      %v7313 = vpop.f32.mrf.mxu0
      %v7314 = vpop.f32.mrf.mxu0
      %v7315 = vadd.f32 0.0, %v7314
      %v7316 = vpop.f32.mrf.mxu0
      %7317 = vmatprep.mubr.bf16.mxu0 0
      %7318 = vmatmul.mubr.bf16.gmra.mxu0 %v6906
      %v7319 = vpop.f32.mrf.mxu0
      %v7320 = vadd.f32 0.0, %v7319
      %v7321 = vpop.f32.mrf.mxu0
      %v7322 = vpop.f32.mrf.mxu0
      %v7323 = vadd.f32 0.0, %v7322
      %v7324 = vpop.f32.mrf.mxu0
      %7325 = vmatprep.mubr.bf16.mxu0 0
      %7326 = vmatmul.mubr.bf16.gmra.mxu0 %v6909
      %v7327 = vpop.f32.mrf.mxu0
      %v7328 = vadd.f32 0.0, %v7327
      %v7329 = vpop.f32.mrf.mxu0
      %v7330 = vpop.f32.mrf.mxu0
      %v7331 = vadd.f32 0.0, %v7330
      %v7332 = vpop.f32.mrf.mxu0
      %7333 = vmatprep.mubr.bf16.mxu0 0
      %7334 = vmatmul.mubr.bf16.gmra.mxu0 %v6912
      %v7335 = vpop.f32.mrf.mxu0
      %v7336 = vadd.f32 0.0, %v7335
      %v7337 = vpop.f32.mrf.mxu0
      %v7338 = vpop.f32.mrf.mxu0
      %v7339 = vadd.f32 0.0, %v7338
      %v7340 = vpop.f32.mrf.mxu0
      %7341 = vmatprep.mubr.bf16.mxu0 0
      %7342 = vmatmul.mubr.bf16.gmra.mxu0 %v6915
      %v7343 = vpop.f32.mrf.mxu0
      %v7344 = vadd.f32 0.0, %v7343
      %v7345 = vpop.f32.mrf.mxu0
      %v7346 = vpop.f32.mrf.mxu0
      %v7347 = vadd.f32 0.0, %v7346
      %v7348 = vpop.f32.mrf.mxu0
      %7349 = vmatprep.mubr.bf16.mxu0 0
      %7350 = vmatmul.mubr.bf16.gmra.mxu0 %v6918
      %v7351 = vpop.f32.mrf.mxu0
      %v7352 = vadd.f32 0.0, %v7351
      %v7353 = vpop.f32.mrf.mxu0
      %v7354 = vpop.f32.mrf.mxu0
      %v7355 = vadd.f32 0.0, %v7354
      %v7356 = vpop.f32.mrf.mxu0
      %7357 = vmatprep.mubr.bf16.mxu0 0
      %7358 = vmatmul.mubr.bf16.gmra.mxu0 %v6921
      %v7359 = vpop.f32.mrf.mxu0
      %v7360 = vadd.f32 0.0, %v7359
      %v7361 = vpop.f32.mrf.mxu0
      %v7362 = vpop.f32.mrf.mxu0
      %v7363 = vadd.f32 0.0, %v7362
      %v7364 = vpop.f32.mrf.mxu0
      %7365 = vmatprep.mubr.bf16.mxu0 0
      %7366 = vmatmul.mubr.bf16.gmra.mxu0 %v6924
      %v7367 = vpop.f32.mrf.mxu0
      %v7368 = vadd.f32 0.0, %v7367
      %v7369 = vpop.f32.mrf.mxu0
      %v7370 = vpop.f32.mrf.mxu0
      %v7371 = vadd.f32 0.0, %v7370
      %v7372 = vpop.f32.mrf.mxu0
      %7373 = vmatprep.mubr.bf16.mxu0 0
      %7374 = vmatmul.mubr.bf16.gmra.mxu0 %v6927
      %v7375 = vpop.f32.mrf.mxu0
      %v7376 = vadd.f32 0.0, %v7375
      %v7377 = vpop.f32.mrf.mxu0
      %v7378 = vpop.f32.mrf.mxu0
      %v7379 = vadd.f32 0.0, %v7378
      %v7380 = vpop.f32.mrf.mxu0
      %7381 = vmatprep.mubr.bf16.mxu0 0
      %7382 = vmatmul.mubr.bf16.gmra.mxu0 %v6930
      %v7383 = vpop.f32.mrf.mxu0
      %v7384 = vadd.f32 0.0, %v7383
      %v7385 = vpop.f32.mrf.mxu0
      %v7386 = vpop.f32.mrf.mxu0
      %v7387 = vadd.f32 0.0, %v7386
      %v7388 = vpop.f32.mrf.mxu0
      %7389 = vmatprep.mubr.bf16.mxu0 0
      %7390 = vmatmul.mubr.bf16.gmra.mxu0 %v6933
      %v7391 = vpop.f32.mrf.mxu0
      %v7392 = vadd.f32 0.0, %v7391
      %v7393 = vpop.f32.mrf.mxu0
      %v7394 = vpop.f32.mrf.mxu0
      %v7395 = vadd.f32 0.0, %v7394
      %v7396 = vpop.f32.mrf.mxu0
      %7397 = vmatprep.mubr.bf16.mxu0 0
      %7398 = vmatmul.mubr.bf16.gmra.mxu0 %v6936
      %v7399 = vpop.f32.mrf.mxu0
      %v7400 = vadd.f32 0.0, %v7399
      %v7401 = vpop.f32.mrf.mxu0
      %v7402 = vpop.f32.mrf.mxu0
      %v7403 = vadd.f32 0.0, %v7402
      %v7404 = vpop.f32.mrf.mxu0
      %7405 = vmatprep.mubr.bf16.mxu0 0
      %7406 = vmatmul.mubr.bf16.gmra.mxu0 %v6939
      %v7407 = vpop.f32.mrf.mxu0
      %v7408 = vadd.f32 0.0, %v7407
      %v7409 = vpop.f32.mrf.mxu0
      %v7410 = vpop.f32.mrf.mxu0
      %v7411 = vadd.f32 0.0, %v7410
      %v7412 = vpop.f32.mrf.mxu0
      %7413 = vmatprep.mubr.bf16.mxu0 0
      %7414 = vmatmul.mubr.bf16.gmra.mxu0 %v6942
      %v7415 = vpop.f32.mrf.mxu0
      %v7416 = vadd.f32 0.0, %v7415
      %v7417 = vpop.f32.mrf.mxu0
      %v7418 = vpop.f32.mrf.mxu0
      %v7419 = vadd.f32 0.0, %v7418
      %v7420 = vpop.f32.mrf.mxu0
      %7421 = vmatprep.mubr.bf16.mxu0 0
      %7422 = vmatmul.mubr.bf16.gmra.mxu0 %v6945
      %v7423 = vpop.f32.mrf.mxu0
      %v7424 = vadd.f32 0.0, %v7423
      %v7425 = vpop.f32.mrf.mxu0
      %v7426 = vpop.f32.mrf.mxu0
      %v7427 = vadd.f32 0.0, %v7426
      %v7428 = vpop.f32.mrf.mxu0
      %7429 = vmatprep.mubr.bf16.mxu0 0
      %7430 = vmatmul.mubr.bf16.gmra.mxu0 %v6948
      %v7431 = vpop.f32.mrf.mxu0
      %v7432 = vadd.f32 0.0, %v7431
      %v7433 = vpop.f32.mrf.mxu0
      %v7434 = vpop.f32.mrf.mxu0
      %v7435 = vadd.f32 0.0, %v7434
      %v7436 = vpop.f32.mrf.mxu0
      %7437 = vmatprep.mubr.bf16.mxu0 0
      %7438 = vmatmul.mubr.bf16.gmra.mxu0 %v6951
      %v7439 = vpop.f32.mrf.mxu0
      %v7440 = vadd.f32 0.0, %v7439
      %v7441 = vpop.f32.mrf.mxu0
      %v7442 = vpop.f32.mrf.mxu0
      %v7443 = vadd.f32 0.0, %v7442
      %v7444 = vpop.f32.mrf.mxu0
      %7445 = vmatprep.mubr.bf16.mxu0 0
      %7446 = vmatmul.mubr.bf16.gmra.mxu0 %v6954
      %v7447 = vpop.f32.mrf.mxu0
      %v7448 = vadd.f32 0.0, %v7447
      %v7449 = vpop.f32.mrf.mxu0
      %v7450 = vpop.f32.mrf.mxu0
      %v7451 = vadd.f32 0.0, %v7450
      %v7452 = vpop.f32.mrf.mxu0
      %7453 = vmatprep.mubr.bf16.mxu0 0
      %7454 = vmatmul.mubr.bf16.gmra.mxu0 %v6957
      %v7455 = vpop.f32.mrf.mxu0
      %v7456 = vadd.f32 0.0, %v7455
      %v7457 = vpop.f32.mrf.mxu0
      %v7458 = vpop.f32.mrf.mxu0
      %v7459 = vadd.f32 0.0, %v7458
      %v7460 = vpop.f32.mrf.mxu0
      %7461 = vmatprep.mubr.bf16.mxu0 0
      %7462 = vmatmul.mubr.bf16.gmra.mxu0 %v6960
      %v7463 = vpop.f32.mrf.mxu0
      %v7464 = vadd.f32 0.0, %v7463
      %v7465 = vpop.f32.mrf.mxu0
      %v7466 = vpop.f32.mrf.mxu0
      %v7467 = vadd.f32 0.0, %v7466
      %v7468 = vpop.f32.mrf.mxu0
      %7469 = vmatprep.mubr.bf16.mxu0 0
      %7470 = vmatmul.mubr.bf16.gmra.mxu0 %v6963
      %v7471 = vpop.f32.mrf.mxu0
      %v7472 = vadd.f32 0.0, %v7471
      %v7473 = vpop.f32.mrf.mxu0
      %v7474 = vpop.f32.mrf.mxu0
      %v7475 = vadd.f32 0.0, %v7474
      %v7476 = vpop.f32.mrf.mxu0
      %7477 = vmatprep.mubr.bf16.mxu0 0
      %7478 = vmatmul.mubr.bf16.gmra.mxu0 %v6966
      %v7479 = vpop.f32.mrf.mxu0
      %v7480 = vadd.f32 0.0, %v7479
      %v7481 = vpop.f32.mrf.mxu0
      %v7482 = vpop.f32.mrf.mxu0
      %v7483 = vadd.f32 0.0, %v7482
      %v7484 = vpop.f32.mrf.mxu0
      %7485 = vmatprep.mubr.bf16.mxu0 0
      %7486 = vmatmul.mubr.bf16.gmra.mxu0 %v6969
      %v7487 = vpop.f32.mrf.mxu0
      %v7488 = vadd.f32 0.0, %v7487
      %v7489 = vpop.f32.mrf.mxu0
      %v7490 = vpop.f32.mrf.mxu0
      %v7491 = vadd.f32 0.0, %v7490
      %v7492 = vpop.f32.mrf.mxu0
      %7493 = vmatprep.mubr.bf16.mxu0 0
      %7494 = vmatmul.mubr.bf16.gmra.mxu0 %v6972
      %v7495 = vpop.f32.mrf.mxu0
      %v7496 = vadd.f32 0.0, %v7495
      %v7497 = vpop.f32.mrf.mxu0
      %v7498 = vpop.f32.mrf.mxu0
      %v7499 = vadd.f32 0.0, %v7498
      %v7500 = vpop.f32.mrf.mxu0
      %7501 = vmatprep.mubr.bf16.mxu0 0
      %7502 = vmatmul.mubr.bf16.gmra.mxu0 %v6975
      %v7503 = vpop.f32.mrf.mxu0
      %v7504 = vadd.f32 0.0, %v7503
      %v7505 = vpop.f32.mrf.mxu0
      %v7506 = vpop.f32.mrf.mxu0
      %v7507 = vadd.f32 0.0, %v7506
      %v7508 = vpop.f32.mrf.mxu0
      %7509 = vmatprep.mubr.bf16.mxu0 0
      %7510 = vmatmul.mubr.bf16.gmra.mxu0 %v6978
      %v7511 = vpop.f32.mrf.mxu0
      %v7512 = vadd.f32 0.0, %v7511
      %v7513 = vpop.f32.mrf.mxu0
      %v7514 = vpop.f32.mrf.mxu0
      %v7515 = vadd.f32 0.0, %v7514
      %v7516 = vpop.f32.mrf.mxu0
      %7517 = vmatprep.mubr.bf16.mxu0 0
      %7518 = vmatmul.mubr.bf16.gmra.mxu0 %v6981
      %v7519 = vpop.f32.mrf.mxu0
      %v7520 = vadd.f32 0.0, %v7519
      %v7521 = vpop.f32.mrf.mxu0
      %v7522 = vpop.f32.mrf.mxu0
      %v7523 = vadd.f32 0.0, %v7522
      %v7524 = vpop.f32.mrf.mxu0
      %7525 = vmatprep.mubr.bf16.mxu0 0
      %7526 = vmatmul.mubr.bf16.gmra.mxu0 %v6984
      %v7527 = vpop.f32.mrf.mxu0
      %v7528 = vadd.f32 0.0, %v7527
      %v7529 = vpop.f32.mrf.mxu0
      %v7530 = vpop.f32.mrf.mxu0
      %v7531 = vadd.f32 0.0, %v7530
      %v7532 = vpop.f32.mrf.mxu0
      %7533 = vdwg.mxu0
      %v7534 = vadd.f32 %v4904, %v7024
      %v7535 = vadd.f32 %v4905, %v7027
      %v7536 = vadd.f32 %v4906, %v7032
      %v7537 = vadd.f32 %v4907, %v7035
      %v7538 = vadd.f32 %v4908, %v7040
      %v7539 = vadd.f32 %v4909, %v7043
      %v7540 = vadd.f32 %v4910, %v7048
      %v7541 = vadd.f32 %v4911, %v7051
      %v7542 = vadd.f32 %v4912, %v7056
      %v7543 = vadd.f32 %v4913, %v7059
      %v7544 = vadd.f32 %v4914, %v7064
      %v7545 = vadd.f32 %v4915, %v7067
      %v7546 = vadd.f32 %v4916, %v7072
      %v7547 = vadd.f32 %v4917, %v7075
      %v7548 = vadd.f32 %v4918, %v7080
      %v7549 = vadd.f32 %v4919, %v7083
      %v7550 = vadd.f32 %v4920, %v7088
      %v7551 = vadd.f32 %v4921, %v7091
      %v7552 = vadd.f32 %v4922, %v7096
      %v7553 = vadd.f32 %v4923, %v7099
      %v7554 = vadd.f32 %v4924, %v7104
      %v7555 = vadd.f32 %v4925, %v7107
      %v7556 = vadd.f32 %v4926, %v7112
      %v7557 = vadd.f32 %v4927, %v7115
      %v7558 = vadd.f32 %v4928, %v7120
      %v7559 = vadd.f32 %v4929, %v7123
      %v7560 = vadd.f32 %v4930, %v7128
      %v7561 = vadd.f32 %v4931, %v7131
      %v7562 = vadd.f32 %v4932, %v7136
      %v7563 = vadd.f32 %v4933, %v7139
      %v7564 = vadd.f32 %v4934, %v7144
      %v7565 = vadd.f32 %v4935, %v7147
      %v7566 = vadd.f32 %v4936, %v7152
      %v7567 = vadd.f32 %v4937, %v7155
      %v7568 = vadd.f32 %v4938, %v7160
      %v7569 = vadd.f32 %v4939, %v7163
      %v7570 = vadd.f32 %v4940, %v7168
      %v7571 = vadd.f32 %v4941, %v7171
      %v7572 = vadd.f32 %v4942, %v7176
      %v7573 = vadd.f32 %v4943, %v7179
      %v7574 = vadd.f32 %v4944, %v7184
      %v7575 = vadd.f32 %v4945, %v7187
      %v7576 = vadd.f32 %v4946, %v7192
      %v7577 = vadd.f32 %v4947, %v7195
      %v7578 = vadd.f32 %v4948, %v7200
      %v7579 = vadd.f32 %v4949, %v7203
      %v7580 = vadd.f32 %v4950, %v7208
      %v7581 = vadd.f32 %v4951, %v7211
      %v7582 = vadd.f32 %v4952, %v7216
      %v7583 = vadd.f32 %v4953, %v7219
      %v7584 = vadd.f32 %v4954, %v7224
      %v7585 = vadd.f32 %v4955, %v7227
      %v7586 = vadd.f32 %v4956, %v7232
      %v7587 = vadd.f32 %v4957, %v7235
      %v7588 = vadd.f32 %v4958, %v7240
      %v7589 = vadd.f32 %v4959, %v7243
      %v7590 = vadd.f32 %v4960, %v7248
      %v7591 = vadd.f32 %v4961, %v7251
      %v7592 = vadd.f32 %v4962, %v7256
      %v7593 = vadd.f32 %v4963, %v7259
      %v7594 = vadd.f32 %v4964, %v7264
      %v7595 = vadd.f32 %v4965, %v7267
      %v7596 = vadd.f32 %v4966, %v7272
      %v7597 = vadd.f32 %v4967, %v7275
      %v7598 = vadd.f32 %v4968, %v7280
      %v7599 = vadd.f32 %v4969, %v7283
      %v7600 = vadd.f32 %v4970, %v7288
      %v7601 = vadd.f32 %v4971, %v7291
      %v7602 = vadd.f32 %v4972, %v7296
      %v7603 = vadd.f32 %v4973, %v7299
      %v7604 = vadd.f32 %v4974, %v7304
      %v7605 = vadd.f32 %v4975, %v7307
      %v7606 = vadd.f32 %v4976, %v7312
      %v7607 = vadd.f32 %v4977, %v7315
      %v7608 = vadd.f32 %v4978, %v7320
      %v7609 = vadd.f32 %v4979, %v7323
      %v7610 = vadd.f32 %v4980, %v7328
      %v7611 = vadd.f32 %v4981, %v7331
      %v7612 = vadd.f32 %v4982, %v7336
      %v7613 = vadd.f32 %v4983, %v7339
      %v7614 = vadd.f32 %v4984, %v7344
      %v7615 = vadd.f32 %v4985, %v7347
      %v7616 = vadd.f32 %v4986, %v7352
      %v7617 = vadd.f32 %v4987, %v7355
      %v7618 = vadd.f32 %v4988, %v7360
      %v7619 = vadd.f32 %v4989, %v7363
      %v7620 = vadd.f32 %v4990, %v7368
      %v7621 = vadd.f32 %v4991, %v7371
      %v7622 = vadd.f32 %v4992, %v7376
      %v7623 = vadd.f32 %v4993, %v7379
      %v7624 = vadd.f32 %v4994, %v7384
      %v7625 = vadd.f32 %v4995, %v7387
      %v7626 = vadd.f32 %v4996, %v7392
      %v7627 = vadd.f32 %v4997, %v7395
      %v7628 = vadd.f32 %v4998, %v7400
      %v7629 = vadd.f32 %v4999, %v7403
      %v7630 = vadd.f32 %v5000, %v7408
      %v7631 = vadd.f32 %v5001, %v7411
      %v7632 = vadd.f32 %v5002, %v7416
      %v7633 = vadd.f32 %v5003, %v7419
      %v7634 = vadd.f32 %v5004, %v7424
      %v7635 = vadd.f32 %v5005, %v7427
      %v7636 = vadd.f32 %v5006, %v7432
      %v7637 = vadd.f32 %v5007, %v7435
      %v7638 = vadd.f32 %v5008, %v7440
      %v7639 = vadd.f32 %v5009, %v7443
      %v7640 = vadd.f32 %v5010, %v7448
      %v7641 = vadd.f32 %v5011, %v7451
      %v7642 = vadd.f32 %v5012, %v7456
      %v7643 = vadd.f32 %v5013, %v7459
      %v7644 = vadd.f32 %v5014, %v7464
      %v7645 = vadd.f32 %v5015, %v7467
      %v7646 = vadd.f32 %v5016, %v7472
      %v7647 = vadd.f32 %v5017, %v7475
      %v7648 = vadd.f32 %v5018, %v7480
      %v7649 = vadd.f32 %v5019, %v7483
      %v7650 = vadd.f32 %v5020, %v7488
      %v7651 = vadd.f32 %v5021, %v7491
      %v7652 = vadd.f32 %v5022, %v7496
      %v7653 = vadd.f32 %v5023, %v7499
      %v7654 = vadd.f32 %v5024, %v7504
      %v7655 = vadd.f32 %v5025, %v7507
      %v7656 = vadd.f32 %v5026, %v7512
      %v7657 = vadd.f32 %v5027, %v7515
      %v7658 = vadd.f32 %v5028, %v7520
      %v7659 = vadd.f32 %v5029, %v7523
      %v7660 = vadd.f32 %v5030, %v7528
      %v7661 = vadd.f32 %v5031, %v7531
      %vm7662 = vcmp.ge.f32.partialorder %v7534, 0.0
      %vm7663 = vcmp.ge.f32.partialorder %v7535, 0.0
      %vm7664 = vcmp.ge.f32.partialorder %v7536, 0.0
      %vm7665 = vcmp.ge.f32.partialorder %v7537, 0.0
      %vm7666 = vcmp.ge.f32.partialorder %v7538, 0.0
      %vm7667 = vcmp.ge.f32.partialorder %v7539, 0.0
      %vm7668 = vcmp.ge.f32.partialorder %v7540, 0.0
      %vm7669 = vcmp.ge.f32.partialorder %v7541, 0.0
      %vm7670 = vcmp.ge.f32.partialorder %v7542, 0.0
      %vm7671 = vcmp.ge.f32.partialorder %v7543, 0.0
      %vm7672 = vcmp.ge.f32.partialorder %v7544, 0.0
      %vm7673 = vcmp.ge.f32.partialorder %v7545, 0.0
      %vm7674 = vcmp.ge.f32.partialorder %v7546, 0.0
      %vm7675 = vcmp.ge.f32.partialorder %v7547, 0.0
      %vm7676 = vcmp.ge.f32.partialorder %v7548, 0.0
      %vm7677 = vcmp.ge.f32.partialorder %v7549, 0.0
      %vm7678 = vcmp.ge.f32.partialorder %v7550, 0.0
      %vm7679 = vcmp.ge.f32.partialorder %v7551, 0.0
      %vm7680 = vcmp.ge.f32.partialorder %v7552, 0.0
      %vm7681 = vcmp.ge.f32.partialorder %v7553, 0.0
      %vm7682 = vcmp.ge.f32.partialorder %v7554, 0.0
      %vm7683 = vcmp.ge.f32.partialorder %v7555, 0.0
      %vm7684 = vcmp.ge.f32.partialorder %v7556, 0.0
      %vm7685 = vcmp.ge.f32.partialorder %v7557, 0.0
      %vm7686 = vcmp.ge.f32.partialorder %v7558, 0.0
      %vm7687 = vcmp.ge.f32.partialorder %v7559, 0.0
      %vm7688 = vcmp.ge.f32.partialorder %v7560, 0.0
      %vm7689 = vcmp.ge.f32.partialorder %v7561, 0.0
      %vm7690 = vcmp.ge.f32.partialorder %v7562, 0.0
      %vm7691 = vcmp.ge.f32.partialorder %v7563, 0.0
      %vm7692 = vcmp.ge.f32.partialorder %v7564, 0.0
      %vm7693 = vcmp.ge.f32.partialorder %v7565, 0.0
      %vm7694 = vcmp.ge.f32.partialorder %v7566, 0.0
      %vm7695 = vcmp.ge.f32.partialorder %v7567, 0.0
      %vm7696 = vcmp.ge.f32.partialorder %v7568, 0.0
      %vm7697 = vcmp.ge.f32.partialorder %v7569, 0.0
      %vm7698 = vcmp.ge.f32.partialorder %v7570, 0.0
      %vm7699 = vcmp.ge.f32.partialorder %v7571, 0.0
      %vm7700 = vcmp.ge.f32.partialorder %v7572, 0.0
      %vm7701 = vcmp.ge.f32.partialorder %v7573, 0.0
      %vm7702 = vcmp.ge.f32.partialorder %v7574, 0.0
      %vm7703 = vcmp.ge.f32.partialorder %v7575, 0.0
      %vm7704 = vcmp.ge.f32.partialorder %v7576, 0.0
      %vm7705 = vcmp.ge.f32.partialorder %v7577, 0.0
      %vm7706 = vcmp.ge.f32.partialorder %v7578, 0.0
      %vm7707 = vcmp.ge.f32.partialorder %v7579, 0.0
      %vm7708 = vcmp.ge.f32.partialorder %v7580, 0.0
      %vm7709 = vcmp.ge.f32.partialorder %v7581, 0.0
      %vm7710 = vcmp.ge.f32.partialorder %v7582, 0.0
      %vm7711 = vcmp.ge.f32.partialorder %v7583, 0.0
      %vm7712 = vcmp.ge.f32.partialorder %v7584, 0.0
      %vm7713 = vcmp.ge.f32.partialorder %v7585, 0.0
      %vm7714 = vcmp.ge.f32.partialorder %v7586, 0.0
      %vm7715 = vcmp.ge.f32.partialorder %v7587, 0.0
      %vm7716 = vcmp.ge.f32.partialorder %v7588, 0.0
      %vm7717 = vcmp.ge.f32.partialorder %v7589, 0.0
      %vm7718 = vcmp.ge.f32.partialorder %v7590, 0.0
      %vm7719 = vcmp.ge.f32.partialorder %v7591, 0.0
      %vm7720 = vcmp.ge.f32.partialorder %v7592, 0.0
      %vm7721 = vcmp.ge.f32.partialorder %v7593, 0.0
      %vm7722 = vcmp.ge.f32.partialorder %v7594, 0.0
      %vm7723 = vcmp.ge.f32.partialorder %v7595, 0.0
      %vm7724 = vcmp.ge.f32.partialorder %v7596, 0.0
      %vm7725 = vcmp.ge.f32.partialorder %v7597, 0.0
      %vm7726 = vcmp.ge.f32.partialorder %v7598, 0.0
      %vm7727 = vcmp.ge.f32.partialorder %v7599, 0.0
      %vm7728 = vcmp.ge.f32.partialorder %v7600, 0.0
      %vm7729 = vcmp.ge.f32.partialorder %v7601, 0.0
      %vm7730 = vcmp.ge.f32.partialorder %v7602, 0.0
      %vm7731 = vcmp.ge.f32.partialorder %v7603, 0.0
      %vm7732 = vcmp.ge.f32.partialorder %v7604, 0.0
      %vm7733 = vcmp.ge.f32.partialorder %v7605, 0.0
      %vm7734 = vcmp.ge.f32.partialorder %v7606, 0.0
      %vm7735 = vcmp.ge.f32.partialorder %v7607, 0.0
      %vm7736 = vcmp.ge.f32.partialorder %v7608, 0.0
      %vm7737 = vcmp.ge.f32.partialorder %v7609, 0.0
      %vm7738 = vcmp.ge.f32.partialorder %v7610, 0.0
      %vm7739 = vcmp.ge.f32.partialorder %v7611, 0.0
      %vm7740 = vcmp.ge.f32.partialorder %v7612, 0.0
      %vm7741 = vcmp.ge.f32.partialorder %v7613, 0.0
      %vm7742 = vcmp.ge.f32.partialorder %v7614, 0.0
      %vm7743 = vcmp.ge.f32.partialorder %v7615, 0.0
      %vm7744 = vcmp.ge.f32.partialorder %v7616, 0.0
      %vm7745 = vcmp.ge.f32.partialorder %v7617, 0.0
      %vm7746 = vcmp.ge.f32.partialorder %v7618, 0.0
      %vm7747 = vcmp.ge.f32.partialorder %v7619, 0.0
      %vm7748 = vcmp.ge.f32.partialorder %v7620, 0.0
      %vm7749 = vcmp.ge.f32.partialorder %v7621, 0.0
      %vm7750 = vcmp.ge.f32.partialorder %v7622, 0.0
      %vm7751 = vcmp.ge.f32.partialorder %v7623, 0.0
      %vm7752 = vcmp.ge.f32.partialorder %v7624, 0.0
      %vm7753 = vcmp.ge.f32.partialorder %v7625, 0.0
      %vm7754 = vcmp.ge.f32.partialorder %v7626, 0.0
      %vm7755 = vcmp.ge.f32.partialorder %v7627, 0.0
      %vm7756 = vcmp.ge.f32.partialorder %v7628, 0.0
      %vm7757 = vcmp.ge.f32.partialorder %v7629, 0.0
      %vm7758 = vcmp.ge.f32.partialorder %v7630, 0.0
      %vm7759 = vcmp.ge.f32.partialorder %v7631, 0.0
      %vm7760 = vcmp.ge.f32.partialorder %v7632, 0.0
      %vm7761 = vcmp.ge.f32.partialorder %v7633, 0.0
      %vm7762 = vcmp.ge.f32.partialorder %v7634, 0.0
      %vm7763 = vcmp.ge.f32.partialorder %v7635, 0.0
      %vm7764 = vcmp.ge.f32.partialorder %v7636, 0.0
      %vm7765 = vcmp.ge.f32.partialorder %v7637, 0.0
      %vm7766 = vcmp.ge.f32.partialorder %v7638, 0.0
      %vm7767 = vcmp.ge.f32.partialorder %v7639, 0.0
      %vm7768 = vcmp.ge.f32.partialorder %v7640, 0.0
      %vm7769 = vcmp.ge.f32.partialorder %v7641, 0.0
      %vm7770 = vcmp.ge.f32.partialorder %v7642, 0.0
      %vm7771 = vcmp.ge.f32.partialorder %v7643, 0.0
      %vm7772 = vcmp.ge.f32.partialorder %v7644, 0.0
      %vm7773 = vcmp.ge.f32.partialorder %v7645, 0.0
      %vm7774 = vcmp.ge.f32.partialorder %v7646, 0.0
      %vm7775 = vcmp.ge.f32.partialorder %v7647, 0.0
      %vm7776 = vcmp.ge.f32.partialorder %v7648, 0.0
      %vm7777 = vcmp.ge.f32.partialorder %v7649, 0.0
      %vm7778 = vcmp.ge.f32.partialorder %v7650, 0.0
      %vm7779 = vcmp.ge.f32.partialorder %v7651, 0.0
      %vm7780 = vcmp.ge.f32.partialorder %v7652, 0.0
      %vm7781 = vcmp.ge.f32.partialorder %v7653, 0.0
      %vm7782 = vcmp.ge.f32.partialorder %v7654, 0.0
      %vm7783 = vcmp.ge.f32.partialorder %v7655, 0.0
      %vm7784 = vcmp.ge.f32.partialorder %v7656, 0.0
      %vm7785 = vcmp.ge.f32.partialorder %v7657, 0.0
      %vm7786 = vcmp.ge.f32.partialorder %v7658, 0.0
      %vm7787 = vcmp.ge.f32.partialorder %v7659, 0.0
      %vm7788 = vcmp.ge.f32.partialorder %v7660, 0.0
      %vm7789 = vcmp.ge.f32.partialorder %v7661, 0.0
      %v7790 = vmul.f32 %v7534, 0.2
      %v7791 = vmul.f32 %v7535, 0.2
      %v7792 = vmul.f32 %v7536, 0.2
      %v7793 = vmul.f32 %v7537, 0.2
      %v7794 = vmul.f32 %v7538, 0.2
      %v7795 = vmul.f32 %v7539, 0.2
      %v7796 = vmul.f32 %v7540, 0.2
      %v7797 = vmul.f32 %v7541, 0.2
      %v7798 = vmul.f32 %v7542, 0.2
      %v7799 = vmul.f32 %v7543, 0.2
      %v7800 = vmul.f32 %v7544, 0.2
      %v7801 = vmul.f32 %v7545, 0.2
      %v7802 = vmul.f32 %v7546, 0.2
      %v7803 = vmul.f32 %v7547, 0.2
      %v7804 = vmul.f32 %v7548, 0.2
      %v7805 = vmul.f32 %v7549, 0.2
      %v7806 = vmul.f32 %v7550, 0.2
      %v7807 = vmul.f32 %v7551, 0.2
      %v7808 = vmul.f32 %v7552, 0.2
      %v7809 = vmul.f32 %v7553, 0.2
      %v7810 = vmul.f32 %v7554, 0.2
      %v7811 = vmul.f32 %v7555, 0.2
      %v7812 = vmul.f32 %v7556, 0.2
      %v7813 = vmul.f32 %v7557, 0.2
      %v7814 = vmul.f32 %v7558, 0.2
      %v7815 = vmul.f32 %v7559, 0.2
      %v7816 = vmul.f32 %v7560, 0.2
      %v7817 = vmul.f32 %v7561, 0.2
      %v7818 = vmul.f32 %v7562, 0.2
      %v7819 = vmul.f32 %v7563, 0.2
      %v7820 = vmul.f32 %v7564, 0.2
      %v7821 = vmul.f32 %v7565, 0.2
      %v7822 = vmul.f32 %v7566, 0.2
      %v7823 = vmul.f32 %v7567, 0.2
      %v7824 = vmul.f32 %v7568, 0.2
      %v7825 = vmul.f32 %v7569, 0.2
      %v7826 = vmul.f32 %v7570, 0.2
      %v7827 = vmul.f32 %v7571, 0.2
      %v7828 = vmul.f32 %v7572, 0.2
      %v7829 = vmul.f32 %v7573, 0.2
      %v7830 = vmul.f32 %v7574, 0.2
      %v7831 = vmul.f32 %v7575, 0.2
      %v7832 = vmul.f32 %v7576, 0.2
      %v7833 = vmul.f32 %v7577, 0.2
      %v7834 = vmul.f32 %v7578, 0.2
      %v7835 = vmul.f32 %v7579, 0.2
      %v7836 = vmul.f32 %v7580, 0.2
      %v7837 = vmul.f32 %v7581, 0.2
      %v7838 = vmul.f32 %v7582, 0.2
      %v7839 = vmul.f32 %v7583, 0.2
      %v7840 = vmul.f32 %v7584, 0.2
      %v7841 = vmul.f32 %v7585, 0.2
      %v7842 = vmul.f32 %v7586, 0.2
      %v7843 = vmul.f32 %v7587, 0.2
      %v7844 = vmul.f32 %v7588, 0.2
      %v7845 = vmul.f32 %v7589, 0.2
      %v7846 = vmul.f32 %v7590, 0.2
      %v7847 = vmul.f32 %v7591, 0.2
      %v7848 = vmul.f32 %v7592, 0.2
      %v7849 = vmul.f32 %v7593, 0.2
      %v7850 = vmul.f32 %v7594, 0.2
      %v7851 = vmul.f32 %v7595, 0.2
      %v7852 = vmul.f32 %v7596, 0.2
      %v7853 = vmul.f32 %v7597, 0.2
      %v7854 = vmul.f32 %v7598, 0.2
      %v7855 = vmul.f32 %v7599, 0.2
      %v7856 = vmul.f32 %v7600, 0.2
      %v7857 = vmul.f32 %v7601, 0.2
      %v7858 = vmul.f32 %v7602, 0.2
      %v7859 = vmul.f32 %v7603, 0.2
      %v7860 = vmul.f32 %v7604, 0.2
      %v7861 = vmul.f32 %v7605, 0.2
      %v7862 = vmul.f32 %v7606, 0.2
      %v7863 = vmul.f32 %v7607, 0.2
      %v7864 = vmul.f32 %v7608, 0.2
      %v7865 = vmul.f32 %v7609, 0.2
      %v7866 = vmul.f32 %v7610, 0.2
      %v7867 = vmul.f32 %v7611, 0.2
      %v7868 = vmul.f32 %v7612, 0.2
      %v7869 = vmul.f32 %v7613, 0.2
      %v7870 = vmul.f32 %v7614, 0.2
      %v7871 = vmul.f32 %v7615, 0.2
      %v7872 = vmul.f32 %v7616, 0.2
      %v7873 = vmul.f32 %v7617, 0.2
      %v7874 = vmul.f32 %v7618, 0.2
      %v7875 = vmul.f32 %v7619, 0.2
      %v7876 = vmul.f32 %v7620, 0.2
      %v7877 = vmul.f32 %v7621, 0.2
      %v7878 = vmul.f32 %v7622, 0.2
      %v7879 = vmul.f32 %v7623, 0.2
      %v7880 = vmul.f32 %v7624, 0.2
      %v7881 = vmul.f32 %v7625, 0.2
      %v7882 = vmul.f32 %v7626, 0.2
      %v7883 = vmul.f32 %v7627, 0.2
      %v7884 = vmul.f32 %v7628, 0.2
      %v7885 = vmul.f32 %v7629, 0.2
      %v7886 = vmul.f32 %v7630, 0.2
      %v7887 = vmul.f32 %v7631, 0.2
      %v7888 = vmul.f32 %v7632, 0.2
      %v7889 = vmul.f32 %v7633, 0.2
      %v7890 = vmul.f32 %v7634, 0.2
      %v7891 = vmul.f32 %v7635, 0.2
      %v7892 = vmul.f32 %v7636, 0.2
      %v7893 = vmul.f32 %v7637, 0.2
      %v7894 = vmul.f32 %v7638, 0.2
      %v7895 = vmul.f32 %v7639, 0.2
      %v7896 = vmul.f32 %v7640, 0.2
      %v7897 = vmul.f32 %v7641, 0.2
      %v7898 = vmul.f32 %v7642, 0.2
      %v7899 = vmul.f32 %v7643, 0.2
      %v7900 = vmul.f32 %v7644, 0.2
      %v7901 = vmul.f32 %v7645, 0.2
      %v7902 = vmul.f32 %v7646, 0.2
      %v7903 = vmul.f32 %v7647, 0.2
      %v7904 = vmul.f32 %v7648, 0.2
      %v7905 = vmul.f32 %v7649, 0.2
      %v7906 = vmul.f32 %v7650, 0.2
      %v7907 = vmul.f32 %v7651, 0.2
      %v7908 = vmul.f32 %v7652, 0.2
      %v7909 = vmul.f32 %v7653, 0.2
      %v7910 = vmul.f32 %v7654, 0.2
      %v7911 = vmul.f32 %v7655, 0.2
      %v7912 = vmul.f32 %v7656, 0.2
      %v7913 = vmul.f32 %v7657, 0.2
      %v7914 = vmul.f32 %v7658, 0.2
      %v7915 = vmul.f32 %v7659, 0.2
      %v7916 = vmul.f32 %v7660, 0.2
      %v7917 = vmul.f32 %v7661, 0.2
      %v7918 = vsel %vm7662, %v7534, %v7790
      %v7919 = vsel %vm7663, %v7535, %v7791
      %v7920 = vsel %vm7664, %v7536, %v7792
      %v7921 = vsel %vm7665, %v7537, %v7793
      %v7922 = vsel %vm7666, %v7538, %v7794
      %v7923 = vsel %vm7667, %v7539, %v7795
      %v7924 = vsel %vm7668, %v7540, %v7796
      %v7925 = vsel %vm7669, %v7541, %v7797
      %v7926 = vsel %vm7670, %v7542, %v7798
      %v7927 = vsel %vm7671, %v7543, %v7799
      %v7928 = vsel %vm7672, %v7544, %v7800
      %v7929 = vsel %vm7673, %v7545, %v7801
      %v7930 = vsel %vm7674, %v7546, %v7802
      %v7931 = vsel %vm7675, %v7547, %v7803
      %v7932 = vsel %vm7676, %v7548, %v7804
      %v7933 = vsel %vm7677, %v7549, %v7805
      %v7934 = vsel %vm7678, %v7550, %v7806
      %v7935 = vsel %vm7679, %v7551, %v7807
      %v7936 = vsel %vm7680, %v7552, %v7808
      %v7937 = vsel %vm7681, %v7553, %v7809
      %v7938 = vsel %vm7682, %v7554, %v7810
      %v7939 = vsel %vm7683, %v7555, %v7811
      %v7940 = vsel %vm7684, %v7556, %v7812
      %v7941 = vsel %vm7685, %v7557, %v7813
      %v7942 = vsel %vm7686, %v7558, %v7814
      %v7943 = vsel %vm7687, %v7559, %v7815
      %v7944 = vsel %vm7688, %v7560, %v7816
      %v7945 = vsel %vm7689, %v7561, %v7817
      %v7946 = vsel %vm7690, %v7562, %v7818
      %v7947 = vsel %vm7691, %v7563, %v7819
      %v7948 = vsel %vm7692, %v7564, %v7820
      %v7949 = vsel %vm7693, %v7565, %v7821
      %v7950 = vsel %vm7694, %v7566, %v7822
      %v7951 = vsel %vm7695, %v7567, %v7823
      %v7952 = vsel %vm7696, %v7568, %v7824
      %v7953 = vsel %vm7697, %v7569, %v7825
      %v7954 = vsel %vm7698, %v7570, %v7826
      %v7955 = vsel %vm7699, %v7571, %v7827
      %v7956 = vsel %vm7700, %v7572, %v7828
      %v7957 = vsel %vm7701, %v7573, %v7829
      %v7958 = vsel %vm7702, %v7574, %v7830
      %v7959 = vsel %vm7703, %v7575, %v7831
      %v7960 = vsel %vm7704, %v7576, %v7832
      %v7961 = vsel %vm7705, %v7577, %v7833
      %v7962 = vsel %vm7706, %v7578, %v7834
      %v7963 = vsel %vm7707, %v7579, %v7835
      %v7964 = vsel %vm7708, %v7580, %v7836
      %v7965 = vsel %vm7709, %v7581, %v7837
      %v7966 = vsel %vm7710, %v7582, %v7838
      %v7967 = vsel %vm7711, %v7583, %v7839
      %v7968 = vsel %vm7712, %v7584, %v7840
      %v7969 = vsel %vm7713, %v7585, %v7841
      %v7970 = vsel %vm7714, %v7586, %v7842
      %v7971 = vsel %vm7715, %v7587, %v7843
      %v7972 = vsel %vm7716, %v7588, %v7844
      %v7973 = vsel %vm7717, %v7589, %v7845
      %v7974 = vsel %vm7718, %v7590, %v7846
      %v7975 = vsel %vm7719, %v7591, %v7847
      %v7976 = vsel %vm7720, %v7592, %v7848
      %v7977 = vsel %vm7721, %v7593, %v7849
      %v7978 = vsel %vm7722, %v7594, %v7850
      %v7979 = vsel %vm7723, %v7595, %v7851
      %v7980 = vsel %vm7724, %v7596, %v7852
      %v7981 = vsel %vm7725, %v7597, %v7853
      %v7982 = vsel %vm7726, %v7598, %v7854
      %v7983 = vsel %vm7727, %v7599, %v7855
      %v7984 = vsel %vm7728, %v7600, %v7856
      %v7985 = vsel %vm7729, %v7601, %v7857
      %v7986 = vsel %vm7730, %v7602, %v7858
      %v7987 = vsel %vm7731, %v7603, %v7859
      %v7988 = vsel %vm7732, %v7604, %v7860
      %v7989 = vsel %vm7733, %v7605, %v7861
      %v7990 = vsel %vm7734, %v7606, %v7862
      %v7991 = vsel %vm7735, %v7607, %v7863
      %v7992 = vsel %vm7736, %v7608, %v7864
      %v7993 = vsel %vm7737, %v7609, %v7865
      %v7994 = vsel %vm7738, %v7610, %v7866
      %v7995 = vsel %vm7739, %v7611, %v7867
      %v7996 = vsel %vm7740, %v7612, %v7868
      %v7997 = vsel %vm7741, %v7613, %v7869
      %v7998 = vsel %vm7742, %v7614, %v7870
      %v7999 = vsel %vm7743, %v7615, %v7871
      %v8000 = vsel %vm7744, %v7616, %v7872
      %v8001 = vsel %vm7745, %v7617, %v7873
      %v8002 = vsel %vm7746, %v7618, %v7874
      %v8003 = vsel %vm7747, %v7619, %v7875
      %v8004 = vsel %vm7748, %v7620, %v7876
      %v8005 = vsel %vm7749, %v7621, %v7877
      %v8006 = vsel %vm7750, %v7622, %v7878
      %v8007 = vsel %vm7751, %v7623, %v7879
      %v8008 = vsel %vm7752, %v7624, %v7880
      %v8009 = vsel %vm7753, %v7625, %v7881
      %v8010 = vsel %vm7754, %v7626, %v7882
      %v8011 = vsel %vm7755, %v7627, %v7883
      %v8012 = vsel %vm7756, %v7628, %v7884
      %v8013 = vsel %vm7757, %v7629, %v7885
      %v8014 = vsel %vm7758, %v7630, %v7886
      %v8015 = vsel %vm7759, %v7631, %v7887
      %v8016 = vsel %vm7760, %v7632, %v7888
      %v8017 = vsel %vm7761, %v7633, %v7889
      %v8018 = vsel %vm7762, %v7634, %v7890
      %v8019 = vsel %vm7763, %v7635, %v7891
      %v8020 = vsel %vm7764, %v7636, %v7892
      %v8021 = vsel %vm7765, %v7637, %v7893
      %v8022 = vsel %vm7766, %v7638, %v7894
      %v8023 = vsel %vm7767, %v7639, %v7895
      %v8024 = vsel %vm7768, %v7640, %v7896
      %v8025 = vsel %vm7769, %v7641, %v7897
      %v8026 = vsel %vm7770, %v7642, %v7898
      %v8027 = vsel %vm7771, %v7643, %v7899
      %v8028 = vsel %vm7772, %v7644, %v7900
      %v8029 = vsel %vm7773, %v7645, %v7901
      %v8030 = vsel %vm7774, %v7646, %v7902
      %v8031 = vsel %vm7775, %v7647, %v7903
      %v8032 = vsel %vm7776, %v7648, %v7904
      %v8033 = vsel %vm7777, %v7649, %v7905
      %v8034 = vsel %vm7778, %v7650, %v7906
      %v8035 = vsel %vm7779, %v7651, %v7907
      %v8036 = vsel %vm7780, %v7652, %v7908
      %v8037 = vsel %vm7781, %v7653, %v7909
      %v8038 = vsel %vm7782, %v7654, %v7910
      %v8039 = vsel %vm7783, %v7655, %v7911
      %v8040 = vsel %vm7784, %v7656, %v7912
      %v8041 = vsel %vm7785, %v7657, %v7913
      %v8042 = vsel %vm7786, %v7658, %v7914
      %v8043 = vsel %vm7787, %v7659, %v7915
      %v8044 = vsel %vm7788, %v7660, %v7916
      %v8045 = vsel %vm7789, %v7661, %v7917
      %v8046 = vpack.c.bf16 %v7919, %v7918
      %v8047 = vpack.c.bf16 %v7921, %v7920
      %v8048 = vpack.c.bf16 %v7923, %v7922
      %v8049 = vpack.c.bf16 %v7925, %v7924
      %v8050 = vpack.c.bf16 %v7927, %v7926
      %v8051 = vpack.c.bf16 %v7929, %v7928
      %v8052 = vpack.c.bf16 %v7931, %v7930
      %v8053 = vpack.c.bf16 %v7933, %v7932
      %v8054 = vpack.c.bf16 %v7935, %v7934
      %v8055 = vpack.c.bf16 %v7937, %v7936
      %v8056 = vpack.c.bf16 %v7939, %v7938
      %v8057 = vpack.c.bf16 %v7941, %v7940
      %v8058 = vpack.c.bf16 %v7943, %v7942
      %v8059 = vpack.c.bf16 %v7945, %v7944
      %v8060 = vpack.c.bf16 %v7947, %v7946
      %v8061 = vpack.c.bf16 %v7949, %v7948
      %v8062 = vpack.c.bf16 %v7951, %v7950
      %v8063 = vpack.c.bf16 %v7953, %v7952
      %v8064 = vpack.c.bf16 %v7955, %v7954
      %v8065 = vpack.c.bf16 %v7957, %v7956
      %v8066 = vpack.c.bf16 %v7959, %v7958
      %v8067 = vpack.c.bf16 %v7961, %v7960
      %v8068 = vpack.c.bf16 %v7963, %v7962
      %v8069 = vpack.c.bf16 %v7965, %v7964
      %v8070 = vpack.c.bf16 %v7967, %v7966
      %v8071 = vpack.c.bf16 %v7969, %v7968
      %v8072 = vpack.c.bf16 %v7971, %v7970
      %v8073 = vpack.c.bf16 %v7973, %v7972
      %v8074 = vpack.c.bf16 %v7975, %v7974
      %v8075 = vpack.c.bf16 %v7977, %v7976
      %v8076 = vpack.c.bf16 %v7979, %v7978
      %v8077 = vpack.c.bf16 %v7981, %v7980
      %v8078 = vpack.c.bf16 %v7983, %v7982
      %v8079 = vpack.c.bf16 %v7985, %v7984
      %v8080 = vpack.c.bf16 %v7987, %v7986
      %v8081 = vpack.c.bf16 %v7989, %v7988
      %v8082 = vpack.c.bf16 %v7991, %v7990
      %v8083 = vpack.c.bf16 %v7993, %v7992
      %v8084 = vpack.c.bf16 %v7995, %v7994
      %v8085 = vpack.c.bf16 %v7997, %v7996
      %v8086 = vpack.c.bf16 %v7999, %v7998
      %v8087 = vpack.c.bf16 %v8001, %v8000
      %v8088 = vpack.c.bf16 %v8003, %v8002
      %v8089 = vpack.c.bf16 %v8005, %v8004
      %v8090 = vpack.c.bf16 %v8007, %v8006
      %v8091 = vpack.c.bf16 %v8009, %v8008
      %v8092 = vpack.c.bf16 %v8011, %v8010
      %v8093 = vpack.c.bf16 %v8013, %v8012
      %v8094 = vpack.c.bf16 %v8015, %v8014
      %v8095 = vpack.c.bf16 %v8017, %v8016
      %v8096 = vpack.c.bf16 %v8019, %v8018
      %v8097 = vpack.c.bf16 %v8021, %v8020
      %v8098 = vpack.c.bf16 %v8023, %v8022
      %v8099 = vpack.c.bf16 %v8025, %v8024
      %v8100 = vpack.c.bf16 %v8027, %v8026
      %v8101 = vpack.c.bf16 %v8029, %v8028
      %v8102 = vpack.c.bf16 %v8031, %v8030
      %v8103 = vpack.c.bf16 %v8033, %v8032
      %v8104 = vpack.c.bf16 %v8035, %v8034
      %v8105 = vpack.c.bf16 %v8037, %v8036
      %v8106 = vpack.c.bf16 %v8039, %v8038
      %v8107 = vpack.c.bf16 %v8041, %v8040
      %v8108 = vpack.c.bf16 %v8043, %v8042
      %v8109 = vpack.c.bf16 %v8045, %v8044
      %v8174 = vunpack.c.l.b16 %v8046
      %v8175 = vunpack.c.h.b16 %v8046
      %v8176 = vunpack.c.l.b16 %v8047
      %v8177 = vunpack.c.h.b16 %v8047
      %v8178 = vunpack.c.l.b16 %v8048
      %v8179 = vunpack.c.h.b16 %v8048
      %v8180 = vunpack.c.l.b16 %v8049
      %v8181 = vunpack.c.h.b16 %v8049
      %v8182 = vunpack.c.l.b16 %v8050
      %v8183 = vunpack.c.h.b16 %v8050
      %v8184 = vunpack.c.l.b16 %v8051
      %v8185 = vunpack.c.h.b16 %v8051
      %v8186 = vunpack.c.l.b16 %v8052
      %v8187 = vunpack.c.h.b16 %v8052
      %v8188 = vunpack.c.l.b16 %v8053
      %v8189 = vunpack.c.h.b16 %v8053
      %v8190 = vunpack.c.l.b16 %v8054
      %v8191 = vunpack.c.h.b16 %v8054
      %v8192 = vunpack.c.l.b16 %v8055
      %v8193 = vunpack.c.h.b16 %v8055
      %v8194 = vunpack.c.l.b16 %v8056
      %v8195 = vunpack.c.h.b16 %v8056
      %v8196 = vunpack.c.l.b16 %v8057
      %v8197 = vunpack.c.h.b16 %v8057
      %v8198 = vunpack.c.l.b16 %v8058
      %v8199 = vunpack.c.h.b16 %v8058
      %v8200 = vunpack.c.l.b16 %v8059
      %v8201 = vunpack.c.h.b16 %v8059
      %v8202 = vunpack.c.l.b16 %v8060
      %v8203 = vunpack.c.h.b16 %v8060
      %v8204 = vunpack.c.l.b16 %v8061
      %v8205 = vunpack.c.h.b16 %v8061
      %v8206 = vunpack.c.l.b16 %v8062
      %v8207 = vunpack.c.h.b16 %v8062
      %v8208 = vunpack.c.l.b16 %v8063
      %v8209 = vunpack.c.h.b16 %v8063
      %v8210 = vunpack.c.l.b16 %v8064
      %v8211 = vunpack.c.h.b16 %v8064
      %v8212 = vunpack.c.l.b16 %v8065
      %v8213 = vunpack.c.h.b16 %v8065
      %v8214 = vunpack.c.l.b16 %v8066
      %v8215 = vunpack.c.h.b16 %v8066
      %v8216 = vunpack.c.l.b16 %v8067
      %v8217 = vunpack.c.h.b16 %v8067
      %v8218 = vunpack.c.l.b16 %v8068
      %v8219 = vunpack.c.h.b16 %v8068
      %v8220 = vunpack.c.l.b16 %v8069
      %v8221 = vunpack.c.h.b16 %v8069
      %v8222 = vunpack.c.l.b16 %v8070
      %v8223 = vunpack.c.h.b16 %v8070
      %v8224 = vunpack.c.l.b16 %v8071
      %v8225 = vunpack.c.h.b16 %v8071
      %v8226 = vunpack.c.l.b16 %v8072
      %v8227 = vunpack.c.h.b16 %v8072
      %v8228 = vunpack.c.l.b16 %v8073
      %v8229 = vunpack.c.h.b16 %v8073
      %v8230 = vunpack.c.l.b16 %v8074
      %v8231 = vunpack.c.h.b16 %v8074
      %v8232 = vunpack.c.l.b16 %v8075
      %v8233 = vunpack.c.h.b16 %v8075
      %v8234 = vunpack.c.l.b16 %v8076
      %v8235 = vunpack.c.h.b16 %v8076
      %v8236 = vunpack.c.l.b16 %v8077
      %v8237 = vunpack.c.h.b16 %v8077
      %v8238 = vunpack.c.l.b16 %v8078
      %v8239 = vunpack.c.h.b16 %v8078
      %v8240 = vunpack.c.l.b16 %v8079
      %v8241 = vunpack.c.h.b16 %v8079
      %v8242 = vunpack.c.l.b16 %v8080
      %v8243 = vunpack.c.h.b16 %v8080
      %v8244 = vunpack.c.l.b16 %v8081
      %v8245 = vunpack.c.h.b16 %v8081
      %v8246 = vunpack.c.l.b16 %v8082
      %v8247 = vunpack.c.h.b16 %v8082
      %v8248 = vunpack.c.l.b16 %v8083
      %v8249 = vunpack.c.h.b16 %v8083
      %v8250 = vunpack.c.l.b16 %v8084
      %v8251 = vunpack.c.h.b16 %v8084
      %v8252 = vunpack.c.l.b16 %v8085
      %v8253 = vunpack.c.h.b16 %v8085
      %v8254 = vunpack.c.l.b16 %v8086
      %v8255 = vunpack.c.h.b16 %v8086
      %v8256 = vunpack.c.l.b16 %v8087
      %v8257 = vunpack.c.h.b16 %v8087
      %v8258 = vunpack.c.l.b16 %v8088
      %v8259 = vunpack.c.h.b16 %v8088
      %v8260 = vunpack.c.l.b16 %v8089
      %v8261 = vunpack.c.h.b16 %v8089
      %v8262 = vunpack.c.l.b16 %v8090
      %v8263 = vunpack.c.h.b16 %v8090
      %v8264 = vunpack.c.l.b16 %v8091
      %v8265 = vunpack.c.h.b16 %v8091
      %v8266 = vunpack.c.l.b16 %v8092
      %v8267 = vunpack.c.h.b16 %v8092
      %v8268 = vunpack.c.l.b16 %v8093
      %v8269 = vunpack.c.h.b16 %v8093
      %v8270 = vunpack.c.l.b16 %v8094
      %v8271 = vunpack.c.h.b16 %v8094
      %v8272 = vunpack.c.l.b16 %v8095
      %v8273 = vunpack.c.h.b16 %v8095
      %v8274 = vunpack.c.l.b16 %v8096
      %v8275 = vunpack.c.h.b16 %v8096
      %v8276 = vunpack.c.l.b16 %v8097
      %v8277 = vunpack.c.h.b16 %v8097
      %v8278 = vunpack.c.l.b16 %v8098
      %v8279 = vunpack.c.h.b16 %v8098
      %v8280 = vunpack.c.l.b16 %v8099
      %v8281 = vunpack.c.h.b16 %v8099
      %v8282 = vunpack.c.l.b16 %v8100
      %v8283 = vunpack.c.h.b16 %v8100
      %v8284 = vunpack.c.l.b16 %v8101
      %v8285 = vunpack.c.h.b16 %v8101
      %v8286 = vunpack.c.l.b16 %v8102
      %v8287 = vunpack.c.h.b16 %v8102
      %v8288 = vunpack.c.l.b16 %v8103
      %v8289 = vunpack.c.h.b16 %v8103
      %v8290 = vunpack.c.l.b16 %v8104
      %v8291 = vunpack.c.h.b16 %v8104
      %v8292 = vunpack.c.l.b16 %v8105
      %v8293 = vunpack.c.h.b16 %v8105
      %v8294 = vunpack.c.l.b16 %v8106
      %v8295 = vunpack.c.h.b16 %v8106
      %v8296 = vunpack.c.l.b16 %v8107
      %v8297 = vunpack.c.h.b16 %v8107
      %v8298 = vunpack.c.l.b16 %v8108
      %v8299 = vunpack.c.h.b16 %v8108
      %v8300 = vunpack.c.l.b16 %v8109
      %v8301 = vunpack.c.h.b16 %v8109
      %v8302 = vpack.c.b16 %v8174, %v8174
      %v8303 = vpack.c.b16 %v8175, %v8175
      %v8304 = vpack.c.b16 %v8176, %v8176
      %v8305 = vpack.c.b16 %v8177, %v8177
      %v8306 = vpack.c.b16 %v8178, %v8178
      %v8307 = vpack.c.b16 %v8179, %v8179
      %v8308 = vpack.c.b16 %v8180, %v8180
      %v8309 = vpack.c.b16 %v8181, %v8181
      %v8310 = vpack.c.b16 %v8182, %v8182
      %v8311 = vpack.c.b16 %v8183, %v8183
      %v8312 = vpack.c.b16 %v8184, %v8184
      %v8313 = vpack.c.b16 %v8185, %v8185
      %v8314 = vpack.c.b16 %v8186, %v8186
      %v8315 = vpack.c.b16 %v8187, %v8187
      %v8316 = vpack.c.b16 %v8188, %v8188
      %v8317 = vpack.c.b16 %v8189, %v8189
      %v8318 = vpack.c.b16 %v8190, %v8190
      %v8319 = vpack.c.b16 %v8191, %v8191
      %v8320 = vpack.c.b16 %v8192, %v8192
      %v8321 = vpack.c.b16 %v8193, %v8193
      %v8322 = vpack.c.b16 %v8194, %v8194
      %v8323 = vpack.c.b16 %v8195, %v8195
      %v8324 = vpack.c.b16 %v8196, %v8196
      %v8325 = vpack.c.b16 %v8197, %v8197
      %v8326 = vpack.c.b16 %v8198, %v8198
      %v8327 = vpack.c.b16 %v8199, %v8199
      %v8328 = vpack.c.b16 %v8200, %v8200
      %v8329 = vpack.c.b16 %v8201, %v8201
      %v8330 = vpack.c.b16 %v8202, %v8202
      %v8331 = vpack.c.b16 %v8203, %v8203
      %v8332 = vpack.c.b16 %v8204, %v8204
      %v8333 = vpack.c.b16 %v8205, %v8205
      %v8334 = vpack.c.b16 %v8206, %v8206
      %v8335 = vpack.c.b16 %v8207, %v8207
      %v8336 = vpack.c.b16 %v8208, %v8208
      %v8337 = vpack.c.b16 %v8209, %v8209
      %v8338 = vpack.c.b16 %v8210, %v8210
      %v8339 = vpack.c.b16 %v8211, %v8211
      %v8340 = vpack.c.b16 %v8212, %v8212
      %v8341 = vpack.c.b16 %v8213, %v8213
      %v8342 = vpack.c.b16 %v8214, %v8214
      %v8343 = vpack.c.b16 %v8215, %v8215
      %v8344 = vpack.c.b16 %v8216, %v8216
      %v8345 = vpack.c.b16 %v8217, %v8217
      %v8346 = vpack.c.b16 %v8218, %v8218
      %v8347 = vpack.c.b16 %v8219, %v8219
      %v8348 = vpack.c.b16 %v8220, %v8220
      %v8349 = vpack.c.b16 %v8221, %v8221
      %v8350 = vpack.c.b16 %v8222, %v8222
      %v8351 = vpack.c.b16 %v8223, %v8223
      %v8352 = vpack.c.b16 %v8224, %v8224
      %v8353 = vpack.c.b16 %v8225, %v8225
      %v8354 = vpack.c.b16 %v8226, %v8226
      %v8355 = vpack.c.b16 %v8227, %v8227
      %v8356 = vpack.c.b16 %v8228, %v8228
      %v8357 = vpack.c.b16 %v8229, %v8229
      %v8358 = vpack.c.b16 %v8230, %v8230
      %v8359 = vpack.c.b16 %v8231, %v8231
      %v8360 = vpack.c.b16 %v8232, %v8232
      %v8361 = vpack.c.b16 %v8233, %v8233
      %v8362 = vpack.c.b16 %v8234, %v8234
      %v8363 = vpack.c.b16 %v8235, %v8235
      %v8364 = vpack.c.b16 %v8236, %v8236
      %v8365 = vpack.c.b16 %v8237, %v8237
      %v8366 = vpack.c.b16 %v8238, %v8238
      %v8367 = vpack.c.b16 %v8239, %v8239
      %v8368 = vpack.c.b16 %v8240, %v8240
      %v8369 = vpack.c.b16 %v8241, %v8241
      %v8370 = vpack.c.b16 %v8242, %v8242
      %v8371 = vpack.c.b16 %v8243, %v8243
      %v8372 = vpack.c.b16 %v8244, %v8244
      %v8373 = vpack.c.b16 %v8245, %v8245
      %v8374 = vpack.c.b16 %v8246, %v8246
      %v8375 = vpack.c.b16 %v8247, %v8247
      %v8376 = vpack.c.b16 %v8248, %v8248
      %v8377 = vpack.c.b16 %v8249, %v8249
      %v8378 = vpack.c.b16 %v8250, %v8250
      %v8379 = vpack.c.b16 %v8251, %v8251
      %v8380 = vpack.c.b16 %v8252, %v8252
      %v8381 = vpack.c.b16 %v8253, %v8253
      %v8382 = vpack.c.b16 %v8254, %v8254
      %v8383 = vpack.c.b16 %v8255, %v8255
      %v8384 = vpack.c.b16 %v8256, %v8256
      %v8385 = vpack.c.b16 %v8257, %v8257
      %v8386 = vpack.c.b16 %v8258, %v8258
      %v8387 = vpack.c.b16 %v8259, %v8259
      %v8388 = vpack.c.b16 %v8260, %v8260
      %v8389 = vpack.c.b16 %v8261, %v8261
      %v8390 = vpack.c.b16 %v8262, %v8262
      %v8391 = vpack.c.b16 %v8263, %v8263
      %v8392 = vpack.c.b16 %v8264, %v8264
      %v8393 = vpack.c.b16 %v8265, %v8265
      %v8394 = vpack.c.b16 %v8266, %v8266
      %v8395 = vpack.c.b16 %v8267, %v8267
      %v8396 = vpack.c.b16 %v8268, %v8268
      %v8397 = vpack.c.b16 %v8269, %v8269
      %v8398 = vpack.c.b16 %v8270, %v8270
      %v8399 = vpack.c.b16 %v8271, %v8271
      %v8400 = vpack.c.b16 %v8272, %v8272
      %v8401 = vpack.c.b16 %v8273, %v8273
      %v8402 = vpack.c.b16 %v8274, %v8274
      %v8403 = vpack.c.b16 %v8275, %v8275
      %v8404 = vpack.c.b16 %v8276, %v8276
      %v8405 = vpack.c.b16 %v8277, %v8277
      %v8406 = vpack.c.b16 %v8278, %v8278
      %v8407 = vpack.c.b16 %v8279, %v8279
      %v8408 = vpack.c.b16 %v8280, %v8280
      %v8409 = vpack.c.b16 %v8281, %v8281
      %v8410 = vpack.c.b16 %v8282, %v8282
      %v8411 = vpack.c.b16 %v8283, %v8283
      %v8412 = vpack.c.b16 %v8284, %v8284
      %v8413 = vpack.c.b16 %v8285, %v8285
      %v8414 = vpack.c.b16 %v8286, %v8286
      %v8415 = vpack.c.b16 %v8287, %v8287
      %v8416 = vpack.c.b16 %v8288, %v8288
      %v8417 = vpack.c.b16 %v8289, %v8289
      %v8418 = vpack.c.b16 %v8290, %v8290
      %v8419 = vpack.c.b16 %v8291, %v8291
      %v8420 = vpack.c.b16 %v8292, %v8292
      %v8421 = vpack.c.b16 %v8293, %v8293
      %v8422 = vpack.c.b16 %v8294, %v8294
      %v8423 = vpack.c.b16 %v8295, %v8295
      %v8424 = vpack.c.b16 %v8296, %v8296
      %v8425 = vpack.c.b16 %v8297, %v8297
      %v8426 = vpack.c.b16 %v8298, %v8298
      %v8427 = vpack.c.b16 %v8299, %v8299
      %v8428 = vpack.c.b16 %v8300, %v8300
      %v8429 = vpack.c.b16 %v8301, %v8301
      %vm8558 = vcmask 60416
      %8559 = vst.msk [vmem:[%s143] sm:$0xf] %vm8558, %v8302
      %8560 = vst.msk [vmem:[%s143 + $0x4] sm:$0xf] %vm8558, %v8303
      %8561 = vst.msk [vmem:[%s143 + $0x8] sm:$0xf] %vm8558, %v8304
      %8562 = vst.msk [vmem:[%s143 + $0xc] sm:$0xf] %vm8558, %v8305
      %8563 = vst.msk [vmem:[%s143 + $0x10] sm:$0xf] %vm8558, %v8306
      %8564 = vst.msk [vmem:[%s143 + $0x14] sm:$0xf] %vm8558, %v8307
      %8565 = vst.msk [vmem:[%s143 + $0x18] sm:$0xf] %vm8558, %v8308
      %8566 = vst.msk [vmem:[%s143 + $0x1c] sm:$0xf] %vm8558, %v8309
      %8567 = vst.msk [vmem:[%s143 + $0x20] sm:$0xf] %vm8558, %v8310
      %8568 = vst.msk [vmem:[%s143 + $0x24] sm:$0xf] %vm8558, %v8311
      %8569 = vst.msk [vmem:[%s143 + $0x28] sm:$0xf] %vm8558, %v8312
      %8570 = vst.msk [vmem:[%s143 + $0x2c] sm:$0xf] %vm8558, %v8313
      %8571 = vst.msk [vmem:[%s143 + $0x30] sm:$0xf] %vm8558, %v8314
      %8572 = vst.msk [vmem:[%s143 + $0x34] sm:$0xf] %vm8558, %v8315
      %8573 = vst.msk [vmem:[%s143 + $0x38] sm:$0xf] %vm8558, %v8316
      %8574 = vst.msk [vmem:[%s143 + $0x3c] sm:$0xf] %vm8558, %v8317
      %8575 = vst.msk [vmem:[%s143 + $0x40] sm:$0xf] %vm8558, %v8318
      %8576 = vst.msk [vmem:[%s143 + $0x44] sm:$0xf] %vm8558, %v8319
      %8577 = vst.msk [vmem:[%s143 + $0x48] sm:$0xf] %vm8558, %v8320
      %8578 = vst.msk [vmem:[%s143 + $0x4c] sm:$0xf] %vm8558, %v8321
      %8579 = vst.msk [vmem:[%s143 + $0x50] sm:$0xf] %vm8558, %v8322
      %8580 = vst.msk [vmem:[%s143 + $0x54] sm:$0xf] %vm8558, %v8323
      %8581 = vst.msk [vmem:[%s143 + $0x58] sm:$0xf] %vm8558, %v8324
      %8582 = vst.msk [vmem:[%s143 + $0x5c] sm:$0xf] %vm8558, %v8325
      %8583 = vst.msk [vmem:[%s143 + $0x60] sm:$0xf] %vm8558, %v8326
      %8584 = vst.msk [vmem:[%s143 + $0x64] sm:$0xf] %vm8558, %v8327
      %8585 = vst.msk [vmem:[%s143 + $0x68] sm:$0xf] %vm8558, %v8328
      %8586 = vst.msk [vmem:[%s143 + $0x6c] sm:$0xf] %vm8558, %v8329
      %8587 = vst.msk [vmem:[%s143 + $0x70] sm:$0xf] %vm8558, %v8330
      %8588 = vst.msk [vmem:[%s143 + $0x74] sm:$0xf] %vm8558, %v8331
      %8589 = vst.msk [vmem:[%s143 + $0x78] sm:$0xf] %vm8558, %v8332
      %8590 = vst.msk [vmem:[%s143 + $0x7c] sm:$0xf] %vm8558, %v8333
      %8591 = vst.msk [vmem:[%s143 + $0x80] sm:$0xf] %vm8558, %v8334
      %8592 = vst.msk [vmem:[%s143 + $0x84] sm:$0xf] %vm8558, %v8335
      %8593 = vst.msk [vmem:[%s143 + $0x88] sm:$0xf] %vm8558, %v8336
      %8594 = vst.msk [vmem:[%s143 + $0x8c] sm:$0xf] %vm8558, %v8337
      %8595 = vst.msk [vmem:[%s143 + $0x90] sm:$0xf] %vm8558, %v8338
      %8596 = vst.msk [vmem:[%s143 + $0x94] sm:$0xf] %vm8558, %v8339
      %8597 = vst.msk [vmem:[%s143 + $0x98] sm:$0xf] %vm8558, %v8340
      %8598 = vst.msk [vmem:[%s143 + $0x9c] sm:$0xf] %vm8558, %v8341
      %8599 = vst.msk [vmem:[%s143 + $0xa0] sm:$0xf] %vm8558, %v8342
      %8600 = vst.msk [vmem:[%s143 + $0xa4] sm:$0xf] %vm8558, %v8343
      %8601 = vst.msk [vmem:[%s143 + $0xa8] sm:$0xf] %vm8558, %v8344
      %8602 = vst.msk [vmem:[%s143 + $0xac] sm:$0xf] %vm8558, %v8345
      %8603 = vst.msk [vmem:[%s143 + $0xb0] sm:$0xf] %vm8558, %v8346
      %8604 = vst.msk [vmem:[%s143 + $0xb4] sm:$0xf] %vm8558, %v8347
      %8605 = vst.msk [vmem:[%s143 + $0xb8] sm:$0xf] %vm8558, %v8348
      %8606 = vst.msk [vmem:[%s143 + $0xbc] sm:$0xf] %vm8558, %v8349
      %8607 = vst.msk [vmem:[%s143 + $0xc0] sm:$0xf] %vm8558, %v8350
      %8608 = vst.msk [vmem:[%s143 + $0xc4] sm:$0xf] %vm8558, %v8351
      %8609 = vst.msk [vmem:[%s143 + $0xc8] sm:$0xf] %vm8558, %v8352
      %8610 = vst.msk [vmem:[%s143 + $0xcc] sm:$0xf] %vm8558, %v8353
      %8611 = vst.msk [vmem:[%s143 + $0xd0] sm:$0xf] %vm8558, %v8354
      %8612 = vst.msk [vmem:[%s143 + $0xd4] sm:$0xf] %vm8558, %v8355
      %8613 = vst.msk [vmem:[%s143 + $0xd8] sm:$0xf] %vm8558, %v8356
      %8614 = vst.msk [vmem:[%s143 + $0xdc] sm:$0xf] %vm8558, %v8357
      %8615 = vst.msk [vmem:[%s143 + $0xe0] sm:$0xf] %vm8558, %v8358
      %8616 = vst.msk [vmem:[%s143 + $0xe4] sm:$0xf] %vm8558, %v8359
      %8617 = vst.msk [vmem:[%s143 + $0xe8] sm:$0xf] %vm8558, %v8360
      %8618 = vst.msk [vmem:[%s143 + $0xec] sm:$0xf] %vm8558, %v8361
      %8619 = vst.msk [vmem:[%s143 + $0xf0] sm:$0xf] %vm8558, %v8362
      %8620 = vst.msk [vmem:[%s143 + $0xf4] sm:$0xf] %vm8558, %v8363
      %8621 = vst.msk [vmem:[%s143 + $0xf8] sm:$0xf] %vm8558, %v8364
      %8622 = vst.msk [vmem:[%s143 + $0xfc] sm:$0xf] %vm8558, %v8365
      %8623 = vst.msk [vmem:[%s143 + $0x100] sm:$0xf] %vm8558, %v8366
      %8624 = vst.msk [vmem:[%s143 + $0x104] sm:$0xf] %vm8558, %v8367
      %8625 = vst.msk [vmem:[%s143 + $0x108] sm:$0xf] %vm8558, %v8368
      %8626 = vst.msk [vmem:[%s143 + $0x10c] sm:$0xf] %vm8558, %v8369
      %8627 = vst.msk [vmem:[%s143 + $0x110] sm:$0xf] %vm8558, %v8370
      %8628 = vst.msk [vmem:[%s143 + $0x114] sm:$0xf] %vm8558, %v8371
      %8629 = vst.msk [vmem:[%s143 + $0x118] sm:$0xf] %vm8558, %v8372
      %8630 = vst.msk [vmem:[%s143 + $0x11c] sm:$0xf] %vm8558, %v8373
      %8631 = vst.msk [vmem:[%s143 + $0x120] sm:$0xf] %vm8558, %v8374
      %8632 = vst.msk [vmem:[%s143 + $0x124] sm:$0xf] %vm8558, %v8375
      %8633 = vst.msk [vmem:[%s143 + $0x128] sm:$0xf] %vm8558, %v8376
      %8634 = vst.msk [vmem:[%s143 + $0x12c] sm:$0xf] %vm8558, %v8377
      %8635 = vst.msk [vmem:[%s143 + $0x130] sm:$0xf] %vm8558, %v8378
      %8636 = vst.msk [vmem:[%s143 + $0x134] sm:$0xf] %vm8558, %v8379
      %8637 = vst.msk [vmem:[%s143 + $0x138] sm:$0xf] %vm8558, %v8380
      %8638 = vst.msk [vmem:[%s143 + $0x13c] sm:$0xf] %vm8558, %v8381
      %8639 = vst.msk [vmem:[%s143 + $0x140] sm:$0xf] %vm8558, %v8382
      %8640 = vst.msk [vmem:[%s143 + $0x144] sm:$0xf] %vm8558, %v8383
      %8641 = vst.msk [vmem:[%s143 + $0x148] sm:$0xf] %vm8558, %v8384
      %8642 = vst.msk [vmem:[%s143 + $0x14c] sm:$0xf] %vm8558, %v8385
      %8643 = vst.msk [vmem:[%s143 + $0x150] sm:$0xf] %vm8558, %v8386
      %8644 = vst.msk [vmem:[%s143 + $0x154] sm:$0xf] %vm8558, %v8387
      %8645 = vst.msk [vmem:[%s143 + $0x158] sm:$0xf] %vm8558, %v8388
      %8646 = vst.msk [vmem:[%s143 + $0x15c] sm:$0xf] %vm8558, %v8389
      %8647 = vst.msk [vmem:[%s143 + $0x160] sm:$0xf] %vm8558, %v8390
      %8648 = vst.msk [vmem:[%s143 + $0x164] sm:$0xf] %vm8558, %v8391
      %8649 = vst.msk [vmem:[%s143 + $0x168] sm:$0xf] %vm8558, %v8392
      %8650 = vst.msk [vmem:[%s143 + $0x16c] sm:$0xf] %vm8558, %v8393
      %8651 = vst.msk [vmem:[%s143 + $0x170] sm:$0xf] %vm8558, %v8394
      %8652 = vst.msk [vmem:[%s143 + $0x174] sm:$0xf] %vm8558, %v8395
      %8653 = vst.msk [vmem:[%s143 + $0x178] sm:$0xf] %vm8558, %v8396
      %8654 = vst.msk [vmem:[%s143 + $0x17c] sm:$0xf] %vm8558, %v8397
      %8655 = vst.msk [vmem:[%s143 + $0x180] sm:$0xf] %vm8558, %v8398
      %8656 = vst.msk [vmem:[%s143 + $0x184] sm:$0xf] %vm8558, %v8399
      %8657 = vst.msk [vmem:[%s143 + $0x188] sm:$0xf] %vm8558, %v8400
      %8658 = vst.msk [vmem:[%s143 + $0x18c] sm:$0xf] %vm8558, %v8401
      %8659 = vst.msk [vmem:[%s143 + $0x190] sm:$0xf] %vm8558, %v8402
      %8660 = vst.msk [vmem:[%s143 + $0x194] sm:$0xf] %vm8558, %v8403
      %8661 = vst.msk [vmem:[%s143 + $0x198] sm:$0xf] %vm8558, %v8404
      %8662 = vst.msk [vmem:[%s143 + $0x19c] sm:$0xf] %vm8558, %v8405
      %8663 = vst.msk [vmem:[%s143 + $0x1a0] sm:$0xf] %vm8558, %v8406
      %8664 = vst.msk [vmem:[%s143 + $0x1a4] sm:$0xf] %vm8558, %v8407
      %8665 = vst.msk [vmem:[%s143 + $0x1a8] sm:$0xf] %vm8558, %v8408
      %8666 = vst.msk [vmem:[%s143 + $0x1ac] sm:$0xf] %vm8558, %v8409
      %8667 = vst.msk [vmem:[%s143 + $0x1b0] sm:$0xf] %vm8558, %v8410
      %8668 = vst.msk [vmem:[%s143 + $0x1b4] sm:$0xf] %vm8558, %v8411
      %8669 = vst.msk [vmem:[%s143 + $0x1b8] sm:$0xf] %vm8558, %v8412
      %8670 = vst.msk [vmem:[%s143 + $0x1bc] sm:$0xf] %vm8558, %v8413
      %8671 = vst.msk [vmem:[%s143 + $0x1c0] sm:$0xf] %vm8558, %v8414
      %8672 = vst.msk [vmem:[%s143 + $0x1c4] sm:$0xf] %vm8558, %v8415
      %8673 = vst.msk [vmem:[%s143 + $0x1c8] sm:$0xf] %vm8558, %v8416
      %8674 = vst.msk [vmem:[%s143 + $0x1cc] sm:$0xf] %vm8558, %v8417
      %8675 = vst.msk [vmem:[%s143 + $0x1d0] sm:$0xf] %vm8558, %v8418
      %8676 = vst.msk [vmem:[%s143 + $0x1d4] sm:$0xf] %vm8558, %v8419
      %8677 = vst.msk [vmem:[%s143 + $0x1d8] sm:$0xf] %vm8558, %v8420
      %8678 = vst.msk [vmem:[%s143 + $0x1dc] sm:$0xf] %vm8558, %v8421
      %8679 = vst.msk [vmem:[%s143 + $0x1e0] sm:$0xf] %vm8558, %v8422
      %8680 = vst.msk [vmem:[%s143 + $0x1e4] sm:$0xf] %vm8558, %v8423
      %8681 = vst.msk [vmem:[%s143 + $0x1e8] sm:$0xf] %vm8558, %v8424
      %8682 = vst.msk [vmem:[%s143 + $0x1ec] sm:$0xf] %vm8558, %v8425
      %8683 = vst.msk [vmem:[%s143 + $0x1f0] sm:$0xf] %vm8558, %v8426
      %8684 = vst.msk [vmem:[%s143 + $0x1f4] sm:$0xf] %vm8558, %v8427
      %8685 = vst.msk [vmem:[%s143 + $0x1f8] sm:$0xf] %vm8558, %v8428
      %8686 = vst.msk [vmem:[%s143 + $0x1fc] sm:$0xf] %vm8558, %v8429
      %p8687 = scmp.lt.s32.totalorder %s13, 1
      %s8688 = scalar_select %p8687, %s13, 1
      %s8689 = smul.addr %s8688, 128
      %s8690 = smul.addr %s8689, 4
      %s8691 = scalar_lea.vmem %s2, %s8690
      // Predicated region
      $region29: #{discriminator_forward.5} parent=27 // pred_check
        %p8692 = pneg %p78
      $region30: #{discriminator_forward.5} parent=27 // pred_check_branch
        %8694 = sbr.rel (%p8692) target = $region32
      $region31: #{discriminator_forward.5} parent=27 // pred_region
        _
      $region32: #{discriminator_forward.5} parent=27 // pred_fallthru
        _
    $region28: #{discriminator_forward.5} parent=5 // pred_fallthru
      _
    %p8695 = scmp.le.s32.totalorder 2, %s8
    // Predicated region
    $region33: #{discriminator_forward.5} parent=5 // pred_check
      %p8696 = pneg %p8695
    $region34: #{discriminator_forward.5} parent=5 // pred_check_branch
      %8698 = sbr.rel (%p8696) target = $region36
    $region35: #{discriminator_forward.5} parent=5 // pred_region
      %s8699 = ssub.s32 %s8, 2
      // Predicated region
      $region37: #{discriminator_forward.5} parent=35 // pred_check
        %p8700 = pneg %p84
      $region38: #{discriminator_forward.5} parent=35 // pred_check_branch
        %8702 = sbr.rel (%p8700) target = $region40
      $region39: #{discriminator_forward.5} parent=35 // pred_region
        %p8703 = scmp.lt.s32.totalorder %s14, 1
        %s8704 = scalar_select %p8703, %s14, 1
        %s8705 = smul.addr %s8704, 128
        %s8706 = smul.addr %s8705, 4
        %s8707 = scalar_lea.vmem %s2, %s8706
      $region40: #{discriminator_forward.5} parent=35 // pred_fallthru
        _
    $region36: #{discriminator_forward.5} parent=5 // pred_fallthru
      _
  $region6: #{discriminator_forward.5} parent=0 // loop_footer
    %s12 = sadd.s32 1, %s8
  $region7: #{discriminator_forward.5} parent=0 // loop_footer_branch
    %7 = sbr.rel target = $region3
  $region8: #{discriminator_forward.5} parent=0 // loop_exit
    _

// kernel: discriminator_forward.6
$region0: #{discriminator_forward.6}
  #allocation0 [shape = 'u32[]', space=smem, size = 0x4, offset = 0x4, fixed_abs, tag = 'smem constant byte address 0x4 - core index']
  #allocation1 [shape = 'u32[144,128]{1,0:T(1,128)}', space=vmem, size = 0x12000, scoped, tag = 'internal scratch']
  %s0 = inlined_call_operand.vmem [shape: bf16[2,17,17,32], index: 0, kind: input, shape index: {}]
  %s1 = inlined_call_operand.vmem [shape: bf16[4,32,16], index: 1, kind: input, shape index: {}]
  %s2 = inlined_call_operand.vmem [shape: bf16[2,16,16,16], index: 2, kind: output, shape index: {}]
  %s3 = sld [smem:[#allocation0]]
  $region41: #{discriminator_forward.6} parent=0
    _
  %s5 = ssub.s32 1, %s3
  %s6 = scalar_select 0, %s5, %s3
  loop: start=0, step=1, limit=4
  $region2: #{discriminator_forward.6} parent=0 // loop_pre_header
    _
  $region3: #{discriminator_forward.6} parent=0 // loop_header
    %s8 = sphi 0, %s12
    %p9 = scmp.ge.s32.totalorder %s8, 4
    %s18 = sphi 0, %s20
    %s21 = sphi 0, %s18
    %s22 = sphi 0, %s21
    %s38 = sphi 0, %s22
    %s42 = sphi 0, %s42
    %s44 = sphi 0, %s42
    %s45 = sphi 0, %s44
    %s59 = sphi 0, %s45
    %s65 = sphi 0, %s67
    %s68 = sphi 0, %s65
    %s69 = sphi 0, %s68
    %s85 = sphi 0, %s69
  $region4: #{discriminator_forward.6} parent=0 // loop_header_branch
    %11 = sbr.rel (%p9) target = $region8
  $region5: #{discriminator_forward.6} parent=0 // loop_body
    %s13 = ssub.s32 %s8, 1
    %s14 = ssub.s32 %s8, 2
    %s15 = sadd.s32 %s8, 1
    %s16 = ssub.s32 %s8, %s15
    %p17 = scmp.eq.s32.totalorder %s16, 0
    %s19 = sadd.s32 %s18, 1
    %s20 = scalar_select %p17, %s18, %s19
    %p23 = pneg %p17
    %p24 = scmp.eq.s32.totalorder %s8, 1
    %p25 = por %p23, %p24
    %p26 = scmp.ne.s32.totalorder %s18, %s21
    %p27 = scmp.eq.s32.totalorder %s8, 0
    %p28 = por %p26, %p27
    %p29 = scmp.ne.s32.totalorder %s18, %s21
    %p30 = scmp.eq.s32.totalorder %s13, 1
    %p31 = por %p29, %p30
    %p32 = scmp.ne.s32.totalorder %s21, %s22
    %p33 = scmp.eq.s32.totalorder %s13, 0
    %p34 = por %p32, %p33
    %p35 = scmp.ne.s32.totalorder %s21, %s22
    %p36 = scmp.eq.s32.totalorder %s14, 1
    %p37 = por %p35, %p36
    %p39 = scmp.ne.s32.totalorder %s22, %s38
    %p40 = scmp.eq.s32.totalorder %s14, 0
    %p41 = por %p39, %p40
    %s43 = sadd.s32 %s42, 1
    %p46 = scmp.eq.s32.totalorder %s8, 1
    %p47 = scmp.ne.s32.totalorder %s42, %s44
    %p48 = scmp.eq.s32.totalorder %s8, 0
    %p49 = por %p47, %p48
    %p50 = scmp.ne.s32.totalorder %s42, %s44
    %p51 = scmp.eq.s32.totalorder %s13, 1
    %p52 = por %p50, %p51
    %p53 = scmp.ne.s32.totalorder %s44, %s45
    %p54 = scmp.eq.s32.totalorder %s13, 0
    %p55 = por %p53, %p54
    %p56 = scmp.ne.s32.totalorder %s44, %s45
    %p57 = scmp.eq.s32.totalorder %s14, 1
    %p58 = por %p56, %p57
    %p60 = scmp.ne.s32.totalorder %s45, %s59
    %p61 = scmp.eq.s32.totalorder %s14, 0
    %p62 = por %p60, %p61
    %s63 = ssub.s32 %s8, %s15
    %p64 = scmp.eq.s32.totalorder %s63, 0
    %s66 = sadd.s32 %s65, 1
    %s67 = scalar_select %p64, %s65, %s66
    %p70 = pneg %p64
    %p71 = scmp.eq.s32.totalorder %s8, 1
    %p72 = por %p70, %p71
    %p73 = scmp.ne.s32.totalorder %s65, %s68
    %p74 = scmp.eq.s32.totalorder %s8, 0
    %p75 = por %p73, %p74
    %p76 = scmp.ne.s32.totalorder %s65, %s68
    %p77 = scmp.eq.s32.totalorder %s13, 1
    %p78 = por %p76, %p77
    %p79 = scmp.ne.s32.totalorder %s68, %s69
    %p80 = scmp.eq.s32.totalorder %s13, 0
    %p81 = por %p79, %p80
    %p82 = scmp.ne.s32.totalorder %s68, %s69
    %p83 = scmp.eq.s32.totalorder %s14, 1
    %p84 = por %p82, %p83
    %p86 = scmp.ne.s32.totalorder %s69, %s85
    %p87 = scmp.eq.s32.totalorder %s14, 0
    %p88 = por %p86, %p87
    %p89 = scmp.le.s32.totalorder 1, %s8
    %p90 = scmp.lt.s32.totalorder %s8, 3
    %p91 = pnand %p89, %p90
    %p92 = pneg %p91
    // Predicated region
    $region9: #{discriminator_forward.6} parent=5 // pred_check
      _
    $region10: #{discriminator_forward.6} parent=5 // pred_check_branch
      %94 = sbr.rel (%p91) target = $region12
    $region11: #{discriminator_forward.6} parent=5 // pred_region
      %s95 = ssub.s32 %s8, 1
      // Predicated region
      $region13: #{discriminator_forward.6} parent=11 // pred_check
        %p96 = pneg %p55
      $region14: #{discriminator_forward.6} parent=11 // pred_check_branch
        %98 = sbr.rel (%p96) target = $region16
      $region15: #{discriminator_forward.6} parent=11 // pred_region
        _
      $region16: #{discriminator_forward.6} parent=11 // pred_fallthru
        _
    $region12: #{discriminator_forward.6} parent=5 // pred_fallthru
      _
    %p99 = scmp.lt.s32.totalorder %s8, 2
    // Predicated region
    $region17: #{discriminator_forward.6} parent=5 // pred_check
      %p100 = pneg %p99
    $region18: #{discriminator_forward.6} parent=5 // pred_check_branch
      %102 = sbr.rel (%p100) target = $region20
    $region19: #{discriminator_forward.6} parent=5 // pred_region
      // Predicated region
      $region21: #{discriminator_forward.6} parent=19 // pred_check
        %p103 = pneg %p28
      $region22: #{discriminator_forward.6} parent=19 // pred_check_branch
        %105 = sbr.rel (%p103) target = $region24
      $region23: #{discriminator_forward.6} parent=19 // pred_region
        %p106 = scmp.lt.s32.totalorder %s8, 1
        %s107 = scalar_select %p106, %s8, 1
        %s108 = smul.addr %s107, 51
        %s109 = smul.addr %s108, 4
        %s110 = scalar_lea.vmem %s0, %s109
      $region24: #{discriminator_forward.6} parent=19 // pred_fallthru
        _
    $region20: #{discriminator_forward.6} parent=5 // pred_fallthru
      _
    %p111 = scmp.le.s32.totalorder 1, %s8
    %p112 = scmp.lt.s32.totalorder %s8, 3
    %p113 = pnand %p111, %p112
    %p114 = pneg %p113
    // Predicated region
    $region25: #{discriminator_forward.6} parent=5 // pred_check
      _
    $region26: #{discriminator_forward.6} parent=5 // pred_check_branch
      %116 = sbr.rel (%p113) target = $region28
    $region27: #{discriminator_forward.6} parent=5 // pred_region
      %s117 = ssub.s32 %s8, 1
      %p118 = scmp.lt.s32.totalorder %s13, 1
      %s119 = scalar_select %p118, %s13, 1
      %s120 = smul.addr %s119, 51
      %s121 = smul.addr %s120, 4
      %s122 = scalar_lea.vmem %s0, %s121
      %p123 = pneg %p34
      %p124 = pneg %p31
      %p125 = pneg %p55
      %p126 = pneg %p52
      %p127 = pneg %p81
      %p128 = pneg %p78
      %p129 = scmp.lt.s32.totalorder %s13, 1
      %s130 = scalar_select %p129, %s13, 1
      %s131 = smul.addr %s130, 32
      %s132 = smul.addr %s131, 4
      %s133 = scalar_lea.vmem %s2, %s132
      %p134 = scmp.lt.s32.totalorder %s13, 1
      %s135 = scalar_select %p134, %s13, 1
      %s136 = smul.addr %s135, 51
      %s137 = smul.addr %s136, 4
      %s138 = scalar_lea.vmem %s0, %s137
      %p139 = scmp.lt.s32.totalorder %s13, 1
      %s140 = scalar_select %p139, %s13, 1
      %s141 = smul.addr %s140, 32
      %s142 = smul.addr %s141, 4
      %s143 = scalar_lea.vmem %s2, %s142
      %v145 = vld [vmem:[%s138] sm:$0xf]
      %v146 = vld [vmem:[%s138 + $0x4] sm:$0xf]
      %v147 = vld [vmem:[%s138 + $0xc] sm:$0xf]
      %v148 = vld [vmem:[%s138 + $0x10] sm:$0xf]
      %v149 = vld [vmem:[%s138 + $0x18] sm:$0xf]
      %v150 = vld [vmem:[%s138 + $0x1c] sm:$0xf]
      %v151 = vld [vmem:[%s138 + $0x24] sm:$0xf]
      %v152 = vld [vmem:[%s138 + $0x28] sm:$0xf]
      %v153 = vld [vmem:[%s138 + $0x30] sm:$0xf]
      %v154 = vld [vmem:[%s138 + $0x34] sm:$0xf]
      %v155 = vld [vmem:[%s138 + $0x3c] sm:$0xf]
      %v156 = vld [vmem:[%s138 + $0x40] sm:$0xf]
      %v157 = vld [vmem:[%s138 + $0x48] sm:$0xf]
      %v158 = vld [vmem:[%s138 + $0x4c] sm:$0xf]
      %v159 = vld [vmem:[%s138 + $0x54] sm:$0xf]
      %v160 = vld [vmem:[%s138 + $0x58] sm:$0xf]
      %v161 = vld [vmem:[%s138 + $0x60] sm:$0xf]
      %v162 = vld [vmem:[%s138 + $0x64] sm:$0xf]
      %v163 = vld [vmem:[%s138 + $0x6c] sm:$0xf]
      %v164 = vld [vmem:[%s138 + $0x70] sm:$0xf]
      %v165 = vld [vmem:[%s138 + $0x78] sm:$0xf]
      %v166 = vld [vmem:[%s138 + $0x7c] sm:$0xf]
      %v167 = vld [vmem:[%s138 + $0x84] sm:$0xf]
      %v168 = vld [vmem:[%s138 + $0x88] sm:$0xf]
      %v169 = vld [vmem:[%s138 + $0x90] sm:$0xf]
      %v170 = vld [vmem:[%s138 + $0x94] sm:$0xf]
      %v171 = vld [vmem:[%s138 + $0x9c] sm:$0xf]
      %v172 = vld [vmem:[%s138 + $0xa0] sm:$0xf]
      %v173 = vld [vmem:[%s138 + $0xa8] sm:$0xf]
      %v174 = vld [vmem:[%s138 + $0xac] sm:$0xf]
      %v175 = vld [vmem:[%s138 + $0xb4] sm:$0xf]
      %v176 = vld [vmem:[%s138 + $0xb8] sm:$0xf]
      %v177 = vld [vmem:[%s1] sm:$0xf]
      %v178 = vld [vmem:[%s1 + $0x4] sm:$0xf]
      %v179 = vld [vmem:[%s1 + $0x8] sm:$0xf]
      %v180 = vld [vmem:[%s1 + $0xc] sm:$0xf]
      %v181 = vld [vmem:[%s138 + $0x8] sm:$0x1]
      %v182 = vld [vmem:[%s138 + $0x14] sm:$0x1]
      %v183 = vld [vmem:[%s138 + $0x20] sm:$0x1]
      %v184 = vld [vmem:[%s138 + $0x2c] sm:$0x1]
      %v185 = vld [vmem:[%s138 + $0x38] sm:$0x1]
      %v186 = vld [vmem:[%s138 + $0x44] sm:$0x1]
      %v187 = vld [vmem:[%s138 + $0x50] sm:$0x1]
      %v188 = vld [vmem:[%s138 + $0x5c] sm:$0x1]
      %v189 = vld [vmem:[%s138 + $0x68] sm:$0x1]
      %v190 = vld [vmem:[%s138 + $0x74] sm:$0x1]
      %v191 = vld [vmem:[%s138 + $0x80] sm:$0x1]
      %v192 = vld [vmem:[%s138 + $0x8c] sm:$0x1]
      %v193 = vld [vmem:[%s138 + $0x98] sm:$0x1]
      %v194 = vld [vmem:[%s138 + $0xa4] sm:$0x1]
      %v195 = vld [vmem:[%s138 + $0xb0] sm:$0x1]
      %v196 = vld [vmem:[%s138 + $0xbc] sm:$0x1]
      %vm197 = vsmask.f32 3328
      %vm198 = vsmask.f32 7440
      %vm199 = vmor %vm197, %vm198
      %v201 = vshrl.u32 %v145, 16
      %v203 = vrot.slane %v201, 4
      %v204 = vshll.u32 %v145, 16
      %v206 = vrot.slane %v204, 5
      %v207 = vor.u32 %v203, %v206
      %v208 = vrot.slane %v207, 4
      %v210 = vshll.u32 %v146, 16
      %v212 = vrot.slane %v210, 5
      %v213 = vsel %vm199, %v208, %v212
      %v214 = vshrl.u32 %v146, 16
      %v216 = vrot.slane %v214, 4
      %v217 = vor.u32 %v216, %v212
      %v218 = vrot.slane %v217, 4
      %v220 = vshll.u32 %v181, 16
      %v222 = vrot.slane %v220, 5
      %v223 = vsel %vm199, %v218, %v222
      %v225 = vshrl.u32 %v147, 16
      %v227 = vrot.slane %v225, 4
      %v228 = vshll.u32 %v147, 16
      %v230 = vrot.slane %v228, 5
      %v231 = vor.u32 %v227, %v230
      %v232 = vrot.slane %v231, 4
      %v234 = vshll.u32 %v148, 16
      %v236 = vrot.slane %v234, 5
      %v237 = vsel %vm199, %v232, %v236
      %v238 = vshrl.u32 %v148, 16
      %v240 = vrot.slane %v238, 4
      %v241 = vor.u32 %v240, %v236
      %v242 = vrot.slane %v241, 4
      %v244 = vshll.u32 %v182, 16
      %v246 = vrot.slane %v244, 5
      %v247 = vsel %vm199, %v242, %v246
      %v249 = vshrl.u32 %v149, 16
      %v251 = vrot.slane %v249, 4
      %v252 = vshll.u32 %v149, 16
      %v254 = vrot.slane %v252, 5
      %v255 = vor.u32 %v251, %v254
      %v256 = vrot.slane %v255, 4
      %v258 = vshll.u32 %v150, 16
      %v260 = vrot.slane %v258, 5
      %v261 = vsel %vm199, %v256, %v260
      %v262 = vshrl.u32 %v150, 16
      %v264 = vrot.slane %v262, 4
      %v265 = vor.u32 %v264, %v260
      %v266 = vrot.slane %v265, 4
      %v268 = vshll.u32 %v183, 16
      %v270 = vrot.slane %v268, 5
      %v271 = vsel %vm199, %v266, %v270
      %v273 = vshrl.u32 %v151, 16
      %v275 = vrot.slane %v273, 4
      %v276 = vshll.u32 %v151, 16
      %v278 = vrot.slane %v276, 5
      %v279 = vor.u32 %v275, %v278
      %v280 = vrot.slane %v279, 4
      %v282 = vshll.u32 %v152, 16
      %v284 = vrot.slane %v282, 5
      %v285 = vsel %vm199, %v280, %v284
      %v286 = vshrl.u32 %v152, 16
      %v288 = vrot.slane %v286, 4
      %v289 = vor.u32 %v288, %v284
      %v290 = vrot.slane %v289, 4
      %v292 = vshll.u32 %v184, 16
      %v294 = vrot.slane %v292, 5
      %v295 = vsel %vm199, %v290, %v294
      %v297 = vshrl.u32 %v153, 16
      %v299 = vrot.slane %v297, 4
      %v300 = vshll.u32 %v153, 16
      %v302 = vrot.slane %v300, 5
      %v303 = vor.u32 %v299, %v302
      %v304 = vrot.slane %v303, 4
      %v306 = vshll.u32 %v154, 16
      %v308 = vrot.slane %v306, 5
      %v309 = vsel %vm199, %v304, %v308
      %v310 = vshrl.u32 %v154, 16
      %v312 = vrot.slane %v310, 4
      %v313 = vor.u32 %v312, %v308
      %v314 = vrot.slane %v313, 4
      %v316 = vshll.u32 %v185, 16
      %v318 = vrot.slane %v316, 5
      %v319 = vsel %vm199, %v314, %v318
      %v321 = vshrl.u32 %v155, 16
      %v323 = vrot.slane %v321, 4
      %v324 = vshll.u32 %v155, 16
      %v326 = vrot.slane %v324, 5
      %v327 = vor.u32 %v323, %v326
      %v328 = vrot.slane %v327, 4
      %v330 = vshll.u32 %v156, 16
      %v332 = vrot.slane %v330, 5
      %v333 = vsel %vm199, %v328, %v332
      %v334 = vshrl.u32 %v156, 16
      %v336 = vrot.slane %v334, 4
      %v337 = vor.u32 %v336, %v332
      %v338 = vrot.slane %v337, 4
      %v340 = vshll.u32 %v186, 16
      %v342 = vrot.slane %v340, 5
      %v343 = vsel %vm199, %v338, %v342
      %v345 = vshrl.u32 %v157, 16
      %v347 = vrot.slane %v345, 4
      %v348 = vshll.u32 %v157, 16
      %v350 = vrot.slane %v348, 5
      %v351 = vor.u32 %v347, %v350
      %v352 = vrot.slane %v351, 4
      %v354 = vshll.u32 %v158, 16
      %v356 = vrot.slane %v354, 5
      %v357 = vsel %vm199, %v352, %v356
      %v358 = vshrl.u32 %v158, 16
      %v360 = vrot.slane %v358, 4
      %v361 = vor.u32 %v360, %v356
      %v362 = vrot.slane %v361, 4
      %v364 = vshll.u32 %v187, 16
      %v366 = vrot.slane %v364, 5
      %v367 = vsel %vm199, %v362, %v366
      %v369 = vshrl.u32 %v159, 16
      %v371 = vrot.slane %v369, 4
      %v372 = vshll.u32 %v159, 16
      %v374 = vrot.slane %v372, 5
      %v375 = vor.u32 %v371, %v374
      %v376 = vrot.slane %v375, 4
      %v378 = vshll.u32 %v160, 16
      %v380 = vrot.slane %v378, 5
      %v381 = vsel %vm199, %v376, %v380
      %v382 = vshrl.u32 %v160, 16
      %v384 = vrot.slane %v382, 4
      %v385 = vor.u32 %v384, %v380
      %v386 = vrot.slane %v385, 4
      %v388 = vshll.u32 %v188, 16
      %v390 = vrot.slane %v388, 5
      %v391 = vsel %vm199, %v386, %v390
      %v393 = vshrl.u32 %v161, 16
      %v395 = vrot.slane %v393, 4
      %v396 = vshll.u32 %v161, 16
      %v398 = vrot.slane %v396, 5
      %v399 = vor.u32 %v395, %v398
      %v400 = vrot.slane %v399, 4
      %v402 = vshll.u32 %v162, 16
      %v404 = vrot.slane %v402, 5
      %v405 = vsel %vm199, %v400, %v404
      %v406 = vshrl.u32 %v162, 16
      %v408 = vrot.slane %v406, 4
      %v409 = vor.u32 %v408, %v404
      %v410 = vrot.slane %v409, 4
      %v412 = vshll.u32 %v189, 16
      %v414 = vrot.slane %v412, 5
      %v415 = vsel %vm199, %v410, %v414
      %v417 = vshrl.u32 %v163, 16
      %v419 = vrot.slane %v417, 4
      %v420 = vshll.u32 %v163, 16
      %v422 = vrot.slane %v420, 5
      %v423 = vor.u32 %v419, %v422
      %v424 = vrot.slane %v423, 4
      %v426 = vshll.u32 %v164, 16
      %v428 = vrot.slane %v426, 5
      %v429 = vsel %vm199, %v424, %v428
      %v430 = vshrl.u32 %v164, 16
      %v432 = vrot.slane %v430, 4
      %v433 = vor.u32 %v432, %v428
      %v434 = vrot.slane %v433, 4
      %v436 = vshll.u32 %v190, 16
      %v438 = vrot.slane %v436, 5
      %v439 = vsel %vm199, %v434, %v438
      %v441 = vshrl.u32 %v165, 16
      %v443 = vrot.slane %v441, 4
      %v444 = vshll.u32 %v165, 16
      %v446 = vrot.slane %v444, 5
      %v447 = vor.u32 %v443, %v446
      %v448 = vrot.slane %v447, 4
      %v450 = vshll.u32 %v166, 16
      %v452 = vrot.slane %v450, 5
      %v453 = vsel %vm199, %v448, %v452
      %v454 = vshrl.u32 %v166, 16
      %v456 = vrot.slane %v454, 4
      %v457 = vor.u32 %v456, %v452
      %v458 = vrot.slane %v457, 4
      %v460 = vshll.u32 %v191, 16
      %v462 = vrot.slane %v460, 5
      %v463 = vsel %vm199, %v458, %v462
      %v465 = vshrl.u32 %v167, 16
      %v467 = vrot.slane %v465, 4
      %v468 = vshll.u32 %v167, 16
      %v470 = vrot.slane %v468, 5
      %v471 = vor.u32 %v467, %v470
      %v472 = vrot.slane %v471, 4
      %v474 = vshll.u32 %v168, 16
      %v476 = vrot.slane %v474, 5
      %v477 = vsel %vm199, %v472, %v476
      %v478 = vshrl.u32 %v168, 16
      %v480 = vrot.slane %v478, 4
      %v481 = vor.u32 %v480, %v476
      %v482 = vrot.slane %v481, 4
      %v484 = vshll.u32 %v192, 16
      %v486 = vrot.slane %v484, 5
      %v487 = vsel %vm199, %v482, %v486
      %v489 = vshrl.u32 %v169, 16
      %v491 = vrot.slane %v489, 4
      %v492 = vshll.u32 %v169, 16
      %v494 = vrot.slane %v492, 5
      %v495 = vor.u32 %v491, %v494
      %v496 = vrot.slane %v495, 4
      %v498 = vshll.u32 %v170, 16
      %v500 = vrot.slane %v498, 5
      %v501 = vsel %vm199, %v496, %v500
      %v502 = vshrl.u32 %v170, 16
      %v504 = vrot.slane %v502, 4
      %v505 = vor.u32 %v504, %v500
      %v506 = vrot.slane %v505, 4
      %v508 = vshll.u32 %v193, 16
      %v510 = vrot.slane %v508, 5
      %v511 = vsel %vm199, %v506, %v510
      %v513 = vshrl.u32 %v171, 16
      %v515 = vrot.slane %v513, 4
      %v516 = vshll.u32 %v171, 16
      %v518 = vrot.slane %v516, 5
      %v519 = vor.u32 %v515, %v518
      %v520 = vrot.slane %v519, 4
      %v522 = vshll.u32 %v172, 16
      %v524 = vrot.slane %v522, 5
      %v525 = vsel %vm199, %v520, %v524
      %v526 = vshrl.u32 %v172, 16
      %v528 = vrot.slane %v526, 4
      %v529 = vor.u32 %v528, %v524
      %v530 = vrot.slane %v529, 4
      %v532 = vshll.u32 %v194, 16
      %v534 = vrot.slane %v532, 5
      %v535 = vsel %vm199, %v530, %v534
      %v537 = vshrl.u32 %v173, 16
      %v539 = vrot.slane %v537, 4
      %v540 = vshll.u32 %v173, 16
      %v542 = vrot.slane %v540, 5
      %v543 = vor.u32 %v539, %v542
      %v544 = vrot.slane %v543, 4
      %v546 = vshll.u32 %v174, 16
      %v548 = vrot.slane %v546, 5
      %v549 = vsel %vm199, %v544, %v548
      %v550 = vshrl.u32 %v174, 16
      %v552 = vrot.slane %v550, 4
      %v553 = vor.u32 %v552, %v548
      %v554 = vrot.slane %v553, 4
      %v556 = vshll.u32 %v195, 16
      %v558 = vrot.slane %v556, 5
      %v559 = vsel %vm199, %v554, %v558
      %v561 = vshrl.u32 %v175, 16
      %v563 = vrot.slane %v561, 4
      %v564 = vshll.u32 %v175, 16
      %v566 = vrot.slane %v564, 5
      %v567 = vor.u32 %v563, %v566
      %v568 = vrot.slane %v567, 4
      %v570 = vshll.u32 %v176, 16
      %v572 = vrot.slane %v570, 5
      %v573 = vsel %vm199, %v568, %v572
      %v574 = vshrl.u32 %v176, 16
      %v576 = vrot.slane %v574, 4
      %v577 = vor.u32 %v576, %v572
      %v578 = vrot.slane %v577, 4
      %v580 = vshll.u32 %v196, 16
      %v582 = vrot.slane %v580, 5
      %v583 = vsel %vm199, %v578, %v582
      %s584 = scalar_lea.vmem %s1, 16
      %v585 = vld [vmem:[%s584] sm:$0xf]
      %v586 = vld [vmem:[%s584 + $0x4] sm:$0xf]
      %v587 = vld [vmem:[%s584 + $0x8] sm:$0xf]
      %v588 = vld [vmem:[%s584 + $0xc] sm:$0xf]
      %v589 = vunpack.c.l.b16 %v213
      %v590 = vunpack.c.l.b16 %v223
      %v591 = vunpack.c.l.b16 %v237
      %v592 = vunpack.c.l.b16 %v247
      %v593 = vunpack.c.l.b16 %v261
      %v594 = vunpack.c.l.b16 %v271
      %v595 = vunpack.c.l.b16 %v285
      %v596 = vunpack.c.l.b16 %v295
      %v597 = vunpack.c.l.b16 %v309
      %v598 = vunpack.c.l.b16 %v319
      %v599 = vunpack.c.l.b16 %v333
      %v600 = vunpack.c.l.b16 %v343
      %v601 = vunpack.c.l.b16 %v357
      %v602 = vunpack.c.l.b16 %v367
      %v603 = vunpack.c.l.b16 %v381
      %v604 = vunpack.c.l.b16 %v391
      %v605 = vunpack.c.l.b16 %v405
      %v606 = vunpack.c.l.b16 %v415
      %v607 = vunpack.c.l.b16 %v429
      %v608 = vunpack.c.l.b16 %v439
      %v609 = vunpack.c.l.b16 %v453
      %v610 = vunpack.c.l.b16 %v463
      %v611 = vunpack.c.l.b16 %v477
      %v612 = vunpack.c.l.b16 %v487
      %v613 = vunpack.c.l.b16 %v501
      %v614 = vunpack.c.l.b16 %v511
      %v615 = vunpack.c.l.b16 %v525
      %v616 = vunpack.c.l.b16 %v535
      %v617 = vunpack.c.l.b16 %v549
      %v618 = vunpack.c.l.b16 %v559
      %v619 = vunpack.c.l.b16 %v573
      %v620 = vunpack.c.l.b16 %v583
      %v621 = vpack.c.b16 %v590, %v589
      %v622 = vpack.c.b16 %v592, %v591
      %v623 = vpack.c.b16 %v594, %v593
      %v624 = vpack.c.b16 %v596, %v595
      %v625 = vpack.c.b16 %v598, %v597
      %v626 = vpack.c.b16 %v600, %v599
      %v627 = vpack.c.b16 %v602, %v601
      %v628 = vpack.c.b16 %v604, %v603
      %v629 = vpack.c.b16 %v606, %v605
      %v630 = vpack.c.b16 %v608, %v607
      %v631 = vpack.c.b16 %v610, %v609
      %v632 = vpack.c.b16 %v612, %v611
      %v633 = vpack.c.b16 %v614, %v613
      %v634 = vpack.c.b16 %v616, %v615
      %v635 = vpack.c.b16 %v618, %v617
      %v636 = vpack.c.b16 %v620, %v619
      %v641 = vunpack.c.l.b16 %v585
      %v642 = vunpack.c.l.b16 %v586
      %v643 = vunpack.c.l.b16 %v587
      %v644 = vunpack.c.l.b16 %v588
      %v645 = vpack.c.b16 %v642, %v641
      %v646 = vpack.c.b16 %v644, %v643
      %vm649 = vcmask 261120
      %v651 = vsel %vm649, %v621, 0
      %v654 = vsel %vm649, %v622, 0
      %v657 = vsel %vm649, %v623, 0
      %v660 = vsel %vm649, %v624, 0
      %v663 = vsel %vm649, %v625, 0
      %v666 = vsel %vm649, %v626, 0
      %v669 = vsel %vm649, %v627, 0
      %v672 = vsel %vm649, %v628, 0
      %v675 = vsel %vm649, %v629, 0
      %v678 = vsel %vm649, %v630, 0
      %v681 = vsel %vm649, %v631, 0
      %v684 = vsel %vm649, %v632, 0
      %v687 = vsel %vm649, %v633, 0
      %v690 = vsel %vm649, %v634, 0
      %v693 = vsel %vm649, %v635, 0
      %v696 = vsel %vm649, %v636, 0
      %698 = vmatprep.subr.bf16.mxu0 0
      %699 = vmatpush1.bf16.msra.mxu0 0
      %700 = vmatprep.subr.bf16.mxu0 0
      %701 = vmatpush1.bf16.msra.mxu0 0
      %702 = vmatprep.subr.bf16.mxu0 0
      %703 = vmatpush1.bf16.msra.mxu0 0
      %704 = vmatprep.subr.bf16.mxu0 0
      %705 = vmatpush1.bf16.msra.mxu0 0
      %706 = vmatprep.subr.bf16.mxu0 0
      %707 = vmatpush1.bf16.msra.mxu0 0
      %708 = vmatprep.subr.bf16.mxu0 0
      %709 = vmatpush1.bf16.msra.mxu0 0
      %710 = vmatprep.subr.bf16.mxu0 0
      %711 = vmatpush1.bf16.msra.mxu0 %v646
      %712 = vmatprep.subr.bf16.mxu0 0
      %713 = vmatpush1.bf16.msra.mxu0 %v645
      %714 = vmatprep.subr.bf16.mxu0 0
      %715 = vmatpush2.bf16.msra.mxu0 0
      %716 = vmatprep.subr.bf16.mxu0 0
      %717 = vmatpush2.bf16.msra.mxu0 0
      %718 = vmatprep.subr.bf16.mxu0 0
      %719 = vmatpush2.bf16.msra.mxu0 0
      %720 = vmatprep.subr.bf16.mxu0 0
      %721 = vmatpush2.bf16.msra.mxu0 0
      %722 = vmatprep.subr.bf16.mxu0 0
      %723 = vmatpush2.bf16.msra.mxu0 0
      %724 = vmatprep.subr.bf16.mxu0 0
      %725 = vmatpush2.bf16.msra.mxu0 0
      %726 = vmatprep.subr.bf16.mxu0 0
      %727 = vmatpush2.bf16.msra.mxu0 0
      %728 = vmatprep.subr.bf16.mxu0 0
      %729 = vmatpush2.bf16.msra.mxu0 0
      %730 = vmatprep.mubr.bf16.mxu0 0
      %731 = vmatmul.mubr.bf16.gmra.mxu0 %v651
      %v732 = vpop.f32.mrf.mxu0
      %v733 = vadd.f32 0.0, %v732
      %v734 = vpop.f32.mrf.mxu0
      %v735 = vpop.f32.mrf.mxu0
      %v736 = vadd.f32 0.0, %v735
      %v737 = vpop.f32.mrf.mxu0
      %738 = vmatprep.mubr.bf16.mxu0 0
      %739 = vmatmul.mubr.bf16.gmra.mxu0 %v654
      %v740 = vpop.f32.mrf.mxu0
      %v741 = vadd.f32 0.0, %v740
      %v742 = vpop.f32.mrf.mxu0
      %v743 = vpop.f32.mrf.mxu0
      %v744 = vadd.f32 0.0, %v743
      %v745 = vpop.f32.mrf.mxu0
      %746 = vmatprep.mubr.bf16.mxu0 0
      %747 = vmatmul.mubr.bf16.gmra.mxu0 %v657
      %v748 = vpop.f32.mrf.mxu0
      %v749 = vadd.f32 0.0, %v748
      %v750 = vpop.f32.mrf.mxu0
      %v751 = vpop.f32.mrf.mxu0
      %v752 = vadd.f32 0.0, %v751
      %v753 = vpop.f32.mrf.mxu0
      %754 = vmatprep.mubr.bf16.mxu0 0
      %755 = vmatmul.mubr.bf16.gmra.mxu0 %v660
      %v756 = vpop.f32.mrf.mxu0
      %v757 = vadd.f32 0.0, %v756
      %v758 = vpop.f32.mrf.mxu0
      %v759 = vpop.f32.mrf.mxu0
      %v760 = vadd.f32 0.0, %v759
      %v761 = vpop.f32.mrf.mxu0
      %762 = vmatprep.mubr.bf16.mxu0 0
      %763 = vmatmul.mubr.bf16.gmra.mxu0 %v663
      %v764 = vpop.f32.mrf.mxu0
      %v765 = vadd.f32 0.0, %v764
      %v766 = vpop.f32.mrf.mxu0
      %v767 = vpop.f32.mrf.mxu0
      %v768 = vadd.f32 0.0, %v767
      %v769 = vpop.f32.mrf.mxu0
      %770 = vmatprep.mubr.bf16.mxu0 0
      %771 = vmatmul.mubr.bf16.gmra.mxu0 %v666
      %v772 = vpop.f32.mrf.mxu0
      %v773 = vadd.f32 0.0, %v772
      %v774 = vpop.f32.mrf.mxu0
      %v775 = vpop.f32.mrf.mxu0
      %v776 = vadd.f32 0.0, %v775
      %v777 = vpop.f32.mrf.mxu0
      %778 = vmatprep.mubr.bf16.mxu0 0
      %779 = vmatmul.mubr.bf16.gmra.mxu0 %v669
      %v780 = vpop.f32.mrf.mxu0
      %v781 = vadd.f32 0.0, %v780
      %v782 = vpop.f32.mrf.mxu0
      %v783 = vpop.f32.mrf.mxu0
      %v784 = vadd.f32 0.0, %v783
      %v785 = vpop.f32.mrf.mxu0
      %786 = vmatprep.mubr.bf16.mxu0 0
      %787 = vmatmul.mubr.bf16.gmra.mxu0 %v672
      %v788 = vpop.f32.mrf.mxu0
      %v789 = vadd.f32 0.0, %v788
      %v790 = vpop.f32.mrf.mxu0
      %v791 = vpop.f32.mrf.mxu0
      %v792 = vadd.f32 0.0, %v791
      %v793 = vpop.f32.mrf.mxu0
      %794 = vmatprep.mubr.bf16.mxu0 0
      %795 = vmatmul.mubr.bf16.gmra.mxu0 %v675
      %v796 = vpop.f32.mrf.mxu0
      %v797 = vadd.f32 0.0, %v796
      %v798 = vpop.f32.mrf.mxu0
      %v799 = vpop.f32.mrf.mxu0
      %v800 = vadd.f32 0.0, %v799
      %v801 = vpop.f32.mrf.mxu0
      %802 = vmatprep.mubr.bf16.mxu0 0
      %803 = vmatmul.mubr.bf16.gmra.mxu0 %v678
      %v804 = vpop.f32.mrf.mxu0
      %v805 = vadd.f32 0.0, %v804
      %v806 = vpop.f32.mrf.mxu0
      %v807 = vpop.f32.mrf.mxu0
      %v808 = vadd.f32 0.0, %v807
      %v809 = vpop.f32.mrf.mxu0
      %810 = vmatprep.mubr.bf16.mxu0 0
      %811 = vmatmul.mubr.bf16.gmra.mxu0 %v681
      %v812 = vpop.f32.mrf.mxu0
      %v813 = vadd.f32 0.0, %v812
      %v814 = vpop.f32.mrf.mxu0
      %v815 = vpop.f32.mrf.mxu0
      %v816 = vadd.f32 0.0, %v815
      %v817 = vpop.f32.mrf.mxu0
      %818 = vmatprep.mubr.bf16.mxu0 0
      %819 = vmatmul.mubr.bf16.gmra.mxu0 %v684
      %v820 = vpop.f32.mrf.mxu0
      %v821 = vadd.f32 0.0, %v820
      %v822 = vpop.f32.mrf.mxu0
      %v823 = vpop.f32.mrf.mxu0
      %v824 = vadd.f32 0.0, %v823
      %v825 = vpop.f32.mrf.mxu0
      %826 = vmatprep.mubr.bf16.mxu0 0
      %827 = vmatmul.mubr.bf16.gmra.mxu0 %v687
      %v828 = vpop.f32.mrf.mxu0
      %v829 = vadd.f32 0.0, %v828
      %v830 = vpop.f32.mrf.mxu0
      %v831 = vpop.f32.mrf.mxu0
      %v832 = vadd.f32 0.0, %v831
      %v833 = vpop.f32.mrf.mxu0
      %834 = vmatprep.mubr.bf16.mxu0 0
      %835 = vmatmul.mubr.bf16.gmra.mxu0 %v690
      %v836 = vpop.f32.mrf.mxu0
      %v837 = vadd.f32 0.0, %v836
      %v838 = vpop.f32.mrf.mxu0
      %v839 = vpop.f32.mrf.mxu0
      %v840 = vadd.f32 0.0, %v839
      %v841 = vpop.f32.mrf.mxu0
      %842 = vmatprep.mubr.bf16.mxu0 0
      %843 = vmatmul.mubr.bf16.gmra.mxu0 %v693
      %v844 = vpop.f32.mrf.mxu0
      %v845 = vadd.f32 0.0, %v844
      %v846 = vpop.f32.mrf.mxu0
      %v847 = vpop.f32.mrf.mxu0
      %v848 = vadd.f32 0.0, %v847
      %v849 = vpop.f32.mrf.mxu0
      %850 = vmatprep.mubr.bf16.mxu0 0
      %851 = vmatmul.mubr.bf16.gmra.mxu0 %v696
      %v852 = vpop.f32.mrf.mxu0
      %v853 = vadd.f32 0.0, %v852
      %v854 = vpop.f32.mrf.mxu0
      %v855 = vpop.f32.mrf.mxu0
      %v856 = vadd.f32 0.0, %v855
      %v857 = vpop.f32.mrf.mxu0
      %858 = vdwg.mxu0
      %v891 = vunpack.c.l.b16 %v145
      %v892 = vunpack.c.l.b16 %v146
      %v893 = vunpack.c.l.b16 %v147
      %v894 = vunpack.c.l.b16 %v148
      %v895 = vunpack.c.l.b16 %v149
      %v896 = vunpack.c.l.b16 %v150
      %v897 = vunpack.c.l.b16 %v151
      %v898 = vunpack.c.l.b16 %v152
      %v899 = vunpack.c.l.b16 %v153
      %v900 = vunpack.c.l.b16 %v154
      %v901 = vunpack.c.l.b16 %v155
      %v902 = vunpack.c.l.b16 %v156
      %v903 = vunpack.c.l.b16 %v157
      %v904 = vunpack.c.l.b16 %v158
      %v905 = vunpack.c.l.b16 %v159
      %v906 = vunpack.c.l.b16 %v160
      %v907 = vunpack.c.l.b16 %v161
      %v908 = vunpack.c.l.b16 %v162
      %v909 = vunpack.c.l.b16 %v163
      %v910 = vunpack.c.l.b16 %v164
      %v911 = vunpack.c.l.b16 %v165
      %v912 = vunpack.c.l.b16 %v166
      %v913 = vunpack.c.l.b16 %v167
      %v914 = vunpack.c.l.b16 %v168
      %v915 = vunpack.c.l.b16 %v169
      %v916 = vunpack.c.l.b16 %v170
      %v917 = vunpack.c.l.b16 %v171
      %v918 = vunpack.c.l.b16 %v172
      %v919 = vunpack.c.l.b16 %v173
      %v920 = vunpack.c.l.b16 %v174
      %v921 = vunpack.c.l.b16 %v175
      %v922 = vunpack.c.l.b16 %v176
      %v923 = vpack.c.b16 %v892, %v891
      %v924 = vpack.c.b16 %v894, %v893
      %v925 = vpack.c.b16 %v896, %v895
      %v926 = vpack.c.b16 %v898, %v897
      %v927 = vpack.c.b16 %v900, %v899
      %v928 = vpack.c.b16 %v902, %v901
      %v929 = vpack.c.b16 %v904, %v903
      %v930 = vpack.c.b16 %v906, %v905
      %v931 = vpack.c.b16 %v908, %v907
      %v932 = vpack.c.b16 %v910, %v909
      %v933 = vpack.c.b16 %v912, %v911
      %v934 = vpack.c.b16 %v914, %v913
      %v935 = vpack.c.b16 %v916, %v915
      %v936 = vpack.c.b16 %v918, %v917
      %v937 = vpack.c.b16 %v920, %v919
      %v938 = vpack.c.b16 %v922, %v921
      %v943 = vunpack.c.l.b16 %v177
      %v944 = vunpack.c.l.b16 %v178
      %v945 = vunpack.c.l.b16 %v179
      %v946 = vunpack.c.l.b16 %v180
      %v947 = vpack.c.b16 %v944, %v943
      %v948 = vpack.c.b16 %v946, %v945
      %v952 = vsel %vm649, %v923, 0
      %v955 = vsel %vm649, %v924, 0
      %v958 = vsel %vm649, %v925, 0
      %v961 = vsel %vm649, %v926, 0
      %v964 = vsel %vm649, %v927, 0
      %v967 = vsel %vm649, %v928, 0
      %v970 = vsel %vm649, %v929, 0
      %v973 = vsel %vm649, %v930, 0
      %v976 = vsel %vm649, %v931, 0
      %v979 = vsel %vm649, %v932, 0
      %v982 = vsel %vm649, %v933, 0
      %v985 = vsel %vm649, %v934, 0
      %v988 = vsel %vm649, %v935, 0
      %v991 = vsel %vm649, %v936, 0
      %v994 = vsel %vm649, %v937, 0
      %v997 = vsel %vm649, %v938, 0
      %999 = vmatprep.subr.bf16.mxu0 0
      %1000 = vmatpush1.bf16.msra.mxu0 0
      %1001 = vmatprep.subr.bf16.mxu0 0
      %1002 = vmatpush1.bf16.msra.mxu0 0
      %1003 = vmatprep.subr.bf16.mxu0 0
      %1004 = vmatpush1.bf16.msra.mxu0 0
      %1005 = vmatprep.subr.bf16.mxu0 0
      %1006 = vmatpush1.bf16.msra.mxu0 0
      %1007 = vmatprep.subr.bf16.mxu0 0
      %1008 = vmatpush1.bf16.msra.mxu0 0
      %1009 = vmatprep.subr.bf16.mxu0 0
      %1010 = vmatpush1.bf16.msra.mxu0 0
      %1011 = vmatprep.subr.bf16.mxu0 0
      %1012 = vmatpush1.bf16.msra.mxu0 %v948
      %1013 = vmatprep.subr.bf16.mxu0 0
      %1014 = vmatpush1.bf16.msra.mxu0 %v947
      %1015 = vmatprep.subr.bf16.mxu0 0
      %1016 = vmatpush2.bf16.msra.mxu0 0
      %1017 = vmatprep.subr.bf16.mxu0 0
      %1018 = vmatpush2.bf16.msra.mxu0 0
      %1019 = vmatprep.subr.bf16.mxu0 0
      %1020 = vmatpush2.bf16.msra.mxu0 0
      %1021 = vmatprep.subr.bf16.mxu0 0
      %1022 = vmatpush2.bf16.msra.mxu0 0
      %1023 = vmatprep.subr.bf16.mxu0 0
      %1024 = vmatpush2.bf16.msra.mxu0 0
      %1025 = vmatprep.subr.bf16.mxu0 0
      %1026 = vmatpush2.bf16.msra.mxu0 0
      %1027 = vmatprep.subr.bf16.mxu0 0
      %1028 = vmatpush2.bf16.msra.mxu0 0
      %1029 = vmatprep.subr.bf16.mxu0 0
      %1030 = vmatpush2.bf16.msra.mxu0 0
      %1031 = vmatprep.mubr.bf16.mxu0 0
      %1032 = vmatmul.mubr.bf16.gmra.mxu0 %v952
      %v1033 = vpop.f32.mrf.mxu0
      %v1034 = vadd.f32 %v733, %v1033
      %v1035 = vpop.f32.mrf.mxu0
      %v1036 = vpop.f32.mrf.mxu0
      %v1037 = vadd.f32 %v736, %v1036
      %v1038 = vpop.f32.mrf.mxu0
      %1039 = vmatprep.mubr.bf16.mxu0 0
      %1040 = vmatmul.mubr.bf16.gmra.mxu0 %v955
      %v1041 = vpop.f32.mrf.mxu0
      %v1042 = vadd.f32 %v741, %v1041
      %v1043 = vpop.f32.mrf.mxu0
      %v1044 = vpop.f32.mrf.mxu0
      %v1045 = vadd.f32 %v744, %v1044
      %v1046 = vpop.f32.mrf.mxu0
      %1047 = vmatprep.mubr.bf16.mxu0 0
      %1048 = vmatmul.mubr.bf16.gmra.mxu0 %v958
      %v1049 = vpop.f32.mrf.mxu0
      %v1050 = vadd.f32 %v749, %v1049
      %v1051 = vpop.f32.mrf.mxu0
      %v1052 = vpop.f32.mrf.mxu0
      %v1053 = vadd.f32 %v752, %v1052
      %v1054 = vpop.f32.mrf.mxu0
      %1055 = vmatprep.mubr.bf16.mxu0 0
      %1056 = vmatmul.mubr.bf16.gmra.mxu0 %v961
      %v1057 = vpop.f32.mrf.mxu0
      %v1058 = vadd.f32 %v757, %v1057
      %v1059 = vpop.f32.mrf.mxu0
      %v1060 = vpop.f32.mrf.mxu0
      %v1061 = vadd.f32 %v760, %v1060
      %v1062 = vpop.f32.mrf.mxu0
      %1063 = vmatprep.mubr.bf16.mxu0 0
      %1064 = vmatmul.mubr.bf16.gmra.mxu0 %v964
      %v1065 = vpop.f32.mrf.mxu0
      %v1066 = vadd.f32 %v765, %v1065
      %v1067 = vpop.f32.mrf.mxu0
      %v1068 = vpop.f32.mrf.mxu0
      %v1069 = vadd.f32 %v768, %v1068
      %v1070 = vpop.f32.mrf.mxu0
      %1071 = vmatprep.mubr.bf16.mxu0 0
      %1072 = vmatmul.mubr.bf16.gmra.mxu0 %v967
      %v1073 = vpop.f32.mrf.mxu0
      %v1074 = vadd.f32 %v773, %v1073
      %v1075 = vpop.f32.mrf.mxu0
      %v1076 = vpop.f32.mrf.mxu0
      %v1077 = vadd.f32 %v776, %v1076
      %v1078 = vpop.f32.mrf.mxu0
      %1079 = vmatprep.mubr.bf16.mxu0 0
      %1080 = vmatmul.mubr.bf16.gmra.mxu0 %v970
      %v1081 = vpop.f32.mrf.mxu0
      %v1082 = vadd.f32 %v781, %v1081
      %v1083 = vpop.f32.mrf.mxu0
      %v1084 = vpop.f32.mrf.mxu0
      %v1085 = vadd.f32 %v784, %v1084
      %v1086 = vpop.f32.mrf.mxu0
      %1087 = vmatprep.mubr.bf16.mxu0 0
      %1088 = vmatmul.mubr.bf16.gmra.mxu0 %v973
      %v1089 = vpop.f32.mrf.mxu0
      %v1090 = vadd.f32 %v789, %v1089
      %v1091 = vpop.f32.mrf.mxu0
      %v1092 = vpop.f32.mrf.mxu0
      %v1093 = vadd.f32 %v792, %v1092
      %v1094 = vpop.f32.mrf.mxu0
      %1095 = vmatprep.mubr.bf16.mxu0 0
      %1096 = vmatmul.mubr.bf16.gmra.mxu0 %v976
      %v1097 = vpop.f32.mrf.mxu0
      %v1098 = vadd.f32 %v797, %v1097
      %v1099 = vpop.f32.mrf.mxu0
      %v1100 = vpop.f32.mrf.mxu0
      %v1101 = vadd.f32 %v800, %v1100
      %v1102 = vpop.f32.mrf.mxu0
      %1103 = vmatprep.mubr.bf16.mxu0 0
      %1104 = vmatmul.mubr.bf16.gmra.mxu0 %v979
      %v1105 = vpop.f32.mrf.mxu0
      %v1106 = vadd.f32 %v805, %v1105
      %v1107 = vpop.f32.mrf.mxu0
      %v1108 = vpop.f32.mrf.mxu0
      %v1109 = vadd.f32 %v808, %v1108
      %v1110 = vpop.f32.mrf.mxu0
      %1111 = vmatprep.mubr.bf16.mxu0 0
      %1112 = vmatmul.mubr.bf16.gmra.mxu0 %v982
      %v1113 = vpop.f32.mrf.mxu0
      %v1114 = vadd.f32 %v813, %v1113
      %v1115 = vpop.f32.mrf.mxu0
      %v1116 = vpop.f32.mrf.mxu0
      %v1117 = vadd.f32 %v816, %v1116
      %v1118 = vpop.f32.mrf.mxu0
      %1119 = vmatprep.mubr.bf16.mxu0 0
      %1120 = vmatmul.mubr.bf16.gmra.mxu0 %v985
      %v1121 = vpop.f32.mrf.mxu0
      %v1122 = vadd.f32 %v821, %v1121
      %v1123 = vpop.f32.mrf.mxu0
      %v1124 = vpop.f32.mrf.mxu0
      %v1125 = vadd.f32 %v824, %v1124
      %v1126 = vpop.f32.mrf.mxu0
      %1127 = vmatprep.mubr.bf16.mxu0 0
      %1128 = vmatmul.mubr.bf16.gmra.mxu0 %v988
      %v1129 = vpop.f32.mrf.mxu0
      %v1130 = vadd.f32 %v829, %v1129
      %v1131 = vpop.f32.mrf.mxu0
      %v1132 = vpop.f32.mrf.mxu0
      %v1133 = vadd.f32 %v832, %v1132
      %v1134 = vpop.f32.mrf.mxu0
      %1135 = vmatprep.mubr.bf16.mxu0 0
      %1136 = vmatmul.mubr.bf16.gmra.mxu0 %v991
      %v1137 = vpop.f32.mrf.mxu0
      %v1138 = vadd.f32 %v837, %v1137
      %v1139 = vpop.f32.mrf.mxu0
      %v1140 = vpop.f32.mrf.mxu0
      %v1141 = vadd.f32 %v840, %v1140
      %v1142 = vpop.f32.mrf.mxu0
      %1143 = vmatprep.mubr.bf16.mxu0 0
      %1144 = vmatmul.mubr.bf16.gmra.mxu0 %v994
      %v1145 = vpop.f32.mrf.mxu0
      %v1146 = vadd.f32 %v845, %v1145
      %v1147 = vpop.f32.mrf.mxu0
      %v1148 = vpop.f32.mrf.mxu0
      %v1149 = vadd.f32 %v848, %v1148
      %v1150 = vpop.f32.mrf.mxu0
      %1151 = vmatprep.mubr.bf16.mxu0 0
      %1152 = vmatmul.mubr.bf16.gmra.mxu0 %v997
      %v1153 = vpop.f32.mrf.mxu0
      %v1154 = vadd.f32 %v853, %v1153
      %v1155 = vpop.f32.mrf.mxu0
      %v1156 = vpop.f32.mrf.mxu0
      %v1157 = vadd.f32 %v856, %v1156
      %v1158 = vpop.f32.mrf.mxu0
      %1159 = vdwg.mxu0
      %s1160 = scalar_lea.vmem %s138, 12
      %v1161 = vld [vmem:[%s1160] sm:$0xf]
      %v1162 = vld [vmem:[%s1160 + $0x4] sm:$0xf]
      %v1163 = vld [vmem:[%s1160 + $0xc] sm:$0xf]
      %v1164 = vld [vmem:[%s1160 + $0x10] sm:$0xf]
      %v1165 = vld [vmem:[%s1160 + $0x18] sm:$0xf]
      %v1166 = vld [vmem:[%s1160 + $0x1c] sm:$0xf]
      %v1167 = vld [vmem:[%s1160 + $0x24] sm:$0xf]
      %v1168 = vld [vmem:[%s1160 + $0x28] sm:$0xf]
      %v1169 = vld [vmem:[%s1160 + $0x30] sm:$0xf]
      %v1170 = vld [vmem:[%s1160 + $0x34] sm:$0xf]
      %v1171 = vld [vmem:[%s1160 + $0x3c] sm:$0xf]
      %v1172 = vld [vmem:[%s1160 + $0x40] sm:$0xf]
      %v1173 = vld [vmem:[%s1160 + $0x48] sm:$0xf]
      %v1174 = vld [vmem:[%s1160 + $0x4c] sm:$0xf]
      %v1175 = vld [vmem:[%s1160 + $0x54] sm:$0xf]
      %v1176 = vld [vmem:[%s1160 + $0x58] sm:$0xf]
      %v1177 = vld [vmem:[%s1160 + $0x60] sm:$0xf]
      %v1178 = vld [vmem:[%s1160 + $0x64] sm:$0xf]
      %v1179 = vld [vmem:[%s1160 + $0x6c] sm:$0xf]
      %v1180 = vld [vmem:[%s1160 + $0x70] sm:$0xf]
      %v1181 = vld [vmem:[%s1160 + $0x78] sm:$0xf]
      %v1182 = vld [vmem:[%s1160 + $0x7c] sm:$0xf]
      %v1183 = vld [vmem:[%s1160 + $0x84] sm:$0xf]
      %v1184 = vld [vmem:[%s1160 + $0x88] sm:$0xf]
      %v1185 = vld [vmem:[%s1160 + $0x90] sm:$0xf]
      %v1186 = vld [vmem:[%s1160 + $0x94] sm:$0xf]
      %v1187 = vld [vmem:[%s1160 + $0x9c] sm:$0xf]
      %v1188 = vld [vmem:[%s1160 + $0xa0] sm:$0xf]
      %v1189 = vld [vmem:[%s1160 + $0xa8] sm:$0xf]
      %v1190 = vld [vmem:[%s1160 + $0xac] sm:$0xf]
      %v1191 = vld [vmem:[%s1160 + $0xb4] sm:$0xf]
      %v1192 = vld [vmem:[%s1160 + $0xb8] sm:$0xf]
      %s1193 = scalar_lea.vmem %s1, 32
      %v1194 = vld [vmem:[%s1193] sm:$0xf]
      %v1195 = vld [vmem:[%s1193 + $0x4] sm:$0xf]
      %v1196 = vld [vmem:[%s1193 + $0x8] sm:$0xf]
      %v1197 = vld [vmem:[%s1193 + $0xc] sm:$0xf]
      %v1230 = vunpack.c.l.b16 %v1161
      %v1231 = vunpack.c.l.b16 %v1162
      %v1232 = vunpack.c.l.b16 %v1163
      %v1233 = vunpack.c.l.b16 %v1164
      %v1234 = vunpack.c.l.b16 %v1165
      %v1235 = vunpack.c.l.b16 %v1166
      %v1236 = vunpack.c.l.b16 %v1167
      %v1237 = vunpack.c.l.b16 %v1168
      %v1238 = vunpack.c.l.b16 %v1169
      %v1239 = vunpack.c.l.b16 %v1170
      %v1240 = vunpack.c.l.b16 %v1171
      %v1241 = vunpack.c.l.b16 %v1172
      %v1242 = vunpack.c.l.b16 %v1173
      %v1243 = vunpack.c.l.b16 %v1174
      %v1244 = vunpack.c.l.b16 %v1175
      %v1245 = vunpack.c.l.b16 %v1176
      %v1246 = vunpack.c.l.b16 %v1177
      %v1247 = vunpack.c.l.b16 %v1178
      %v1248 = vunpack.c.l.b16 %v1179
      %v1249 = vunpack.c.l.b16 %v1180
      %v1250 = vunpack.c.l.b16 %v1181
      %v1251 = vunpack.c.l.b16 %v1182
      %v1252 = vunpack.c.l.b16 %v1183
      %v1253 = vunpack.c.l.b16 %v1184
      %v1254 = vunpack.c.l.b16 %v1185
      %v1255 = vunpack.c.l.b16 %v1186
      %v1256 = vunpack.c.l.b16 %v1187
      %v1257 = vunpack.c.l.b16 %v1188
      %v1258 = vunpack.c.l.b16 %v1189
      %v1259 = vunpack.c.l.b16 %v1190
      %v1260 = vunpack.c.l.b16 %v1191
      %v1261 = vunpack.c.l.b16 %v1192
      %v1262 = vpack.c.b16 %v1231, %v1230
      %v1263 = vpack.c.b16 %v1233, %v1232
      %v1264 = vpack.c.b16 %v1235, %v1234
      %v1265 = vpack.c.b16 %v1237, %v1236
      %v1266 = vpack.c.b16 %v1239, %v1238
      %v1267 = vpack.c.b16 %v1241, %v1240
      %v1268 = vpack.c.b16 %v1243, %v1242
      %v1269 = vpack.c.b16 %v1245, %v1244
      %v1270 = vpack.c.b16 %v1247, %v1246
      %v1271 = vpack.c.b16 %v1249, %v1248
      %v1272 = vpack.c.b16 %v1251, %v1250
      %v1273 = vpack.c.b16 %v1253, %v1252
      %v1274 = vpack.c.b16 %v1255, %v1254
      %v1275 = vpack.c.b16 %v1257, %v1256
      %v1276 = vpack.c.b16 %v1259, %v1258
      %v1277 = vpack.c.b16 %v1261, %v1260
      %v1282 = vunpack.c.l.b16 %v1194
      %v1283 = vunpack.c.l.b16 %v1195
      %v1284 = vunpack.c.l.b16 %v1196
      %v1285 = vunpack.c.l.b16 %v1197
      %v1286 = vpack.c.b16 %v1283, %v1282
      %v1287 = vpack.c.b16 %v1285, %v1284
      %v1291 = vsel %vm649, %v1262, 0
      %v1294 = vsel %vm649, %v1263, 0
      %v1297 = vsel %vm649, %v1264, 0
      %v1300 = vsel %vm649, %v1265, 0
      %v1303 = vsel %vm649, %v1266, 0
      %v1306 = vsel %vm649, %v1267, 0
      %v1309 = vsel %vm649, %v1268, 0
      %v1312 = vsel %vm649, %v1269, 0
      %v1315 = vsel %vm649, %v1270, 0
      %v1318 = vsel %vm649, %v1271, 0
      %v1321 = vsel %vm649, %v1272, 0
      %v1324 = vsel %vm649, %v1273, 0
      %v1327 = vsel %vm649, %v1274, 0
      %v1330 = vsel %vm649, %v1275, 0
      %v1333 = vsel %vm649, %v1276, 0
      %v1336 = vsel %vm649, %v1277, 0
      %1338 = vmatprep.subr.bf16.mxu0 0
      %1339 = vmatpush1.bf16.msra.mxu0 0
      %1340 = vmatprep.subr.bf16.mxu0 0
      %1341 = vmatpush1.bf16.msra.mxu0 0
      %1342 = vmatprep.subr.bf16.mxu0 0
      %1343 = vmatpush1.bf16.msra.mxu0 0
      %1344 = vmatprep.subr.bf16.mxu0 0
      %1345 = vmatpush1.bf16.msra.mxu0 0
      %1346 = vmatprep.subr.bf16.mxu0 0
      %1347 = vmatpush1.bf16.msra.mxu0 0
      %1348 = vmatprep.subr.bf16.mxu0 0
      %1349 = vmatpush1.bf16.msra.mxu0 0
      %1350 = vmatprep.subr.bf16.mxu0 0
      %1351 = vmatpush1.bf16.msra.mxu0 %v1287
      %1352 = vmatprep.subr.bf16.mxu0 0
      %1353 = vmatpush1.bf16.msra.mxu0 %v1286
      %1354 = vmatprep.subr.bf16.mxu0 0
      %1355 = vmatpush2.bf16.msra.mxu0 0
      %1356 = vmatprep.subr.bf16.mxu0 0
      %1357 = vmatpush2.bf16.msra.mxu0 0
      %1358 = vmatprep.subr.bf16.mxu0 0
      %1359 = vmatpush2.bf16.msra.mxu0 0
      %1360 = vmatprep.subr.bf16.mxu0 0
      %1361 = vmatpush2.bf16.msra.mxu0 0
      %1362 = vmatprep.subr.bf16.mxu0 0
      %1363 = vmatpush2.bf16.msra.mxu0 0
      %1364 = vmatprep.subr.bf16.mxu0 0
      %1365 = vmatpush2.bf16.msra.mxu0 0
      %1366 = vmatprep.subr.bf16.mxu0 0
      %1367 = vmatpush2.bf16.msra.mxu0 0
      %1368 = vmatprep.subr.bf16.mxu0 0
      %1369 = vmatpush2.bf16.msra.mxu0 0
      %1370 = vmatprep.mubr.bf16.mxu0 0
      %1371 = vmatmul.mubr.bf16.gmra.mxu0 %v1291
      %v1372 = vpop.f32.mrf.mxu0
      %v1373 = vadd.f32 0.0, %v1372
      %v1374 = vpop.f32.mrf.mxu0
      %v1375 = vpop.f32.mrf.mxu0
      %v1376 = vadd.f32 0.0, %v1375
      %v1377 = vpop.f32.mrf.mxu0
      %1378 = vmatprep.mubr.bf16.mxu0 0
      %1379 = vmatmul.mubr.bf16.gmra.mxu0 %v1294
      %v1380 = vpop.f32.mrf.mxu0
      %v1381 = vadd.f32 0.0, %v1380
      %v1382 = vpop.f32.mrf.mxu0
      %v1383 = vpop.f32.mrf.mxu0
      %v1384 = vadd.f32 0.0, %v1383
      %v1385 = vpop.f32.mrf.mxu0
      %1386 = vmatprep.mubr.bf16.mxu0 0
      %1387 = vmatmul.mubr.bf16.gmra.mxu0 %v1297
      %v1388 = vpop.f32.mrf.mxu0
      %v1389 = vadd.f32 0.0, %v1388
      %v1390 = vpop.f32.mrf.mxu0
      %v1391 = vpop.f32.mrf.mxu0
      %v1392 = vadd.f32 0.0, %v1391
      %v1393 = vpop.f32.mrf.mxu0
      %1394 = vmatprep.mubr.bf16.mxu0 0
      %1395 = vmatmul.mubr.bf16.gmra.mxu0 %v1300
      %v1396 = vpop.f32.mrf.mxu0
      %v1397 = vadd.f32 0.0, %v1396
      %v1398 = vpop.f32.mrf.mxu0
      %v1399 = vpop.f32.mrf.mxu0
      %v1400 = vadd.f32 0.0, %v1399
      %v1401 = vpop.f32.mrf.mxu0
      %1402 = vmatprep.mubr.bf16.mxu0 0
      %1403 = vmatmul.mubr.bf16.gmra.mxu0 %v1303
      %v1404 = vpop.f32.mrf.mxu0
      %v1405 = vadd.f32 0.0, %v1404
      %v1406 = vpop.f32.mrf.mxu0
      %v1407 = vpop.f32.mrf.mxu0
      %v1408 = vadd.f32 0.0, %v1407
      %v1409 = vpop.f32.mrf.mxu0
      %1410 = vmatprep.mubr.bf16.mxu0 0
      %1411 = vmatmul.mubr.bf16.gmra.mxu0 %v1306
      %v1412 = vpop.f32.mrf.mxu0
      %v1413 = vadd.f32 0.0, %v1412
      %v1414 = vpop.f32.mrf.mxu0
      %v1415 = vpop.f32.mrf.mxu0
      %v1416 = vadd.f32 0.0, %v1415
      %v1417 = vpop.f32.mrf.mxu0
      %1418 = vmatprep.mubr.bf16.mxu0 0
      %1419 = vmatmul.mubr.bf16.gmra.mxu0 %v1309
      %v1420 = vpop.f32.mrf.mxu0
      %v1421 = vadd.f32 0.0, %v1420
      %v1422 = vpop.f32.mrf.mxu0
      %v1423 = vpop.f32.mrf.mxu0
      %v1424 = vadd.f32 0.0, %v1423
      %v1425 = vpop.f32.mrf.mxu0
      %1426 = vmatprep.mubr.bf16.mxu0 0
      %1427 = vmatmul.mubr.bf16.gmra.mxu0 %v1312
      %v1428 = vpop.f32.mrf.mxu0
      %v1429 = vadd.f32 0.0, %v1428
      %v1430 = vpop.f32.mrf.mxu0
      %v1431 = vpop.f32.mrf.mxu0
      %v1432 = vadd.f32 0.0, %v1431
      %v1433 = vpop.f32.mrf.mxu0
      %1434 = vmatprep.mubr.bf16.mxu0 0
      %1435 = vmatmul.mubr.bf16.gmra.mxu0 %v1315
      %v1436 = vpop.f32.mrf.mxu0
      %v1437 = vadd.f32 0.0, %v1436
      %v1438 = vpop.f32.mrf.mxu0
      %v1439 = vpop.f32.mrf.mxu0
      %v1440 = vadd.f32 0.0, %v1439
      %v1441 = vpop.f32.mrf.mxu0
      %1442 = vmatprep.mubr.bf16.mxu0 0
      %1443 = vmatmul.mubr.bf16.gmra.mxu0 %v1318
      %v1444 = vpop.f32.mrf.mxu0
      %v1445 = vadd.f32 0.0, %v1444
      %v1446 = vpop.f32.mrf.mxu0
      %v1447 = vpop.f32.mrf.mxu0
      %v1448 = vadd.f32 0.0, %v1447
      %v1449 = vpop.f32.mrf.mxu0
      %1450 = vmatprep.mubr.bf16.mxu0 0
      %1451 = vmatmul.mubr.bf16.gmra.mxu0 %v1321
      %v1452 = vpop.f32.mrf.mxu0
      %v1453 = vadd.f32 0.0, %v1452
      %v1454 = vpop.f32.mrf.mxu0
      %v1455 = vpop.f32.mrf.mxu0
      %v1456 = vadd.f32 0.0, %v1455
      %v1457 = vpop.f32.mrf.mxu0
      %1458 = vmatprep.mubr.bf16.mxu0 0
      %1459 = vmatmul.mubr.bf16.gmra.mxu0 %v1324
      %v1460 = vpop.f32.mrf.mxu0
      %v1461 = vadd.f32 0.0, %v1460
      %v1462 = vpop.f32.mrf.mxu0
      %v1463 = vpop.f32.mrf.mxu0
      %v1464 = vadd.f32 0.0, %v1463
      %v1465 = vpop.f32.mrf.mxu0
      %1466 = vmatprep.mubr.bf16.mxu0 0
      %1467 = vmatmul.mubr.bf16.gmra.mxu0 %v1327
      %v1468 = vpop.f32.mrf.mxu0
      %v1469 = vadd.f32 0.0, %v1468
      %v1470 = vpop.f32.mrf.mxu0
      %v1471 = vpop.f32.mrf.mxu0
      %v1472 = vadd.f32 0.0, %v1471
      %v1473 = vpop.f32.mrf.mxu0
      %1474 = vmatprep.mubr.bf16.mxu0 0
      %1475 = vmatmul.mubr.bf16.gmra.mxu0 %v1330
      %v1476 = vpop.f32.mrf.mxu0
      %v1477 = vadd.f32 0.0, %v1476
      %v1478 = vpop.f32.mrf.mxu0
      %v1479 = vpop.f32.mrf.mxu0
      %v1480 = vadd.f32 0.0, %v1479
      %v1481 = vpop.f32.mrf.mxu0
      %1482 = vmatprep.mubr.bf16.mxu0 0
      %1483 = vmatmul.mubr.bf16.gmra.mxu0 %v1333
      %v1484 = vpop.f32.mrf.mxu0
      %v1485 = vadd.f32 0.0, %v1484
      %v1486 = vpop.f32.mrf.mxu0
      %v1487 = vpop.f32.mrf.mxu0
      %v1488 = vadd.f32 0.0, %v1487
      %v1489 = vpop.f32.mrf.mxu0
      %1490 = vmatprep.mubr.bf16.mxu0 0
      %1491 = vmatmul.mubr.bf16.gmra.mxu0 %v1336
      %v1492 = vpop.f32.mrf.mxu0
      %v1493 = vadd.f32 0.0, %v1492
      %v1494 = vpop.f32.mrf.mxu0
      %v1495 = vpop.f32.mrf.mxu0
      %v1496 = vadd.f32 0.0, %v1495
      %v1497 = vpop.f32.mrf.mxu0
      %1498 = vdwg.mxu0
      %v1499 = vadd.f32 %v1034, %v1373
      %v1500 = vadd.f32 %v1037, %v1376
      %v1501 = vadd.f32 %v1042, %v1381
      %v1502 = vadd.f32 %v1045, %v1384
      %v1503 = vadd.f32 %v1050, %v1389
      %v1504 = vadd.f32 %v1053, %v1392
      %v1505 = vadd.f32 %v1058, %v1397
      %v1506 = vadd.f32 %v1061, %v1400
      %v1507 = vadd.f32 %v1066, %v1405
      %v1508 = vadd.f32 %v1069, %v1408
      %v1509 = vadd.f32 %v1074, %v1413
      %v1510 = vadd.f32 %v1077, %v1416
      %v1511 = vadd.f32 %v1082, %v1421
      %v1512 = vadd.f32 %v1085, %v1424
      %v1513 = vadd.f32 %v1090, %v1429
      %v1514 = vadd.f32 %v1093, %v1432
      %v1515 = vadd.f32 %v1098, %v1437
      %v1516 = vadd.f32 %v1101, %v1440
      %v1517 = vadd.f32 %v1106, %v1445
      %v1518 = vadd.f32 %v1109, %v1448
      %v1519 = vadd.f32 %v1114, %v1453
      %v1520 = vadd.f32 %v1117, %v1456
      %v1521 = vadd.f32 %v1122, %v1461
      %v1522 = vadd.f32 %v1125, %v1464
      %v1523 = vadd.f32 %v1130, %v1469
      %v1524 = vadd.f32 %v1133, %v1472
      %v1525 = vadd.f32 %v1138, %v1477
      %v1526 = vadd.f32 %v1141, %v1480
      %v1527 = vadd.f32 %v1146, %v1485
      %v1528 = vadd.f32 %v1149, %v1488
      %v1529 = vadd.f32 %v1154, %v1493
      %v1530 = vadd.f32 %v1157, %v1496
      %v1531 = vld [vmem:[%s1160] sm:$0xf]
      %v1532 = vld [vmem:[%s1160 + $0x4] sm:$0xf]
      %v1533 = vld [vmem:[%s1160 + $0x8] sm:$0x1]
      %v1534 = vld [vmem:[%s1160 + $0xc] sm:$0xf]
      %v1535 = vld [vmem:[%s1160 + $0x10] sm:$0xf]
      %v1536 = vld [vmem:[%s1160 + $0x14] sm:$0x1]
      %v1537 = vld [vmem:[%s1160 + $0x18] sm:$0xf]
      %v1538 = vld [vmem:[%s1160 + $0x1c] sm:$0xf]
      %v1539 = vld [vmem:[%s1160 + $0x20] sm:$0x1]
      %v1540 = vld [vmem:[%s1160 + $0x24] sm:$0xf]
      %v1541 = vld [vmem:[%s1160 + $0x28] sm:$0xf]
      %v1542 = vld [vmem:[%s1160 + $0x2c] sm:$0x1]
      %v1543 = vld [vmem:[%s1160 + $0x30] sm:$0xf]
      %v1544 = vld [vmem:[%s1160 + $0x34] sm:$0xf]
      %v1545 = vld [vmem:[%s1160 + $0x38] sm:$0x1]
      %v1546 = vld [vmem:[%s1160 + $0x3c] sm:$0xf]
      %v1547 = vld [vmem:[%s1160 + $0x40] sm:$0xf]
      %v1548 = vld [vmem:[%s1160 + $0x44] sm:$0x1]
      %v1549 = vld [vmem:[%s1160 + $0x48] sm:$0xf]
      %v1550 = vld [vmem:[%s1160 + $0x4c] sm:$0xf]
      %v1551 = vld [vmem:[%s1160 + $0x50] sm:$0x1]
      %v1552 = vld [vmem:[%s1160 + $0x54] sm:$0xf]
      %v1553 = vld [vmem:[%s1160 + $0x58] sm:$0xf]
      %v1554 = vld [vmem:[%s1160 + $0x5c] sm:$0x1]
      %v1555 = vld [vmem:[%s1160 + $0x60] sm:$0xf]
      %v1556 = vld [vmem:[%s1160 + $0x64] sm:$0xf]
      %v1557 = vld [vmem:[%s1160 + $0x68] sm:$0x1]
      %v1558 = vld [vmem:[%s1160 + $0x6c] sm:$0xf]
      %v1559 = vld [vmem:[%s1160 + $0x70] sm:$0xf]
      %v1560 = vld [vmem:[%s1160 + $0x74] sm:$0x1]
      %v1561 = vld [vmem:[%s1160 + $0x78] sm:$0xf]
      %v1562 = vld [vmem:[%s1160 + $0x7c] sm:$0xf]
      %v1563 = vld [vmem:[%s1160 + $0x80] sm:$0x1]
      %v1564 = vld [vmem:[%s1160 + $0x84] sm:$0xf]
      %v1565 = vld [vmem:[%s1160 + $0x88] sm:$0xf]
      %v1566 = vld [vmem:[%s1160 + $0x8c] sm:$0x1]
      %v1567 = vld [vmem:[%s1160 + $0x90] sm:$0xf]
      %v1568 = vld [vmem:[%s1160 + $0x94] sm:$0xf]
      %v1569 = vld [vmem:[%s1160 + $0x98] sm:$0x1]
      %v1570 = vld [vmem:[%s1160 + $0x9c] sm:$0xf]
      %v1571 = vld [vmem:[%s1160 + $0xa0] sm:$0xf]
      %v1572 = vld [vmem:[%s1160 + $0xa4] sm:$0x1]
      %v1573 = vld [vmem:[%s1160 + $0xa8] sm:$0xf]
      %v1574 = vld [vmem:[%s1160 + $0xac] sm:$0xf]
      %v1575 = vld [vmem:[%s1160 + $0xb0] sm:$0x1]
      %v1576 = vld [vmem:[%s1160 + $0xb4] sm:$0xf]
      %v1577 = vld [vmem:[%s1160 + $0xb8] sm:$0xf]
      %v1578 = vld [vmem:[%s1160 + $0xbc] sm:$0x1]
      %v1580 = vshrl.u32 %v1531, 16
      %v1582 = vrot.slane %v1580, 4
      %v1583 = vshll.u32 %v1531, 16
      %v1585 = vrot.slane %v1583, 5
      %v1586 = vor.u32 %v1582, %v1585
      %v1587 = vrot.slane %v1586, 4
      %v1589 = vshll.u32 %v1532, 16
      %v1591 = vrot.slane %v1589, 5
      %v1592 = vsel %vm199, %v1587, %v1591
      %v1593 = vshrl.u32 %v1532, 16
      %v1595 = vrot.slane %v1593, 4
      %v1596 = vor.u32 %v1595, %v1591
      %v1597 = vrot.slane %v1596, 4
      %v1599 = vshll.u32 %v1533, 16
      %v1601 = vrot.slane %v1599, 5
      %v1602 = vsel %vm199, %v1597, %v1601
      %v1604 = vshrl.u32 %v1534, 16
      %v1606 = vrot.slane %v1604, 4
      %v1607 = vshll.u32 %v1534, 16
      %v1609 = vrot.slane %v1607, 5
      %v1610 = vor.u32 %v1606, %v1609
      %v1611 = vrot.slane %v1610, 4
      %v1613 = vshll.u32 %v1535, 16
      %v1615 = vrot.slane %v1613, 5
      %v1616 = vsel %vm199, %v1611, %v1615
      %v1617 = vshrl.u32 %v1535, 16
      %v1619 = vrot.slane %v1617, 4
      %v1620 = vor.u32 %v1619, %v1615
      %v1621 = vrot.slane %v1620, 4
      %v1623 = vshll.u32 %v1536, 16
      %v1625 = vrot.slane %v1623, 5
      %v1626 = vsel %vm199, %v1621, %v1625
      %v1628 = vshrl.u32 %v1537, 16
      %v1630 = vrot.slane %v1628, 4
      %v1631 = vshll.u32 %v1537, 16
      %v1633 = vrot.slane %v1631, 5
      %v1634 = vor.u32 %v1630, %v1633
      %v1635 = vrot.slane %v1634, 4
      %v1637 = vshll.u32 %v1538, 16
      %v1639 = vrot.slane %v1637, 5
      %v1640 = vsel %vm199, %v1635, %v1639
      %v1641 = vshrl.u32 %v1538, 16
      %v1643 = vrot.slane %v1641, 4
      %v1644 = vor.u32 %v1643, %v1639
      %v1645 = vrot.slane %v1644, 4
      %v1647 = vshll.u32 %v1539, 16
      %v1649 = vrot.slane %v1647, 5
      %v1650 = vsel %vm199, %v1645, %v1649
      %v1652 = vshrl.u32 %v1540, 16
      %v1654 = vrot.slane %v1652, 4
      %v1655 = vshll.u32 %v1540, 16
      %v1657 = vrot.slane %v1655, 5
      %v1658 = vor.u32 %v1654, %v1657
      %v1659 = vrot.slane %v1658, 4
      %v1661 = vshll.u32 %v1541, 16
      %v1663 = vrot.slane %v1661, 5
      %v1664 = vsel %vm199, %v1659, %v1663
      %v1665 = vshrl.u32 %v1541, 16
      %v1667 = vrot.slane %v1665, 4
      %v1668 = vor.u32 %v1667, %v1663
      %v1669 = vrot.slane %v1668, 4
      %v1671 = vshll.u32 %v1542, 16
      %v1673 = vrot.slane %v1671, 5
      %v1674 = vsel %vm199, %v1669, %v1673
      %v1676 = vshrl.u32 %v1543, 16
      %v1678 = vrot.slane %v1676, 4
      %v1679 = vshll.u32 %v1543, 16
      %v1681 = vrot.slane %v1679, 5
      %v1682 = vor.u32 %v1678, %v1681
      %v1683 = vrot.slane %v1682, 4
      %v1685 = vshll.u32 %v1544, 16
      %v1687 = vrot.slane %v1685, 5
      %v1688 = vsel %vm199, %v1683, %v1687
      %v1689 = vshrl.u32 %v1544, 16
      %v1691 = vrot.slane %v1689, 4
      %v1692 = vor.u32 %v1691, %v1687
      %v1693 = vrot.slane %v1692, 4
      %v1695 = vshll.u32 %v1545, 16
      %v1697 = vrot.slane %v1695, 5
      %v1698 = vsel %vm199, %v1693, %v1697
      %v1700 = vshrl.u32 %v1546, 16
      %v1702 = vrot.slane %v1700, 4
      %v1703 = vshll.u32 %v1546, 16
      %v1705 = vrot.slane %v1703, 5
      %v1706 = vor.u32 %v1702, %v1705
      %v1707 = vrot.slane %v1706, 4
      %v1709 = vshll.u32 %v1547, 16
      %v1711 = vrot.slane %v1709, 5
      %v1712 = vsel %vm199, %v1707, %v1711
      %v1713 = vshrl.u32 %v1547, 16
      %v1715 = vrot.slane %v1713, 4
      %v1716 = vor.u32 %v1715, %v1711
      %v1717 = vrot.slane %v1716, 4
      %v1719 = vshll.u32 %v1548, 16
      %v1721 = vrot.slane %v1719, 5
      %v1722 = vsel %vm199, %v1717, %v1721
      %v1724 = vshrl.u32 %v1549, 16
      %v1726 = vrot.slane %v1724, 4
      %v1727 = vshll.u32 %v1549, 16
      %v1729 = vrot.slane %v1727, 5
      %v1730 = vor.u32 %v1726, %v1729
      %v1731 = vrot.slane %v1730, 4
      %v1733 = vshll.u32 %v1550, 16
      %v1735 = vrot.slane %v1733, 5
      %v1736 = vsel %vm199, %v1731, %v1735
      %v1737 = vshrl.u32 %v1550, 16
      %v1739 = vrot.slane %v1737, 4
      %v1740 = vor.u32 %v1739, %v1735
      %v1741 = vrot.slane %v1740, 4
      %v1743 = vshll.u32 %v1551, 16
      %v1745 = vrot.slane %v1743, 5
      %v1746 = vsel %vm199, %v1741, %v1745
      %v1748 = vshrl.u32 %v1552, 16
      %v1750 = vrot.slane %v1748, 4
      %v1751 = vshll.u32 %v1552, 16
      %v1753 = vrot.slane %v1751, 5
      %v1754 = vor.u32 %v1750, %v1753
      %v1755 = vrot.slane %v1754, 4
      %v1757 = vshll.u32 %v1553, 16
      %v1759 = vrot.slane %v1757, 5
      %v1760 = vsel %vm199, %v1755, %v1759
      %v1761 = vshrl.u32 %v1553, 16
      %v1763 = vrot.slane %v1761, 4
      %v1764 = vor.u32 %v1763, %v1759
      %v1765 = vrot.slane %v1764, 4
      %v1767 = vshll.u32 %v1554, 16
      %v1769 = vrot.slane %v1767, 5
      %v1770 = vsel %vm199, %v1765, %v1769
      %v1772 = vshrl.u32 %v1555, 16
      %v1774 = vrot.slane %v1772, 4
      %v1775 = vshll.u32 %v1555, 16
      %v1777 = vrot.slane %v1775, 5
      %v1778 = vor.u32 %v1774, %v1777
      %v1779 = vrot.slane %v1778, 4
      %v1781 = vshll.u32 %v1556, 16
      %v1783 = vrot.slane %v1781, 5
      %v1784 = vsel %vm199, %v1779, %v1783
      %v1785 = vshrl.u32 %v1556, 16
      %v1787 = vrot.slane %v1785, 4
      %v1788 = vor.u32 %v1787, %v1783
      %v1789 = vrot.slane %v1788, 4
      %v1791 = vshll.u32 %v1557, 16
      %v1793 = vrot.slane %v1791, 5
      %v1794 = vsel %vm199, %v1789, %v1793
      %v1796 = vshrl.u32 %v1558, 16
      %v1798 = vrot.slane %v1796, 4
      %v1799 = vshll.u32 %v1558, 16
      %v1801 = vrot.slane %v1799, 5
      %v1802 = vor.u32 %v1798, %v1801
      %v1803 = vrot.slane %v1802, 4
      %v1805 = vshll.u32 %v1559, 16
      %v1807 = vrot.slane %v1805, 5
      %v1808 = vsel %vm199, %v1803, %v1807
      %v1809 = vshrl.u32 %v1559, 16
      %v1811 = vrot.slane %v1809, 4
      %v1812 = vor.u32 %v1811, %v1807
      %v1813 = vrot.slane %v1812, 4
      %v1815 = vshll.u32 %v1560, 16
      %v1817 = vrot.slane %v1815, 5
      %v1818 = vsel %vm199, %v1813, %v1817
      %v1820 = vshrl.u32 %v1561, 16
      %v1822 = vrot.slane %v1820, 4
      %v1823 = vshll.u32 %v1561, 16
      %v1825 = vrot.slane %v1823, 5
      %v1826 = vor.u32 %v1822, %v1825
      %v1827 = vrot.slane %v1826, 4
      %v1829 = vshll.u32 %v1562, 16
      %v1831 = vrot.slane %v1829, 5
      %v1832 = vsel %vm199, %v1827, %v1831
      %v1833 = vshrl.u32 %v1562, 16
      %v1835 = vrot.slane %v1833, 4
      %v1836 = vor.u32 %v1835, %v1831
      %v1837 = vrot.slane %v1836, 4
      %v1839 = vshll.u32 %v1563, 16
      %v1841 = vrot.slane %v1839, 5
      %v1842 = vsel %vm199, %v1837, %v1841
      %v1844 = vshrl.u32 %v1564, 16
      %v1846 = vrot.slane %v1844, 4
      %v1847 = vshll.u32 %v1564, 16
      %v1849 = vrot.slane %v1847, 5
      %v1850 = vor.u32 %v1846, %v1849
      %v1851 = vrot.slane %v1850, 4
      %v1853 = vshll.u32 %v1565, 16
      %v1855 = vrot.slane %v1853, 5
      %v1856 = vsel %vm199, %v1851, %v1855
      %v1857 = vshrl.u32 %v1565, 16
      %v1859 = vrot.slane %v1857, 4
      %v1860 = vor.u32 %v1859, %v1855
      %v1861 = vrot.slane %v1860, 4
      %v1863 = vshll.u32 %v1566, 16
      %v1865 = vrot.slane %v1863, 5
      %v1866 = vsel %vm199, %v1861, %v1865
      %v1868 = vshrl.u32 %v1567, 16
      %v1870 = vrot.slane %v1868, 4
      %v1871 = vshll.u32 %v1567, 16
      %v1873 = vrot.slane %v1871, 5
      %v1874 = vor.u32 %v1870, %v1873
      %v1875 = vrot.slane %v1874, 4
      %v1877 = vshll.u32 %v1568, 16
      %v1879 = vrot.slane %v1877, 5
      %v1880 = vsel %vm199, %v1875, %v1879
      %v1881 = vshrl.u32 %v1568, 16
      %v1883 = vrot.slane %v1881, 4
      %v1884 = vor.u32 %v1883, %v1879
      %v1885 = vrot.slane %v1884, 4
      %v1887 = vshll.u32 %v1569, 16
      %v1889 = vrot.slane %v1887, 5
      %v1890 = vsel %vm199, %v1885, %v1889
      %v1892 = vshrl.u32 %v1570, 16
      %v1894 = vrot.slane %v1892, 4
      %v1895 = vshll.u32 %v1570, 16
      %v1897 = vrot.slane %v1895, 5
      %v1898 = vor.u32 %v1894, %v1897
      %v1899 = vrot.slane %v1898, 4
      %v1901 = vshll.u32 %v1571, 16
      %v1903 = vrot.slane %v1901, 5
      %v1904 = vsel %vm199, %v1899, %v1903
      %v1905 = vshrl.u32 %v1571, 16
      %v1907 = vrot.slane %v1905, 4
      %v1908 = vor.u32 %v1907, %v1903
      %v1909 = vrot.slane %v1908, 4
      %v1911 = vshll.u32 %v1572, 16
      %v1913 = vrot.slane %v1911, 5
      %v1914 = vsel %vm199, %v1909, %v1913
      %v1916 = vshrl.u32 %v1573, 16
      %v1918 = vrot.slane %v1916, 4
      %v1919 = vshll.u32 %v1573, 16
      %v1921 = vrot.slane %v1919, 5
      %v1922 = vor.u32 %v1918, %v1921
      %v1923 = vrot.slane %v1922, 4
      %v1925 = vshll.u32 %v1574, 16
      %v1927 = vrot.slane %v1925, 5
      %v1928 = vsel %vm199, %v1923, %v1927
      %v1929 = vshrl.u32 %v1574, 16
      %v1931 = vrot.slane %v1929, 4
      %v1932 = vor.u32 %v1931, %v1927
      %v1933 = vrot.slane %v1932, 4
      %v1935 = vshll.u32 %v1575, 16
      %v1937 = vrot.slane %v1935, 5
      %v1938 = vsel %vm199, %v1933, %v1937
      %v1940 = vshrl.u32 %v1576, 16
      %v1942 = vrot.slane %v1940, 4
      %v1943 = vshll.u32 %v1576, 16
      %v1945 = vrot.slane %v1943, 5
      %v1946 = vor.u32 %v1942, %v1945
      %v1947 = vrot.slane %v1946, 4
      %v1949 = vshll.u32 %v1577, 16
      %v1951 = vrot.slane %v1949, 5
      %v1952 = vsel %vm199, %v1947, %v1951
      %v1953 = vshrl.u32 %v1577, 16
      %v1955 = vrot.slane %v1953, 4
      %v1956 = vor.u32 %v1955, %v1951
      %v1957 = vrot.slane %v1956, 4
      %v1959 = vshll.u32 %v1578, 16
      %v1961 = vrot.slane %v1959, 5
      %v1962 = vsel %vm199, %v1957, %v1961
      %s1963 = scalar_lea.vmem %s1, 48
      %v1964 = vld [vmem:[%s1963] sm:$0xf]
      %v1965 = vld [vmem:[%s1963 + $0x4] sm:$0xf]
      %v1966 = vld [vmem:[%s1963 + $0x8] sm:$0xf]
      %v1967 = vld [vmem:[%s1963 + $0xc] sm:$0xf]
      %v1968 = vunpack.c.l.b16 %v1592
      %v1969 = vunpack.c.l.b16 %v1602
      %v1970 = vunpack.c.l.b16 %v1616
      %v1971 = vunpack.c.l.b16 %v1626
      %v1972 = vunpack.c.l.b16 %v1640
      %v1973 = vunpack.c.l.b16 %v1650
      %v1974 = vunpack.c.l.b16 %v1664
      %v1975 = vunpack.c.l.b16 %v1674
      %v1976 = vunpack.c.l.b16 %v1688
      %v1977 = vunpack.c.l.b16 %v1698
      %v1978 = vunpack.c.l.b16 %v1712
      %v1979 = vunpack.c.l.b16 %v1722
      %v1980 = vunpack.c.l.b16 %v1736
      %v1981 = vunpack.c.l.b16 %v1746
      %v1982 = vunpack.c.l.b16 %v1760
      %v1983 = vunpack.c.l.b16 %v1770
      %v1984 = vunpack.c.l.b16 %v1784
      %v1985 = vunpack.c.l.b16 %v1794
      %v1986 = vunpack.c.l.b16 %v1808
      %v1987 = vunpack.c.l.b16 %v1818
      %v1988 = vunpack.c.l.b16 %v1832
      %v1989 = vunpack.c.l.b16 %v1842
      %v1990 = vunpack.c.l.b16 %v1856
      %v1991 = vunpack.c.l.b16 %v1866
      %v1992 = vunpack.c.l.b16 %v1880
      %v1993 = vunpack.c.l.b16 %v1890
      %v1994 = vunpack.c.l.b16 %v1904
      %v1995 = vunpack.c.l.b16 %v1914
      %v1996 = vunpack.c.l.b16 %v1928
      %v1997 = vunpack.c.l.b16 %v1938
      %v1998 = vunpack.c.l.b16 %v1952
      %v1999 = vunpack.c.l.b16 %v1962
      %v2000 = vpack.c.b16 %v1969, %v1968
      %v2001 = vpack.c.b16 %v1971, %v1970
      %v2002 = vpack.c.b16 %v1973, %v1972
      %v2003 = vpack.c.b16 %v1975, %v1974
      %v2004 = vpack.c.b16 %v1977, %v1976
      %v2005 = vpack.c.b16 %v1979, %v1978
      %v2006 = vpack.c.b16 %v1981, %v1980
      %v2007 = vpack.c.b16 %v1983, %v1982
      %v2008 = vpack.c.b16 %v1985, %v1984
      %v2009 = vpack.c.b16 %v1987, %v1986
      %v2010 = vpack.c.b16 %v1989, %v1988
      %v2011 = vpack.c.b16 %v1991, %v1990
      %v2012 = vpack.c.b16 %v1993, %v1992
      %v2013 = vpack.c.b16 %v1995, %v1994
      %v2014 = vpack.c.b16 %v1997, %v1996
      %v2015 = vpack.c.b16 %v1999, %v1998
      %v2020 = vunpack.c.l.b16 %v1964
      %v2021 = vunpack.c.l.b16 %v1965
      %v2022 = vunpack.c.l.b16 %v1966
      %v2023 = vunpack.c.l.b16 %v1967
      %v2024 = vpack.c.b16 %v2021, %v2020
      %v2025 = vpack.c.b16 %v2023, %v2022
      %v2029 = vsel %vm649, %v2000, 0
      %v2032 = vsel %vm649, %v2001, 0
      %v2035 = vsel %vm649, %v2002, 0
      %v2038 = vsel %vm649, %v2003, 0
      %v2041 = vsel %vm649, %v2004, 0
      %v2044 = vsel %vm649, %v2005, 0
      %v2047 = vsel %vm649, %v2006, 0
      %v2050 = vsel %vm649, %v2007, 0
      %v2053 = vsel %vm649, %v2008, 0
      %v2056 = vsel %vm649, %v2009, 0
      %v2059 = vsel %vm649, %v2010, 0
      %v2062 = vsel %vm649, %v2011, 0
      %v2065 = vsel %vm649, %v2012, 0
      %v2068 = vsel %vm649, %v2013, 0
      %v2071 = vsel %vm649, %v2014, 0
      %v2074 = vsel %vm649, %v2015, 0
      %2076 = vmatprep.subr.bf16.mxu0 0
      %2077 = vmatpush1.bf16.msra.mxu0 0
      %2078 = vmatprep.subr.bf16.mxu0 0
      %2079 = vmatpush1.bf16.msra.mxu0 0
      %2080 = vmatprep.subr.bf16.mxu0 0
      %2081 = vmatpush1.bf16.msra.mxu0 0
      %2082 = vmatprep.subr.bf16.mxu0 0
      %2083 = vmatpush1.bf16.msra.mxu0 0
      %2084 = vmatprep.subr.bf16.mxu0 0
      %2085 = vmatpush1.bf16.msra.mxu0 0
      %2086 = vmatprep.subr.bf16.mxu0 0
      %2087 = vmatpush1.bf16.msra.mxu0 0
      %2088 = vmatprep.subr.bf16.mxu0 0
      %2089 = vmatpush1.bf16.msra.mxu0 %v2025
      %2090 = vmatprep.subr.bf16.mxu0 0
      %2091 = vmatpush1.bf16.msra.mxu0 %v2024
      %2092 = vmatprep.subr.bf16.mxu0 0
      %2093 = vmatpush2.bf16.msra.mxu0 0
      %2094 = vmatprep.subr.bf16.mxu0 0
      %2095 = vmatpush2.bf16.msra.mxu0 0
      %2096 = vmatprep.subr.bf16.mxu0 0
      %2097 = vmatpush2.bf16.msra.mxu0 0
      %2098 = vmatprep.subr.bf16.mxu0 0
      %2099 = vmatpush2.bf16.msra.mxu0 0
      %2100 = vmatprep.subr.bf16.mxu0 0
      %2101 = vmatpush2.bf16.msra.mxu0 0
      %2102 = vmatprep.subr.bf16.mxu0 0
      %2103 = vmatpush2.bf16.msra.mxu0 0
      %2104 = vmatprep.subr.bf16.mxu0 0
      %2105 = vmatpush2.bf16.msra.mxu0 0
      %2106 = vmatprep.subr.bf16.mxu0 0
      %2107 = vmatpush2.bf16.msra.mxu0 0
      %2108 = vmatprep.mubr.bf16.mxu0 0
      %2109 = vmatmul.mubr.bf16.gmra.mxu0 %v2029
      %v2110 = vpop.f32.mrf.mxu0
      %v2111 = vadd.f32 0.0, %v2110
      %v2112 = vpop.f32.mrf.mxu0
      %v2113 = vpop.f32.mrf.mxu0
      %v2114 = vadd.f32 0.0, %v2113
      %v2115 = vpop.f32.mrf.mxu0
      %2116 = vmatprep.mubr.bf16.mxu0 0
      %2117 = vmatmul.mubr.bf16.gmra.mxu0 %v2032
      %v2118 = vpop.f32.mrf.mxu0
      %v2119 = vadd.f32 0.0, %v2118
      %v2120 = vpop.f32.mrf.mxu0
      %v2121 = vpop.f32.mrf.mxu0
      %v2122 = vadd.f32 0.0, %v2121
      %v2123 = vpop.f32.mrf.mxu0
      %2124 = vmatprep.mubr.bf16.mxu0 0
      %2125 = vmatmul.mubr.bf16.gmra.mxu0 %v2035
      %v2126 = vpop.f32.mrf.mxu0
      %v2127 = vadd.f32 0.0, %v2126
      %v2128 = vpop.f32.mrf.mxu0
      %v2129 = vpop.f32.mrf.mxu0
      %v2130 = vadd.f32 0.0, %v2129
      %v2131 = vpop.f32.mrf.mxu0
      %2132 = vmatprep.mubr.bf16.mxu0 0
      %2133 = vmatmul.mubr.bf16.gmra.mxu0 %v2038
      %v2134 = vpop.f32.mrf.mxu0
      %v2135 = vadd.f32 0.0, %v2134
      %v2136 = vpop.f32.mrf.mxu0
      %v2137 = vpop.f32.mrf.mxu0
      %v2138 = vadd.f32 0.0, %v2137
      %v2139 = vpop.f32.mrf.mxu0
      %2140 = vmatprep.mubr.bf16.mxu0 0
      %2141 = vmatmul.mubr.bf16.gmra.mxu0 %v2041
      %v2142 = vpop.f32.mrf.mxu0
      %v2143 = vadd.f32 0.0, %v2142
      %v2144 = vpop.f32.mrf.mxu0
      %v2145 = vpop.f32.mrf.mxu0
      %v2146 = vadd.f32 0.0, %v2145
      %v2147 = vpop.f32.mrf.mxu0
      %2148 = vmatprep.mubr.bf16.mxu0 0
      %2149 = vmatmul.mubr.bf16.gmra.mxu0 %v2044
      %v2150 = vpop.f32.mrf.mxu0
      %v2151 = vadd.f32 0.0, %v2150
      %v2152 = vpop.f32.mrf.mxu0
      %v2153 = vpop.f32.mrf.mxu0
      %v2154 = vadd.f32 0.0, %v2153
      %v2155 = vpop.f32.mrf.mxu0
      %2156 = vmatprep.mubr.bf16.mxu0 0
      %2157 = vmatmul.mubr.bf16.gmra.mxu0 %v2047
      %v2158 = vpop.f32.mrf.mxu0
      %v2159 = vadd.f32 0.0, %v2158
      %v2160 = vpop.f32.mrf.mxu0
      %v2161 = vpop.f32.mrf.mxu0
      %v2162 = vadd.f32 0.0, %v2161
      %v2163 = vpop.f32.mrf.mxu0
      %2164 = vmatprep.mubr.bf16.mxu0 0
      %2165 = vmatmul.mubr.bf16.gmra.mxu0 %v2050
      %v2166 = vpop.f32.mrf.mxu0
      %v2167 = vadd.f32 0.0, %v2166
      %v2168 = vpop.f32.mrf.mxu0
      %v2169 = vpop.f32.mrf.mxu0
      %v2170 = vadd.f32 0.0, %v2169
      %v2171 = vpop.f32.mrf.mxu0
      %2172 = vmatprep.mubr.bf16.mxu0 0
      %2173 = vmatmul.mubr.bf16.gmra.mxu0 %v2053
      %v2174 = vpop.f32.mrf.mxu0
      %v2175 = vadd.f32 0.0, %v2174
      %v2176 = vpop.f32.mrf.mxu0
      %v2177 = vpop.f32.mrf.mxu0
      %v2178 = vadd.f32 0.0, %v2177
      %v2179 = vpop.f32.mrf.mxu0
      %2180 = vmatprep.mubr.bf16.mxu0 0
      %2181 = vmatmul.mubr.bf16.gmra.mxu0 %v2056
      %v2182 = vpop.f32.mrf.mxu0
      %v2183 = vadd.f32 0.0, %v2182
      %v2184 = vpop.f32.mrf.mxu0
      %v2185 = vpop.f32.mrf.mxu0
      %v2186 = vadd.f32 0.0, %v2185
      %v2187 = vpop.f32.mrf.mxu0
      %2188 = vmatprep.mubr.bf16.mxu0 0
      %2189 = vmatmul.mubr.bf16.gmra.mxu0 %v2059
      %v2190 = vpop.f32.mrf.mxu0
      %v2191 = vadd.f32 0.0, %v2190
      %v2192 = vpop.f32.mrf.mxu0
      %v2193 = vpop.f32.mrf.mxu0
      %v2194 = vadd.f32 0.0, %v2193
      %v2195 = vpop.f32.mrf.mxu0
      %2196 = vmatprep.mubr.bf16.mxu0 0
      %2197 = vmatmul.mubr.bf16.gmra.mxu0 %v2062
      %v2198 = vpop.f32.mrf.mxu0
      %v2199 = vadd.f32 0.0, %v2198
      %v2200 = vpop.f32.mrf.mxu0
      %v2201 = vpop.f32.mrf.mxu0
      %v2202 = vadd.f32 0.0, %v2201
      %v2203 = vpop.f32.mrf.mxu0
      %2204 = vmatprep.mubr.bf16.mxu0 0
      %2205 = vmatmul.mubr.bf16.gmra.mxu0 %v2065
      %v2206 = vpop.f32.mrf.mxu0
      %v2207 = vadd.f32 0.0, %v2206
      %v2208 = vpop.f32.mrf.mxu0
      %v2209 = vpop.f32.mrf.mxu0
      %v2210 = vadd.f32 0.0, %v2209
      %v2211 = vpop.f32.mrf.mxu0
      %2212 = vmatprep.mubr.bf16.mxu0 0
      %2213 = vmatmul.mubr.bf16.gmra.mxu0 %v2068
      %v2214 = vpop.f32.mrf.mxu0
      %v2215 = vadd.f32 0.0, %v2214
      %v2216 = vpop.f32.mrf.mxu0
      %v2217 = vpop.f32.mrf.mxu0
      %v2218 = vadd.f32 0.0, %v2217
      %v2219 = vpop.f32.mrf.mxu0
      %2220 = vmatprep.mubr.bf16.mxu0 0
      %2221 = vmatmul.mubr.bf16.gmra.mxu0 %v2071
      %v2222 = vpop.f32.mrf.mxu0
      %v2223 = vadd.f32 0.0, %v2222
      %v2224 = vpop.f32.mrf.mxu0
      %v2225 = vpop.f32.mrf.mxu0
      %v2226 = vadd.f32 0.0, %v2225
      %v2227 = vpop.f32.mrf.mxu0
      %2228 = vmatprep.mubr.bf16.mxu0 0
      %2229 = vmatmul.mubr.bf16.gmra.mxu0 %v2074
      %v2230 = vpop.f32.mrf.mxu0
      %v2231 = vadd.f32 0.0, %v2230
      %v2232 = vpop.f32.mrf.mxu0
      %v2233 = vpop.f32.mrf.mxu0
      %v2234 = vadd.f32 0.0, %v2233
      %v2235 = vpop.f32.mrf.mxu0
      %2236 = vdwg.mxu0
      %v2237 = vadd.f32 %v1499, %v2111
      %v2238 = vadd.f32 %v1500, %v2114
      %v2239 = vadd.f32 %v1501, %v2119
      %v2240 = vadd.f32 %v1502, %v2122
      %v2241 = vadd.f32 %v1503, %v2127
      %v2242 = vadd.f32 %v1504, %v2130
      %v2243 = vadd.f32 %v1505, %v2135
      %v2244 = vadd.f32 %v1506, %v2138
      %v2245 = vadd.f32 %v1507, %v2143
      %v2246 = vadd.f32 %v1508, %v2146
      %v2247 = vadd.f32 %v1509, %v2151
      %v2248 = vadd.f32 %v1510, %v2154
      %v2249 = vadd.f32 %v1511, %v2159
      %v2250 = vadd.f32 %v1512, %v2162
      %v2251 = vadd.f32 %v1513, %v2167
      %v2252 = vadd.f32 %v1514, %v2170
      %v2253 = vadd.f32 %v1515, %v2175
      %v2254 = vadd.f32 %v1516, %v2178
      %v2255 = vadd.f32 %v1517, %v2183
      %v2256 = vadd.f32 %v1518, %v2186
      %v2257 = vadd.f32 %v1519, %v2191
      %v2258 = vadd.f32 %v1520, %v2194
      %v2259 = vadd.f32 %v1521, %v2199
      %v2260 = vadd.f32 %v1522, %v2202
      %v2261 = vadd.f32 %v1523, %v2207
      %v2262 = vadd.f32 %v1524, %v2210
      %v2263 = vadd.f32 %v1525, %v2215
      %v2264 = vadd.f32 %v1526, %v2218
      %v2265 = vadd.f32 %v1527, %v2223
      %v2266 = vadd.f32 %v1528, %v2226
      %v2267 = vadd.f32 %v1529, %v2231
      %v2268 = vadd.f32 %v1530, %v2234
      %vm2269 = vcmp.ge.f32.partialorder %v2237, 0.0
      %vm2270 = vcmp.ge.f32.partialorder %v2238, 0.0
      %vm2271 = vcmp.ge.f32.partialorder %v2239, 0.0
      %vm2272 = vcmp.ge.f32.partialorder %v2240, 0.0
      %vm2273 = vcmp.ge.f32.partialorder %v2241, 0.0
      %vm2274 = vcmp.ge.f32.partialorder %v2242, 0.0
      %vm2275 = vcmp.ge.f32.partialorder %v2243, 0.0
      %vm2276 = vcmp.ge.f32.partialorder %v2244, 0.0
      %vm2277 = vcmp.ge.f32.partialorder %v2245, 0.0
      %vm2278 = vcmp.ge.f32.partialorder %v2246, 0.0
      %vm2279 = vcmp.ge.f32.partialorder %v2247, 0.0
      %vm2280 = vcmp.ge.f32.partialorder %v2248, 0.0
      %vm2281 = vcmp.ge.f32.partialorder %v2249, 0.0
      %vm2282 = vcmp.ge.f32.partialorder %v2250, 0.0
      %vm2283 = vcmp.ge.f32.partialorder %v2251, 0.0
      %vm2284 = vcmp.ge.f32.partialorder %v2252, 0.0
      %vm2285 = vcmp.ge.f32.partialorder %v2253, 0.0
      %vm2286 = vcmp.ge.f32.partialorder %v2254, 0.0
      %vm2287 = vcmp.ge.f32.partialorder %v2255, 0.0
      %vm2288 = vcmp.ge.f32.partialorder %v2256, 0.0
      %vm2289 = vcmp.ge.f32.partialorder %v2257, 0.0
      %vm2290 = vcmp.ge.f32.partialorder %v2258, 0.0
      %vm2291 = vcmp.ge.f32.partialorder %v2259, 0.0
      %vm2292 = vcmp.ge.f32.partialorder %v2260, 0.0
      %vm2293 = vcmp.ge.f32.partialorder %v2261, 0.0
      %vm2294 = vcmp.ge.f32.partialorder %v2262, 0.0
      %vm2295 = vcmp.ge.f32.partialorder %v2263, 0.0
      %vm2296 = vcmp.ge.f32.partialorder %v2264, 0.0
      %vm2297 = vcmp.ge.f32.partialorder %v2265, 0.0
      %vm2298 = vcmp.ge.f32.partialorder %v2266, 0.0
      %vm2299 = vcmp.ge.f32.partialorder %v2267, 0.0
      %vm2300 = vcmp.ge.f32.partialorder %v2268, 0.0
      %v2301 = vmul.f32 %v2237, 0.2
      %v2302 = vmul.f32 %v2238, 0.2
      %v2303 = vmul.f32 %v2239, 0.2
      %v2304 = vmul.f32 %v2240, 0.2
      %v2305 = vmul.f32 %v2241, 0.2
      %v2306 = vmul.f32 %v2242, 0.2
      %v2307 = vmul.f32 %v2243, 0.2
      %v2308 = vmul.f32 %v2244, 0.2
      %v2309 = vmul.f32 %v2245, 0.2
      %v2310 = vmul.f32 %v2246, 0.2
      %v2311 = vmul.f32 %v2247, 0.2
      %v2312 = vmul.f32 %v2248, 0.2
      %v2313 = vmul.f32 %v2249, 0.2
      %v2314 = vmul.f32 %v2250, 0.2
      %v2315 = vmul.f32 %v2251, 0.2
      %v2316 = vmul.f32 %v2252, 0.2
      %v2317 = vmul.f32 %v2253, 0.2
      %v2318 = vmul.f32 %v2254, 0.2
      %v2319 = vmul.f32 %v2255, 0.2
      %v2320 = vmul.f32 %v2256, 0.2
      %v2321 = vmul.f32 %v2257, 0.2
      %v2322 = vmul.f32 %v2258, 0.2
      %v2323 = vmul.f32 %v2259, 0.2
      %v2324 = vmul.f32 %v2260, 0.2
      %v2325 = vmul.f32 %v2261, 0.2
      %v2326 = vmul.f32 %v2262, 0.2
      %v2327 = vmul.f32 %v2263, 0.2
      %v2328 = vmul.f32 %v2264, 0.2
      %v2329 = vmul.f32 %v2265, 0.2
      %v2330 = vmul.f32 %v2266, 0.2
      %v2331 = vmul.f32 %v2267, 0.2
      %v2332 = vmul.f32 %v2268, 0.2
      %v2333 = vsel %vm2269, %v2237, %v2301
      %v2334 = vsel %vm2270, %v2238, %v2302
      %v2335 = vsel %vm2271, %v2239, %v2303
      %v2336 = vsel %vm2272, %v2240, %v2304
      %v2337 = vsel %vm2273, %v2241, %v2305
      %v2338 = vsel %vm2274, %v2242, %v2306
      %v2339 = vsel %vm2275, %v2243, %v2307
      %v2340 = vsel %vm2276, %v2244, %v2308
      %v2341 = vsel %vm2277, %v2245, %v2309
      %v2342 = vsel %vm2278, %v2246, %v2310
      %v2343 = vsel %vm2279, %v2247, %v2311
      %v2344 = vsel %vm2280, %v2248, %v2312
      %v2345 = vsel %vm2281, %v2249, %v2313
      %v2346 = vsel %vm2282, %v2250, %v2314
      %v2347 = vsel %vm2283, %v2251, %v2315
      %v2348 = vsel %vm2284, %v2252, %v2316
      %v2349 = vsel %vm2285, %v2253, %v2317
      %v2350 = vsel %vm2286, %v2254, %v2318
      %v2351 = vsel %vm2287, %v2255, %v2319
      %v2352 = vsel %vm2288, %v2256, %v2320
      %v2353 = vsel %vm2289, %v2257, %v2321
      %v2354 = vsel %vm2290, %v2258, %v2322
      %v2355 = vsel %vm2291, %v2259, %v2323
      %v2356 = vsel %vm2292, %v2260, %v2324
      %v2357 = vsel %vm2293, %v2261, %v2325
      %v2358 = vsel %vm2294, %v2262, %v2326
      %v2359 = vsel %vm2295, %v2263, %v2327
      %v2360 = vsel %vm2296, %v2264, %v2328
      %v2361 = vsel %vm2297, %v2265, %v2329
      %v2362 = vsel %vm2298, %v2266, %v2330
      %v2363 = vsel %vm2299, %v2267, %v2331
      %v2364 = vsel %vm2300, %v2268, %v2332
      %v2365 = vpack.c.bf16 %v2334, %v2333
      %v2366 = vpack.c.bf16 %v2336, %v2335
      %v2367 = vpack.c.bf16 %v2338, %v2337
      %v2368 = vpack.c.bf16 %v2340, %v2339
      %v2369 = vpack.c.bf16 %v2342, %v2341
      %v2370 = vpack.c.bf16 %v2344, %v2343
      %v2371 = vpack.c.bf16 %v2346, %v2345
      %v2372 = vpack.c.bf16 %v2348, %v2347
      %v2373 = vpack.c.bf16 %v2350, %v2349
      %v2374 = vpack.c.bf16 %v2352, %v2351
      %v2375 = vpack.c.bf16 %v2354, %v2353
      %v2376 = vpack.c.bf16 %v2356, %v2355
      %v2377 = vpack.c.bf16 %v2358, %v2357
      %v2378 = vpack.c.bf16 %v2360, %v2359
      %v2379 = vpack.c.bf16 %v2362, %v2361
      %v2380 = vpack.c.bf16 %v2364, %v2363
      %v2397 = vunpack.c.l.b16 %v2365
      %v2398 = vunpack.c.h.b16 %v2365
      %v2399 = vunpack.c.l.b16 %v2366
      %v2400 = vunpack.c.h.b16 %v2366
      %v2401 = vunpack.c.l.b16 %v2367
      %v2402 = vunpack.c.h.b16 %v2367
      %v2403 = vunpack.c.l.b16 %v2368
      %v2404 = vunpack.c.h.b16 %v2368
      %v2405 = vunpack.c.l.b16 %v2369
      %v2406 = vunpack.c.h.b16 %v2369
      %v2407 = vunpack.c.l.b16 %v2370
      %v2408 = vunpack.c.h.b16 %v2370
      %v2409 = vunpack.c.l.b16 %v2371
      %v2410 = vunpack.c.h.b16 %v2371
      %v2411 = vunpack.c.l.b16 %v2372
      %v2412 = vunpack.c.h.b16 %v2372
      %v2413 = vunpack.c.l.b16 %v2373
      %v2414 = vunpack.c.h.b16 %v2373
      %v2415 = vunpack.c.l.b16 %v2374
      %v2416 = vunpack.c.h.b16 %v2374
      %v2417 = vunpack.c.l.b16 %v2375
      %v2418 = vunpack.c.h.b16 %v2375
      %v2419 = vunpack.c.l.b16 %v2376
      %v2420 = vunpack.c.h.b16 %v2376
      %v2421 = vunpack.c.l.b16 %v2377
      %v2422 = vunpack.c.h.b16 %v2377
      %v2423 = vunpack.c.l.b16 %v2378
      %v2424 = vunpack.c.h.b16 %v2378
      %v2425 = vunpack.c.l.b16 %v2379
      %v2426 = vunpack.c.h.b16 %v2379
      %v2427 = vunpack.c.l.b16 %v2380
      %v2428 = vunpack.c.h.b16 %v2380
      %v2429 = vpack.c.b16 %v2397, %v2397
      %v2430 = vpack.c.b16 %v2398, %v2398
      %v2431 = vpack.c.b16 %v2399, %v2399
      %v2432 = vpack.c.b16 %v2400, %v2400
      %v2433 = vpack.c.b16 %v2401, %v2401
      %v2434 = vpack.c.b16 %v2402, %v2402
      %v2435 = vpack.c.b16 %v2403, %v2403
      %v2436 = vpack.c.b16 %v2404, %v2404
      %v2437 = vpack.c.b16 %v2405, %v2405
      %v2438 = vpack.c.b16 %v2406, %v2406
      %v2439 = vpack.c.b16 %v2407, %v2407
      %v2440 = vpack.c.b16 %v2408, %v2408
      %v2441 = vpack.c.b16 %v2409, %v2409
      %v2442 = vpack.c.b16 %v2410, %v2410
      %v2443 = vpack.c.b16 %v2411, %v2411
      %v2444 = vpack.c.b16 %v2412, %v2412
      %v2445 = vpack.c.b16 %v2413, %v2413
      %v2446 = vpack.c.b16 %v2414, %v2414
      %v2447 = vpack.c.b16 %v2415, %v2415
      %v2448 = vpack.c.b16 %v2416, %v2416
      %v2449 = vpack.c.b16 %v2417, %v2417
      %v2450 = vpack.c.b16 %v2418, %v2418
      %v2451 = vpack.c.b16 %v2419, %v2419
      %v2452 = vpack.c.b16 %v2420, %v2420
      %v2453 = vpack.c.b16 %v2421, %v2421
      %v2454 = vpack.c.b16 %v2422, %v2422
      %v2455 = vpack.c.b16 %v2423, %v2423
      %v2456 = vpack.c.b16 %v2424, %v2424
      %v2457 = vpack.c.b16 %v2425, %v2425
      %v2458 = vpack.c.b16 %v2426, %v2426
      %v2459 = vpack.c.b16 %v2427, %v2427
      %v2460 = vpack.c.b16 %v2428, %v2428
      %vm2493 = vcmask 125952
      %2494 = vst.msk [vmem:[%s143] sm:$0xf] %vm2493, %v2429
      %2495 = vst.msk [vmem:[%s143 + $0x4] sm:$0xf] %vm2493, %v2430
      %2496 = vst.msk [vmem:[%s143 + $0x8] sm:$0xf] %vm2493, %v2431
      %2497 = vst.msk [vmem:[%s143 + $0xc] sm:$0xf] %vm2493, %v2432
      %2498 = vst.msk [vmem:[%s143 + $0x10] sm:$0xf] %vm2493, %v2433
      %2499 = vst.msk [vmem:[%s143 + $0x14] sm:$0xf] %vm2493, %v2434
      %2500 = vst.msk [vmem:[%s143 + $0x18] sm:$0xf] %vm2493, %v2435
      %2501 = vst.msk [vmem:[%s143 + $0x1c] sm:$0xf] %vm2493, %v2436
      %2502 = vst.msk [vmem:[%s143 + $0x20] sm:$0xf] %vm2493, %v2437
      %2503 = vst.msk [vmem:[%s143 + $0x24] sm:$0xf] %vm2493, %v2438
      %2504 = vst.msk [vmem:[%s143 + $0x28] sm:$0xf] %vm2493, %v2439
      %2505 = vst.msk [vmem:[%s143 + $0x2c] sm:$0xf] %vm2493, %v2440
      %2506 = vst.msk [vmem:[%s143 + $0x30] sm:$0xf] %vm2493, %v2441
      %2507 = vst.msk [vmem:[%s143 + $0x34] sm:$0xf] %vm2493, %v2442
      %2508 = vst.msk [vmem:[%s143 + $0x38] sm:$0xf] %vm2493, %v2443
      %2509 = vst.msk [vmem:[%s143 + $0x3c] sm:$0xf] %vm2493, %v2444
      %2510 = vst.msk [vmem:[%s143 + $0x40] sm:$0xf] %vm2493, %v2445
      %2511 = vst.msk [vmem:[%s143 + $0x44] sm:$0xf] %vm2493, %v2446
      %2512 = vst.msk [vmem:[%s143 + $0x48] sm:$0xf] %vm2493, %v2447
      %2513 = vst.msk [vmem:[%s143 + $0x4c] sm:$0xf] %vm2493, %v2448
      %2514 = vst.msk [vmem:[%s143 + $0x50] sm:$0xf] %vm2493, %v2449
      %2515 = vst.msk [vmem:[%s143 + $0x54] sm:$0xf] %vm2493, %v2450
      %2516 = vst.msk [vmem:[%s143 + $0x58] sm:$0xf] %vm2493, %v2451
      %2517 = vst.msk [vmem:[%s143 + $0x5c] sm:$0xf] %vm2493, %v2452
      %2518 = vst.msk [vmem:[%s143 + $0x60] sm:$0xf] %vm2493, %v2453
      %2519 = vst.msk [vmem:[%s143 + $0x64] sm:$0xf] %vm2493, %v2454
      %2520 = vst.msk [vmem:[%s143 + $0x68] sm:$0xf] %vm2493, %v2455
      %2521 = vst.msk [vmem:[%s143 + $0x6c] sm:$0xf] %vm2493, %v2456
      %2522 = vst.msk [vmem:[%s143 + $0x70] sm:$0xf] %vm2493, %v2457
      %2523 = vst.msk [vmem:[%s143 + $0x74] sm:$0xf] %vm2493, %v2458
      %2524 = vst.msk [vmem:[%s143 + $0x78] sm:$0xf] %vm2493, %v2459
      %2525 = vst.msk [vmem:[%s143 + $0x7c] sm:$0xf] %vm2493, %v2460
      %p2526 = scmp.lt.s32.totalorder %s13, 1
      %s2527 = scalar_select %p2526, %s13, 1
      %s2528 = smul.addr %s2527, 32
      %s2529 = smul.addr %s2528, 4
      %s2530 = scalar_lea.vmem %s2, %s2529
      // Predicated region
      $region29: #{discriminator_forward.6} parent=27 // pred_check
        %p2531 = pneg %p78
      $region30: #{discriminator_forward.6} parent=27 // pred_check_branch
        %2533 = sbr.rel (%p2531) target = $region32
      $region31: #{discriminator_forward.6} parent=27 // pred_region
        _
      $region32: #{discriminator_forward.6} parent=27 // pred_fallthru
        _
    $region28: #{discriminator_forward.6} parent=5 // pred_fallthru
      _
    %p2534 = scmp.le.s32.totalorder 2, %s8
    // Predicated region
    $region33: #{discriminator_forward.6} parent=5 // pred_check
      %p2535 = pneg %p2534
    $region34: #{discriminator_forward.6} parent=5 // pred_check_branch
      %2537 = sbr.rel (%p2535) target = $region36
    $region35: #{discriminator_forward.6} parent=5 // pred_region
      %s2538 = ssub.s32 %s8, 2
      // Predicated region
      $region37: #{discriminator_forward.6} parent=35 // pred_check
        %p2539 = pneg %p84
      $region38: #{discriminator_forward.6} parent=35 // pred_check_branch
        %2541 = sbr.rel (%p2539) target = $region40
      $region39: #{discriminator_forward.6} parent=35 // pred_region
        %p2542 = scmp.lt.s32.totalorder %s14, 1
        %s2543 = scalar_select %p2542, %s14, 1
        %s2544 = smul.addr %s2543, 32
        %s2545 = smul.addr %s2544, 4
        %s2546 = scalar_lea.vmem %s2, %s2545
      $region40: #{discriminator_forward.6} parent=35 // pred_fallthru
        _
    $region36: #{discriminator_forward.6} parent=5 // pred_fallthru
      _
  $region6: #{discriminator_forward.6} parent=0 // loop_footer
    %s12 = sadd.s32 1, %s8
  $region7: #{discriminator_forward.6} parent=0 // loop_footer_branch
    %7 = sbr.rel target = $region3
  $region8: #{discriminator_forward.6} parent=0 // loop_exit
    _

// kernel: discriminator_forward.7
$region0: #{discriminator_forward.7}
  #allocation0 [shape = 'u32[]', space=smem, size = 0x4, offset = 0x4, fixed_abs, tag = 'smem constant byte address 0x4 - core index']
  #allocation1 [shape = 'u32[144,128]{1,0:T(1,128)}', space=vmem, size = 0x12000, scoped, tag = 'internal scratch']
  %s0 = inlined_call_operand.vmem [shape: bf16[2,9,9,64], index: 0, kind: input, shape index: {}]
  %s1 = inlined_call_operand.vmem [shape: bf16[4,64,32], index: 1, kind: input, shape index: {}]
  %s2 = inlined_call_operand.vmem [shape: bf16[2,8,8,32], index: 2, kind: output, shape index: {}]
  %s3 = sld [smem:[#allocation0]]
  $region41: #{discriminator_forward.7} parent=0
    _
  %s5 = ssub.s32 1, %s3
  %s6 = scalar_select 0, %s5, %s3
  loop: start=0, step=1, limit=4
  $region2: #{discriminator_forward.7} parent=0 // loop_pre_header
    _
  $region3: #{discriminator_forward.7} parent=0 // loop_header
    %s8 = sphi 0, %s12
    %p9 = scmp.ge.s32.totalorder %s8, 4
    %s18 = sphi 0, %s20
    %s21 = sphi 0, %s18
    %s22 = sphi 0, %s21
    %s38 = sphi 0, %s22
    %s42 = sphi 0, %s42
    %s44 = sphi 0, %s42
    %s45 = sphi 0, %s44
    %s59 = sphi 0, %s45
    %s65 = sphi 0, %s67
    %s68 = sphi 0, %s65
    %s69 = sphi 0, %s68
    %s85 = sphi 0, %s69
  $region4: #{discriminator_forward.7} parent=0 // loop_header_branch
    %11 = sbr.rel (%p9) target = $region8
  $region5: #{discriminator_forward.7} parent=0 // loop_body
    %s13 = ssub.s32 %s8, 1
    %s14 = ssub.s32 %s8, 2
    %s15 = sadd.s32 %s8, 1
    %s16 = ssub.s32 %s8, %s15
    %p17 = scmp.eq.s32.totalorder %s16, 0
    %s19 = sadd.s32 %s18, 1
    %s20 = scalar_select %p17, %s18, %s19
    %p23 = pneg %p17
    %p24 = scmp.eq.s32.totalorder %s8, 1
    %p25 = por %p23, %p24
    %p26 = scmp.ne.s32.totalorder %s18, %s21
    %p27 = scmp.eq.s32.totalorder %s8, 0
    %p28 = por %p26, %p27
    %p29 = scmp.ne.s32.totalorder %s18, %s21
    %p30 = scmp.eq.s32.totalorder %s13, 1
    %p31 = por %p29, %p30
    %p32 = scmp.ne.s32.totalorder %s21, %s22
    %p33 = scmp.eq.s32.totalorder %s13, 0
    %p34 = por %p32, %p33
    %p35 = scmp.ne.s32.totalorder %s21, %s22
    %p36 = scmp.eq.s32.totalorder %s14, 1
    %p37 = por %p35, %p36
    %p39 = scmp.ne.s32.totalorder %s22, %s38
    %p40 = scmp.eq.s32.totalorder %s14, 0
    %p41 = por %p39, %p40
    %s43 = sadd.s32 %s42, 1
    %p46 = scmp.eq.s32.totalorder %s8, 1
    %p47 = scmp.ne.s32.totalorder %s42, %s44
    %p48 = scmp.eq.s32.totalorder %s8, 0
    %p49 = por %p47, %p48
    %p50 = scmp.ne.s32.totalorder %s42, %s44
    %p51 = scmp.eq.s32.totalorder %s13, 1
    %p52 = por %p50, %p51
    %p53 = scmp.ne.s32.totalorder %s44, %s45
    %p54 = scmp.eq.s32.totalorder %s13, 0
    %p55 = por %p53, %p54
    %p56 = scmp.ne.s32.totalorder %s44, %s45
    %p57 = scmp.eq.s32.totalorder %s14, 1
    %p58 = por %p56, %p57
    %p60 = scmp.ne.s32.totalorder %s45, %s59
    %p61 = scmp.eq.s32.totalorder %s14, 0
    %p62 = por %p60, %p61
    %s63 = ssub.s32 %s8, %s15
    %p64 = scmp.eq.s32.totalorder %s63, 0
    %s66 = sadd.s32 %s65, 1
    %s67 = scalar_select %p64, %s65, %s66
    %p70 = pneg %p64
    %p71 = scmp.eq.s32.totalorder %s8, 1
    %p72 = por %p70, %p71
    %p73 = scmp.ne.s32.totalorder %s65, %s68
    %p74 = scmp.eq.s32.totalorder %s8, 0
    %p75 = por %p73, %p74
    %p76 = scmp.ne.s32.totalorder %s65, %s68
    %p77 = scmp.eq.s32.totalorder %s13, 1
    %p78 = por %p76, %p77
    %p79 = scmp.ne.s32.totalorder %s68, %s69
    %p80 = scmp.eq.s32.totalorder %s13, 0
    %p81 = por %p79, %p80
    %p82 = scmp.ne.s32.totalorder %s68, %s69
    %p83 = scmp.eq.s32.totalorder %s14, 1
    %p84 = por %p82, %p83
    %p86 = scmp.ne.s32.totalorder %s69, %s85
    %p87 = scmp.eq.s32.totalorder %s14, 0
    %p88 = por %p86, %p87
    %p89 = scmp.le.s32.totalorder 1, %s8
    %p90 = scmp.lt.s32.totalorder %s8, 3
    %p91 = pnand %p89, %p90
    %p92 = pneg %p91
    // Predicated region
    $region9: #{discriminator_forward.7} parent=5 // pred_check
      _
    $region10: #{discriminator_forward.7} parent=5 // pred_check_branch
      %94 = sbr.rel (%p91) target = $region12
    $region11: #{discriminator_forward.7} parent=5 // pred_region
      %s95 = ssub.s32 %s8, 1
      // Predicated region
      $region13: #{discriminator_forward.7} parent=11 // pred_check
        %p96 = pneg %p55
      $region14: #{discriminator_forward.7} parent=11 // pred_check_branch
        %98 = sbr.rel (%p96) target = $region16
      $region15: #{discriminator_forward.7} parent=11 // pred_region
        _
      $region16: #{discriminator_forward.7} parent=11 // pred_fallthru
        _
    $region12: #{discriminator_forward.7} parent=5 // pred_fallthru
      _
    %p99 = scmp.lt.s32.totalorder %s8, 2
    // Predicated region
    $region17: #{discriminator_forward.7} parent=5 // pred_check
      %p100 = pneg %p99
    $region18: #{discriminator_forward.7} parent=5 // pred_check_branch
      %102 = sbr.rel (%p100) target = $region20
    $region19: #{discriminator_forward.7} parent=5 // pred_region
      // Predicated region
      $region21: #{discriminator_forward.7} parent=19 // pred_check
        %p103 = pneg %p28
      $region22: #{discriminator_forward.7} parent=19 // pred_check_branch
        %105 = sbr.rel (%p103) target = $region24
      $region23: #{discriminator_forward.7} parent=19 // pred_region
        %p106 = scmp.lt.s32.totalorder %s8, 1
        %s107 = scalar_select %p106, %s8, 1
        %s108 = smul.addr %s107, 18
        %s109 = smul.addr %s108, 4
        %s110 = scalar_lea.vmem %s0, %s109
      $region24: #{discriminator_forward.7} parent=19 // pred_fallthru
        _
    $region20: #{discriminator_forward.7} parent=5 // pred_fallthru
      _
    %p111 = scmp.le.s32.totalorder 1, %s8
    %p112 = scmp.lt.s32.totalorder %s8, 3
    %p113 = pnand %p111, %p112
    %p114 = pneg %p113
    // Predicated region
    $region25: #{discriminator_forward.7} parent=5 // pred_check
      _
    $region26: #{discriminator_forward.7} parent=5 // pred_check_branch
      %116 = sbr.rel (%p113) target = $region28
    $region27: #{discriminator_forward.7} parent=5 // pred_region
      %s117 = ssub.s32 %s8, 1
      %p118 = scmp.lt.s32.totalorder %s13, 1
      %s119 = scalar_select %p118, %s13, 1
      %s120 = smul.addr %s119, 18
      %s121 = smul.addr %s120, 4
      %s122 = scalar_lea.vmem %s0, %s121
      %p123 = pneg %p34
      %p124 = pneg %p31
      %p125 = pneg %p55
      %p126 = pneg %p52
      %p127 = pneg %p81
      %p128 = pneg %p78
      %p129 = scmp.lt.s32.totalorder %s13, 1
      %s130 = scalar_select %p129, %s13, 1
      %s131 = smul.addr %s130, 8
      %s132 = smul.addr %s131, 4
      %s133 = scalar_lea.vmem %s2, %s132
      %p134 = scmp.lt.s32.totalorder %s13, 1
      %s135 = scalar_select %p134, %s13, 1
      %s136 = smul.addr %s135, 18
      %s137 = smul.addr %s136, 4
      %s138 = scalar_lea.vmem %s0, %s137
      %p139 = scmp.lt.s32.totalorder %s13, 1
      %s140 = scalar_select %p139, %s13, 1
      %s141 = smul.addr %s140, 8
      %s142 = smul.addr %s141, 4
      %s143 = scalar_lea.vmem %s2, %s142
      %v145 = vld [vmem:[%s138] sm:$0xf]
      %v146 = vld [vmem:[%s138 + $0x8] sm:$0xf]
      %v147 = vld [vmem:[%s138 + $0x10] sm:$0xf]
      %v148 = vld [vmem:[%s138 + $0x18] sm:$0xf]
      %v149 = vld [vmem:[%s138 + $0x20] sm:$0xf]
      %v150 = vld [vmem:[%s138 + $0x28] sm:$0xf]
      %v151 = vld [vmem:[%s138 + $0x30] sm:$0xf]
      %v152 = vld [vmem:[%s138 + $0x38] sm:$0xf]
      %v153 = vld [vmem:[%s1] sm:$0xf]
      %v154 = vld [vmem:[%s1 + $0x4] sm:$0xf]
      %v155 = vld [vmem:[%s1 + $0x8] sm:$0xf]
      %v156 = vld [vmem:[%s1 + $0xc] sm:$0xf]
      %v157 = vld [vmem:[%s1 + $0x10] sm:$0xf]
      %v158 = vld [vmem:[%s1 + $0x14] sm:$0xf]
      %v159 = vld [vmem:[%s1 + $0x18] sm:$0xf]
      %v160 = vld [vmem:[%s1 + $0x1c] sm:$0xf]
      %v161 = vld [vmem:[%s138 + $0x4] sm:$0x1]
      %v162 = vld [vmem:[%s138 + $0xc] sm:$0x1]
      %v163 = vld [vmem:[%s138 + $0x14] sm:$0x1]
      %v164 = vld [vmem:[%s138 + $0x1c] sm:$0x1]
      %v165 = vld [vmem:[%s138 + $0x24] sm:$0x1]
      %v166 = vld [vmem:[%s138 + $0x2c] sm:$0x1]
      %v167 = vld [vmem:[%s138 + $0x34] sm:$0x1]
      %v168 = vld [vmem:[%s138 + $0x3c] sm:$0x1]
      %vm169 = vsmask.f32 3328
      %vm170 = vsmask.f32 7440
      %vm171 = vmor %vm169, %vm170
      %v173 = vshrl.u32 %v145, 16
      %v175 = vrot.slane %v173, 4
      %v176 = vshll.u32 %v145, 16
      %v178 = vrot.slane %v176, 5
      %v179 = vor.u32 %v175, %v178
      %v180 = vrot.slane %v179, 4
      %v182 = vshll.u32 %v161, 16
      %v184 = vrot.slane %v182, 5
      %v185 = vsel %vm171, %v180, %v184
      %v187 = vshrl.u32 %v146, 16
      %v189 = vrot.slane %v187, 4
      %v190 = vshll.u32 %v146, 16
      %v192 = vrot.slane %v190, 5
      %v193 = vor.u32 %v189, %v192
      %v194 = vrot.slane %v193, 4
      %v196 = vshll.u32 %v162, 16
      %v198 = vrot.slane %v196, 5
      %v199 = vsel %vm171, %v194, %v198
      %v201 = vshrl.u32 %v147, 16
      %v203 = vrot.slane %v201, 4
      %v204 = vshll.u32 %v147, 16
      %v206 = vrot.slane %v204, 5
      %v207 = vor.u32 %v203, %v206
      %v208 = vrot.slane %v207, 4
      %v210 = vshll.u32 %v163, 16
      %v212 = vrot.slane %v210, 5
      %v213 = vsel %vm171, %v208, %v212
      %v215 = vshrl.u32 %v148, 16
      %v217 = vrot.slane %v215, 4
      %v218 = vshll.u32 %v148, 16
      %v220 = vrot.slane %v218, 5
      %v221 = vor.u32 %v217, %v220
      %v222 = vrot.slane %v221, 4
      %v224 = vshll.u32 %v164, 16
      %v226 = vrot.slane %v224, 5
      %v227 = vsel %vm171, %v222, %v226
      %v229 = vshrl.u32 %v149, 16
      %v231 = vrot.slane %v229, 4
      %v232 = vshll.u32 %v149, 16
      %v234 = vrot.slane %v232, 5
      %v235 = vor.u32 %v231, %v234
      %v236 = vrot.slane %v235, 4
      %v238 = vshll.u32 %v165, 16
      %v240 = vrot.slane %v238, 5
      %v241 = vsel %vm171, %v236, %v240
      %v243 = vshrl.u32 %v150, 16
      %v245 = vrot.slane %v243, 4
      %v246 = vshll.u32 %v150, 16
      %v248 = vrot.slane %v246, 5
      %v249 = vor.u32 %v245, %v248
      %v250 = vrot.slane %v249, 4
      %v252 = vshll.u32 %v166, 16
      %v254 = vrot.slane %v252, 5
      %v255 = vsel %vm171, %v250, %v254
      %v257 = vshrl.u32 %v151, 16
      %v259 = vrot.slane %v257, 4
      %v260 = vshll.u32 %v151, 16
      %v262 = vrot.slane %v260, 5
      %v263 = vor.u32 %v259, %v262
      %v264 = vrot.slane %v263, 4
      %v266 = vshll.u32 %v167, 16
      %v268 = vrot.slane %v266, 5
      %v269 = vsel %vm171, %v264, %v268
      %v271 = vshrl.u32 %v152, 16
      %v273 = vrot.slane %v271, 4
      %v274 = vshll.u32 %v152, 16
      %v276 = vrot.slane %v274, 5
      %v277 = vor.u32 %v273, %v276
      %v278 = vrot.slane %v277, 4
      %v280 = vshll.u32 %v168, 16
      %v282 = vrot.slane %v280, 5
      %v283 = vsel %vm171, %v278, %v282
      %s284 = scalar_lea.vmem %s1, 32
      %v285 = vld [vmem:[%s284] sm:$0xf]
      %v286 = vld [vmem:[%s284 + $0x4] sm:$0xf]
      %v287 = vld [vmem:[%s284 + $0x8] sm:$0xf]
      %v288 = vld [vmem:[%s284 + $0xc] sm:$0xf]
      %v289 = vld [vmem:[%s284 + $0x10] sm:$0xf]
      %v290 = vld [vmem:[%s284 + $0x14] sm:$0xf]
      %v291 = vld [vmem:[%s284 + $0x18] sm:$0xf]
      %v292 = vld [vmem:[%s284 + $0x1c] sm:$0xf]
      %v293 = vunpack.c.l.b16 %v185
      %v294 = vunpack.c.l.b16 %v199
      %v295 = vunpack.c.l.b16 %v213
      %v296 = vunpack.c.l.b16 %v227
      %v297 = vunpack.c.l.b16 %v241
      %v298 = vunpack.c.l.b16 %v255
      %v299 = vunpack.c.l.b16 %v269
      %v300 = vunpack.c.l.b16 %v283
      %v301 = vpack.c.b16 %v294, %v293
      %v302 = vpack.c.b16 %v296, %v295
      %v303 = vpack.c.b16 %v298, %v297
      %v304 = vpack.c.b16 %v300, %v299
      %v313 = vunpack.c.l.b16 %v285
      %v314 = vunpack.c.l.b16 %v286
      %v315 = vunpack.c.l.b16 %v287
      %v316 = vunpack.c.l.b16 %v288
      %v317 = vunpack.c.l.b16 %v289
      %v318 = vunpack.c.l.b16 %v290
      %v319 = vunpack.c.l.b16 %v291
      %v320 = vunpack.c.l.b16 %v292
      %v321 = vpack.c.b16 %v314, %v313
      %v322 = vpack.c.b16 %v316, %v315
      %v323 = vpack.c.b16 %v318, %v317
      %v324 = vpack.c.b16 %v320, %v319
      %vm329 = vcmask 523264
      %v331 = vsel %vm329, %v301, 0
      %v334 = vsel %vm329, %v302, 0
      %v337 = vsel %vm329, %v303, 0
      %v340 = vsel %vm329, %v304, 0
      %342 = vmatprep.subr.bf16.mxu0 0
      %343 = vmatpush1.bf16.msra.mxu0 0
      %344 = vmatprep.subr.bf16.mxu0 0
      %345 = vmatpush1.bf16.msra.mxu0 0
      %346 = vmatprep.subr.bf16.mxu0 0
      %347 = vmatpush1.bf16.msra.mxu0 0
      %348 = vmatprep.subr.bf16.mxu0 0
      %349 = vmatpush1.bf16.msra.mxu0 0
      %350 = vmatprep.subr.bf16.mxu0 0
      %351 = vmatpush1.bf16.msra.mxu0 %v324
      %352 = vmatprep.subr.bf16.mxu0 0
      %353 = vmatpush1.bf16.msra.mxu0 %v323
      %354 = vmatprep.subr.bf16.mxu0 0
      %355 = vmatpush1.bf16.msra.mxu0 %v322
      %356 = vmatprep.subr.bf16.mxu0 0
      %357 = vmatpush1.bf16.msra.mxu0 %v321
      %358 = vmatprep.subr.bf16.mxu0 0
      %359 = vmatpush2.bf16.msra.mxu0 0
      %360 = vmatprep.subr.bf16.mxu0 0
      %361 = vmatpush2.bf16.msra.mxu0 0
      %362 = vmatprep.subr.bf16.mxu0 0
      %363 = vmatpush2.bf16.msra.mxu0 0
      %364 = vmatprep.subr.bf16.mxu0 0
      %365 = vmatpush2.bf16.msra.mxu0 0
      %366 = vmatprep.subr.bf16.mxu0 0
      %367 = vmatpush2.bf16.msra.mxu0 0
      %368 = vmatprep.subr.bf16.mxu0 0
      %369 = vmatpush2.bf16.msra.mxu0 0
      %370 = vmatprep.subr.bf16.mxu0 0
      %371 = vmatpush2.bf16.msra.mxu0 0
      %372 = vmatprep.subr.bf16.mxu0 0
      %373 = vmatpush2.bf16.msra.mxu0 0
      %374 = vmatprep.mubr.bf16.mxu0 0
      %375 = vmatmul.mubr.bf16.gmra.mxu0 %v331
      %v376 = vpop.f32.mrf.mxu0
      %v377 = vadd.f32 0.0, %v376
      %v378 = vpop.f32.mrf.mxu0
      %v379 = vpop.f32.mrf.mxu0
      %v380 = vadd.f32 0.0, %v379
      %v381 = vpop.f32.mrf.mxu0
      %382 = vmatprep.mubr.bf16.mxu0 0
      %383 = vmatmul.mubr.bf16.gmra.mxu0 %v334
      %v384 = vpop.f32.mrf.mxu0
      %v385 = vadd.f32 0.0, %v384
      %v386 = vpop.f32.mrf.mxu0
      %v387 = vpop.f32.mrf.mxu0
      %v388 = vadd.f32 0.0, %v387
      %v389 = vpop.f32.mrf.mxu0
      %390 = vmatprep.mubr.bf16.mxu0 0
      %391 = vmatmul.mubr.bf16.gmra.mxu0 %v337
      %v392 = vpop.f32.mrf.mxu0
      %v393 = vadd.f32 0.0, %v392
      %v394 = vpop.f32.mrf.mxu0
      %v395 = vpop.f32.mrf.mxu0
      %v396 = vadd.f32 0.0, %v395
      %v397 = vpop.f32.mrf.mxu0
      %398 = vmatprep.mubr.bf16.mxu0 0
      %399 = vmatmul.mubr.bf16.gmra.mxu0 %v340
      %v400 = vpop.f32.mrf.mxu0
      %v401 = vadd.f32 0.0, %v400
      %v402 = vpop.f32.mrf.mxu0
      %v403 = vpop.f32.mrf.mxu0
      %v404 = vadd.f32 0.0, %v403
      %v405 = vpop.f32.mrf.mxu0
      %406 = vdwg.mxu0
      %v415 = vunpack.c.l.b16 %v145
      %v416 = vunpack.c.l.b16 %v146
      %v417 = vunpack.c.l.b16 %v147
      %v418 = vunpack.c.l.b16 %v148
      %v419 = vunpack.c.l.b16 %v149
      %v420 = vunpack.c.l.b16 %v150
      %v421 = vunpack.c.l.b16 %v151
      %v422 = vunpack.c.l.b16 %v152
      %v423 = vpack.c.b16 %v416, %v415
      %v424 = vpack.c.b16 %v418, %v417
      %v425 = vpack.c.b16 %v420, %v419
      %v426 = vpack.c.b16 %v422, %v421
      %v435 = vunpack.c.l.b16 %v153
      %v436 = vunpack.c.l.b16 %v154
      %v437 = vunpack.c.l.b16 %v155
      %v438 = vunpack.c.l.b16 %v156
      %v439 = vunpack.c.l.b16 %v157
      %v440 = vunpack.c.l.b16 %v158
      %v441 = vunpack.c.l.b16 %v159
      %v442 = vunpack.c.l.b16 %v160
      %v443 = vpack.c.b16 %v436, %v435
      %v444 = vpack.c.b16 %v438, %v437
      %v445 = vpack.c.b16 %v440, %v439
      %v446 = vpack.c.b16 %v442, %v441
      %v452 = vsel %vm329, %v423, 0
      %v455 = vsel %vm329, %v424, 0
      %v458 = vsel %vm329, %v425, 0
      %v461 = vsel %vm329, %v426, 0
      %463 = vmatprep.subr.bf16.mxu0 0
      %464 = vmatpush1.bf16.msra.mxu0 0
      %465 = vmatprep.subr.bf16.mxu0 0
      %466 = vmatpush1.bf16.msra.mxu0 0
      %467 = vmatprep.subr.bf16.mxu0 0
      %468 = vmatpush1.bf16.msra.mxu0 0
      %469 = vmatprep.subr.bf16.mxu0 0
      %470 = vmatpush1.bf16.msra.mxu0 0
      %471 = vmatprep.subr.bf16.mxu0 0
      %472 = vmatpush1.bf16.msra.mxu0 %v446
      %473 = vmatprep.subr.bf16.mxu0 0
      %474 = vmatpush1.bf16.msra.mxu0 %v445
      %475 = vmatprep.subr.bf16.mxu0 0
      %476 = vmatpush1.bf16.msra.mxu0 %v444
      %477 = vmatprep.subr.bf16.mxu0 0
      %478 = vmatpush1.bf16.msra.mxu0 %v443
      %479 = vmatprep.subr.bf16.mxu0 0
      %480 = vmatpush2.bf16.msra.mxu0 0
      %481 = vmatprep.subr.bf16.mxu0 0
      %482 = vmatpush2.bf16.msra.mxu0 0
      %483 = vmatprep.subr.bf16.mxu0 0
      %484 = vmatpush2.bf16.msra.mxu0 0
      %485 = vmatprep.subr.bf16.mxu0 0
      %486 = vmatpush2.bf16.msra.mxu0 0
      %487 = vmatprep.subr.bf16.mxu0 0
      %488 = vmatpush2.bf16.msra.mxu0 0
      %489 = vmatprep.subr.bf16.mxu0 0
      %490 = vmatpush2.bf16.msra.mxu0 0
      %491 = vmatprep.subr.bf16.mxu0 0
      %492 = vmatpush2.bf16.msra.mxu0 0
      %493 = vmatprep.subr.bf16.mxu0 0
      %494 = vmatpush2.bf16.msra.mxu0 0
      %495 = vmatprep.mubr.bf16.mxu0 0
      %496 = vmatmul.mubr.bf16.gmra.mxu0 %v452
      %v497 = vpop.f32.mrf.mxu0
      %v498 = vadd.f32 %v377, %v497
      %v499 = vpop.f32.mrf.mxu0
      %v500 = vpop.f32.mrf.mxu0
      %v501 = vadd.f32 %v380, %v500
      %v502 = vpop.f32.mrf.mxu0
      %503 = vmatprep.mubr.bf16.mxu0 0
      %504 = vmatmul.mubr.bf16.gmra.mxu0 %v455
      %v505 = vpop.f32.mrf.mxu0
      %v506 = vadd.f32 %v385, %v505
      %v507 = vpop.f32.mrf.mxu0
      %v508 = vpop.f32.mrf.mxu0
      %v509 = vadd.f32 %v388, %v508
      %v510 = vpop.f32.mrf.mxu0
      %511 = vmatprep.mubr.bf16.mxu0 0
      %512 = vmatmul.mubr.bf16.gmra.mxu0 %v458
      %v513 = vpop.f32.mrf.mxu0
      %v514 = vadd.f32 %v393, %v513
      %v515 = vpop.f32.mrf.mxu0
      %v516 = vpop.f32.mrf.mxu0
      %v517 = vadd.f32 %v396, %v516
      %v518 = vpop.f32.mrf.mxu0
      %519 = vmatprep.mubr.bf16.mxu0 0
      %520 = vmatmul.mubr.bf16.gmra.mxu0 %v461
      %v521 = vpop.f32.mrf.mxu0
      %v522 = vadd.f32 %v401, %v521
      %v523 = vpop.f32.mrf.mxu0
      %v524 = vpop.f32.mrf.mxu0
      %v525 = vadd.f32 %v404, %v524
      %v526 = vpop.f32.mrf.mxu0
      %527 = vdwg.mxu0
      %s528 = scalar_lea.vmem %s138, 8
      %v529 = vld [vmem:[%s528] sm:$0xf]
      %v530 = vld [vmem:[%s528 + $0x8] sm:$0xf]
      %v531 = vld [vmem:[%s528 + $0x10] sm:$0xf]
      %v532 = vld [vmem:[%s528 + $0x18] sm:$0xf]
      %v533 = vld [vmem:[%s528 + $0x20] sm:$0xf]
      %v534 = vld [vmem:[%s528 + $0x28] sm:$0xf]
      %v535 = vld [vmem:[%s528 + $0x30] sm:$0xf]
      %v536 = vld [vmem:[%s528 + $0x38] sm:$0xf]
      %s537 = scalar_lea.vmem %s1, 64
      %v538 = vld [vmem:[%s537] sm:$0xf]
      %v539 = vld [vmem:[%s537 + $0x4] sm:$0xf]
      %v540 = vld [vmem:[%s537 + $0x8] sm:$0xf]
      %v541 = vld [vmem:[%s537 + $0xc] sm:$0xf]
      %v542 = vld [vmem:[%s537 + $0x10] sm:$0xf]
      %v543 = vld [vmem:[%s537 + $0x14] sm:$0xf]
      %v544 = vld [vmem:[%s537 + $0x18] sm:$0xf]
      %v545 = vld [vmem:[%s537 + $0x1c] sm:$0xf]
      %v554 = vunpack.c.l.b16 %v529
      %v555 = vunpack.c.l.b16 %v530
      %v556 = vunpack.c.l.b16 %v531
      %v557 = vunpack.c.l.b16 %v532
      %v558 = vunpack.c.l.b16 %v533
      %v559 = vunpack.c.l.b16 %v534
      %v560 = vunpack.c.l.b16 %v535
      %v561 = vunpack.c.l.b16 %v536
      %v562 = vpack.c.b16 %v555, %v554
      %v563 = vpack.c.b16 %v557, %v556
      %v564 = vpack.c.b16 %v559, %v558
      %v565 = vpack.c.b16 %v561, %v560
      %v574 = vunpack.c.l.b16 %v538
      %v575 = vunpack.c.l.b16 %v539
      %v576 = vunpack.c.l.b16 %v540
      %v577 = vunpack.c.l.b16 %v541
      %v578 = vunpack.c.l.b16 %v542
      %v579 = vunpack.c.l.b16 %v543
      %v580 = vunpack.c.l.b16 %v544
      %v581 = vunpack.c.l.b16 %v545
      %v582 = vpack.c.b16 %v575, %v574
      %v583 = vpack.c.b16 %v577, %v576
      %v584 = vpack.c.b16 %v579, %v578
      %v585 = vpack.c.b16 %v581, %v580
      %v591 = vsel %vm329, %v562, 0
      %v594 = vsel %vm329, %v563, 0
      %v597 = vsel %vm329, %v564, 0
      %v600 = vsel %vm329, %v565, 0
      %602 = vmatprep.subr.bf16.mxu0 0
      %603 = vmatpush1.bf16.msra.mxu0 0
      %604 = vmatprep.subr.bf16.mxu0 0
      %605 = vmatpush1.bf16.msra.mxu0 0
      %606 = vmatprep.subr.bf16.mxu0 0
      %607 = vmatpush1.bf16.msra.mxu0 0
      %608 = vmatprep.subr.bf16.mxu0 0
      %609 = vmatpush1.bf16.msra.mxu0 0
      %610 = vmatprep.subr.bf16.mxu0 0
      %611 = vmatpush1.bf16.msra.mxu0 %v585
      %612 = vmatprep.subr.bf16.mxu0 0
      %613 = vmatpush1.bf16.msra.mxu0 %v584
      %614 = vmatprep.subr.bf16.mxu0 0
      %615 = vmatpush1.bf16.msra.mxu0 %v583
      %616 = vmatprep.subr.bf16.mxu0 0
      %617 = vmatpush1.bf16.msra.mxu0 %v582
      %618 = vmatprep.subr.bf16.mxu0 0
      %619 = vmatpush2.bf16.msra.mxu0 0
      %620 = vmatprep.subr.bf16.mxu0 0
      %621 = vmatpush2.bf16.msra.mxu0 0
      %622 = vmatprep.subr.bf16.mxu0 0
      %623 = vmatpush2.bf16.msra.mxu0 0
      %624 = vmatprep.subr.bf16.mxu0 0
      %625 = vmatpush2.bf16.msra.mxu0 0
      %626 = vmatprep.subr.bf16.mxu0 0
      %627 = vmatpush2.bf16.msra.mxu0 0
      %628 = vmatprep.subr.bf16.mxu0 0
      %629 = vmatpush2.bf16.msra.mxu0 0
      %630 = vmatprep.subr.bf16.mxu0 0
      %631 = vmatpush2.bf16.msra.mxu0 0
      %632 = vmatprep.subr.bf16.mxu0 0
      %633 = vmatpush2.bf16.msra.mxu0 0
      %634 = vmatprep.mubr.bf16.mxu0 0
      %635 = vmatmul.mubr.bf16.gmra.mxu0 %v591
      %v636 = vpop.f32.mrf.mxu0
      %v637 = vadd.f32 0.0, %v636
      %v638 = vpop.f32.mrf.mxu0
      %v639 = vpop.f32.mrf.mxu0
      %v640 = vadd.f32 0.0, %v639
      %v641 = vpop.f32.mrf.mxu0
      %642 = vmatprep.mubr.bf16.mxu0 0
      %643 = vmatmul.mubr.bf16.gmra.mxu0 %v594
      %v644 = vpop.f32.mrf.mxu0
      %v645 = vadd.f32 0.0, %v644
      %v646 = vpop.f32.mrf.mxu0
      %v647 = vpop.f32.mrf.mxu0
      %v648 = vadd.f32 0.0, %v647
      %v649 = vpop.f32.mrf.mxu0
      %650 = vmatprep.mubr.bf16.mxu0 0
      %651 = vmatmul.mubr.bf16.gmra.mxu0 %v597
      %v652 = vpop.f32.mrf.mxu0
      %v653 = vadd.f32 0.0, %v652
      %v654 = vpop.f32.mrf.mxu0
      %v655 = vpop.f32.mrf.mxu0
      %v656 = vadd.f32 0.0, %v655
      %v657 = vpop.f32.mrf.mxu0
      %658 = vmatprep.mubr.bf16.mxu0 0
      %659 = vmatmul.mubr.bf16.gmra.mxu0 %v600
      %v660 = vpop.f32.mrf.mxu0
      %v661 = vadd.f32 0.0, %v660
      %v662 = vpop.f32.mrf.mxu0
      %v663 = vpop.f32.mrf.mxu0
      %v664 = vadd.f32 0.0, %v663
      %v665 = vpop.f32.mrf.mxu0
      %666 = vdwg.mxu0
      %v667 = vadd.f32 %v498, %v637
      %v668 = vadd.f32 %v501, %v640
      %v669 = vadd.f32 %v506, %v645
      %v670 = vadd.f32 %v509, %v648
      %v671 = vadd.f32 %v514, %v653
      %v672 = vadd.f32 %v517, %v656
      %v673 = vadd.f32 %v522, %v661
      %v674 = vadd.f32 %v525, %v664
      %v675 = vld [vmem:[%s528] sm:$0xf]
      %v676 = vld [vmem:[%s528 + $0x4] sm:$0x1]
      %v677 = vld [vmem:[%s528 + $0x8] sm:$0xf]
      %v678 = vld [vmem:[%s528 + $0xc] sm:$0x1]
      %v679 = vld [vmem:[%s528 + $0x10] sm:$0xf]
      %v680 = vld [vmem:[%s528 + $0x14] sm:$0x1]
      %v681 = vld [vmem:[%s528 + $0x18] sm:$0xf]
      %v682 = vld [vmem:[%s528 + $0x1c] sm:$0x1]
      %v683 = vld [vmem:[%s528 + $0x20] sm:$0xf]
      %v684 = vld [vmem:[%s528 + $0x24] sm:$0x1]
      %v685 = vld [vmem:[%s528 + $0x28] sm:$0xf]
      %v686 = vld [vmem:[%s528 + $0x2c] sm:$0x1]
      %v687 = vld [vmem:[%s528 + $0x30] sm:$0xf]
      %v688 = vld [vmem:[%s528 + $0x34] sm:$0x1]
      %v689 = vld [vmem:[%s528 + $0x38] sm:$0xf]
      %v690 = vld [vmem:[%s528 + $0x3c] sm:$0x1]
      %v692 = vshrl.u32 %v675, 16
      %v694 = vrot.slane %v692, 4
      %v695 = vshll.u32 %v675, 16
      %v697 = vrot.slane %v695, 5
      %v698 = vor.u32 %v694, %v697
      %v699 = vrot.slane %v698, 4
      %v701 = vshll.u32 %v676, 16
      %v703 = vrot.slane %v701, 5
      %v704 = vsel %vm171, %v699, %v703
      %v706 = vshrl.u32 %v677, 16
      %v708 = vrot.slane %v706, 4
      %v709 = vshll.u32 %v677, 16
      %v711 = vrot.slane %v709, 5
      %v712 = vor.u32 %v708, %v711
      %v713 = vrot.slane %v712, 4
      %v715 = vshll.u32 %v678, 16
      %v717 = vrot.slane %v715, 5
      %v718 = vsel %vm171, %v713, %v717
      %v720 = vshrl.u32 %v679, 16
      %v722 = vrot.slane %v720, 4
      %v723 = vshll.u32 %v679, 16
      %v725 = vrot.slane %v723, 5
      %v726 = vor.u32 %v722, %v725
      %v727 = vrot.slane %v726, 4
      %v729 = vshll.u32 %v680, 16
      %v731 = vrot.slane %v729, 5
      %v732 = vsel %vm171, %v727, %v731
      %v734 = vshrl.u32 %v681, 16
      %v736 = vrot.slane %v734, 4
      %v737 = vshll.u32 %v681, 16
      %v739 = vrot.slane %v737, 5
      %v740 = vor.u32 %v736, %v739
      %v741 = vrot.slane %v740, 4
      %v743 = vshll.u32 %v682, 16
      %v745 = vrot.slane %v743, 5
      %v746 = vsel %vm171, %v741, %v745
      %v748 = vshrl.u32 %v683, 16
      %v750 = vrot.slane %v748, 4
      %v751 = vshll.u32 %v683, 16
      %v753 = vrot.slane %v751, 5
      %v754 = vor.u32 %v750, %v753
      %v755 = vrot.slane %v754, 4
      %v757 = vshll.u32 %v684, 16
      %v759 = vrot.slane %v757, 5
      %v760 = vsel %vm171, %v755, %v759
      %v762 = vshrl.u32 %v685, 16
      %v764 = vrot.slane %v762, 4
      %v765 = vshll.u32 %v685, 16
      %v767 = vrot.slane %v765, 5
      %v768 = vor.u32 %v764, %v767
      %v769 = vrot.slane %v768, 4
      %v771 = vshll.u32 %v686, 16
      %v773 = vrot.slane %v771, 5
      %v774 = vsel %vm171, %v769, %v773
      %v776 = vshrl.u32 %v687, 16
      %v778 = vrot.slane %v776, 4
      %v779 = vshll.u32 %v687, 16
      %v781 = vrot.slane %v779, 5
      %v782 = vor.u32 %v778, %v781
      %v783 = vrot.slane %v782, 4
      %v785 = vshll.u32 %v688, 16
      %v787 = vrot.slane %v785, 5
      %v788 = vsel %vm171, %v783, %v787
      %v790 = vshrl.u32 %v689, 16
      %v792 = vrot.slane %v790, 4
      %v793 = vshll.u32 %v689, 16
      %v795 = vrot.slane %v793, 5
      %v796 = vor.u32 %v792, %v795
      %v797 = vrot.slane %v796, 4
      %v799 = vshll.u32 %v690, 16
      %v801 = vrot.slane %v799, 5
      %v802 = vsel %vm171, %v797, %v801
      %s803 = scalar_lea.vmem %s1, 96
      %v804 = vld [vmem:[%s803] sm:$0xf]
      %v805 = vld [vmem:[%s803 + $0x4] sm:$0xf]
      %v806 = vld [vmem:[%s803 + $0x8] sm:$0xf]
      %v807 = vld [vmem:[%s803 + $0xc] sm:$0xf]
      %v808 = vld [vmem:[%s803 + $0x10] sm:$0xf]
      %v809 = vld [vmem:[%s803 + $0x14] sm:$0xf]
      %v810 = vld [vmem:[%s803 + $0x18] sm:$0xf]
      %v811 = vld [vmem:[%s803 + $0x1c] sm:$0xf]
      %v812 = vunpack.c.l.b16 %v704
      %v813 = vunpack.c.l.b16 %v718
      %v814 = vunpack.c.l.b16 %v732
      %v815 = vunpack.c.l.b16 %v746
      %v816 = vunpack.c.l.b16 %v760
      %v817 = vunpack.c.l.b16 %v774
      %v818 = vunpack.c.l.b16 %v788
      %v819 = vunpack.c.l.b16 %v802
      %v820 = vpack.c.b16 %v813, %v812
      %v821 = vpack.c.b16 %v815, %v814
      %v822 = vpack.c.b16 %v817, %v816
      %v823 = vpack.c.b16 %v819, %v818
      %v832 = vunpack.c.l.b16 %v804
      %v833 = vunpack.c.l.b16 %v805
      %v834 = vunpack.c.l.b16 %v806
      %v835 = vunpack.c.l.b16 %v807
      %v836 = vunpack.c.l.b16 %v808
      %v837 = vunpack.c.l.b16 %v809
      %v838 = vunpack.c.l.b16 %v810
      %v839 = vunpack.c.l.b16 %v811
      %v840 = vpack.c.b16 %v833, %v832
      %v841 = vpack.c.b16 %v835, %v834
      %v842 = vpack.c.b16 %v837, %v836
      %v843 = vpack.c.b16 %v839, %v838
      %v849 = vsel %vm329, %v820, 0
      %v852 = vsel %vm329, %v821, 0
      %v855 = vsel %vm329, %v822, 0
      %v858 = vsel %vm329, %v823, 0
      %860 = vmatprep.subr.bf16.mxu0 0
      %861 = vmatpush1.bf16.msra.mxu0 0
      %862 = vmatprep.subr.bf16.mxu0 0
      %863 = vmatpush1.bf16.msra.mxu0 0
      %864 = vmatprep.subr.bf16.mxu0 0
      %865 = vmatpush1.bf16.msra.mxu0 0
      %866 = vmatprep.subr.bf16.mxu0 0
      %867 = vmatpush1.bf16.msra.mxu0 0
      %868 = vmatprep.subr.bf16.mxu0 0
      %869 = vmatpush1.bf16.msra.mxu0 %v843
      %870 = vmatprep.subr.bf16.mxu0 0
      %871 = vmatpush1.bf16.msra.mxu0 %v842
      %872 = vmatprep.subr.bf16.mxu0 0
      %873 = vmatpush1.bf16.msra.mxu0 %v841
      %874 = vmatprep.subr.bf16.mxu0 0
      %875 = vmatpush1.bf16.msra.mxu0 %v840
      %876 = vmatprep.subr.bf16.mxu0 0
      %877 = vmatpush2.bf16.msra.mxu0 0
      %878 = vmatprep.subr.bf16.mxu0 0
      %879 = vmatpush2.bf16.msra.mxu0 0
      %880 = vmatprep.subr.bf16.mxu0 0
      %881 = vmatpush2.bf16.msra.mxu0 0
      %882 = vmatprep.subr.bf16.mxu0 0
      %883 = vmatpush2.bf16.msra.mxu0 0
      %884 = vmatprep.subr.bf16.mxu0 0
      %885 = vmatpush2.bf16.msra.mxu0 0
      %886 = vmatprep.subr.bf16.mxu0 0
      %887 = vmatpush2.bf16.msra.mxu0 0
      %888 = vmatprep.subr.bf16.mxu0 0
      %889 = vmatpush2.bf16.msra.mxu0 0
      %890 = vmatprep.subr.bf16.mxu0 0
      %891 = vmatpush2.bf16.msra.mxu0 0
      %892 = vmatprep.mubr.bf16.mxu0 0
      %893 = vmatmul.mubr.bf16.gmra.mxu0 %v849
      %v894 = vpop.f32.mrf.mxu0
      %v895 = vadd.f32 0.0, %v894
      %v896 = vpop.f32.mrf.mxu0
      %v897 = vpop.f32.mrf.mxu0
      %v898 = vadd.f32 0.0, %v897
      %v899 = vpop.f32.mrf.mxu0
      %900 = vmatprep.mubr.bf16.mxu0 0
      %901 = vmatmul.mubr.bf16.gmra.mxu0 %v852
      %v902 = vpop.f32.mrf.mxu0
      %v903 = vadd.f32 0.0, %v902
      %v904 = vpop.f32.mrf.mxu0
      %v905 = vpop.f32.mrf.mxu0
      %v906 = vadd.f32 0.0, %v905
      %v907 = vpop.f32.mrf.mxu0
      %908 = vmatprep.mubr.bf16.mxu0 0
      %909 = vmatmul.mubr.bf16.gmra.mxu0 %v855
      %v910 = vpop.f32.mrf.mxu0
      %v911 = vadd.f32 0.0, %v910
      %v912 = vpop.f32.mrf.mxu0
      %v913 = vpop.f32.mrf.mxu0
      %v914 = vadd.f32 0.0, %v913
      %v915 = vpop.f32.mrf.mxu0
      %916 = vmatprep.mubr.bf16.mxu0 0
      %917 = vmatmul.mubr.bf16.gmra.mxu0 %v858
      %v918 = vpop.f32.mrf.mxu0
      %v919 = vadd.f32 0.0, %v918
      %v920 = vpop.f32.mrf.mxu0
      %v921 = vpop.f32.mrf.mxu0
      %v922 = vadd.f32 0.0, %v921
      %v923 = vpop.f32.mrf.mxu0
      %924 = vdwg.mxu0
      %v925 = vadd.f32 %v667, %v895
      %v926 = vadd.f32 %v668, %v898
      %v927 = vadd.f32 %v669, %v903
      %v928 = vadd.f32 %v670, %v906
      %v929 = vadd.f32 %v671, %v911
      %v930 = vadd.f32 %v672, %v914
      %v931 = vadd.f32 %v673, %v919
      %v932 = vadd.f32 %v674, %v922
      %vm933 = vcmp.ge.f32.partialorder %v925, 0.0
      %vm934 = vcmp.ge.f32.partialorder %v926, 0.0
      %vm935 = vcmp.ge.f32.partialorder %v927, 0.0
      %vm936 = vcmp.ge.f32.partialorder %v928, 0.0
      %vm937 = vcmp.ge.f32.partialorder %v929, 0.0
      %vm938 = vcmp.ge.f32.partialorder %v930, 0.0
      %vm939 = vcmp.ge.f32.partialorder %v931, 0.0
      %vm940 = vcmp.ge.f32.partialorder %v932, 0.0
      %v941 = vmul.f32 %v925, 0.2
      %v942 = vmul.f32 %v926, 0.2
      %v943 = vmul.f32 %v927, 0.2
      %v944 = vmul.f32 %v928, 0.2
      %v945 = vmul.f32 %v929, 0.2
      %v946 = vmul.f32 %v930, 0.2
      %v947 = vmul.f32 %v931, 0.2
      %v948 = vmul.f32 %v932, 0.2
      %v949 = vsel %vm933, %v925, %v941
      %v950 = vsel %vm934, %v926, %v942
      %v951 = vsel %vm935, %v927, %v943
      %v952 = vsel %vm936, %v928, %v944
      %v953 = vsel %vm937, %v929, %v945
      %v954 = vsel %vm938, %v930, %v946
      %v955 = vsel %vm939, %v931, %v947
      %v956 = vsel %vm940, %v932, %v948
      %v957 = vpack.c.bf16 %v949, %v949
      %v958 = vpack.c.bf16 %v950, %v950
      %v959 = vpack.c.bf16 %v951, %v951
      %v960 = vpack.c.bf16 %v952, %v952
      %v961 = vpack.c.bf16 %v953, %v953
      %v962 = vpack.c.bf16 %v954, %v954
      %v963 = vpack.c.bf16 %v955, %v955
      %v964 = vpack.c.bf16 %v956, %v956
      %vm965 = vcmask 257024
      %966 = vst.msk [vmem:[%s143] sm:$0xf] %vm965, %v957
      %967 = vst.msk [vmem:[%s143 + $0x4] sm:$0xf] %vm965, %v958
      %968 = vst.msk [vmem:[%s143 + $0x8] sm:$0xf] %vm965, %v959
      %969 = vst.msk [vmem:[%s143 + $0xc] sm:$0xf] %vm965, %v960
      %970 = vst.msk [vmem:[%s143 + $0x10] sm:$0xf] %vm965, %v961
      %971 = vst.msk [vmem:[%s143 + $0x14] sm:$0xf] %vm965, %v962
      %972 = vst.msk [vmem:[%s143 + $0x18] sm:$0xf] %vm965, %v963
      %973 = vst.msk [vmem:[%s143 + $0x1c] sm:$0xf] %vm965, %v964
      %p974 = scmp.lt.s32.totalorder %s13, 1
      %s975 = scalar_select %p974, %s13, 1
      %s976 = smul.addr %s975, 8
      %s977 = smul.addr %s976, 4
      %s978 = scalar_lea.vmem %s2, %s977
      // Predicated region
      $region29: #{discriminator_forward.7} parent=27 // pred_check
        %p979 = pneg %p78
      $region30: #{discriminator_forward.7} parent=27 // pred_check_branch
        %981 = sbr.rel (%p979) target = $region32
      $region31: #{discriminator_forward.7} parent=27 // pred_region
        _
      $region32: #{discriminator_forward.7} parent=27 // pred_fallthru
        _
    $region28: #{discriminator_forward.7} parent=5 // pred_fallthru
      _
    %p982 = scmp.le.s32.totalorder 2, %s8
    // Predicated region
    $region33: #{discriminator_forward.7} parent=5 // pred_check
      %p983 = pneg %p982
    $region34: #{discriminator_forward.7} parent=5 // pred_check_branch
      %985 = sbr.rel (%p983) target = $region36
    $region35: #{discriminator_forward.7} parent=5 // pred_region
      %s986 = ssub.s32 %s8, 2
      // Predicated region
      $region37: #{discriminator_forward.7} parent=35 // pred_check
        %p987 = pneg %p84
      $region38: #{discriminator_forward.7} parent=35 // pred_check_branch
        %989 = sbr.rel (%p987) target = $region40
      $region39: #{discriminator_forward.7} parent=35 // pred_region
        %p990 = scmp.lt.s32.totalorder %s14, 1
        %s991 = scalar_select %p990, %s14, 1
        %s992 = smul.addr %s991, 8
        %s993 = smul.addr %s992, 4
        %s994 = scalar_lea.vmem %s2, %s993
      $region40: #{discriminator_forward.7} parent=35 // pred_fallthru
        _
    $region36: #{discriminator_forward.7} parent=5 // pred_fallthru
      _
  $region6: #{discriminator_forward.7} parent=0 // loop_footer
    %s12 = sadd.s32 1, %s8
  $region7: #{discriminator_forward.7} parent=0 // loop_footer_branch
    %7 = sbr.rel target = $region3
  $region8: #{discriminator_forward.7} parent=0 // loop_exit
    _

// kernel: discriminator_forward.9
$region0: #{discriminator_forward.9}
  #allocation0 [shape = 'u32[]', space=smem, size = 0x4, offset = 0x4, fixed_abs, tag = 'smem constant byte address 0x4 - core index']
  #allocation1 [shape = 'u32[144,128]{1,0:T(1,128)}', space=vmem, size = 0x12000, scoped, tag = 'internal scratch']
  %s0 = inlined_call_operand.vmem [shape: bf16[2,1024], index: 0, kind: input, shape index: {}]
  %s1 = inlined_call_operand.vmem [shape: bf16[1,1024], index: 1, kind: input, shape index: {}]
  %s2 = inlined_call_operand.vmem [shape: f32[2,1], index: 2, kind: output, shape index: {}]
  %s3 = sld [smem:[#allocation0]]
  $region18: #{discriminator_forward.9} parent=0
    _
  %s5 = ssub.s32 1, %s3
  %s6 = scalar_select 0, %s5, %s3
  // Predicated region
  $region2: #{discriminator_forward.9} parent=0 // pred_check
    _
  $region3: #{discriminator_forward.9} parent=0 // pred_check_branch
    %8 = sbr.rel (0) target = $region5
  $region4: #{discriminator_forward.9} parent=0 // pred_region
    _
  $region5: #{discriminator_forward.9} parent=0 // pred_fallthru
    _
  // Predicated region
  $region6: #{discriminator_forward.9} parent=0 // pred_check
    _
  $region7: #{discriminator_forward.9} parent=0 // pred_check_branch
    %10 = sbr.rel (0) target = $region9
  $region8: #{discriminator_forward.9} parent=0 // pred_region
    _
  $region9: #{discriminator_forward.9} parent=0 // pred_fallthru
    _
  %v11 = vld [vmem:[%s0] sm:$0xff]
  %v12 = vunpack.c.l.bf16 %v11
  %v13 = vunpack.c.h.bf16 %v11
  %v14 = vld [vmem:[%s1] sm:$0xff]
  %v15 = vunpack.c.l.bf16 %v14
  %v16 = vunpack.c.h.bf16 %v14
  %v19 = vlaneseq
  %v20 = vshrl.u32 %v19, 7
  %v21 = vsub.s32 0, %v20
  %v22 = vrot.slane %v15, %v21
  %v23 = vlaneseq
  %v24 = vshrl.u32 %v23, 7
  %v25 = vsub.s32 2, %v24
  %v26 = vrot.slane %v15, %v25
  %v27 = vlaneseq
  %v28 = vshrl.u32 %v27, 7
  %v29 = vsub.s32 4, %v28
  %v30 = vrot.slane %v15, %v29
  %v31 = vlaneseq
  %v32 = vshrl.u32 %v31, 7
  %v33 = vsub.s32 6, %v32
  %v34 = vrot.slane %v15, %v33
  %v35 = vlaneseq
  %v36 = vshrl.u32 %v35, 7
  %v37 = vsub.s32 0, %v36
  %v38 = vrot.slane %v16, %v37
  %v39 = vlaneseq
  %v40 = vshrl.u32 %v39, 7
  %v41 = vsub.s32 2, %v40
  %v42 = vrot.slane %v16, %v41
  %v43 = vlaneseq
  %v44 = vshrl.u32 %v43, 7
  %v45 = vsub.s32 4, %v44
  %v46 = vrot.slane %v16, %v45
  %v47 = vlaneseq
  %v48 = vshrl.u32 %v47, 7
  %v49 = vsub.s32 6, %v48
  %v50 = vrot.slane %v16, %v49
  %v59 = vlaneseq
  %v60 = vshrl.u32 %v59, 7
  %v61 = vsub.s32 0, %v60
  %v62 = vrot.slane %v22, %v61
  %v63 = vlaneseq
  %v64 = vshrl.u32 %v63, 7
  %v65 = vsub.s32 0, %v64
  %v66 = vrot.slane %v26, %v65
  %v67 = vlaneseq
  %v68 = vshrl.u32 %v67, 7
  %v69 = vsub.s32 0, %v68
  %v70 = vrot.slane %v30, %v69
  %v71 = vlaneseq
  %v72 = vshrl.u32 %v71, 7
  %v73 = vsub.s32 0, %v72
  %v74 = vrot.slane %v34, %v73
  %v75 = vlaneseq
  %v76 = vshrl.u32 %v75, 7
  %v77 = vsub.s32 0, %v76
  %v78 = vrot.slane %v38, %v77
  %v79 = vlaneseq
  %v80 = vshrl.u32 %v79, 7
  %v81 = vsub.s32 0, %v80
  %v82 = vrot.slane %v42, %v81
  %v83 = vlaneseq
  %v84 = vshrl.u32 %v83, 7
  %v85 = vsub.s32 0, %v84
  %v86 = vrot.slane %v46, %v85
  %v87 = vlaneseq
  %v88 = vshrl.u32 %v87, 7
  %v89 = vsub.s32 0, %v88
  %v90 = vrot.slane %v50, %v89
  %v99 = vcombine.low %v62, %v66
  %v100 = vcombine.low %v70, %v74
  %v102 = vunpack.c.l.s4 1983009808
  %v103 = vunpack.c.0.s8 %v102
  %v104 = vlaneseq
  %v105 = vshrl.u32 %v104, 7
  %v106 = vsub.s32 %v103, %v105
  %v107 = vrot.slane %v99, %v106
  %v109 = vunpack.c.l.s4 1983009808
  %v110 = vunpack.c.0.s8 %v109
  %v111 = vlaneseq
  %v112 = vshrl.u32 %v111, 7
  %v113 = vsub.s32 %v110, %v112
  %v114 = vrot.slane %v100, %v113
  %v115 = vcombine.low %v107, %v114
  %v116 = vcombine.low %v78, %v82
  %v117 = vcombine.low %v86, %v90
  %v119 = vunpack.c.l.s4 1983009808
  %v120 = vunpack.c.0.s8 %v119
  %v121 = vlaneseq
  %v122 = vshrl.u32 %v121, 7
  %v123 = vsub.s32 %v120, %v122
  %v124 = vrot.slane %v116, %v123
  %v126 = vunpack.c.l.s4 1983009808
  %v127 = vunpack.c.0.s8 %v126
  %v128 = vlaneseq
  %v129 = vshrl.u32 %v128, 7
  %v130 = vsub.s32 %v127, %v129
  %v131 = vrot.slane %v117, %v130
  %v132 = vcombine.low %v124, %v131
  %v135 = vmul.f32 %v12, %v115
  %v136 = vmul.f32 %v13, %v132
  %v139 = vcombine.high %v135, %v135
  %v141 = vunpack.c.l.s4 1983009808
  %v142 = vunpack.c.0.s8 %v141
  %v143 = vlaneseq
  %v144 = vshrl.u32 %v143, 7
  %v145 = vsub.s32 %v142, %v144
  %v146 = vrot.slane %v135, %v145
  %v148 = vunpack.c.l.s4 1983009808
  %v149 = vunpack.c.0.s8 %v148
  %v150 = vlaneseq
  %v151 = vshrl.u32 %v150, 7
  %v152 = vsub.s32 %v149, %v151
  %v153 = vrot.slane %v139, %v152
  %v154 = vcombine.high %v146, %v146
  %v155 = vcombine.high %v153, %v153
  %v156 = vcombine.high %v136, %v136
  %v158 = vunpack.c.l.s4 1983009808
  %v159 = vunpack.c.0.s8 %v158
  %v160 = vlaneseq
  %v161 = vshrl.u32 %v160, 7
  %v162 = vsub.s32 %v159, %v161
  %v163 = vrot.slane %v136, %v162
  %v165 = vunpack.c.l.s4 1983009808
  %v166 = vunpack.c.0.s8 %v165
  %v167 = vlaneseq
  %v168 = vshrl.u32 %v167, 7
  %v169 = vsub.s32 %v166, %v168
  %v170 = vrot.slane %v156, %v169
  %v171 = vcombine.high %v163, %v163
  %v172 = vcombine.high %v170, %v170
  %vm181 = vcmask 1041408
  %v182 = vsel %vm181, %v146, 0.0
  %v183 = vsel %vm181, %v154, 0.0
  %v184 = vadd.f32 %v182, %v183
  %v185 = vsel %vm181, %v153, 0.0
  %v186 = vadd.f32 %v184, %v185
  %v187 = vsel %vm181, %v155, 0.0
  %v188 = vadd.f32 %v186, %v187
  %v189 = vsel %vm181, %v163, 0.0
  %v190 = vadd.f32 %v188, %v189
  %v191 = vsel %vm181, %v171, 0.0
  %v192 = vadd.f32 %v190, %v191
  %v193 = vsel %vm181, %v170, 0.0
  %v194 = vadd.f32 %v192, %v193
  %v195 = vsel %vm181, %v172, 0.0
  %v196 = vadd.f32 %v194, %v195
  %197 = vadd.xlane.f32.xlu0 %v196
  %v198 = vpop.xlane.xlu0 %197
  %vm199 = vcmask 1024
  %200 = vst.msk [vmem:[%s2] sm:$0x3] %vm199, %v198
  // Predicated region
  $region10: #{discriminator_forward.9} parent=0 // pred_check
    _
  $region11: #{discriminator_forward.9} parent=0 // pred_check_branch
    %202 = sbr.rel (0) target = $region13
  $region12: #{discriminator_forward.9} parent=0 // pred_region
    _
  $region13: #{discriminator_forward.9} parent=0 // pred_fallthru
    _
  // Predicated region
  $region14: #{discriminator_forward.9} parent=0 // pred_check
    _
  $region15: #{discriminator_forward.9} parent=0 // pred_check_branch
    %204 = sbr.rel (0) target = $region17
  $region16: #{discriminator_forward.9} parent=0 // pred_region
    _
  $region17: #{discriminator_forward.9} parent=0 // pred_fallthru
    _

// kernel: discriminator_forward.8
$region0: #{discriminator_forward.8}
  #allocation0 [shape = 'u32[]', space=smem, size = 0x4, offset = 0x4, fixed_abs, tag = 'smem constant byte address 0x4 - core index']
  #allocation1 [shape = 'u32[144,128]{1,0:T(1,128)}', space=vmem, size = 0x12000, scoped, tag = 'internal scratch']
  %s0 = inlined_call_operand.vmem [shape: bf16[2,5,5,128], index: 0, kind: input, shape index: {}]
  %s1 = inlined_call_operand.vmem [shape: bf16[4,128,64], index: 1, kind: input, shape index: {}]
  %s2 = inlined_call_operand.vmem [shape: bf16[2,4,4,64], index: 2, kind: output, shape index: {}]
  %s3 = sld [smem:[#allocation0]]
  $region41: #{discriminator_forward.8} parent=0
    _
  %s5 = ssub.s32 1, %s3
  %s6 = scalar_select 0, %s5, %s3
  loop: start=0, step=1, limit=4
  $region2: #{discriminator_forward.8} parent=0 // loop_pre_header
    _
  $region3: #{discriminator_forward.8} parent=0 // loop_header
    %s8 = sphi 0, %s12
    %p9 = scmp.ge.s32.totalorder %s8, 4
    %s18 = sphi 0, %s20
    %s21 = sphi 0, %s18
    %s22 = sphi 0, %s21
    %s38 = sphi 0, %s22
    %s42 = sphi 0, %s42
    %s44 = sphi 0, %s42
    %s45 = sphi 0, %s44
    %s59 = sphi 0, %s45
    %s65 = sphi 0, %s67
    %s68 = sphi 0, %s65
    %s69 = sphi 0, %s68
    %s85 = sphi 0, %s69
  $region4: #{discriminator_forward.8} parent=0 // loop_header_branch
    %11 = sbr.rel (%p9) target = $region8
  $region5: #{discriminator_forward.8} parent=0 // loop_body
    %s13 = ssub.s32 %s8, 1
    %s14 = ssub.s32 %s8, 2
    %s15 = sadd.s32 %s8, 1
    %s16 = ssub.s32 %s8, %s15
    %p17 = scmp.eq.s32.totalorder %s16, 0
    %s19 = sadd.s32 %s18, 1
    %s20 = scalar_select %p17, %s18, %s19
    %p23 = pneg %p17
    %p24 = scmp.eq.s32.totalorder %s8, 1
    %p25 = por %p23, %p24
    %p26 = scmp.ne.s32.totalorder %s18, %s21
    %p27 = scmp.eq.s32.totalorder %s8, 0
    %p28 = por %p26, %p27
    %p29 = scmp.ne.s32.totalorder %s18, %s21
    %p30 = scmp.eq.s32.totalorder %s13, 1
    %p31 = por %p29, %p30
    %p32 = scmp.ne.s32.totalorder %s21, %s22
    %p33 = scmp.eq.s32.totalorder %s13, 0
    %p34 = por %p32, %p33
    %p35 = scmp.ne.s32.totalorder %s21, %s22
    %p36 = scmp.eq.s32.totalorder %s14, 1
    %p37 = por %p35, %p36
    %p39 = scmp.ne.s32.totalorder %s22, %s38
    %p40 = scmp.eq.s32.totalorder %s14, 0
    %p41 = por %p39, %p40
    %s43 = sadd.s32 %s42, 1
    %p46 = scmp.eq.s32.totalorder %s8, 1
    %p47 = scmp.ne.s32.totalorder %s42, %s44
    %p48 = scmp.eq.s32.totalorder %s8, 0
    %p49 = por %p47, %p48
    %p50 = scmp.ne.s32.totalorder %s42, %s44
    %p51 = scmp.eq.s32.totalorder %s13, 1
    %p52 = por %p50, %p51
    %p53 = scmp.ne.s32.totalorder %s44, %s45
    %p54 = scmp.eq.s32.totalorder %s13, 0
    %p55 = por %p53, %p54
    %p56 = scmp.ne.s32.totalorder %s44, %s45
    %p57 = scmp.eq.s32.totalorder %s14, 1
    %p58 = por %p56, %p57
    %p60 = scmp.ne.s32.totalorder %s45, %s59
    %p61 = scmp.eq.s32.totalorder %s14, 0
    %p62 = por %p60, %p61
    %s63 = ssub.s32 %s8, %s15
    %p64 = scmp.eq.s32.totalorder %s63, 0
    %s66 = sadd.s32 %s65, 1
    %s67 = scalar_select %p64, %s65, %s66
    %p70 = pneg %p64
    %p71 = scmp.eq.s32.totalorder %s8, 1
    %p72 = por %p70, %p71
    %p73 = scmp.ne.s32.totalorder %s65, %s68
    %p74 = scmp.eq.s32.totalorder %s8, 0
    %p75 = por %p73, %p74
    %p76 = scmp.ne.s32.totalorder %s65, %s68
    %p77 = scmp.eq.s32.totalorder %s13, 1
    %p78 = por %p76, %p77
    %p79 = scmp.ne.s32.totalorder %s68, %s69
    %p80 = scmp.eq.s32.totalorder %s13, 0
    %p81 = por %p79, %p80
    %p82 = scmp.ne.s32.totalorder %s68, %s69
    %p83 = scmp.eq.s32.totalorder %s14, 1
    %p84 = por %p82, %p83
    %p86 = scmp.ne.s32.totalorder %s69, %s85
    %p87 = scmp.eq.s32.totalorder %s14, 0
    %p88 = por %p86, %p87
    %p89 = scmp.le.s32.totalorder 1, %s8
    %p90 = scmp.lt.s32.totalorder %s8, 3
    %p91 = pnand %p89, %p90
    %p92 = pneg %p91
    // Predicated region
    $region9: #{discriminator_forward.8} parent=5 // pred_check
      _
    $region10: #{discriminator_forward.8} parent=5 // pred_check_branch
      %94 = sbr.rel (%p91) target = $region12
    $region11: #{discriminator_forward.8} parent=5 // pred_region
      %s95 = ssub.s32 %s8, 1
      // Predicated region
      $region13: #{discriminator_forward.8} parent=11 // pred_check
        %p96 = pneg %p55
      $region14: #{discriminator_forward.8} parent=11 // pred_check_branch
        %98 = sbr.rel (%p96) target = $region16
      $region15: #{discriminator_forward.8} parent=11 // pred_region
        _
      $region16: #{discriminator_forward.8} parent=11 // pred_fallthru
        _
    $region12: #{discriminator_forward.8} parent=5 // pred_fallthru
      _
    %p99 = scmp.lt.s32.totalorder %s8, 2
    // Predicated region
    $region17: #{discriminator_forward.8} parent=5 // pred_check
      %p100 = pneg %p99
    $region18: #{discriminator_forward.8} parent=5 // pred_check_branch
      %102 = sbr.rel (%p100) target = $region20
    $region19: #{discriminator_forward.8} parent=5 // pred_region
      // Predicated region
      $region21: #{discriminator_forward.8} parent=19 // pred_check
        %p103 = pneg %p28
      $region22: #{discriminator_forward.8} parent=19 // pred_check_branch
        %105 = sbr.rel (%p103) target = $region24
      $region23: #{discriminator_forward.8} parent=19 // pred_region
        %p106 = scmp.lt.s32.totalorder %s8, 1
        %s107 = scalar_select %p106, %s8, 1
        %s108 = smul.addr %s107, 5
        %s109 = smul.addr %s108, 4
        %s110 = scalar_lea.vmem %s0, %s109
      $region24: #{discriminator_forward.8} parent=19 // pred_fallthru
        _
    $region20: #{discriminator_forward.8} parent=5 // pred_fallthru
      _
    %p111 = scmp.le.s32.totalorder 1, %s8
    %p112 = scmp.lt.s32.totalorder %s8, 3
    %p113 = pnand %p111, %p112
    %p114 = pneg %p113
    // Predicated region
    $region25: #{discriminator_forward.8} parent=5 // pred_check
      _
    $region26: #{discriminator_forward.8} parent=5 // pred_check_branch
      %116 = sbr.rel (%p113) target = $region28
    $region27: #{discriminator_forward.8} parent=5 // pred_region
      %s117 = ssub.s32 %s8, 1
      %p118 = scmp.lt.s32.totalorder %s13, 1
      %s119 = scalar_select %p118, %s13, 1
      %s120 = smul.addr %s119, 5
      %s121 = smul.addr %s120, 4
      %s122 = scalar_lea.vmem %s0, %s121
      %p123 = pneg %p34
      %p124 = pneg %p31
      %p125 = pneg %p55
      %p126 = pneg %p52
      %p127 = pneg %p81
      %p128 = pneg %p78
      %p129 = scmp.lt.s32.totalorder %s13, 1
      %s130 = scalar_select %p129, %s13, 1
      %s131 = smul.addr %s130, 4
      %s132 = smul.addr %s131, 2
      %s133 = scalar_lea.vmem %s2, %s132
      %p134 = scmp.lt.s32.totalorder %s13, 1
      %s135 = scalar_select %p134, %s13, 1
      %s136 = smul.addr %s135, 5
      %s137 = smul.addr %s136, 4
      %s138 = scalar_lea.vmem %s0, %s137
      %p139 = scmp.lt.s32.totalorder %s13, 1
      %s140 = scalar_select %p139, %s13, 1
      %s141 = smul.addr %s140, 4
      %s142 = smul.addr %s141, 2
      %s143 = scalar_lea.vmem %s2, %s142
      %v145 = vld [vmem:[%s138] sm:$0x3]
      %v146 = vld [vmem:[%s138 + $0x4] sm:$0x3]
      %v147 = vld [vmem:[%s138 + $0x8] sm:$0x3]
      %v148 = vld [vmem:[%s138 + $0xc] sm:$0x3]
      %v149 = vld [vmem:[%s1] sm:$0xf]
      %v150 = vld [vmem:[%s1 + $0x4] sm:$0xf]
      %v151 = vld [vmem:[%s1 + $0x8] sm:$0xf]
      %v152 = vld [vmem:[%s1 + $0xc] sm:$0xf]
      %v153 = vld [vmem:[%s1 + $0x10] sm:$0xf]
      %v154 = vld [vmem:[%s1 + $0x14] sm:$0xf]
      %v155 = vld [vmem:[%s1 + $0x18] sm:$0xf]
      %v156 = vld [vmem:[%s1 + $0x1c] sm:$0xf]
      %v157 = vld [vmem:[%s1 + $0x20] sm:$0xf]
      %v158 = vld [vmem:[%s1 + $0x24] sm:$0xf]
      %v159 = vld [vmem:[%s1 + $0x28] sm:$0xf]
      %v160 = vld [vmem:[%s1 + $0x2c] sm:$0xf]
      %v161 = vld [vmem:[%s1 + $0x30] sm:$0xf]
      %v162 = vld [vmem:[%s1 + $0x34] sm:$0xf]
      %v163 = vld [vmem:[%s1 + $0x38] sm:$0xf]
      %v164 = vld [vmem:[%s1 + $0x3c] sm:$0xf]
      %v165 = vld [vmem:[%s138] sm:$0x7]
      %v166 = vld [vmem:[%s138 + $0x4] sm:$0x7]
      %v167 = vld [vmem:[%s138 + $0x8] sm:$0x7]
      %v168 = vld [vmem:[%s138 + $0xc] sm:$0x7]
      %v174 = vunpack.c.l.s4 1983009808
      %v175 = vunpack.c.0.s8 %v174
      %v176 = vlaneseq
      %v177 = vshrl.u32 %v176, 7
      %v178 = vsub.s32 %v175, %v177
      %v179 = vrot.slane %v165, %v178
      %v180 = vcombine.high %v179, %v179
      %v182 = vunpack.c.l.s4 1983009808
      %v183 = vunpack.c.0.s8 %v182
      %v184 = vlaneseq
      %v185 = vshrl.u32 %v184, 7
      %v186 = vsub.s32 %v183, %v185
      %v187 = vrot.slane %v166, %v186
      %v188 = vcombine.high %v187, %v187
      %v190 = vunpack.c.l.s4 1983009808
      %v191 = vunpack.c.0.s8 %v190
      %v192 = vlaneseq
      %v193 = vshrl.u32 %v192, 7
      %v194 = vsub.s32 %v191, %v193
      %v195 = vrot.slane %v167, %v194
      %v196 = vcombine.high %v195, %v195
      %v198 = vunpack.c.l.s4 1983009808
      %v199 = vunpack.c.0.s8 %v198
      %v200 = vlaneseq
      %v201 = vshrl.u32 %v200, 7
      %v202 = vsub.s32 %v199, %v201
      %v203 = vrot.slane %v168, %v202
      %v204 = vcombine.high %v203, %v203
      %vm205 = vsmask.f32 1280
      %vm206 = vsmask.f32 3336
      %vm207 = vmor %vm205, %vm206
      %vm208 = vsmask.f32 5392
      %vm209 = vmor %vm207, %vm208
      %vm210 = vsmask.f32 7448
      %vm211 = vmor %vm209, %vm210
      %v213 = vshrl.u32 %v179, 16
      %v215 = vrot.slane %v213, 6
      %v216 = vshll.u32 %v179, 16
      %v218 = vrot.slane %v216, 7
      %v219 = vor.u32 %v215, %v218
      %v220 = vrot.slane %v219, 2
      %v222 = vshll.u32 %v180, 16
      %v224 = vrot.slane %v222, 7
      %v225 = vsel %vm211, %v220, %v224
      %v227 = vshrl.u32 %v187, 16
      %v229 = vrot.slane %v227, 6
      %v230 = vshll.u32 %v187, 16
      %v232 = vrot.slane %v230, 7
      %v233 = vor.u32 %v229, %v232
      %v234 = vrot.slane %v233, 2
      %v236 = vshll.u32 %v188, 16
      %v238 = vrot.slane %v236, 7
      %v239 = vsel %vm211, %v234, %v238
      %v241 = vshrl.u32 %v195, 16
      %v243 = vrot.slane %v241, 6
      %v244 = vshll.u32 %v195, 16
      %v246 = vrot.slane %v244, 7
      %v247 = vor.u32 %v243, %v246
      %v248 = vrot.slane %v247, 2
      %v250 = vshll.u32 %v196, 16
      %v252 = vrot.slane %v250, 7
      %v253 = vsel %vm211, %v248, %v252
      %v255 = vshrl.u32 %v203, 16
      %v257 = vrot.slane %v255, 6
      %v258 = vshll.u32 %v203, 16
      %v260 = vrot.slane %v258, 7
      %v261 = vor.u32 %v257, %v260
      %v262 = vrot.slane %v261, 2
      %v264 = vshll.u32 %v204, 16
      %v266 = vrot.slane %v264, 7
      %v267 = vsel %vm211, %v262, %v266
      %s268 = scalar_lea.vmem %s1, 64
      %v269 = vld [vmem:[%s268] sm:$0xf]
      %v270 = vld [vmem:[%s268 + $0x4] sm:$0xf]
      %v271 = vld [vmem:[%s268 + $0x8] sm:$0xf]
      %v272 = vld [vmem:[%s268 + $0xc] sm:$0xf]
      %v273 = vld [vmem:[%s268 + $0x10] sm:$0xf]
      %v274 = vld [vmem:[%s268 + $0x14] sm:$0xf]
      %v275 = vld [vmem:[%s268 + $0x18] sm:$0xf]
      %v276 = vld [vmem:[%s268 + $0x1c] sm:$0xf]
      %v277 = vld [vmem:[%s268 + $0x20] sm:$0xf]
      %v278 = vld [vmem:[%s268 + $0x24] sm:$0xf]
      %v279 = vld [vmem:[%s268 + $0x28] sm:$0xf]
      %v280 = vld [vmem:[%s268 + $0x2c] sm:$0xf]
      %v281 = vld [vmem:[%s268 + $0x30] sm:$0xf]
      %v282 = vld [vmem:[%s268 + $0x34] sm:$0xf]
      %v283 = vld [vmem:[%s268 + $0x38] sm:$0xf]
      %v284 = vld [vmem:[%s268 + $0x3c] sm:$0xf]
      %v285 = vcombine.low %v225, %v239
      %v286 = vcombine.low %v253, %v267
      %v288 = vunpack.c.l.s4 1983009808
      %v289 = vunpack.c.0.s8 %v288
      %v290 = vlaneseq
      %v291 = vshrl.u32 %v290, 7
      %v292 = vsub.s32 %v289, %v291
      %v293 = vrot.slane %v285, %v292
      %v295 = vunpack.c.l.s4 1983009808
      %v296 = vunpack.c.0.s8 %v295
      %v297 = vlaneseq
      %v298 = vshrl.u32 %v297, 7
      %v299 = vsub.s32 %v296, %v298
      %v300 = vrot.slane %v286, %v299
      %v301 = vcombine.low %v293, %v300
      %v319 = vunpack.c.l.b16 %v269
      %v320 = vunpack.c.l.b16 %v270
      %v321 = vunpack.c.l.b16 %v271
      %v322 = vunpack.c.l.b16 %v272
      %v323 = vunpack.c.l.b16 %v273
      %v324 = vunpack.c.l.b16 %v274
      %v325 = vunpack.c.l.b16 %v275
      %v326 = vunpack.c.l.b16 %v276
      %v327 = vunpack.c.l.b16 %v277
      %v328 = vunpack.c.l.b16 %v278
      %v329 = vunpack.c.l.b16 %v279
      %v330 = vunpack.c.l.b16 %v280
      %v331 = vunpack.c.l.b16 %v281
      %v332 = vunpack.c.l.b16 %v282
      %v333 = vunpack.c.l.b16 %v283
      %v334 = vunpack.c.l.b16 %v284
      %v335 = vpack.c.b16 %v320, %v319
      %v336 = vpack.c.b16 %v322, %v321
      %v337 = vpack.c.b16 %v324, %v323
      %v338 = vpack.c.b16 %v326, %v325
      %v339 = vpack.c.b16 %v328, %v327
      %v340 = vpack.c.b16 %v330, %v329
      %v341 = vpack.c.b16 %v332, %v331
      %v342 = vpack.c.b16 %v334, %v333
      %351 = vmatprep.subr.bf16.mxu0 0
      %352 = vmatpush1.bf16.msra.mxu0 %v342
      %353 = vmatprep.subr.bf16.mxu0 0
      %354 = vmatpush1.bf16.msra.mxu0 %v341
      %355 = vmatprep.subr.bf16.mxu0 0
      %356 = vmatpush1.bf16.msra.mxu0 %v340
      %357 = vmatprep.subr.bf16.mxu0 0
      %358 = vmatpush1.bf16.msra.mxu0 %v339
      %359 = vmatprep.subr.bf16.mxu0 0
      %360 = vmatpush1.bf16.msra.mxu0 %v338
      %361 = vmatprep.subr.bf16.mxu0 0
      %362 = vmatpush1.bf16.msra.mxu0 %v337
      %363 = vmatprep.subr.bf16.mxu0 0
      %364 = vmatpush1.bf16.msra.mxu0 %v336
      %365 = vmatprep.subr.bf16.mxu0 0
      %366 = vmatpush1.bf16.msra.mxu0 %v335
      %367 = vmatprep.subr.bf16.mxu0 0
      %368 = vmatpush2.bf16.msra.mxu0 0
      %369 = vmatprep.subr.bf16.mxu0 0
      %370 = vmatpush2.bf16.msra.mxu0 0
      %371 = vmatprep.subr.bf16.mxu0 0
      %372 = vmatpush2.bf16.msra.mxu0 0
      %373 = vmatprep.subr.bf16.mxu0 0
      %374 = vmatpush2.bf16.msra.mxu0 0
      %375 = vmatprep.subr.bf16.mxu0 0
      %376 = vmatpush2.bf16.msra.mxu0 0
      %377 = vmatprep.subr.bf16.mxu0 0
      %378 = vmatpush2.bf16.msra.mxu0 0
      %379 = vmatprep.subr.bf16.mxu0 0
      %380 = vmatpush2.bf16.msra.mxu0 0
      %381 = vmatprep.subr.bf16.mxu0 0
      %382 = vmatpush2.bf16.msra.mxu0 0
      %383 = vmatprep.mubr.bf16.mxu0 0
      %384 = vmatmul.mubr.bf16.gmra.mxu0 %v301
      %v385 = vpop.f32.mrf.mxu0
      %v386 = vadd.f32 0.0, %v385
      %v387 = vpop.f32.mrf.mxu0
      %v388 = vpop.f32.mrf.mxu0
      %v389 = vadd.f32 0.0, %v388
      %v390 = vpop.f32.mrf.mxu0
      %391 = vdwg.mxu0
      %v396 = vcombine.low %v145, %v146
      %v397 = vcombine.low %v147, %v148
      %v399 = vunpack.c.l.s4 1983009808
      %v400 = vunpack.c.0.s8 %v399
      %v401 = vlaneseq
      %v402 = vshrl.u32 %v401, 7
      %v403 = vsub.s32 %v400, %v402
      %v404 = vrot.slane %v396, %v403
      %v406 = vunpack.c.l.s4 1983009808
      %v407 = vunpack.c.0.s8 %v406
      %v408 = vlaneseq
      %v409 = vshrl.u32 %v408, 7
      %v410 = vsub.s32 %v407, %v409
      %v411 = vrot.slane %v397, %v410
      %v412 = vcombine.low %v404, %v411
      %v430 = vunpack.c.l.b16 %v149
      %v431 = vunpack.c.l.b16 %v150
      %v432 = vunpack.c.l.b16 %v151
      %v433 = vunpack.c.l.b16 %v152
      %v434 = vunpack.c.l.b16 %v153
      %v435 = vunpack.c.l.b16 %v154
      %v436 = vunpack.c.l.b16 %v155
      %v437 = vunpack.c.l.b16 %v156
      %v438 = vunpack.c.l.b16 %v157
      %v439 = vunpack.c.l.b16 %v158
      %v440 = vunpack.c.l.b16 %v159
      %v441 = vunpack.c.l.b16 %v160
      %v442 = vunpack.c.l.b16 %v161
      %v443 = vunpack.c.l.b16 %v162
      %v444 = vunpack.c.l.b16 %v163
      %v445 = vunpack.c.l.b16 %v164
      %v446 = vpack.c.b16 %v431, %v430
      %v447 = vpack.c.b16 %v433, %v432
      %v448 = vpack.c.b16 %v435, %v434
      %v449 = vpack.c.b16 %v437, %v436
      %v450 = vpack.c.b16 %v439, %v438
      %v451 = vpack.c.b16 %v441, %v440
      %v452 = vpack.c.b16 %v443, %v442
      %v453 = vpack.c.b16 %v445, %v444
      %462 = vmatprep.subr.bf16.mxu0 0
      %463 = vmatpush1.bf16.msra.mxu0 %v453
      %464 = vmatprep.subr.bf16.mxu0 0
      %465 = vmatpush1.bf16.msra.mxu0 %v452
      %466 = vmatprep.subr.bf16.mxu0 0
      %467 = vmatpush1.bf16.msra.mxu0 %v451
      %468 = vmatprep.subr.bf16.mxu0 0
      %469 = vmatpush1.bf16.msra.mxu0 %v450
      %470 = vmatprep.subr.bf16.mxu0 0
      %471 = vmatpush1.bf16.msra.mxu0 %v449
      %472 = vmatprep.subr.bf16.mxu0 0
      %473 = vmatpush1.bf16.msra.mxu0 %v448
      %474 = vmatprep.subr.bf16.mxu0 0
      %475 = vmatpush1.bf16.msra.mxu0 %v447
      %476 = vmatprep.subr.bf16.mxu0 0
      %477 = vmatpush1.bf16.msra.mxu0 %v446
      %478 = vmatprep.subr.bf16.mxu0 0
      %479 = vmatpush2.bf16.msra.mxu0 0
      %480 = vmatprep.subr.bf16.mxu0 0
      %481 = vmatpush2.bf16.msra.mxu0 0
      %482 = vmatprep.subr.bf16.mxu0 0
      %483 = vmatpush2.bf16.msra.mxu0 0
      %484 = vmatprep.subr.bf16.mxu0 0
      %485 = vmatpush2.bf16.msra.mxu0 0
      %486 = vmatprep.subr.bf16.mxu0 0
      %487 = vmatpush2.bf16.msra.mxu0 0
      %488 = vmatprep.subr.bf16.mxu0 0
      %489 = vmatpush2.bf16.msra.mxu0 0
      %490 = vmatprep.subr.bf16.mxu0 0
      %491 = vmatpush2.bf16.msra.mxu0 0
      %492 = vmatprep.subr.bf16.mxu0 0
      %493 = vmatpush2.bf16.msra.mxu0 0
      %494 = vmatprep.mubr.bf16.mxu0 0
      %495 = vmatmul.mubr.bf16.gmra.mxu0 %v412
      %v496 = vpop.f32.mrf.mxu0
      %v497 = vadd.f32 %v386, %v496
      %v498 = vpop.f32.mrf.mxu0
      %v499 = vpop.f32.mrf.mxu0
      %v500 = vadd.f32 %v389, %v499
      %v501 = vpop.f32.mrf.mxu0
      %502 = vdwg.mxu0
      %s503 = scalar_lea.vmem %s138, 4
      %v504 = vld [vmem:[%s503] sm:$0x3]
      %v505 = vld [vmem:[%s503 + $0x4] sm:$0x3]
      %v506 = vld [vmem:[%s503 + $0x8] sm:$0x3]
      %v507 = vld [vmem:[%s503 + $0xc] sm:$0x3]
      %s508 = scalar_lea.vmem %s1, 128
      %v509 = vld [vmem:[%s508] sm:$0xf]
      %v510 = vld [vmem:[%s508 + $0x4] sm:$0xf]
      %v511 = vld [vmem:[%s508 + $0x8] sm:$0xf]
      %v512 = vld [vmem:[%s508 + $0xc] sm:$0xf]
      %v513 = vld [vmem:[%s508 + $0x10] sm:$0xf]
      %v514 = vld [vmem:[%s508 + $0x14] sm:$0xf]
      %v515 = vld [vmem:[%s508 + $0x18] sm:$0xf]
      %v516 = vld [vmem:[%s508 + $0x1c] sm:$0xf]
      %v517 = vld [vmem:[%s508 + $0x20] sm:$0xf]
      %v518 = vld [vmem:[%s508 + $0x24] sm:$0xf]
      %v519 = vld [vmem:[%s508 + $0x28] sm:$0xf]
      %v520 = vld [vmem:[%s508 + $0x2c] sm:$0xf]
      %v521 = vld [vmem:[%s508 + $0x30] sm:$0xf]
      %v522 = vld [vmem:[%s508 + $0x34] sm:$0xf]
      %v523 = vld [vmem:[%s508 + $0x38] sm:$0xf]
      %v524 = vld [vmem:[%s508 + $0x3c] sm:$0xf]
      %v529 = vcombine.low %v504, %v505
      %v530 = vcombine.low %v506, %v507
      %v532 = vunpack.c.l.s4 1983009808
      %v533 = vunpack.c.0.s8 %v532
      %v534 = vlaneseq
      %v535 = vshrl.u32 %v534, 7
      %v536 = vsub.s32 %v533, %v535
      %v537 = vrot.slane %v529, %v536
      %v539 = vunpack.c.l.s4 1983009808
      %v540 = vunpack.c.0.s8 %v539
      %v541 = vlaneseq
      %v542 = vshrl.u32 %v541, 7
      %v543 = vsub.s32 %v540, %v542
      %v544 = vrot.slane %v530, %v543
      %v545 = vcombine.low %v537, %v544
      %v563 = vunpack.c.l.b16 %v509
      %v564 = vunpack.c.l.b16 %v510
      %v565 = vunpack.c.l.b16 %v511
      %v566 = vunpack.c.l.b16 %v512
      %v567 = vunpack.c.l.b16 %v513
      %v568 = vunpack.c.l.b16 %v514
      %v569 = vunpack.c.l.b16 %v515
      %v570 = vunpack.c.l.b16 %v516
      %v571 = vunpack.c.l.b16 %v517
      %v572 = vunpack.c.l.b16 %v518
      %v573 = vunpack.c.l.b16 %v519
      %v574 = vunpack.c.l.b16 %v520
      %v575 = vunpack.c.l.b16 %v521
      %v576 = vunpack.c.l.b16 %v522
      %v577 = vunpack.c.l.b16 %v523
      %v578 = vunpack.c.l.b16 %v524
      %v579 = vpack.c.b16 %v564, %v563
      %v580 = vpack.c.b16 %v566, %v565
      %v581 = vpack.c.b16 %v568, %v567
      %v582 = vpack.c.b16 %v570, %v569
      %v583 = vpack.c.b16 %v572, %v571
      %v584 = vpack.c.b16 %v574, %v573
      %v585 = vpack.c.b16 %v576, %v575
      %v586 = vpack.c.b16 %v578, %v577
      %595 = vmatprep.subr.bf16.mxu0 0
      %596 = vmatpush1.bf16.msra.mxu0 %v586
      %597 = vmatprep.subr.bf16.mxu0 0
      %598 = vmatpush1.bf16.msra.mxu0 %v585
      %599 = vmatprep.subr.bf16.mxu0 0
      %600 = vmatpush1.bf16.msra.mxu0 %v584
      %601 = vmatprep.subr.bf16.mxu0 0
      %602 = vmatpush1.bf16.msra.mxu0 %v583
      %603 = vmatprep.subr.bf16.mxu0 0
      %604 = vmatpush1.bf16.msra.mxu0 %v582
      %605 = vmatprep.subr.bf16.mxu0 0
      %606 = vmatpush1.bf16.msra.mxu0 %v581
      %607 = vmatprep.subr.bf16.mxu0 0
      %608 = vmatpush1.bf16.msra.mxu0 %v580
      %609 = vmatprep.subr.bf16.mxu0 0
      %610 = vmatpush1.bf16.msra.mxu0 %v579
      %611 = vmatprep.subr.bf16.mxu0 0
      %612 = vmatpush2.bf16.msra.mxu0 0
      %613 = vmatprep.subr.bf16.mxu0 0
      %614 = vmatpush2.bf16.msra.mxu0 0
      %615 = vmatprep.subr.bf16.mxu0 0
      %616 = vmatpush2.bf16.msra.mxu0 0
      %617 = vmatprep.subr.bf16.mxu0 0
      %618 = vmatpush2.bf16.msra.mxu0 0
      %619 = vmatprep.subr.bf16.mxu0 0
      %620 = vmatpush2.bf16.msra.mxu0 0
      %621 = vmatprep.subr.bf16.mxu0 0
      %622 = vmatpush2.bf16.msra.mxu0 0
      %623 = vmatprep.subr.bf16.mxu0 0
      %624 = vmatpush2.bf16.msra.mxu0 0
      %625 = vmatprep.subr.bf16.mxu0 0
      %626 = vmatpush2.bf16.msra.mxu0 0
      %627 = vmatprep.mubr.bf16.mxu0 0
      %628 = vmatmul.mubr.bf16.gmra.mxu0 %v545
      %v629 = vpop.f32.mrf.mxu0
      %v630 = vadd.f32 0.0, %v629
      %v631 = vpop.f32.mrf.mxu0
      %v632 = vpop.f32.mrf.mxu0
      %v633 = vadd.f32 0.0, %v632
      %v634 = vpop.f32.mrf.mxu0
      %635 = vdwg.mxu0
      %v636 = vadd.f32 %v497, %v630
      %v637 = vadd.f32 %v500, %v633
      %v638 = vld [vmem:[%s503] sm:$0x7]
      %v639 = vld [vmem:[%s503 + $0x4] sm:$0x7]
      %v640 = vld [vmem:[%s503 + $0x8] sm:$0x7]
      %v641 = vld [vmem:[%s503 + $0xc] sm:$0x7]
      %v647 = vunpack.c.l.s4 1983009808
      %v648 = vunpack.c.0.s8 %v647
      %v649 = vlaneseq
      %v650 = vshrl.u32 %v649, 7
      %v651 = vsub.s32 %v648, %v650
      %v652 = vrot.slane %v638, %v651
      %v653 = vcombine.high %v652, %v652
      %v655 = vunpack.c.l.s4 1983009808
      %v656 = vunpack.c.0.s8 %v655
      %v657 = vlaneseq
      %v658 = vshrl.u32 %v657, 7
      %v659 = vsub.s32 %v656, %v658
      %v660 = vrot.slane %v639, %v659
      %v661 = vcombine.high %v660, %v660
      %v663 = vunpack.c.l.s4 1983009808
      %v664 = vunpack.c.0.s8 %v663
      %v665 = vlaneseq
      %v666 = vshrl.u32 %v665, 7
      %v667 = vsub.s32 %v664, %v666
      %v668 = vrot.slane %v640, %v667
      %v669 = vcombine.high %v668, %v668
      %v671 = vunpack.c.l.s4 1983009808
      %v672 = vunpack.c.0.s8 %v671
      %v673 = vlaneseq
      %v674 = vshrl.u32 %v673, 7
      %v675 = vsub.s32 %v672, %v674
      %v676 = vrot.slane %v641, %v675
      %v677 = vcombine.high %v676, %v676
      %v679 = vshrl.u32 %v652, 16
      %v681 = vrot.slane %v679, 6
      %v682 = vshll.u32 %v652, 16
      %v684 = vrot.slane %v682, 7
      %v685 = vor.u32 %v681, %v684
      %v686 = vrot.slane %v685, 2
      %v688 = vshll.u32 %v653, 16
      %v690 = vrot.slane %v688, 7
      %v691 = vsel %vm211, %v686, %v690
      %v693 = vshrl.u32 %v660, 16
      %v695 = vrot.slane %v693, 6
      %v696 = vshll.u32 %v660, 16
      %v698 = vrot.slane %v696, 7
      %v699 = vor.u32 %v695, %v698
      %v700 = vrot.slane %v699, 2
      %v702 = vshll.u32 %v661, 16
      %v704 = vrot.slane %v702, 7
      %v705 = vsel %vm211, %v700, %v704
      %v707 = vshrl.u32 %v668, 16
      %v709 = vrot.slane %v707, 6
      %v710 = vshll.u32 %v668, 16
      %v712 = vrot.slane %v710, 7
      %v713 = vor.u32 %v709, %v712
      %v714 = vrot.slane %v713, 2
      %v716 = vshll.u32 %v669, 16
      %v718 = vrot.slane %v716, 7
      %v719 = vsel %vm211, %v714, %v718
      %v721 = vshrl.u32 %v676, 16
      %v723 = vrot.slane %v721, 6
      %v724 = vshll.u32 %v676, 16
      %v726 = vrot.slane %v724, 7
      %v727 = vor.u32 %v723, %v726
      %v728 = vrot.slane %v727, 2
      %v730 = vshll.u32 %v677, 16
      %v732 = vrot.slane %v730, 7
      %v733 = vsel %vm211, %v728, %v732
      %s734 = scalar_lea.vmem %s1, 192
      %v735 = vld [vmem:[%s734] sm:$0xf]
      %v736 = vld [vmem:[%s734 + $0x4] sm:$0xf]
      %v737 = vld [vmem:[%s734 + $0x8] sm:$0xf]
      %v738 = vld [vmem:[%s734 + $0xc] sm:$0xf]
      %v739 = vld [vmem:[%s734 + $0x10] sm:$0xf]
      %v740 = vld [vmem:[%s734 + $0x14] sm:$0xf]
      %v741 = vld [vmem:[%s734 + $0x18] sm:$0xf]
      %v742 = vld [vmem:[%s734 + $0x1c] sm:$0xf]
      %v743 = vld [vmem:[%s734 + $0x20] sm:$0xf]
      %v744 = vld [vmem:[%s734 + $0x24] sm:$0xf]
      %v745 = vld [vmem:[%s734 + $0x28] sm:$0xf]
      %v746 = vld [vmem:[%s734 + $0x2c] sm:$0xf]
      %v747 = vld [vmem:[%s734 + $0x30] sm:$0xf]
      %v748 = vld [vmem:[%s734 + $0x34] sm:$0xf]
      %v749 = vld [vmem:[%s734 + $0x38] sm:$0xf]
      %v750 = vld [vmem:[%s734 + $0x3c] sm:$0xf]
      %v751 = vcombine.low %v691, %v705
      %v752 = vcombine.low %v719, %v733
      %v754 = vunpack.c.l.s4 1983009808
      %v755 = vunpack.c.0.s8 %v754
      %v756 = vlaneseq
      %v757 = vshrl.u32 %v756, 7
      %v758 = vsub.s32 %v755, %v757
      %v759 = vrot.slane %v751, %v758
      %v761 = vunpack.c.l.s4 1983009808
      %v762 = vunpack.c.0.s8 %v761
      %v763 = vlaneseq
      %v764 = vshrl.u32 %v763, 7
      %v765 = vsub.s32 %v762, %v764
      %v766 = vrot.slane %v752, %v765
      %v767 = vcombine.low %v759, %v766
      %v785 = vunpack.c.l.b16 %v735
      %v786 = vunpack.c.l.b16 %v736
      %v787 = vunpack.c.l.b16 %v737
      %v788 = vunpack.c.l.b16 %v738
      %v789 = vunpack.c.l.b16 %v739
      %v790 = vunpack.c.l.b16 %v740
      %v791 = vunpack.c.l.b16 %v741
      %v792 = vunpack.c.l.b16 %v742
      %v793 = vunpack.c.l.b16 %v743
      %v794 = vunpack.c.l.b16 %v744
      %v795 = vunpack.c.l.b16 %v745
      %v796 = vunpack.c.l.b16 %v746
      %v797 = vunpack.c.l.b16 %v747
      %v798 = vunpack.c.l.b16 %v748
      %v799 = vunpack.c.l.b16 %v749
      %v800 = vunpack.c.l.b16 %v750
      %v801 = vpack.c.b16 %v786, %v785
      %v802 = vpack.c.b16 %v788, %v787
      %v803 = vpack.c.b16 %v790, %v789
      %v804 = vpack.c.b16 %v792, %v791
      %v805 = vpack.c.b16 %v794, %v793
      %v806 = vpack.c.b16 %v796, %v795
      %v807 = vpack.c.b16 %v798, %v797
      %v808 = vpack.c.b16 %v800, %v799
      %817 = vmatprep.subr.bf16.mxu0 0
      %818 = vmatpush1.bf16.msra.mxu0 %v808
      %819 = vmatprep.subr.bf16.mxu0 0
      %820 = vmatpush1.bf16.msra.mxu0 %v807
      %821 = vmatprep.subr.bf16.mxu0 0
      %822 = vmatpush1.bf16.msra.mxu0 %v806
      %823 = vmatprep.subr.bf16.mxu0 0
      %824 = vmatpush1.bf16.msra.mxu0 %v805
      %825 = vmatprep.subr.bf16.mxu0 0
      %826 = vmatpush1.bf16.msra.mxu0 %v804
      %827 = vmatprep.subr.bf16.mxu0 0
      %828 = vmatpush1.bf16.msra.mxu0 %v803
      %829 = vmatprep.subr.bf16.mxu0 0
      %830 = vmatpush1.bf16.msra.mxu0 %v802
      %831 = vmatprep.subr.bf16.mxu0 0
      %832 = vmatpush1.bf16.msra.mxu0 %v801
      %833 = vmatprep.subr.bf16.mxu0 0
      %834 = vmatpush2.bf16.msra.mxu0 0
      %835 = vmatprep.subr.bf16.mxu0 0
      %836 = vmatpush2.bf16.msra.mxu0 0
      %837 = vmatprep.subr.bf16.mxu0 0
      %838 = vmatpush2.bf16.msra.mxu0 0
      %839 = vmatprep.subr.bf16.mxu0 0
      %840 = vmatpush2.bf16.msra.mxu0 0
      %841 = vmatprep.subr.bf16.mxu0 0
      %842 = vmatpush2.bf16.msra.mxu0 0
      %843 = vmatprep.subr.bf16.mxu0 0
      %844 = vmatpush2.bf16.msra.mxu0 0
      %845 = vmatprep.subr.bf16.mxu0 0
      %846 = vmatpush2.bf16.msra.mxu0 0
      %847 = vmatprep.subr.bf16.mxu0 0
      %848 = vmatpush2.bf16.msra.mxu0 0
      %849 = vmatprep.mubr.bf16.mxu0 0
      %850 = vmatmul.mubr.bf16.gmra.mxu0 %v767
      %v851 = vpop.f32.mrf.mxu0
      %v852 = vadd.f32 0.0, %v851
      %v853 = vpop.f32.mrf.mxu0
      %v854 = vpop.f32.mrf.mxu0
      %v855 = vadd.f32 0.0, %v854
      %v856 = vpop.f32.mrf.mxu0
      %857 = vdwg.mxu0
      %v858 = vadd.f32 %v636, %v852
      %v859 = vadd.f32 %v637, %v855
      %vm860 = vcmp.ge.f32.partialorder %v858, 0.0
      %vm861 = vcmp.ge.f32.partialorder %v859, 0.0
      %v862 = vmul.f32 %v858, 0.2
      %v863 = vmul.f32 %v859, 0.2
      %v864 = vsel %vm860, %v858, %v862
      %v865 = vsel %vm861, %v859, %v863
      %v868 = vcombine.high %v864, %v864
      %v869 = vcombine.high %v865, %v865
      %v872 = vpack.c.bf16 %v864, %v864
      %v873 = vpack.c.bf16 %v868, %v868
      %v874 = vpack.c.bf16 %v865, %v865
      %v875 = vpack.c.bf16 %v869, %v869
      %vm876 = vcmask 517120
      %877 = vst.msk [vmem:[%s143] sm:$0x3] %vm876, %v872
      %878 = vst.msk [vmem:[%s143 + $0x2] sm:$0x3] %vm876, %v873
      %879 = vst.msk [vmem:[%s143 + $0x4] sm:$0x3] %vm876, %v874
      %880 = vst.msk [vmem:[%s143 + $0x6] sm:$0x3] %vm876, %v875
      %p881 = scmp.lt.s32.totalorder %s13, 1
      %s882 = scalar_select %p881, %s13, 1
      %s883 = smul.addr %s882, 4
      %s884 = smul.addr %s883, 2
      %s885 = scalar_lea.vmem %s2, %s884
      // Predicated region
      $region29: #{discriminator_forward.8} parent=27 // pred_check
        %p886 = pneg %p78
      $region30: #{discriminator_forward.8} parent=27 // pred_check_branch
        %888 = sbr.rel (%p886) target = $region32
      $region31: #{discriminator_forward.8} parent=27 // pred_region
        _
      $region32: #{discriminator_forward.8} parent=27 // pred_fallthru
        _
    $region28: #{discriminator_forward.8} parent=5 // pred_fallthru
      _
    %p889 = scmp.le.s32.totalorder 2, %s8
    // Predicated region
    $region33: #{discriminator_forward.8} parent=5 // pred_check
      %p890 = pneg %p889
    $region34: #{discriminator_forward.8} parent=5 // pred_check_branch
      %892 = sbr.rel (%p890) target = $region36
    $region35: #{discriminator_forward.8} parent=5 // pred_region
      %s893 = ssub.s32 %s8, 2
      // Predicated region
      $region37: #{discriminator_forward.8} parent=35 // pred_check
        %p894 = pneg %p84
      $region38: #{discriminator_forward.8} parent=35 // pred_check_branch
        %896 = sbr.rel (%p894) target = $region40
      $region39: #{discriminator_forward.8} parent=35 // pred_region
        %p897 = scmp.lt.s32.totalorder %s14, 1
        %s898 = scalar_select %p897, %s14, 1
        %s899 = smul.addr %s898, 4
        %s900 = smul.addr %s899, 2
        %s901 = scalar_lea.vmem %s2, %s900
      $region40: #{discriminator_forward.8} parent=35 // pred_fallthru
        _
    $region36: #{discriminator_forward.8} parent=5 // pred_fallthru
      _
  $region6: #{discriminator_forward.8} parent=0 // loop_footer
    %s12 = sadd.s32 1, %s8
  $region7: #{discriminator_forward.8} parent=0 // loop_footer_branch
    %7 = sbr.rel target = $region3
  $region8: #{discriminator_forward.8} parent=0 // loop_exit
    _

</llo_original>
